<compile_context>
chip_gen: v6e
topology: v6e:2x2x1
jax: 0.10.0
libtpu: 0.0.40
codegen_flags: <defaults>
</compile_context>

<pallas_src>
import functools

import jax
import jax.numpy as jnp
import numpy as np
from jax import lax
from jax.experimental import pallas as pl
from jax.experimental.pallas import tpu as pltpu


# ----------------------------- fused Pallas kernel -------------------------- #

def _fused_kernel(x_ref, w1_ref, w2_ref, g_ref, b_ref, w3_ref, bl_ref,
                  o_ref, y_ref, *, alpha1, alpha2, eps):
    t = pl.program_id(0)
    tb = x_ref.shape[0]            # samples per batch tile
    n = y_ref.shape[0]             # full batch

    # ---- conv1 (spatial unrolling folded into packed weight) + LeakyReLU(0.2)
    h1 = jnp.dot(x_ref[...], w1_ref[...], preferred_element_type=jnp.float32)
    h1 = jnp.where(h1 > 0, h1, alpha1 * h1)                        # (tb, 2048) f32

    # ---- conv2 (block-Toeplitz packed weight; pad=1 taps simply absent) -----
    y = jnp.dot(h1.astype(w2_ref.dtype), w2_ref[...],
                preferred_element_type=jnp.float32)                # (tb, 1024) f32

    # Stash this tile's pre-BN activations: BatchNorm needs batch-global stats.
    row0 = pl.multiple_of(t * tb, tb)
    y_ref[pl.ds(row0, tb), :] = y

    # ---- last tile: batch-global BatchNorm + LeakyReLU(0.1) + folded head ---
    @pl.when(t == pl.num_programs(0) - 1)
    def _():
        yb = y_ref[...]                                            # (n, 1024)
        inv_cnt = 1.0 / (n * 16)                                   # N*H*W per channel

        # lane layout of y: lane = oh*256 + ow*64 + oc  (oh,ow in 0..3, oc in 0..63)
        def per_channel(v):          # (1, 1024) -> (1, 64): fold 16 (oh,ow) groups
            acc = v[:, 0:64]
            for g in range(1, 16):
                acc = acc + v[:, g * 64:(g + 1) * 64]
            return acc

        def tile_lanes(v):           # (1, 64) -> (1, 1024): broadcast back per group
            return jnp.concatenate([v] * 16, axis=1)

        mean = per_channel(jnp.sum(yb, axis=0, keepdims=True)) * inv_cnt
        d = yb - tile_lanes(mean)
        var = per_channel(jnp.sum(d * d, axis=0, keepdims=True)) * inv_cnt
        scale = tile_lanes(g_ref[...] * lax.rsqrt(var + eps))
        shift = tile_lanes(b_ref[...])
        h2 = d * scale + shift
        h2 = jnp.where(h2 > 0, h2, alpha2 * h2)                    # (n, 1024) f32

        # conv3 output is 1x1, so conv3 + Flatten + Linear(20,1) collapse to a
        # single lane reduction against the pre-folded (1, 1024) weight vector.
        z = jnp.sum(h2 * w3_ref[...], axis=1, keepdims=True) + bl_ref[...]  # (n, 1)
        o_ref[...] = jax.nn.sigmoid(z)


# -------------------------- one-time weight packing -------------------------- #

def pack_params(params, mxu_dtype=jnp.bfloat16):
    """Host-side, once: fold every spatial shuffle into packed weight matrices."""
    w1 = np.asarray(params["w1"], np.float32)        # (32, 1, 4, 4)
    w2 = np.asarray(params["w2"], np.float32)        # (64, 32, 4, 4)
    w3 = np.asarray(params["w3"], np.float32)        # (20, 64, 4, 4)
    wl = np.asarray(params["wl"], np.float32)        # (1, 20)
    bl = np.asarray(params["bl"], np.float32)        # (1,)

    # conv1 (k=4, s=2, p=0) folded into one (324, 2048) matmul:
    #   W1[(2*oh+i)*18 + (2*ow+j), oh*256 + ow*32 + c] = w1[c, 0, i, j]
    W1 = np.zeros((18 * 18, 8 * 8 * 32), np.float32)
    for oh in range(8):
        for ow in range(8):
            for i in range(4):
                for j in range(4):
                    W1[(2 * oh + i) * 18 + (2 * ow + j),
                       oh * 256 + ow * 32:oh * 256 + ow * 32 + 32] = w1[:, 0, i, j]

    # conv2 (k=4, s=2, p=1) folded into one (2048, 1024) block-sparse matmul;
    # taps that fall on the zero padding simply have no rows.
    #   W2[ih*256 + iw*32 + c, oh*256 + ow*64 + oc] = w2[oc, c, ih+1-2*oh, iw+1-2*ow]
    W2 = np.zeros((8 * 8 * 32, 4 * 4 * 64), np.float32)
    for oh in range(4):
        for ow in range(4):
            for i in range(4):
                for j in range(4):
                    ih, iw = 2 * oh + i - 1, 2 * ow + j - 1
                    if 0 <= ih < 8 and 0 <= iw < 8:
                        W2[ih * 256 + iw * 32:ih * 256 + iw * 32 + 32,
                           oh * 256 + ow * 64:oh * 256 + ow * 64 + 64] = w2[:, :, i, j].T

    # conv3 (1x1 output) folded with Linear(20, 1):
    #   w3h[0, kh*256 + kw*64 + oc] = sum_o wl[0, o] * w3[o, oc, kh, kw]
    w3h = np.einsum("o,ochw->hwc", wl[0], w3).reshape(1, 4 * 4 * 64)

    return dict(
        w1=jnp.asarray(W1, mxu_dtype),
        w2=jnp.asarray(W2, mxu_dtype),
        gamma=jnp.asarray(params["gamma2"], jnp.float32).reshape(1, 64),
        beta=jnp.asarray(params["beta2"], jnp.float32).reshape(1, 64),
        w3h=jnp.asarray(w3h, jnp.float32),
        bl=jnp.asarray(bl, jnp.float32).reshape(1, 1),
    )


# ------------------------------ pallas_call glue ----------------------------- #

def _pick_batch_tile(n, max_tile):
    """Largest tile <= max_tile that divides n; prefer multiples of 8 (sublane)."""
    if n <= max_tile:
        return n
    t = max_tile - max_tile % 8
    while t >= 8:
        if n % t == 0:
            return t
        t -= 8
    return n


@functools.partial(jax.jit, static_argnames=("batch_tile",))
def dcgan_netD_fc_forward(x, packed, batch_tile=256):
    n = x.shape[0]
    if x.shape[1:] != (1, 18, 18):
        raise ValueError("dcgan_netD_fc expects (N, 1, 18, 18) inputs")
    mxu_dtype = packed["w1"].dtype
    xf = x.reshape(n, 18 * 18).astype(mxu_dtype)       # only wrapper-side prep

    tb = _pick_batch_tile(n, batch_tile)
    n_tiles = n // tb

    kernel = functools.partial(_fused_kernel, alpha1=0.2, alpha2=0.1, eps=1e-5)

    itemsize = mxu_dtype.itemsize
    vmem_bytes = int(packed["w1"].size * itemsize          # resident packed conv1
                     + packed["w2"].size * itemsize        # resident packed conv2
                     + n * 1024 * 4                        # resident pre-BN activations
                     + 2 * tb * 324 * itemsize             # double-buffered input tiles
                     + (8 << 20))                          # misc + headroom

    out = pl.pallas_call(
        kernel,
        grid=(n_tiles,),
        in_specs=[
            pl.BlockSpec((tb, 18 * 18), lambda t: (t, 0)),   # x tile (pipelined)
            pl.BlockSpec((18 * 18, 2048), lambda t: (0, 0)),  # packed conv1 (resident)
            pl.BlockSpec((2048, 1024), lambda t: (0, 0)),     # packed conv2 (resident)
            pl.BlockSpec((1, 64), lambda t: (0, 0)),          # BN gamma
            pl.BlockSpec((1, 64), lambda t: (0, 0)),          # BN beta
            pl.BlockSpec((1, 1024), lambda t: (0, 0)),        # folded conv3+linear
            pl.BlockSpec((1, 1), lambda t: (0, 0)),           # linear bias
        ],
        out_specs=pl.BlockSpec((n, 1), lambda t: (0, 0)),     # resident, written once
        out_shape=jax.ShapeDtypeStruct((n, 1), jnp.float32),
        scratch_shapes=[pltpu.VMEM((n, 1024), jnp.float32)],  # pre-BN conv2 output
        compiler_params=pltpu.CompilerParams(
            # Sequential: BN statistics are batch-global, accumulated across tiles.
            dimension_semantics=("arbitrary",),
            vmem_limit_bytes=vmem_bytes),
    )(xf, packed["w1"], packed["w2"], packed["gamma"], packed["beta"],
      packed["w3h"], packed["bl"])

    # output.view(-1, 1).squeeze(1)
    return out[:, 0]


# ------------------------------ pure-JAX reference --------------------------- #

def _reference(x, params):
    dn = ("NCHW", "OIHW", "NCHW")
    hi = lax.Precision.HIGHEST
    h = lax.conv_general_dilated(x, params["w1"], (2, 2), "VALID",
                                 dimension_numbers=dn, precision=hi)
    h = jnp.where(h > 0, h, 0.2 * h)
    h = lax.conv_general_dilated(h, params["w2"], (2, 2), ((1, 1), (1, 1)),
                                 dimension_numbers=dn, precision=hi)
    mean = h.mean(axis=(0, 2, 3), keepdims=True)
    var = ((h - mean) ** 2).mean(axis=(0, 2, 3), keepdims=True)
    h = (h - mean) * lax.rsqrt(var + 1e-5)
    h = h * params["gamma2"].reshape(1, 64, 1, 1) + params["beta2"].reshape(1, 64, 1, 1)
    h = jnp.where(h > 0, h, 0.1 * h)
    h = lax.conv_general_dilated(h, params["w3"], (1, 1), "VALID",
                                 dimension_numbers=dn, precision=hi)
    h = h.reshape(h.shape[0], -1)                              # (N, 20)
    z = h @ params["wl"].T + params["bl"]
    return jax.nn.sigmoid(z)[:, 0]


# ------------------------------------ main ----------------------------------- #

if __name__ == "__main__":
    key = jax.random.PRNGKey(0)
    kx, k1, k2, k3, k4, k5, k6, k7 = jax.random.split(key, 8)
    n = 16
    # Input spatial size must be 18x18 so conv3 output is (N, 20, 1, 1).
    x = jax.random.normal(kx, (n, 1, 18, 18), jnp.float32)
    params = dict(
        w1=0.10 * jax.random.normal(k1, (32, 1, 4, 4), jnp.float32),
        w2=0.05 * jax.random.normal(k2, (64, 32, 4, 4), jnp.float32),
        gamma2=1.0 + 0.1 * jax.random.normal(k6, (64,), jnp.float32),
        beta2=0.1 * jax.random.normal(k7, (64,), jnp.float32),
        w3=0.05 * jax.random.normal(k3, (20, 64, 4, 4), jnp.float32),
        wl=0.20 * jax.random.normal(k4, (1, 20), jnp.float32),
        bl=0.10 * jax.random.normal(k5, (1,), jnp.float32),
    )

    packed = pack_params(params)                  # one-time weight re-packing (bf16 MXU)
    # batch_tile=8 -> two grid steps, exercising the pipelined multi-tile path.
    out = jax.block_until_ready(dcgan_netD_fc_forward(x, packed, batch_tile=8))
    assert out.shape == (n,)

    ref = _reference(x, params)
    # bf16 MXU inputs (f32 accumulation, f32 BN/head) cost a few 1e-3 absolute
    # in the final sigmoid output vs. the f32 reference; 2e-2 leaves >4x margin.
    np.testing.assert_allclose(np.asarray(out), np.asarray(ref), rtol=2e-2, atol=2e-2)

    print("KERNEL_OK")
</pallas_src>

<mosaic_0001>
module attributes {stable_mosaic.version = 11 : i64} {
  func.func @_fused_kernel(%arg0: i32, %arg1: memref<8x324xbf16, #tpu.memory_space<vmem>>, %arg2: memref<324x2048xbf16, #tpu.memory_space<vmem>>, %arg3: memref<2048x1024xbf16, #tpu.memory_space<vmem>>, %arg4: memref<1x64xf32, #tpu.memory_space<vmem>>, %arg5: memref<1x64xf32, #tpu.memory_space<vmem>>, %arg6: memref<1x1024xf32, #tpu.memory_space<vmem>>, %arg7: memref<1x1xf32, #tpu.memory_space<vmem>>, %arg8: memref<16x1xf32, #tpu.memory_space<vmem>>, %arg9: memref<16x1024xf32, #tpu.memory_space<vmem>>) attributes {dimension_semantics = [#tpu.dimension_semantics<arbitrary>], iteration_bounds = array<i64: 2>, scalar_prefetch = 0 : i64, scratch_operands = 1 : i64, tpu.core_type = #tpu.core_type<tc>, window_params = [{transform_indices = @transform_0, window_bounds = array<i64: 8, 324>}, {pipeline_mode = #tpu.pipeline_mode<synchronous>, transform_indices = @transform_1, window_bounds = array<i64: 324, 2048>}, {pipeline_mode = #tpu.pipeline_mode<synchronous>, transform_indices = @transform_2, window_bounds = array<i64: 2048, 1024>}, {pipeline_mode = #tpu.pipeline_mode<synchronous>, transform_indices = @transform_3, window_bounds = array<i64: 1, 64>}, {pipeline_mode = #tpu.pipeline_mode<synchronous>, transform_indices = @transform_4, window_bounds = array<i64: 1, 64>}, {pipeline_mode = #tpu.pipeline_mode<synchronous>, transform_indices = @transform_5, window_bounds = array<i64: 1, 1024>}, {pipeline_mode = #tpu.pipeline_mode<synchronous>, transform_indices = @transform_6, window_bounds = array<i64: 1, 1>}, {pipeline_mode = #tpu.pipeline_mode<synchronous>, transform_indices = @transform_7, window_bounds = array<i64: 16, 1>}]} {
    %c0 = arith.constant 0 : index
    %c0_0 = arith.constant 0 : index
    %0 = vector.load %arg1[%c0, %c0_0] : memref<8x324xbf16, #tpu.memory_space<vmem>>, vector<8x324xbf16>
    %c0_1 = arith.constant 0 : index
    %c0_2 = arith.constant 0 : index
    %1 = vector.load %arg2[%c0_1, %c0_2] : memref<324x2048xbf16, #tpu.memory_space<vmem>>, vector<324x2048xbf16>
    %cst = arith.constant dense<0.000000e+00> : vector<8x2048xf32>
    %2 = tpu.matmul %0, %1, %cst {dimension_numbers = #tpu.dot_dimension_numbers<[1], [0], [0], [1], [0, 0, 1, 1], [], []>} : vector<8x324xbf16>, vector<324x2048xbf16>, vector<8x2048xf32> -> vector<8x2048xf32>
    %cst_3 = arith.constant 0.000000e+00 : f32
    %3 = vector.broadcast %cst_3 : f32 to vector<8x2048xf32>
    %4 = arith.cmpf ogt, %2, %3 : vector<8x2048xf32>
    %cst_4 = arith.constant 2.000000e-01 : f32
    %5 = vector.broadcast %cst_4 : f32 to vector<8x2048xf32>
    %6 = arith.mulf %5, %2 : vector<8x2048xf32>
    %7 = arith.select %4, %2, %6 : vector<8x2048xi1>, vector<8x2048xf32>
    %8 = arith.truncf %7 : vector<8x2048xf32> to vector<8x2048xbf16>
    %c0_5 = arith.constant 0 : index
    %c0_6 = arith.constant 0 : index
    %9 = vector.load %arg3[%c0_5, %c0_6] : memref<2048x1024xbf16, #tpu.memory_space<vmem>>, vector<2048x1024xbf16>
    %cst_7 = arith.constant dense<0.000000e+00> : vector<8x1024xf32>
    %10 = tpu.matmul %8, %9, %cst_7 {dimension_numbers = #tpu.dot_dimension_numbers<[1], [0], [0], [1], [0, 0, 1, 1], [], []>} : vector<8x2048xbf16>, vector<2048x1024xbf16>, vector<8x1024xf32> -> vector<8x1024xf32>
    %c8_i32 = arith.constant 8 : i32
    %11 = arith.muli %arg0, %c8_i32 : i32
    %12 = tpu.assume_multiple %11, 8 : i32
    %13 = arith.index_cast %12 : i32 to index
    %c0_8 = arith.constant 0 : index
    %14 = vector.load %arg9[%13, %c0_8] : memref<16x1024xf32, #tpu.memory_space<vmem>>, vector<8x1024xf32>
    tpu.vector_store %arg9[%13, %c0_8], %10 {strides = array<i32>} : memref<16x1024xf32, #tpu.memory_space<vmem>>, vector<8x1024xf32>,
    %c1_i32 = arith.constant 1 : i32
    %15 = arith.cmpi eq, %arg0, %c1_i32 : i32
    %16 = arith.extui %15 : i1 to i32
    %c0_i32 = arith.constant 0 : i32
    %17 = arith.cmpi ne, %16, %c0_i32 : i32
    scf.if %17 {
      %c0_9 = arith.constant 0 : index
      %c0_10 = arith.constant 0 : index
      %18 = vector.load %arg9[%c0_9, %c0_10] : memref<16x1024xf32, #tpu.memory_space<vmem>>, vector<16x1024xf32>
      %cst_11 = arith.constant dense<0.000000e+00> : vector<1024xf32>
      %19 = vector.multi_reduction <add>, %18, %cst_11 [0] : vector<16x1024xf32> to vector<1024xf32>
      %20 = vector.shape_cast %19 : vector<1024xf32> to vector<1x1024xf32>
      %21 = vector.extract_strided_slice %20 {offsets = [0, 0], sizes = [1, 64], strides = [1, 1]} : vector<1x1024xf32> to vector<1x64xf32>
      %22 = vector.extract_strided_slice %20 {offsets = [0, 64], sizes = [1, 64], strides = [1, 1]} : vector<1x1024xf32> to vector<1x64xf32>
      %23 = arith.addf %21, %22 : vector<1x64xf32>
      %24 = vector.extract_strided_slice %20 {offsets = [0, 128], sizes = [1, 64], strides = [1, 1]} : vector<1x1024xf32> to vector<1x64xf32>
      %25 = arith.addf %23, %24 : vector<1x64xf32>
      %26 = vector.extract_strided_slice %20 {offsets = [0, 192], sizes = [1, 64], strides = [1, 1]} : vector<1x1024xf32> to vector<1x64xf32>
      %27 = arith.addf %25, %26 : vector<1x64xf32>
      %28 = vector.extract_strided_slice %20 {offsets = [0, 256], sizes = [1, 64], strides = [1, 1]} : vector<1x1024xf32> to vector<1x64xf32>
      %29 = arith.addf %27, %28 : vector<1x64xf32>
      %30 = vector.extract_strided_slice %20 {offsets = [0, 320], sizes = [1, 64], strides = [1, 1]} : vector<1x1024xf32> to vector<1x64xf32>
      %31 = arith.addf %29, %30 : vector<1x64xf32>
      %32 = vector.extract_strided_slice %20 {offsets = [0, 384], sizes = [1, 64], strides = [1, 1]} : vector<1x1024xf32> to vector<1x64xf32>
      %33 = arith.addf %31, %32 : vector<1x64xf32>
      %34 = vector.extract_strided_slice %20 {offsets = [0, 448], sizes = [1, 64], strides = [1, 1]} : vector<1x1024xf32> to vector<1x64xf32>
      %35 = arith.addf %33, %34 : vector<1x64xf32>
      %36 = vector.extract_strided_slice %20 {offsets = [0, 512], sizes = [1, 64], strides = [1, 1]} : vector<1x1024xf32> to vector<1x64xf32>
      %37 = arith.addf %35, %36 : vector<1x64xf32>
      %38 = vector.extract_strided_slice %20 {offsets = [0, 576], sizes = [1, 64], strides = [1, 1]} : vector<1x1024xf32> to vector<1x64xf32>
      %39 = arith.addf %37, %38 : vector<1x64xf32>
      %40 = vector.extract_strided_slice %20 {offsets = [0, 640], sizes = [1, 64], strides = [1, 1]} : vector<1x1024xf32> to vector<1x64xf32>
      %41 = arith.addf %39, %40 : vector<1x64xf32>
      %42 = vector.extract_strided_slice %20 {offsets = [0, 704], sizes = [1, 64], strides = [1, 1]} : vector<1x1024xf32> to vector<1x64xf32>
      %43 = arith.addf %41, %42 : vector<1x64xf32>
      %44 = vector.extract_strided_slice %20 {offsets = [0, 768], sizes = [1, 64], strides = [1, 1]} : vector<1x1024xf32> to vector<1x64xf32>
      %45 = arith.addf %43, %44 : vector<1x64xf32>
      %46 = vector.extract_strided_slice %20 {offsets = [0, 832], sizes = [1, 64], strides = [1, 1]} : vector<1x1024xf32> to vector<1x64xf32>
      %47 = arith.addf %45, %46 : vector<1x64xf32>
      %48 = vector.extract_strided_slice %20 {offsets = [0, 896], sizes = [1, 64], strides = [1, 1]} : vector<1x1024xf32> to vector<1x64xf32>
      %49 = arith.addf %47, %48 : vector<1x64xf32>
      %50 = vector.extract_strided_slice %20 {offsets = [0, 960], sizes = [1, 64], strides = [1, 1]} : vector<1x1024xf32> to vector<1x64xf32>
      %51 = arith.addf %49, %50 : vector<1x64xf32>
      %cst_12 = arith.constant 3.906250e-03 : f32
      %52 = vector.broadcast %cst_12 : f32 to vector<1x64xf32>
      %53 = arith.mulf %51, %52 : vector<1x64xf32>
      %54 = tpu.concatenate %53, %53, %53, %53, %53, %53, %53, %53, %53, %53, %53, %53, %53, %53, %53, %53 in 1 : vector<1x64xf32>, vector<1x64xf32>, vector<1x64xf32>, vector<1x64xf32>, vector<1x64xf32>, vector<1x64xf32>, vector<1x64xf32>, vector<1x64xf32>, vector<1x64xf32>, vector<1x64xf32>, vector<1x64xf32>, vector<1x64xf32>, vector<1x64xf32>, vector<1x64xf32>, vector<1x64xf32>, vector<1x64xf32> -> vector<1x1024xf32>
      %55 = vector.broadcast %54 : vector<1x1024xf32> to vector<16x1024xf32>
      %56 = arith.subf %18, %55 : vector<16x1024xf32>
      %57 = arith.mulf %56, %56 : vector<16x1024xf32>
      %cst_13 = arith.constant dense<0.000000e+00> : vector<1024xf32>
      %58 = vector.multi_reduction <add>, %57, %cst_13 [0] : vector<16x1024xf32> to vector<1024xf32>
      %59 = vector.shape_cast %58 : vector<1024xf32> to vector<1x1024xf32>
      %60 = vector.extract_strided_slice %59 {offsets = [0, 0], sizes = [1, 64], strides = [1, 1]} : vector<1x1024xf32> to vector<1x64xf32>
      %61 = vector.extract_strided_slice %59 {offsets = [0, 64], sizes = [1, 64], strides = [1, 1]} : vector<1x1024xf32> to vector<1x64xf32>
      %62 = arith.addf %60, %61 : vector<1x64xf32>
      %63 = vector.extract_strided_slice %59 {offsets = [0, 128], sizes = [1, 64], strides = [1, 1]} : vector<1x1024xf32> to vector<1x64xf32>
      %64 = arith.addf %62, %63 : vector<1x64xf32>
      %65 = vector.extract_strided_slice %59 {offsets = [0, 192], sizes = [1, 64], strides = [1, 1]} : vector<1x1024xf32> to vector<1x64xf32>
      %66 = arith.addf %64, %65 : vector<1x64xf32>
      %67 = vector.extract_strided_slice %59 {offsets = [0, 256], sizes = [1, 64], strides = [1, 1]} : vector<1x1024xf32> to vector<1x64xf32>
      %68 = arith.addf %66, %67 : vector<1x64xf32>
      %69 = vector.extract_strided_slice %59 {offsets = [0, 320], sizes = [1, 64], strides = [1, 1]} : vector<1x1024xf32> to vector<1x64xf32>
      %70 = arith.addf %68, %69 : vector<1x64xf32>
      %71 = vector.extract_strided_slice %59 {offsets = [0, 384], sizes = [1, 64], strides = [1, 1]} : vector<1x1024xf32> to vector<1x64xf32>
      %72 = arith.addf %70, %71 : vector<1x64xf32>
      %73 = vector.extract_strided_slice %59 {offsets = [0, 448], sizes = [1, 64], strides = [1, 1]} : vector<1x1024xf32> to vector<1x64xf32>
      %74 = arith.addf %72, %73 : vector<1x64xf32>
      %75 = vector.extract_strided_slice %59 {offsets = [0, 512], sizes = [1, 64], strides = [1, 1]} : vector<1x1024xf32> to vector<1x64xf32>
      %76 = arith.addf %74, %75 : vector<1x64xf32>
      %77 = vector.extract_strided_slice %59 {offsets = [0, 576], sizes = [1, 64], strides = [1, 1]} : vector<1x1024xf32> to vector<1x64xf32>
      %78 = arith.addf %76, %77 : vector<1x64xf32>
      %79 = vector.extract_strided_slice %59 {offsets = [0, 640], sizes = [1, 64], strides = [1, 1]} : vector<1x1024xf32> to vector<1x64xf32>
      %80 = arith.addf %78, %79 : vector<1x64xf32>
      %81 = vector.extract_strided_slice %59 {offsets = [0, 704], sizes = [1, 64], strides = [1, 1]} : vector<1x1024xf32> to vector<1x64xf32>
      %82 = arith.addf %80, %81 : vector<1x64xf32>
      %83 = vector.extract_strided_slice %59 {offsets = [0, 768], sizes = [1, 64], strides = [1, 1]} : vector<1x1024xf32> to vector<1x64xf32>
      %84 = arith.addf %82, %83 : vector<1x64xf32>
      %85 = vector.extract_strided_slice %59 {offsets = [0, 832], sizes = [1, 64], strides = [1, 1]} : vector<1x1024xf32> to vector<1x64xf32>
      %86 = arith.addf %84, %85 : vector<1x64xf32>
      %87 = vector.extract_strided_slice %59 {offsets = [0, 896], sizes = [1, 64], strides = [1, 1]} : vector<1x1024xf32> to vector<1x64xf32>
      %88 = arith.addf %86, %87 : vector<1x64xf32>
      %89 = vector.extract_strided_slice %59 {offsets = [0, 960], sizes = [1, 64], strides = [1, 1]} : vector<1x1024xf32> to vector<1x64xf32>
      %90 = arith.addf %88, %89 : vector<1x64xf32>
      %cst_14 = arith.constant 3.906250e-03 : f32
      %91 = vector.broadcast %cst_14 : f32 to vector<1x64xf32>
      %92 = arith.mulf %90, %91 : vector<1x64xf32>
      %c0_15 = arith.constant 0 : index
      %c0_16 = arith.constant 0 : index
      %93 = vector.load %arg4[%c0_15, %c0_16] : memref<1x64xf32, #tpu.memory_space<vmem>>, vector<1x64xf32>
      %cst_17 = arith.constant 9.99999974E-6 : f32
      %94 = vector.broadcast %cst_17 : f32 to vector<1x64xf32>
      %95 = arith.addf %92, %94 : vector<1x64xf32>
      %96 = math.rsqrt %95 : vector<1x64xf32>
      %97 = arith.mulf %93, %96 : vector<1x64xf32>
      %98 = tpu.concatenate %97, %97, %97, %97, %97, %97, %97, %97, %97, %97, %97, %97, %97, %97, %97, %97 in 1 : vector<1x64xf32>, vector<1x64xf32>, vector<1x64xf32>, vector<1x64xf32>, vector<1x64xf32>, vector<1x64xf32>, vector<1x64xf32>, vector<1x64xf32>, vector<1x64xf32>, vector<1x64xf32>, vector<1x64xf32>, vector<1x64xf32>, vector<1x64xf32>, vector<1x64xf32>, vector<1x64xf32>, vector<1x64xf32> -> vector<1x1024xf32>
      %c0_18 = arith.constant 0 : index
      %c0_19 = arith.constant 0 : index
      %99 = vector.load %arg5[%c0_18, %c0_19] : memref<1x64xf32, #tpu.memory_space<vmem>>, vector<1x64xf32>
      %100 = tpu.concatenate %99, %99, %99, %99, %99, %99, %99, %99, %99, %99, %99, %99, %99, %99, %99, %99 in 1 : vector<1x64xf32>, vector<1x64xf32>, vector<1x64xf32>, vector<1x64xf32>, vector<1x64xf32>, vector<1x64xf32>, vector<1x64xf32>, vector<1x64xf32>, vector<1x64xf32>, vector<1x64xf32>, vector<1x64xf32>, vector<1x64xf32>, vector<1x64xf32>, vector<1x64xf32>, vector<1x64xf32>, vector<1x64xf32> -> vector<1x1024xf32>
      %101 = vector.broadcast %98 : vector<1x1024xf32> to vector<16x1024xf32>
      %102 = arith.mulf %56, %101 : vector<16x1024xf32>
      %103 = vector.broadcast %100 : vector<1x1024xf32> to vector<16x1024xf32>
      %104 = arith.addf %102, %103 : vector<16x1024xf32>
      %cst_20 = arith.constant 0.000000e+00 : f32
      %105 = vector.broadcast %cst_20 : f32 to vector<16x1024xf32>
      %106 = arith.cmpf ogt, %104, %105 : vector<16x1024xf32>
      %cst_21 = arith.constant 1.000000e-01 : f32
      %107 = vector.broadcast %cst_21 : f32 to vector<16x1024xf32>
      %108 = arith.mulf %107, %104 : vector<16x1024xf32>
      %109 = arith.select %106, %104, %108 : vector<16x1024xi1>, vector<16x1024xf32>
      %c0_22 = arith.constant 0 : index
      %c0_23 = arith.constant 0 : index
      %110 = vector.load %arg6[%c0_22, %c0_23] : memref<1x1024xf32, #tpu.memory_space<vmem>>, vector<1x1024xf32>
      %111 = vector.broadcast %110 : vector<1x1024xf32> to vector<16x1024xf32>
      %112 = arith.mulf %109, %111 : vector<16x1024xf32>
      %cst_24 = arith.constant dense<0.000000e+00> : vector<16xf32>
      %113 = vector.multi_reduction <add>, %112, %cst_24 [1] : vector<16x1024xf32> to vector<16xf32>
      %114 = vector.shape_cast %113 : vector<16xf32> to vector<16x1xf32>
      %c0_25 = arith.constant 0 : index
      %c0_26 = arith.constant 0 : index
      %115 = vector.load %arg7[%c0_25, %c0_26] : memref<1x1xf32, #tpu.memory_space<vmem>>, vector<1x1xf32>
      %116 = vector.broadcast %115 : vector<1x1xf32> to vector<16x1xf32>
      %117 = arith.addf %114, %116 : vector<16x1xf32>
      %118 = arith.negf %117 : vector<16x1xf32>
      %119 = math.exp %118 : vector<16x1xf32>
      %cst_27 = arith.constant 1.000000e+00 : f32
      %120 = vector.broadcast %cst_27 : f32 to vector<16x1xf32>
      %121 = arith.addf %120, %119 : vector<16x1xf32>
      %122 = arith.divf %120, %121 : vector<16x1xf32>
      %c0_28 = arith.constant 0 : index
      %c0_29 = arith.constant 0 : index
      %123 = vector.load %arg8[%c0_28, %c0_29] : memref<16x1xf32, #tpu.memory_space<vmem>>, vector<16x1xf32>
      tpu.vector_store %arg8[%c0_28, %c0_29], %122 {strides = array<i32>} : memref<16x1xf32, #tpu.memory_space<vmem>>, vector<16x1xf32>,
    } else {
    }
    return
  }
  func.func @transform_0(%arg0: i32) -> (i32, i32) {
    %c0_i32 = arith.constant 0 : i32
    %c0_i32_0 = arith.constant 0 : i32
    return %arg0, %c0_i32 : i32, i32
  }
  func.func @transform_1(%arg0: i32) -> (i32, i32) {
    %c0_i32 = arith.constant 0 : i32
    %c0_i32_0 = arith.constant 0 : i32
    %c0_i32_1 = arith.constant 0 : i32
    return %c0_i32, %c0_i32_0 : i32, i32
  }
  func.func @transform_2(%arg0: i32) -> (i32, i32) {
    %c0_i32 = arith.constant 0 : i32
    %c0_i32_0 = arith.constant 0 : i32
    %c0_i32_1 = arith.constant 0 : i32
    return %c0_i32, %c0_i32_0 : i32, i32
  }
  func.func @transform_3(%arg0: i32) -> (i32, i32) {
    %c0_i32 = arith.constant 0 : i32
    %c0_i32_0 = arith.constant 0 : i32
    %c0_i32_1 = arith.constant 0 : i32
    return %c0_i32, %c0_i32_0 : i32, i32
  }
  func.func @transform_4(%arg0: i32) -> (i32, i32) {
    %c0_i32 = arith.constant 0 : i32
    %c0_i32_0 = arith.constant 0 : i32
    %c0_i32_1 = arith.constant 0 : i32
    return %c0_i32, %c0_i32_0 : i32, i32
  }
  func.func @transform_5(%arg0: i32) -> (i32, i32) {
    %c0_i32 = arith.constant 0 : i32
    %c0_i32_0 = arith.constant 0 : i32
    %c0_i32_1 = arith.constant 0 : i32
    return %c0_i32, %c0_i32_0 : i32, i32
  }
  func.func @transform_6(%arg0: i32) -> (i32, i32) {
    %c0_i32 = arith.constant 0 : i32
    %c0_i32_0 = arith.constant 0 : i32
    %c0_i32_1 = arith.constant 0 : i32
    return %c0_i32, %c0_i32_0 : i32, i32
  }
  func.func @transform_7(%arg0: i32) -> (i32, i32) {
    %c0_i32 = arith.constant 0 : i32
    %c0_i32_0 = arith.constant 0 : i32
    %c0_i32_1 = arith.constant 0 : i32
    return %c0_i32, %c0_i32_0 : i32, i32
  }
}

</mosaic_0001>

<llo_original>
// kernel: dcgan_netD_fc_forward.1
$region0: #{dcgan_netD_fc_forward.1}
  #allocation0 [shape = 'u32[]', space=smem, size = 0x4, offset = 0x4, fixed_abs, tag = 'smem constant byte address 0x4 - core index']
  #allocation1 [shape = 'u32[144,128]{1,0:T(1,128)}', space=vmem, size = 0x12000, scoped, tag = 'internal scratch']
  #allocation2 [shape = 'f32[16,1024]{1,0:T(8,128)}', space=vmem, size = 0x10000, scoped, tag = 'scratch operand']
  #allocation3 [shape = 'f32[1,1]{1,0:T(1,128)S(1)}', space=vmem, size = 0x200, scoped, tag = 'scoped memory for dcgan_netD_fc_forward.1']
  %s0 = inlined_call_operand.vmem [shape: bf16[16,324], index: 0, kind: input, shape index: {}]
  %s1 = inlined_call_operand.hbm [shape: bf16[324,2048], index: 1, kind: input, shape index: {}]
  %s2 = inlined_call_operand.hbm [shape: bf16[2048,1024], index: 2, kind: input, shape index: {}]
  %s3 = inlined_call_operand.hbm [shape: f32[1,64], index: 3, kind: input, shape index: {}]
  %s4 = inlined_call_operand.hbm [shape: f32[1,64], index: 4, kind: input, shape index: {}]
  %s5 = inlined_call_operand.hbm [shape: f32[1,1024], index: 5, kind: input, shape index: {}]
  %s6 = inlined_call_operand.<no memory space> [shape: f32[1,1], index: 6, kind: input, shape index: {}]
  %s7 = inlined_call_operand.vmem [shape: f32[16,1], index: 7, kind: output, shape index: {}]
  %s8 = sld [smem:[#allocation0]]
  $region85: #{dcgan_netD_fc_forward.1} parent=0
    _
  %s10 = ssub.s32 1, %s8
  %s11 = scalar_select 0, %s10, %s8
  %v12 = vstv %s6
  %13 = vst [vmem:[#allocation3] sm:$0x1] %v12
  $region1: #{dcgan_netD_fc_forward.1} parent=0
    #allocation4 [shape = 'u8[1343488]{0}', space=vmem, size = 0x148000, scoped, tag = 'input window, operand 1, single buffered']
    #allocation5 [shape = 's32[2]{0}', space=sflag, size = 0x8, scoped, tag = 'scoped memory for dcgan_netD_fc_forward.1']
    #allocation6 [shape = 'u8[4194304]{0}', space=vmem, size = 0x400000, scoped, tag = 'input window, operand 2, single buffered']
    #allocation7 [shape = 's32[1]{0}', space=sflag, size = 0x4, scoped, tag = 'scoped memory for dcgan_netD_fc_forward.1']
    #allocation8 [shape = 'u8[512]{0}', space=vmem, size = 0x400, scoped, tag = 'input window, operand 3, single buffered']
    #allocation9 [shape = 'u8[512]{0}', space=vmem, size = 0x400, scoped, tag = 'input window, operand 4, single buffered']
    #allocation10 [shape = 's32[1]{0}', space=sflag, size = 0x4, scoped, tag = 'scoped memory for dcgan_netD_fc_forward.1']
    #allocation11 [shape = 'u8[4096]{0}', space=vmem, size = 0x1000, scoped, tag = 'input window, operand 5, single buffered']
    %14 = vsyncpa [#allocation5], 0
    %15 = vsyncpa [#allocation7], 0
    %16 = vsyncpa [#allocation10], 0
    loop: start=0, step=1, limit=4
    $region2: #{dcgan_netD_fc_forward.1} parent=1 // loop_pre_header
      _
    $region3: #{dcgan_netD_fc_forward.1} parent=1 // loop_header
      %s18 = sphi 0, %s22
      %p19 = scmp.ge.s32.totalorder %s18, 4
      %s28 = sphi 0, %s30
      %s31 = sphi 0, %s28
      %s32 = sphi 0, %s31
      %s48 = sphi 0, %s32
      %s52 = sphi 0, %s52
      %s54 = sphi 0, %s52
      %s55 = sphi 0, %s54
      %s69 = sphi 0, %s55
      %s73 = sphi 0, %s73
      %s75 = sphi 0, %s73
      %s76 = sphi 0, %s75
      %s90 = sphi 0, %s76
      %s94 = sphi 0, %s94
      %s96 = sphi 0, %s94
      %s97 = sphi 0, %s96
      %s111 = sphi 0, %s97
      %s115 = sphi 0, %s115
      %s117 = sphi 0, %s115
      %s118 = sphi 0, %s117
      %s132 = sphi 0, %s118
      %s136 = sphi 0, %s136
      %s138 = sphi 0, %s136
      %s139 = sphi 0, %s138
      %s153 = sphi 0, %s139
      %s157 = sphi 0, %s157
      %s159 = sphi 0, %s157
      %s160 = sphi 0, %s159
      %s174 = sphi 0, %s160
      %s178 = sphi 0, %s178
      %s180 = sphi 0, %s178
      %s181 = sphi 0, %s180
      %s195 = sphi 0, %s181
    $region4: #{dcgan_netD_fc_forward.1} parent=1 // loop_header_branch
      %21 = sbr.rel (%p19) target = $region8
    $region5: #{dcgan_netD_fc_forward.1} parent=1 // loop_body
      %s23 = ssub.s32 %s18, 1
      %s24 = ssub.s32 %s18, 2
      %s25 = sadd.s32 %s18, 1
      %s26 = ssub.s32 %s18, %s25
      %p27 = scmp.eq.s32.totalorder %s26, 0
      %s29 = sadd.s32 %s28, 1
      %s30 = scalar_select %p27, %s28, %s29
      %p33 = pneg %p27
      %p34 = scmp.eq.s32.totalorder %s18, 1
      %p35 = por %p33, %p34
      %p36 = scmp.ne.s32.totalorder %s28, %s31
      %p37 = scmp.eq.s32.totalorder %s18, 0
      %p38 = por %p36, %p37
      %p39 = scmp.ne.s32.totalorder %s28, %s31
      %p40 = scmp.eq.s32.totalorder %s23, 1
      %p41 = por %p39, %p40
      %p42 = scmp.ne.s32.totalorder %s31, %s32
      %p43 = scmp.eq.s32.totalorder %s23, 0
      %p44 = por %p42, %p43
      %p45 = scmp.ne.s32.totalorder %s31, %s32
      %p46 = scmp.eq.s32.totalorder %s24, 1
      %p47 = por %p45, %p46
      %p49 = scmp.ne.s32.totalorder %s32, %s48
      %p50 = scmp.eq.s32.totalorder %s24, 0
      %p51 = por %p49, %p50
      %s53 = sadd.s32 %s52, 1
      %p56 = scmp.eq.s32.totalorder %s18, 1
      %p57 = scmp.ne.s32.totalorder %s52, %s54
      %p58 = scmp.eq.s32.totalorder %s18, 0
      %p59 = por %p57, %p58
      %p60 = scmp.ne.s32.totalorder %s52, %s54
      %p61 = scmp.eq.s32.totalorder %s23, 1
      %p62 = por %p60, %p61
      %p63 = scmp.ne.s32.totalorder %s54, %s55
      %p64 = scmp.eq.s32.totalorder %s23, 0
      %p65 = por %p63, %p64
      %p66 = scmp.ne.s32.totalorder %s54, %s55
      %p67 = scmp.eq.s32.totalorder %s24, 1
      %p68 = por %p66, %p67
      %p70 = scmp.ne.s32.totalorder %s55, %s69
      %p71 = scmp.eq.s32.totalorder %s24, 0
      %p72 = por %p70, %p71
      %s74 = sadd.s32 %s73, 1
      %p77 = scmp.eq.s32.totalorder %s18, 1
      %p78 = scmp.ne.s32.totalorder %s73, %s75
      %p79 = scmp.eq.s32.totalorder %s18, 0
      %p80 = por %p78, %p79
      %p81 = scmp.ne.s32.totalorder %s73, %s75
      %p82 = scmp.eq.s32.totalorder %s23, 1
      %p83 = por %p81, %p82
      %p84 = scmp.ne.s32.totalorder %s75, %s76
      %p85 = scmp.eq.s32.totalorder %s23, 0
      %p86 = por %p84, %p85
      %p87 = scmp.ne.s32.totalorder %s75, %s76
      %p88 = scmp.eq.s32.totalorder %s24, 1
      %p89 = por %p87, %p88
      %p91 = scmp.ne.s32.totalorder %s76, %s90
      %p92 = scmp.eq.s32.totalorder %s24, 0
      %p93 = por %p91, %p92
      %s95 = sadd.s32 %s94, 1
      %p98 = scmp.eq.s32.totalorder %s18, 1
      %p99 = scmp.ne.s32.totalorder %s94, %s96
      %p100 = scmp.eq.s32.totalorder %s18, 0
      %p101 = por %p99, %p100
      %p102 = scmp.ne.s32.totalorder %s94, %s96
      %p103 = scmp.eq.s32.totalorder %s23, 1
      %p104 = por %p102, %p103
      %p105 = scmp.ne.s32.totalorder %s96, %s97
      %p106 = scmp.eq.s32.totalorder %s23, 0
      %p107 = por %p105, %p106
      %p108 = scmp.ne.s32.totalorder %s96, %s97
      %p109 = scmp.eq.s32.totalorder %s24, 1
      %p110 = por %p108, %p109
      %p112 = scmp.ne.s32.totalorder %s97, %s111
      %p113 = scmp.eq.s32.totalorder %s24, 0
      %p114 = por %p112, %p113
      %s116 = sadd.s32 %s115, 1
      %p119 = scmp.eq.s32.totalorder %s18, 1
      %p120 = scmp.ne.s32.totalorder %s115, %s117
      %p121 = scmp.eq.s32.totalorder %s18, 0
      %p122 = por %p120, %p121
      %p123 = scmp.ne.s32.totalorder %s115, %s117
      %p124 = scmp.eq.s32.totalorder %s23, 1
      %p125 = por %p123, %p124
      %p126 = scmp.ne.s32.totalorder %s117, %s118
      %p127 = scmp.eq.s32.totalorder %s23, 0
      %p128 = por %p126, %p127
      %p129 = scmp.ne.s32.totalorder %s117, %s118
      %p130 = scmp.eq.s32.totalorder %s24, 1
      %p131 = por %p129, %p130
      %p133 = scmp.ne.s32.totalorder %s118, %s132
      %p134 = scmp.eq.s32.totalorder %s24, 0
      %p135 = por %p133, %p134
      %s137 = sadd.s32 %s136, 1
      %p140 = scmp.eq.s32.totalorder %s18, 1
      %p141 = scmp.ne.s32.totalorder %s136, %s138
      %p142 = scmp.eq.s32.totalorder %s18, 0
      %p143 = por %p141, %p142
      %p144 = scmp.ne.s32.totalorder %s136, %s138
      %p145 = scmp.eq.s32.totalorder %s23, 1
      %p146 = por %p144, %p145
      %p147 = scmp.ne.s32.totalorder %s138, %s139
      %p148 = scmp.eq.s32.totalorder %s23, 0
      %p149 = por %p147, %p148
      %p150 = scmp.ne.s32.totalorder %s138, %s139
      %p151 = scmp.eq.s32.totalorder %s24, 1
      %p152 = por %p150, %p151
      %p154 = scmp.ne.s32.totalorder %s139, %s153
      %p155 = scmp.eq.s32.totalorder %s24, 0
      %p156 = por %p154, %p155
      %s158 = sadd.s32 %s157, 1
      %p161 = scmp.eq.s32.totalorder %s18, 1
      %p162 = scmp.ne.s32.totalorder %s157, %s159
      %p163 = scmp.eq.s32.totalorder %s18, 0
      %p164 = por %p162, %p163
      %p165 = scmp.ne.s32.totalorder %s157, %s159
      %p166 = scmp.eq.s32.totalorder %s23, 1
      %p167 = por %p165, %p166
      %p168 = scmp.ne.s32.totalorder %s159, %s160
      %p169 = scmp.eq.s32.totalorder %s23, 0
      %p170 = por %p168, %p169
      %p171 = scmp.ne.s32.totalorder %s159, %s160
      %p172 = scmp.eq.s32.totalorder %s24, 1
      %p173 = por %p171, %p172
      %p175 = scmp.ne.s32.totalorder %s160, %s174
      %p176 = scmp.eq.s32.totalorder %s24, 0
      %p177 = por %p175, %p176
      %s179 = sadd.s32 %s178, 1
      %p182 = scmp.eq.s32.totalorder %s18, 1
      %p183 = scmp.ne.s32.totalorder %s178, %s180
      %p184 = scmp.eq.s32.totalorder %s18, 0
      %p185 = por %p183, %p184
      %p186 = scmp.ne.s32.totalorder %s178, %s180
      %p187 = scmp.eq.s32.totalorder %s23, 1
      %p188 = por %p186, %p187
      %p189 = scmp.ne.s32.totalorder %s180, %s181
      %p190 = scmp.eq.s32.totalorder %s23, 0
      %p191 = por %p189, %p190
      %p192 = scmp.ne.s32.totalorder %s180, %s181
      %p193 = scmp.eq.s32.totalorder %s24, 1
      %p194 = por %p192, %p193
      %p196 = scmp.ne.s32.totalorder %s181, %s195
      %p197 = scmp.eq.s32.totalorder %s24, 0
      %p198 = por %p196, %p197
      %p199 = scmp.le.s32.totalorder 1, %s18
      %p200 = scmp.lt.s32.totalorder %s18, 3
      %p201 = pnand %p199, %p200
      %p202 = pneg %p201
      // Predicated region
      $region9: #{dcgan_netD_fc_forward.1} parent=5 // pred_check
        _
      $region10: #{dcgan_netD_fc_forward.1} parent=5 // pred_check_branch
        %204 = sbr.rel (%p201) target = $region12
      $region11: #{dcgan_netD_fc_forward.1} parent=5 // pred_region
        %s205 = ssub.s32 %s18, 1
        // Predicated region
        $region13: #{dcgan_netD_fc_forward.1} parent=11 // pred_check
          %p206 = pneg %p65
        $region14: #{dcgan_netD_fc_forward.1} parent=11 // pred_check_branch
          %208 = sbr.rel (%p206) target = $region16
        $region15: #{dcgan_netD_fc_forward.1} parent=11 // pred_region
          %s210 = ssub.s32 41984, 41984
          %211 = vsyncadd [#allocation5], %s210
          %s212 = sshll.u32 [#allocation4], 4
          %s213 = int_to_ptr.vmem [resolvable:$true] %s212
          %218 = dma.hbm_to_vmem [thread:$0]  %s1, 41984, %s213, [#allocation5], 1024, 1024, 64
        $region16: #{dcgan_netD_fc_forward.1} parent=11 // pred_fallthru
          _
        // Predicated region
        $region17: #{dcgan_netD_fc_forward.1} parent=11 // pred_check
          %p219 = pneg %p86
        $region18: #{dcgan_netD_fc_forward.1} parent=11 // pred_check_branch
          %221 = sbr.rel (%p219) target = $region20
        $region19: #{dcgan_netD_fc_forward.1} parent=11 // pred_region
          %s223 = ssub.s32 131072, 131072
          %224 = vsyncadd [#allocation7], %s223
          %s225 = sshll.u32 [#allocation6], 4
          %s226 = int_to_ptr.vmem [resolvable:$true] %s225
          %231 = dma.hbm_to_vmem [thread:$0]  %s2, 131072, %s226, [#allocation7], 512, 512, 32
        $region20: #{dcgan_netD_fc_forward.1} parent=11 // pred_fallthru
          _
        // Predicated region
        $region21: #{dcgan_netD_fc_forward.1} parent=11 // pred_check
          %p232 = pneg %p107
        $region22: #{dcgan_netD_fc_forward.1} parent=11 // pred_check_branch
          %234 = sbr.rel (%p232) target = $region24
        $region23: #{dcgan_netD_fc_forward.1} parent=11 // pred_region
          %s236 = ssub.s32 16, 16
          %237 = vsyncadd [#allocation7], %s236
          %s239 = sshll.u32 [#allocation8], 4
          %s240 = int_to_ptr.vmem [resolvable:$true] %s239
          %242 = dma.hbm_to_vmem [thread:$0]  %s3, 16, %s240, [#allocation7]
        $region24: #{dcgan_netD_fc_forward.1} parent=11 // pred_fallthru
          _
        // Predicated region
        $region25: #{dcgan_netD_fc_forward.1} parent=11 // pred_check
          %p243 = pneg %p128
        $region26: #{dcgan_netD_fc_forward.1} parent=11 // pred_check_branch
          %245 = sbr.rel (%p243) target = $region28
        $region27: #{dcgan_netD_fc_forward.1} parent=11 // pred_region
          %s247 = ssub.s32 16, 16
          %248 = vsyncadd [#allocation10], %s247
          %s250 = sshll.u32 [#allocation9], 4
          %s251 = int_to_ptr.vmem [resolvable:$true] %s250
          %253 = dma.hbm_to_vmem [thread:$0]  %s4, 16, %s251, [#allocation10]
        $region28: #{dcgan_netD_fc_forward.1} parent=11 // pred_fallthru
          _
        // Predicated region
        $region29: #{dcgan_netD_fc_forward.1} parent=11 // pred_check
          %p254 = pneg %p149
        $region30: #{dcgan_netD_fc_forward.1} parent=11 // pred_check_branch
          %256 = sbr.rel (%p254) target = $region32
        $region31: #{dcgan_netD_fc_forward.1} parent=11 // pred_region
          %s258 = ssub.s32 128, 128
          %259 = vsyncadd [#allocation10], %s258
          %s261 = sshll.u32 [#allocation11], 4
          %s262 = int_to_ptr.vmem [resolvable:$true] %s261
          %264 = dma.hbm_to_vmem [thread:$0]  %s5, 128, %s262, [#allocation10]
        $region32: #{dcgan_netD_fc_forward.1} parent=11 // pred_fallthru
          _
        // Predicated region
        $region33: #{dcgan_netD_fc_forward.1} parent=11 // pred_check
          %p265 = pneg %p170
        $region34: #{dcgan_netD_fc_forward.1} parent=11 // pred_check_branch
          %267 = sbr.rel (%p265) target = $region36
        $region35: #{dcgan_netD_fc_forward.1} parent=11 // pred_region
          _
        $region36: #{dcgan_netD_fc_forward.1} parent=11 // pred_fallthru
          _
      $region12: #{dcgan_netD_fc_forward.1} parent=5 // pred_fallthru
        _
      %p268 = scmp.lt.s32.totalorder %s18, 2
      // Predicated region
      $region37: #{dcgan_netD_fc_forward.1} parent=5 // pred_check
        %p269 = pneg %p268
      $region38: #{dcgan_netD_fc_forward.1} parent=5 // pred_check_branch
        %271 = sbr.rel (%p269) target = $region40
      $region39: #{dcgan_netD_fc_forward.1} parent=5 // pred_region
        // Predicated region
        $region41: #{dcgan_netD_fc_forward.1} parent=39 // pred_check
          %p272 = pneg %p38
        $region42: #{dcgan_netD_fc_forward.1} parent=39 // pred_check_branch
          %274 = sbr.rel (%p272) target = $region44
        $region43: #{dcgan_netD_fc_forward.1} parent=39 // pred_region
          %p275 = scmp.lt.s32.totalorder %s18, 1
          %s276 = scalar_select %p275, %s18, 1
          %s277 = smul.addr %s276, 3
          %s278 = smul.addr %s277, 4
          %s279 = scalar_lea.vmem %s0, %s278
        $region44: #{dcgan_netD_fc_forward.1} parent=39 // pred_fallthru
          _
      $region40: #{dcgan_netD_fc_forward.1} parent=5 // pred_fallthru
        _
      %p280 = scmp.le.s32.totalorder 1, %s18
      %p281 = scmp.lt.s32.totalorder %s18, 3
      %p282 = pnand %p280, %p281
      %p283 = pneg %p282
      // Predicated region
      $region45: #{dcgan_netD_fc_forward.1} parent=5 // pred_check
        _
      $region46: #{dcgan_netD_fc_forward.1} parent=5 // pred_check_branch
        %285 = sbr.rel (%p282) target = $region48
      $region47: #{dcgan_netD_fc_forward.1} parent=5 // pred_region
        %s286 = ssub.s32 %s18, 1
        // Predicated region
        $region49: #{dcgan_netD_fc_forward.1} parent=47 // pred_check
          %p287 = pneg %p65
        $region50: #{dcgan_netD_fc_forward.1} parent=47 // pred_check_branch
          %289 = sbr.rel (%p287) target = $region52
        $region51: #{dcgan_netD_fc_forward.1} parent=47 // pred_region
          %290 = dma.done [#allocation5], 41984
        $region52: #{dcgan_netD_fc_forward.1} parent=47 // pred_fallthru
          _
        // Predicated region
        $region53: #{dcgan_netD_fc_forward.1} parent=47 // pred_check
          %p291 = pneg %p86
        $region54: #{dcgan_netD_fc_forward.1} parent=47 // pred_check_branch
          %293 = sbr.rel (%p291) target = $region56
        $region55: #{dcgan_netD_fc_forward.1} parent=47 // pred_region
          %294 = dma.done [#allocation7], 131072
        $region56: #{dcgan_netD_fc_forward.1} parent=47 // pred_fallthru
          _
        // Predicated region
        $region57: #{dcgan_netD_fc_forward.1} parent=47 // pred_check
          %p295 = pneg %p107
        $region58: #{dcgan_netD_fc_forward.1} parent=47 // pred_check_branch
          %297 = sbr.rel (%p295) target = $region60
        $region59: #{dcgan_netD_fc_forward.1} parent=47 // pred_region
          %298 = dma.done [#allocation7], 16
        $region60: #{dcgan_netD_fc_forward.1} parent=47 // pred_fallthru
          _
        // Predicated region
        $region61: #{dcgan_netD_fc_forward.1} parent=47 // pred_check
          %p299 = pneg %p128
        $region62: #{dcgan_netD_fc_forward.1} parent=47 // pred_check_branch
          %301 = sbr.rel (%p299) target = $region64
        $region63: #{dcgan_netD_fc_forward.1} parent=47 // pred_region
          %302 = dma.done [#allocation10], 16
        $region64: #{dcgan_netD_fc_forward.1} parent=47 // pred_fallthru
          _
        // Predicated region
        $region65: #{dcgan_netD_fc_forward.1} parent=47 // pred_check
          %p303 = pneg %p149
        $region66: #{dcgan_netD_fc_forward.1} parent=47 // pred_check_branch
          %305 = sbr.rel (%p303) target = $region68
        $region67: #{dcgan_netD_fc_forward.1} parent=47 // pred_region
          %306 = dma.done [#allocation10], 128
        $region68: #{dcgan_netD_fc_forward.1} parent=47 // pred_fallthru
          _
        %p307 = scmp.lt.s32.totalorder %s23, 1
        %s308 = scalar_select %p307, %s23, 1
        %s309 = smul.addr %s308, 3
        %s310 = smul.addr %s309, 4
        %s311 = scalar_lea.vmem %s0, %s310
        %p312 = pneg %p44
        %p313 = pneg %p41
        %p314 = pneg %p65
        %p315 = pneg %p62
        %p316 = pneg %p86
        %p317 = pneg %p83
        %p318 = pneg %p107
        %p319 = pneg %p104
        %p320 = pneg %p128
        %p321 = pneg %p125
        %p322 = pneg %p149
        %p323 = pneg %p146
        %p324 = pneg %p170
        %p325 = pneg %p167
        %p326 = pneg %p191
        %p327 = pneg %p188
        %p328 = scmp.lt.s32.totalorder %s23, 1
        %s329 = scalar_select %p328, %s23, 1
        %s330 = smul.addr %s329, 3
        %s331 = smul.addr %s330, 4
        %s332 = scalar_lea.vmem %s0, %s331
        %v334 = vld [vmem:[%s332] sm:$0xff]
        %v335 = vld [vmem:[%s332 + $0x8] sm:$0xf]
        %v336 = vld [vmem:[#allocation4] sm:$0xff]
        %v337 = vld [vmem:[#allocation4 + $0x8] sm:$0xff]
        %v338 = vld [vmem:[#allocation4 + $0x10] sm:$0xff]
        %v339 = vld [vmem:[#allocation4 + $0x18] sm:$0xff]
        %v340 = vld [vmem:[#allocation4 + $0x20] sm:$0xff]
        %v341 = vld [vmem:[#allocation4 + $0x28] sm:$0xff]
        %v342 = vld [vmem:[#allocation4 + $0x30] sm:$0xff]
        %v343 = vld [vmem:[#allocation4 + $0x38] sm:$0xff]
        %v344 = vld [vmem:[#allocation4 + $0x40] sm:$0xff]
        %v345 = vld [vmem:[#allocation4 + $0x48] sm:$0xff]
        %v346 = vld [vmem:[#allocation4 + $0x50] sm:$0xff]
        %v347 = vld [vmem:[#allocation4 + $0x58] sm:$0xff]
        %v348 = vld [vmem:[#allocation4 + $0x60] sm:$0xff]
        %v349 = vld [vmem:[#allocation4 + $0x68] sm:$0xff]
        %v350 = vld [vmem:[#allocation4 + $0x70] sm:$0xff]
        %v351 = vld [vmem:[#allocation4 + $0x78] sm:$0xff]
        %v352 = vld [vmem:[#allocation4 + $0x80] sm:$0xff]
        %v353 = vld [vmem:[#allocation4 + $0x88] sm:$0xff]
        %v354 = vld [vmem:[#allocation4 + $0x90] sm:$0xff]
        %v355 = vld [vmem:[#allocation4 + $0x98] sm:$0xff]
        %v356 = vld [vmem:[#allocation4 + $0xa0] sm:$0xff]
        %v357 = vld [vmem:[#allocation4 + $0xa8] sm:$0xff]
        %v358 = vld [vmem:[#allocation4 + $0xb0] sm:$0xff]
        %v359 = vld [vmem:[#allocation4 + $0xb8] sm:$0xff]
        %v360 = vld [vmem:[#allocation4 + $0xc0] sm:$0xff]
        %v361 = vld [vmem:[#allocation4 + $0xc8] sm:$0xff]
        %v362 = vld [vmem:[#allocation4 + $0xd0] sm:$0xff]
        %v363 = vld [vmem:[#allocation4 + $0xd8] sm:$0xff]
        %v364 = vld [vmem:[#allocation4 + $0xe0] sm:$0xff]
        %v365 = vld [vmem:[#allocation4 + $0xe8] sm:$0xff]
        %v366 = vld [vmem:[#allocation4 + $0xf0] sm:$0xff]
        %v367 = vld [vmem:[#allocation4 + $0xf8] sm:$0xff]
        %v368 = vld [vmem:[#allocation4 + $0x100] sm:$0xff]
        %v369 = vld [vmem:[#allocation4 + $0x108] sm:$0xff]
        %v370 = vld [vmem:[#allocation4 + $0x110] sm:$0xff]
        %v371 = vld [vmem:[#allocation4 + $0x118] sm:$0xff]
        %v372 = vld [vmem:[#allocation4 + $0x120] sm:$0xff]
        %v373 = vld [vmem:[#allocation4 + $0x128] sm:$0xff]
        %v374 = vld [vmem:[#allocation4 + $0x130] sm:$0xff]
        %v375 = vld [vmem:[#allocation4 + $0x138] sm:$0xff]
        %v376 = vld [vmem:[#allocation4 + $0x140] sm:$0xff]
        %v377 = vld [vmem:[#allocation4 + $0x148] sm:$0xff]
        %v378 = vld [vmem:[#allocation4 + $0x150] sm:$0xff]
        %v379 = vld [vmem:[#allocation4 + $0x158] sm:$0xff]
        %v380 = vld [vmem:[#allocation4 + $0x160] sm:$0xff]
        %v381 = vld [vmem:[#allocation4 + $0x168] sm:$0xff]
        %v382 = vld [vmem:[#allocation4 + $0x170] sm:$0xff]
        %v383 = vld [vmem:[#allocation4 + $0x178] sm:$0xff]
        %v384 = vld [vmem:[#allocation4 + $0x180] sm:$0xff]
        %v385 = vld [vmem:[#allocation4 + $0x188] sm:$0xff]
        %v386 = vld [vmem:[#allocation4 + $0x190] sm:$0xff]
        %v387 = vld [vmem:[#allocation4 + $0x198] sm:$0xff]
        %v388 = vld [vmem:[#allocation4 + $0x1a0] sm:$0xff]
        %v389 = vld [vmem:[#allocation4 + $0x1a8] sm:$0xff]
        %v390 = vld [vmem:[#allocation4 + $0x1b0] sm:$0xff]
        %v391 = vld [vmem:[#allocation4 + $0x1b8] sm:$0xff]
        %v392 = vld [vmem:[#allocation4 + $0x1c0] sm:$0xff]
        %v393 = vld [vmem:[#allocation4 + $0x1c8] sm:$0xff]
        %v394 = vld [vmem:[#allocation4 + $0x1d0] sm:$0xff]
        %v395 = vld [vmem:[#allocation4 + $0x1d8] sm:$0xff]
        %v396 = vld [vmem:[#allocation4 + $0x1e0] sm:$0xff]
        %v397 = vld [vmem:[#allocation4 + $0x1e8] sm:$0xff]
        %v398 = vld [vmem:[#allocation4 + $0x1f0] sm:$0xff]
        %v399 = vld [vmem:[#allocation4 + $0x1f8] sm:$0xff]
        %v400 = vld [vmem:[#allocation4 + $0x200] sm:$0xff]
        %v401 = vld [vmem:[#allocation4 + $0x208] sm:$0xff]
        %v402 = vld [vmem:[#allocation4 + $0x210] sm:$0xff]
        %v403 = vld [vmem:[#allocation4 + $0x218] sm:$0xff]
        %v404 = vld [vmem:[#allocation4 + $0x220] sm:$0xff]
        %v405 = vld [vmem:[#allocation4 + $0x228] sm:$0xff]
        %v406 = vld [vmem:[#allocation4 + $0x230] sm:$0xff]
        %v407 = vld [vmem:[#allocation4 + $0x238] sm:$0xff]
        %v408 = vld [vmem:[#allocation4 + $0x240] sm:$0xff]
        %v409 = vld [vmem:[#allocation4 + $0x248] sm:$0xff]
        %v410 = vld [vmem:[#allocation4 + $0x250] sm:$0xff]
        %v411 = vld [vmem:[#allocation4 + $0x258] sm:$0xff]
        %v412 = vld [vmem:[#allocation4 + $0x260] sm:$0xff]
        %v413 = vld [vmem:[#allocation4 + $0x268] sm:$0xff]
        %v414 = vld [vmem:[#allocation4 + $0x270] sm:$0xff]
        %v415 = vld [vmem:[#allocation4 + $0x278] sm:$0xff]
        %v416 = vld [vmem:[#allocation4 + $0x280] sm:$0xff]
        %v417 = vld [vmem:[#allocation4 + $0x288] sm:$0xff]
        %v418 = vld [vmem:[#allocation4 + $0x290] sm:$0xff]
        %v419 = vld [vmem:[#allocation4 + $0x298] sm:$0xff]
        %v420 = vld [vmem:[#allocation4 + $0x2a0] sm:$0xff]
        %v421 = vld [vmem:[#allocation4 + $0x2a8] sm:$0xff]
        %v422 = vld [vmem:[#allocation4 + $0x2b0] sm:$0xff]
        %v423 = vld [vmem:[#allocation4 + $0x2b8] sm:$0xff]
        %v424 = vld [vmem:[#allocation4 + $0x2c0] sm:$0xff]
        %v425 = vld [vmem:[#allocation4 + $0x2c8] sm:$0xff]
        %v426 = vld [vmem:[#allocation4 + $0x2d0] sm:$0xff]
        %v427 = vld [vmem:[#allocation4 + $0x2d8] sm:$0xff]
        %v428 = vld [vmem:[#allocation4 + $0x2e0] sm:$0xff]
        %v429 = vld [vmem:[#allocation4 + $0x2e8] sm:$0xff]
        %v430 = vld [vmem:[#allocation4 + $0x2f0] sm:$0xff]
        %v431 = vld [vmem:[#allocation4 + $0x2f8] sm:$0xff]
        %v432 = vld [vmem:[#allocation4 + $0x300] sm:$0xff]
        %v433 = vld [vmem:[#allocation4 + $0x308] sm:$0xff]
        %v434 = vld [vmem:[#allocation4 + $0x310] sm:$0xff]
        %v435 = vld [vmem:[#allocation4 + $0x318] sm:$0xff]
        %v436 = vld [vmem:[#allocation4 + $0x320] sm:$0xff]
        %v437 = vld [vmem:[#allocation4 + $0x328] sm:$0xff]
        %v438 = vld [vmem:[#allocation4 + $0x330] sm:$0xff]
        %v439 = vld [vmem:[#allocation4 + $0x338] sm:$0xff]
        %v440 = vld [vmem:[#allocation4 + $0x340] sm:$0xff]
        %v441 = vld [vmem:[#allocation4 + $0x348] sm:$0xff]
        %v442 = vld [vmem:[#allocation4 + $0x350] sm:$0xff]
        %v443 = vld [vmem:[#allocation4 + $0x358] sm:$0xff]
        %v444 = vld [vmem:[#allocation4 + $0x360] sm:$0xff]
        %v445 = vld [vmem:[#allocation4 + $0x368] sm:$0xff]
        %v446 = vld [vmem:[#allocation4 + $0x370] sm:$0xff]
        %v447 = vld [vmem:[#allocation4 + $0x378] sm:$0xff]
        %v448 = vld [vmem:[#allocation4 + $0x380] sm:$0xff]
        %v449 = vld [vmem:[#allocation4 + $0x388] sm:$0xff]
        %v450 = vld [vmem:[#allocation4 + $0x390] sm:$0xff]
        %v451 = vld [vmem:[#allocation4 + $0x398] sm:$0xff]
        %v452 = vld [vmem:[#allocation4 + $0x3a0] sm:$0xff]
        %v453 = vld [vmem:[#allocation4 + $0x3a8] sm:$0xff]
        %v454 = vld [vmem:[#allocation4 + $0x3b0] sm:$0xff]
        %v455 = vld [vmem:[#allocation4 + $0x3b8] sm:$0xff]
        %v456 = vld [vmem:[#allocation4 + $0x3c0] sm:$0xff]
        %v457 = vld [vmem:[#allocation4 + $0x3c8] sm:$0xff]
        %v458 = vld [vmem:[#allocation4 + $0x3d0] sm:$0xff]
        %v459 = vld [vmem:[#allocation4 + $0x3d8] sm:$0xff]
        %v460 = vld [vmem:[#allocation4 + $0x3e0] sm:$0xff]
        %v461 = vld [vmem:[#allocation4 + $0x3e8] sm:$0xff]
        %v462 = vld [vmem:[#allocation4 + $0x3f0] sm:$0xff]
        %v463 = vld [vmem:[#allocation4 + $0x3f8] sm:$0xff]
        %v464 = vld [vmem:[#allocation4 + $0x400] sm:$0xff]
        %v465 = vld [vmem:[#allocation4 + $0x408] sm:$0xff]
        %v466 = vld [vmem:[#allocation4 + $0x410] sm:$0xff]
        %v467 = vld [vmem:[#allocation4 + $0x418] sm:$0xff]
        %v468 = vld [vmem:[#allocation4 + $0x420] sm:$0xff]
        %v469 = vld [vmem:[#allocation4 + $0x428] sm:$0xff]
        %v470 = vld [vmem:[#allocation4 + $0x430] sm:$0xff]
        %v471 = vld [vmem:[#allocation4 + $0x438] sm:$0xff]
        %v472 = vld [vmem:[#allocation4 + $0x440] sm:$0xff]
        %v473 = vld [vmem:[#allocation4 + $0x448] sm:$0xff]
        %v474 = vld [vmem:[#allocation4 + $0x450] sm:$0xff]
        %v475 = vld [vmem:[#allocation4 + $0x458] sm:$0xff]
        %v476 = vld [vmem:[#allocation4 + $0x460] sm:$0xff]
        %v477 = vld [vmem:[#allocation4 + $0x468] sm:$0xff]
        %v478 = vld [vmem:[#allocation4 + $0x470] sm:$0xff]
        %v479 = vld [vmem:[#allocation4 + $0x478] sm:$0xff]
        %v480 = vld [vmem:[#allocation4 + $0x480] sm:$0xff]
        %v481 = vld [vmem:[#allocation4 + $0x488] sm:$0xff]
        %v482 = vld [vmem:[#allocation4 + $0x490] sm:$0xff]
        %v483 = vld [vmem:[#allocation4 + $0x498] sm:$0xff]
        %v484 = vld [vmem:[#allocation4 + $0x4a0] sm:$0xff]
        %v485 = vld [vmem:[#allocation4 + $0x4a8] sm:$0xff]
        %v486 = vld [vmem:[#allocation4 + $0x4b0] sm:$0xff]
        %v487 = vld [vmem:[#allocation4 + $0x4b8] sm:$0xff]
        %v488 = vld [vmem:[#allocation4 + $0x4c0] sm:$0xff]
        %v489 = vld [vmem:[#allocation4 + $0x4c8] sm:$0xff]
        %v490 = vld [vmem:[#allocation4 + $0x4d0] sm:$0xff]
        %v491 = vld [vmem:[#allocation4 + $0x4d8] sm:$0xff]
        %v492 = vld [vmem:[#allocation4 + $0x4e0] sm:$0xff]
        %v493 = vld [vmem:[#allocation4 + $0x4e8] sm:$0xff]
        %v494 = vld [vmem:[#allocation4 + $0x4f0] sm:$0xff]
        %v495 = vld [vmem:[#allocation4 + $0x4f8] sm:$0xff]
        %v496 = vld [vmem:[#allocation4 + $0x500] sm:$0xff]
        %v497 = vld [vmem:[#allocation4 + $0x508] sm:$0xff]
        %v498 = vld [vmem:[#allocation4 + $0x510] sm:$0xff]
        %v499 = vld [vmem:[#allocation4 + $0x518] sm:$0xff]
        %v500 = vld [vmem:[#allocation4 + $0x520] sm:$0xff]
        %v501 = vld [vmem:[#allocation4 + $0x528] sm:$0xff]
        %v502 = vld [vmem:[#allocation4 + $0x530] sm:$0xff]
        %v503 = vld [vmem:[#allocation4 + $0x538] sm:$0xff]
        %v504 = vld [vmem:[#allocation4 + $0x540] sm:$0xff]
        %v505 = vld [vmem:[#allocation4 + $0x548] sm:$0xff]
        %v506 = vld [vmem:[#allocation4 + $0x550] sm:$0xff]
        %v507 = vld [vmem:[#allocation4 + $0x558] sm:$0xff]
        %v508 = vld [vmem:[#allocation4 + $0x560] sm:$0xff]
        %v509 = vld [vmem:[#allocation4 + $0x568] sm:$0xff]
        %v510 = vld [vmem:[#allocation4 + $0x570] sm:$0xff]
        %v511 = vld [vmem:[#allocation4 + $0x578] sm:$0xff]
        %v512 = vld [vmem:[#allocation4 + $0x580] sm:$0xff]
        %v513 = vld [vmem:[#allocation4 + $0x588] sm:$0xff]
        %v514 = vld [vmem:[#allocation4 + $0x590] sm:$0xff]
        %v515 = vld [vmem:[#allocation4 + $0x598] sm:$0xff]
        %v516 = vld [vmem:[#allocation4 + $0x5a0] sm:$0xff]
        %v517 = vld [vmem:[#allocation4 + $0x5a8] sm:$0xff]
        %v518 = vld [vmem:[#allocation4 + $0x5b0] sm:$0xff]
        %v519 = vld [vmem:[#allocation4 + $0x5b8] sm:$0xff]
        %v520 = vld [vmem:[#allocation4 + $0x5c0] sm:$0xff]
        %v521 = vld [vmem:[#allocation4 + $0x5c8] sm:$0xff]
        %v522 = vld [vmem:[#allocation4 + $0x5d0] sm:$0xff]
        %v523 = vld [vmem:[#allocation4 + $0x5d8] sm:$0xff]
        %v524 = vld [vmem:[#allocation4 + $0x5e0] sm:$0xff]
        %v525 = vld [vmem:[#allocation4 + $0x5e8] sm:$0xff]
        %v526 = vld [vmem:[#allocation4 + $0x5f0] sm:$0xff]
        %v527 = vld [vmem:[#allocation4 + $0x5f8] sm:$0xff]
        %v528 = vld [vmem:[#allocation4 + $0x600] sm:$0xff]
        %v529 = vld [vmem:[#allocation4 + $0x608] sm:$0xff]
        %v530 = vld [vmem:[#allocation4 + $0x610] sm:$0xff]
        %v531 = vld [vmem:[#allocation4 + $0x618] sm:$0xff]
        %v532 = vld [vmem:[#allocation4 + $0x620] sm:$0xff]
        %v533 = vld [vmem:[#allocation4 + $0x628] sm:$0xff]
        %v534 = vld [vmem:[#allocation4 + $0x630] sm:$0xff]
        %v535 = vld [vmem:[#allocation4 + $0x638] sm:$0xff]
        %v536 = vld [vmem:[#allocation4 + $0x640] sm:$0xff]
        %v537 = vld [vmem:[#allocation4 + $0x648] sm:$0xff]
        %v538 = vld [vmem:[#allocation4 + $0x650] sm:$0xff]
        %v539 = vld [vmem:[#allocation4 + $0x658] sm:$0xff]
        %v540 = vld [vmem:[#allocation4 + $0x660] sm:$0xff]
        %v541 = vld [vmem:[#allocation4 + $0x668] sm:$0xff]
        %v542 = vld [vmem:[#allocation4 + $0x670] sm:$0xff]
        %v543 = vld [vmem:[#allocation4 + $0x678] sm:$0xff]
        %v544 = vld [vmem:[#allocation4 + $0x680] sm:$0xff]
        %v545 = vld [vmem:[#allocation4 + $0x688] sm:$0xff]
        %v546 = vld [vmem:[#allocation4 + $0x690] sm:$0xff]
        %v547 = vld [vmem:[#allocation4 + $0x698] sm:$0xff]
        %v548 = vld [vmem:[#allocation4 + $0x6a0] sm:$0xff]
        %v549 = vld [vmem:[#allocation4 + $0x6a8] sm:$0xff]
        %v550 = vld [vmem:[#allocation4 + $0x6b0] sm:$0xff]
        %v551 = vld [vmem:[#allocation4 + $0x6b8] sm:$0xff]
        %v552 = vld [vmem:[#allocation4 + $0x6c0] sm:$0xff]
        %v553 = vld [vmem:[#allocation4 + $0x6c8] sm:$0xff]
        %v554 = vld [vmem:[#allocation4 + $0x6d0] sm:$0xff]
        %v555 = vld [vmem:[#allocation4 + $0x6d8] sm:$0xff]
        %v556 = vld [vmem:[#allocation4 + $0x6e0] sm:$0xff]
        %v557 = vld [vmem:[#allocation4 + $0x6e8] sm:$0xff]
        %v558 = vld [vmem:[#allocation4 + $0x6f0] sm:$0xff]
        %v559 = vld [vmem:[#allocation4 + $0x6f8] sm:$0xff]
        %v560 = vld [vmem:[#allocation4 + $0x700] sm:$0xff]
        %v561 = vld [vmem:[#allocation4 + $0x708] sm:$0xff]
        %v562 = vld [vmem:[#allocation4 + $0x710] sm:$0xff]
        %v563 = vld [vmem:[#allocation4 + $0x718] sm:$0xff]
        %v564 = vld [vmem:[#allocation4 + $0x720] sm:$0xff]
        %v565 = vld [vmem:[#allocation4 + $0x728] sm:$0xff]
        %v566 = vld [vmem:[#allocation4 + $0x730] sm:$0xff]
        %v567 = vld [vmem:[#allocation4 + $0x738] sm:$0xff]
        %v568 = vld [vmem:[#allocation4 + $0x740] sm:$0xff]
        %v569 = vld [vmem:[#allocation4 + $0x748] sm:$0xff]
        %v570 = vld [vmem:[#allocation4 + $0x750] sm:$0xff]
        %v571 = vld [vmem:[#allocation4 + $0x758] sm:$0xff]
        %v572 = vld [vmem:[#allocation4 + $0x760] sm:$0xff]
        %v573 = vld [vmem:[#allocation4 + $0x768] sm:$0xff]
        %v574 = vld [vmem:[#allocation4 + $0x770] sm:$0xff]
        %v575 = vld [vmem:[#allocation4 + $0x778] sm:$0xff]
        %v576 = vld [vmem:[#allocation4 + $0x780] sm:$0xff]
        %v577 = vld [vmem:[#allocation4 + $0x788] sm:$0xff]
        %v578 = vld [vmem:[#allocation4 + $0x790] sm:$0xff]
        %v579 = vld [vmem:[#allocation4 + $0x798] sm:$0xff]
        %v580 = vld [vmem:[#allocation4 + $0x7a0] sm:$0xff]
        %v581 = vld [vmem:[#allocation4 + $0x7a8] sm:$0xff]
        %v582 = vld [vmem:[#allocation4 + $0x7b0] sm:$0xff]
        %v583 = vld [vmem:[#allocation4 + $0x7b8] sm:$0xff]
        %v584 = vld [vmem:[#allocation4 + $0x7c0] sm:$0xff]
        %v585 = vld [vmem:[#allocation4 + $0x7c8] sm:$0xff]
        %v586 = vld [vmem:[#allocation4 + $0x7d0] sm:$0xff]
        %v587 = vld [vmem:[#allocation4 + $0x7d8] sm:$0xff]
        %v588 = vld [vmem:[#allocation4 + $0x7e0] sm:$0xff]
        %v589 = vld [vmem:[#allocation4 + $0x7e8] sm:$0xff]
        %v590 = vld [vmem:[#allocation4 + $0x7f0] sm:$0xff]
        %v591 = vld [vmem:[#allocation4 + $0x7f8] sm:$0xff]
        %v592 = vld [vmem:[#allocation4 + $0x800] sm:$0xff]
        %v593 = vld [vmem:[#allocation4 + $0x808] sm:$0xff]
        %v594 = vld [vmem:[#allocation4 + $0x810] sm:$0xff]
        %v595 = vld [vmem:[#allocation4 + $0x818] sm:$0xff]
        %v596 = vld [vmem:[#allocation4 + $0x820] sm:$0xff]
        %v597 = vld [vmem:[#allocation4 + $0x828] sm:$0xff]
        %v598 = vld [vmem:[#allocation4 + $0x830] sm:$0xff]
        %v599 = vld [vmem:[#allocation4 + $0x838] sm:$0xff]
        %v600 = vld [vmem:[#allocation4 + $0x840] sm:$0xff]
        %v601 = vld [vmem:[#allocation4 + $0x848] sm:$0xff]
        %v602 = vld [vmem:[#allocation4 + $0x850] sm:$0xff]
        %v603 = vld [vmem:[#allocation4 + $0x858] sm:$0xff]
        %v604 = vld [vmem:[#allocation4 + $0x860] sm:$0xff]
        %v605 = vld [vmem:[#allocation4 + $0x868] sm:$0xff]
        %v606 = vld [vmem:[#allocation4 + $0x870] sm:$0xff]
        %v607 = vld [vmem:[#allocation4 + $0x878] sm:$0xff]
        %v608 = vld [vmem:[#allocation4 + $0x880] sm:$0xff]
        %v609 = vld [vmem:[#allocation4 + $0x888] sm:$0xff]
        %v610 = vld [vmem:[#allocation4 + $0x890] sm:$0xff]
        %v611 = vld [vmem:[#allocation4 + $0x898] sm:$0xff]
        %v612 = vld [vmem:[#allocation4 + $0x8a0] sm:$0xff]
        %v613 = vld [vmem:[#allocation4 + $0x8a8] sm:$0xff]
        %v614 = vld [vmem:[#allocation4 + $0x8b0] sm:$0xff]
        %v615 = vld [vmem:[#allocation4 + $0x8b8] sm:$0xff]
        %v616 = vld [vmem:[#allocation4 + $0x8c0] sm:$0xff]
        %v617 = vld [vmem:[#allocation4 + $0x8c8] sm:$0xff]
        %v618 = vld [vmem:[#allocation4 + $0x8d0] sm:$0xff]
        %v619 = vld [vmem:[#allocation4 + $0x8d8] sm:$0xff]
        %v620 = vld [vmem:[#allocation4 + $0x8e0] sm:$0xff]
        %v621 = vld [vmem:[#allocation4 + $0x8e8] sm:$0xff]
        %v622 = vld [vmem:[#allocation4 + $0x8f0] sm:$0xff]
        %v623 = vld [vmem:[#allocation4 + $0x8f8] sm:$0xff]
        %v624 = vld [vmem:[#allocation4 + $0x900] sm:$0xff]
        %v625 = vld [vmem:[#allocation4 + $0x908] sm:$0xff]
        %v626 = vld [vmem:[#allocation4 + $0x910] sm:$0xff]
        %v627 = vld [vmem:[#allocation4 + $0x918] sm:$0xff]
        %v628 = vld [vmem:[#allocation4 + $0x920] sm:$0xff]
        %v629 = vld [vmem:[#allocation4 + $0x928] sm:$0xff]
        %v630 = vld [vmem:[#allocation4 + $0x930] sm:$0xff]
        %v631 = vld [vmem:[#allocation4 + $0x938] sm:$0xff]
        %v632 = vld [vmem:[#allocation4 + $0x940] sm:$0xff]
        %v633 = vld [vmem:[#allocation4 + $0x948] sm:$0xff]
        %v634 = vld [vmem:[#allocation4 + $0x950] sm:$0xff]
        %v635 = vld [vmem:[#allocation4 + $0x958] sm:$0xff]
        %v636 = vld [vmem:[#allocation4 + $0x960] sm:$0xff]
        %v637 = vld [vmem:[#allocation4 + $0x968] sm:$0xff]
        %v638 = vld [vmem:[#allocation4 + $0x970] sm:$0xff]
        %v639 = vld [vmem:[#allocation4 + $0x978] sm:$0xff]
        %v640 = vld [vmem:[#allocation4 + $0x980] sm:$0xff]
        %v641 = vld [vmem:[#allocation4 + $0x988] sm:$0xff]
        %v642 = vld [vmem:[#allocation4 + $0x990] sm:$0xff]
        %v643 = vld [vmem:[#allocation4 + $0x998] sm:$0xff]
        %v644 = vld [vmem:[#allocation4 + $0x9a0] sm:$0xff]
        %v645 = vld [vmem:[#allocation4 + $0x9a8] sm:$0xff]
        %v646 = vld [vmem:[#allocation4 + $0x9b0] sm:$0xff]
        %v647 = vld [vmem:[#allocation4 + $0x9b8] sm:$0xff]
        %v648 = vld [vmem:[#allocation4 + $0x9c0] sm:$0xff]
        %v649 = vld [vmem:[#allocation4 + $0x9c8] sm:$0xff]
        %v650 = vld [vmem:[#allocation4 + $0x9d0] sm:$0xff]
        %v651 = vld [vmem:[#allocation4 + $0x9d8] sm:$0xff]
        %v652 = vld [vmem:[#allocation4 + $0x9e0] sm:$0xff]
        %v653 = vld [vmem:[#allocation4 + $0x9e8] sm:$0xff]
        %v654 = vld [vmem:[#allocation4 + $0x9f0] sm:$0xff]
        %v655 = vld [vmem:[#allocation4 + $0x9f8] sm:$0xff]
        %v656 = vld [vmem:[#allocation4 + $0xa00] sm:$0x33]
        %v657 = vld [vmem:[#allocation4 + $0xa08] sm:$0x33]
        %v658 = vld [vmem:[#allocation4 + $0xa10] sm:$0x33]
        %v659 = vld [vmem:[#allocation4 + $0xa18] sm:$0x33]
        %v660 = vld [vmem:[#allocation4 + $0xa20] sm:$0x33]
        %v661 = vld [vmem:[#allocation4 + $0xa28] sm:$0x33]
        %v662 = vld [vmem:[#allocation4 + $0xa30] sm:$0x33]
        %v663 = vld [vmem:[#allocation4 + $0xa38] sm:$0x33]
        %v666 = vunpack.c.l.b16 %v334
        %v667 = vunpack.c.h.b16 %v334
        %v668 = vunpack.c.l.b16 %v335
        %v669 = vpack.c.b16 %v666, %v666
        %v670 = vpack.c.b16 %v667, %v667
        %v671 = vpack.c.b16 %v668, %v668
        %v1002 = vunpack.c.l.b16 %v336
        %v1003 = vunpack.c.h.b16 %v336
        %v1004 = vunpack.c.l.b16 %v337
        %v1005 = vunpack.c.h.b16 %v337
        %v1006 = vunpack.c.l.b16 %v338
        %v1007 = vunpack.c.h.b16 %v338
        %v1008 = vunpack.c.l.b16 %v339
        %v1009 = vunpack.c.h.b16 %v339
        %v1010 = vunpack.c.l.b16 %v340
        %v1011 = vunpack.c.h.b16 %v340
        %v1012 = vunpack.c.l.b16 %v341
        %v1013 = vunpack.c.h.b16 %v341
        %v1014 = vunpack.c.l.b16 %v342
        %v1015 = vunpack.c.h.b16 %v342
        %v1016 = vunpack.c.l.b16 %v343
        %v1017 = vunpack.c.h.b16 %v343
        %v1018 = vunpack.c.l.b16 %v344
        %v1019 = vunpack.c.h.b16 %v344
        %v1020 = vunpack.c.l.b16 %v345
        %v1021 = vunpack.c.h.b16 %v345
        %v1022 = vunpack.c.l.b16 %v346
        %v1023 = vunpack.c.h.b16 %v346
        %v1024 = vunpack.c.l.b16 %v347
        %v1025 = vunpack.c.h.b16 %v347
        %v1026 = vunpack.c.l.b16 %v348
        %v1027 = vunpack.c.h.b16 %v348
        %v1028 = vunpack.c.l.b16 %v349
        %v1029 = vunpack.c.h.b16 %v349
        %v1030 = vunpack.c.l.b16 %v350
        %v1031 = vunpack.c.h.b16 %v350
        %v1032 = vunpack.c.l.b16 %v351
        %v1033 = vunpack.c.h.b16 %v351
        %v1034 = vunpack.c.l.b16 %v352
        %v1035 = vunpack.c.h.b16 %v352
        %v1036 = vunpack.c.l.b16 %v353
        %v1037 = vunpack.c.h.b16 %v353
        %v1038 = vunpack.c.l.b16 %v354
        %v1039 = vunpack.c.h.b16 %v354
        %v1040 = vunpack.c.l.b16 %v355
        %v1041 = vunpack.c.h.b16 %v355
        %v1042 = vunpack.c.l.b16 %v356
        %v1043 = vunpack.c.h.b16 %v356
        %v1044 = vunpack.c.l.b16 %v357
        %v1045 = vunpack.c.h.b16 %v357
        %v1046 = vunpack.c.l.b16 %v358
        %v1047 = vunpack.c.h.b16 %v358
        %v1048 = vunpack.c.l.b16 %v359
        %v1049 = vunpack.c.h.b16 %v359
        %v1050 = vunpack.c.l.b16 %v360
        %v1051 = vunpack.c.h.b16 %v360
        %v1052 = vunpack.c.l.b16 %v361
        %v1053 = vunpack.c.h.b16 %v361
        %v1054 = vunpack.c.l.b16 %v362
        %v1055 = vunpack.c.h.b16 %v362
        %v1056 = vunpack.c.l.b16 %v363
        %v1057 = vunpack.c.h.b16 %v363
        %v1058 = vunpack.c.l.b16 %v364
        %v1059 = vunpack.c.h.b16 %v364
        %v1060 = vunpack.c.l.b16 %v365
        %v1061 = vunpack.c.h.b16 %v365
        %v1062 = vunpack.c.l.b16 %v366
        %v1063 = vunpack.c.h.b16 %v366
        %v1064 = vunpack.c.l.b16 %v367
        %v1065 = vunpack.c.h.b16 %v367
        %v1066 = vunpack.c.l.b16 %v368
        %v1067 = vunpack.c.h.b16 %v368
        %v1068 = vunpack.c.l.b16 %v369
        %v1069 = vunpack.c.h.b16 %v369
        %v1070 = vunpack.c.l.b16 %v370
        %v1071 = vunpack.c.h.b16 %v370
        %v1072 = vunpack.c.l.b16 %v371
        %v1073 = vunpack.c.h.b16 %v371
        %v1074 = vunpack.c.l.b16 %v372
        %v1075 = vunpack.c.h.b16 %v372
        %v1076 = vunpack.c.l.b16 %v373
        %v1077 = vunpack.c.h.b16 %v373
        %v1078 = vunpack.c.l.b16 %v374
        %v1079 = vunpack.c.h.b16 %v374
        %v1080 = vunpack.c.l.b16 %v375
        %v1081 = vunpack.c.h.b16 %v375
        %v1082 = vunpack.c.l.b16 %v376
        %v1083 = vunpack.c.h.b16 %v376
        %v1084 = vunpack.c.l.b16 %v377
        %v1085 = vunpack.c.h.b16 %v377
        %v1086 = vunpack.c.l.b16 %v378
        %v1087 = vunpack.c.h.b16 %v378
        %v1088 = vunpack.c.l.b16 %v379
        %v1089 = vunpack.c.h.b16 %v379
        %v1090 = vunpack.c.l.b16 %v380
        %v1091 = vunpack.c.h.b16 %v380
        %v1092 = vunpack.c.l.b16 %v381
        %v1093 = vunpack.c.h.b16 %v381
        %v1094 = vunpack.c.l.b16 %v382
        %v1095 = vunpack.c.h.b16 %v382
        %v1096 = vunpack.c.l.b16 %v383
        %v1097 = vunpack.c.h.b16 %v383
        %v1098 = vunpack.c.l.b16 %v384
        %v1099 = vunpack.c.h.b16 %v384
        %v1100 = vunpack.c.l.b16 %v385
        %v1101 = vunpack.c.h.b16 %v385
        %v1102 = vunpack.c.l.b16 %v386
        %v1103 = vunpack.c.h.b16 %v386
        %v1104 = vunpack.c.l.b16 %v387
        %v1105 = vunpack.c.h.b16 %v387
        %v1106 = vunpack.c.l.b16 %v388
        %v1107 = vunpack.c.h.b16 %v388
        %v1108 = vunpack.c.l.b16 %v389
        %v1109 = vunpack.c.h.b16 %v389
        %v1110 = vunpack.c.l.b16 %v390
        %v1111 = vunpack.c.h.b16 %v390
        %v1112 = vunpack.c.l.b16 %v391
        %v1113 = vunpack.c.h.b16 %v391
        %v1114 = vunpack.c.l.b16 %v392
        %v1115 = vunpack.c.h.b16 %v392
        %v1116 = vunpack.c.l.b16 %v393
        %v1117 = vunpack.c.h.b16 %v393
        %v1118 = vunpack.c.l.b16 %v394
        %v1119 = vunpack.c.h.b16 %v394
        %v1120 = vunpack.c.l.b16 %v395
        %v1121 = vunpack.c.h.b16 %v395
        %v1122 = vunpack.c.l.b16 %v396
        %v1123 = vunpack.c.h.b16 %v396
        %v1124 = vunpack.c.l.b16 %v397
        %v1125 = vunpack.c.h.b16 %v397
        %v1126 = vunpack.c.l.b16 %v398
        %v1127 = vunpack.c.h.b16 %v398
        %v1128 = vunpack.c.l.b16 %v399
        %v1129 = vunpack.c.h.b16 %v399
        %v1130 = vunpack.c.l.b16 %v400
        %v1131 = vunpack.c.h.b16 %v400
        %v1132 = vunpack.c.l.b16 %v401
        %v1133 = vunpack.c.h.b16 %v401
        %v1134 = vunpack.c.l.b16 %v402
        %v1135 = vunpack.c.h.b16 %v402
        %v1136 = vunpack.c.l.b16 %v403
        %v1137 = vunpack.c.h.b16 %v403
        %v1138 = vunpack.c.l.b16 %v404
        %v1139 = vunpack.c.h.b16 %v404
        %v1140 = vunpack.c.l.b16 %v405
        %v1141 = vunpack.c.h.b16 %v405
        %v1142 = vunpack.c.l.b16 %v406
        %v1143 = vunpack.c.h.b16 %v406
        %v1144 = vunpack.c.l.b16 %v407
        %v1145 = vunpack.c.h.b16 %v407
        %v1146 = vunpack.c.l.b16 %v408
        %v1147 = vunpack.c.h.b16 %v408
        %v1148 = vunpack.c.l.b16 %v409
        %v1149 = vunpack.c.h.b16 %v409
        %v1150 = vunpack.c.l.b16 %v410
        %v1151 = vunpack.c.h.b16 %v410
        %v1152 = vunpack.c.l.b16 %v411
        %v1153 = vunpack.c.h.b16 %v411
        %v1154 = vunpack.c.l.b16 %v412
        %v1155 = vunpack.c.h.b16 %v412
        %v1156 = vunpack.c.l.b16 %v413
        %v1157 = vunpack.c.h.b16 %v413
        %v1158 = vunpack.c.l.b16 %v414
        %v1159 = vunpack.c.h.b16 %v414
        %v1160 = vunpack.c.l.b16 %v415
        %v1161 = vunpack.c.h.b16 %v415
        %v1162 = vunpack.c.l.b16 %v416
        %v1163 = vunpack.c.h.b16 %v416
        %v1164 = vunpack.c.l.b16 %v417
        %v1165 = vunpack.c.h.b16 %v417
        %v1166 = vunpack.c.l.b16 %v418
        %v1167 = vunpack.c.h.b16 %v418
        %v1168 = vunpack.c.l.b16 %v419
        %v1169 = vunpack.c.h.b16 %v419
        %v1170 = vunpack.c.l.b16 %v420
        %v1171 = vunpack.c.h.b16 %v420
        %v1172 = vunpack.c.l.b16 %v421
        %v1173 = vunpack.c.h.b16 %v421
        %v1174 = vunpack.c.l.b16 %v422
        %v1175 = vunpack.c.h.b16 %v422
        %v1176 = vunpack.c.l.b16 %v423
        %v1177 = vunpack.c.h.b16 %v423
        %v1178 = vunpack.c.l.b16 %v424
        %v1179 = vunpack.c.h.b16 %v424
        %v1180 = vunpack.c.l.b16 %v425
        %v1181 = vunpack.c.h.b16 %v425
        %v1182 = vunpack.c.l.b16 %v426
        %v1183 = vunpack.c.h.b16 %v426
        %v1184 = vunpack.c.l.b16 %v427
        %v1185 = vunpack.c.h.b16 %v427
        %v1186 = vunpack.c.l.b16 %v428
        %v1187 = vunpack.c.h.b16 %v428
        %v1188 = vunpack.c.l.b16 %v429
        %v1189 = vunpack.c.h.b16 %v429
        %v1190 = vunpack.c.l.b16 %v430
        %v1191 = vunpack.c.h.b16 %v430
        %v1192 = vunpack.c.l.b16 %v431
        %v1193 = vunpack.c.h.b16 %v431
        %v1194 = vunpack.c.l.b16 %v432
        %v1195 = vunpack.c.h.b16 %v432
        %v1196 = vunpack.c.l.b16 %v433
        %v1197 = vunpack.c.h.b16 %v433
        %v1198 = vunpack.c.l.b16 %v434
        %v1199 = vunpack.c.h.b16 %v434
        %v1200 = vunpack.c.l.b16 %v435
        %v1201 = vunpack.c.h.b16 %v435
        %v1202 = vunpack.c.l.b16 %v436
        %v1203 = vunpack.c.h.b16 %v436
        %v1204 = vunpack.c.l.b16 %v437
        %v1205 = vunpack.c.h.b16 %v437
        %v1206 = vunpack.c.l.b16 %v438
        %v1207 = vunpack.c.h.b16 %v438
        %v1208 = vunpack.c.l.b16 %v439
        %v1209 = vunpack.c.h.b16 %v439
        %v1210 = vunpack.c.l.b16 %v440
        %v1211 = vunpack.c.h.b16 %v440
        %v1212 = vunpack.c.l.b16 %v441
        %v1213 = vunpack.c.h.b16 %v441
        %v1214 = vunpack.c.l.b16 %v442
        %v1215 = vunpack.c.h.b16 %v442
        %v1216 = vunpack.c.l.b16 %v443
        %v1217 = vunpack.c.h.b16 %v443
        %v1218 = vunpack.c.l.b16 %v444
        %v1219 = vunpack.c.h.b16 %v444
        %v1220 = vunpack.c.l.b16 %v445
        %v1221 = vunpack.c.h.b16 %v445
        %v1222 = vunpack.c.l.b16 %v446
        %v1223 = vunpack.c.h.b16 %v446
        %v1224 = vunpack.c.l.b16 %v447
        %v1225 = vunpack.c.h.b16 %v447
        %v1226 = vunpack.c.l.b16 %v448
        %v1227 = vunpack.c.h.b16 %v448
        %v1228 = vunpack.c.l.b16 %v449
        %v1229 = vunpack.c.h.b16 %v449
        %v1230 = vunpack.c.l.b16 %v450
        %v1231 = vunpack.c.h.b16 %v450
        %v1232 = vunpack.c.l.b16 %v451
        %v1233 = vunpack.c.h.b16 %v451
        %v1234 = vunpack.c.l.b16 %v452
        %v1235 = vunpack.c.h.b16 %v452
        %v1236 = vunpack.c.l.b16 %v453
        %v1237 = vunpack.c.h.b16 %v453
        %v1238 = vunpack.c.l.b16 %v454
        %v1239 = vunpack.c.h.b16 %v454
        %v1240 = vunpack.c.l.b16 %v455
        %v1241 = vunpack.c.h.b16 %v455
        %v1242 = vunpack.c.l.b16 %v456
        %v1243 = vunpack.c.h.b16 %v456
        %v1244 = vunpack.c.l.b16 %v457
        %v1245 = vunpack.c.h.b16 %v457
        %v1246 = vunpack.c.l.b16 %v458
        %v1247 = vunpack.c.h.b16 %v458
        %v1248 = vunpack.c.l.b16 %v459
        %v1249 = vunpack.c.h.b16 %v459
        %v1250 = vunpack.c.l.b16 %v460
        %v1251 = vunpack.c.h.b16 %v460
        %v1252 = vunpack.c.l.b16 %v461
        %v1253 = vunpack.c.h.b16 %v461
        %v1254 = vunpack.c.l.b16 %v462
        %v1255 = vunpack.c.h.b16 %v462
        %v1256 = vunpack.c.l.b16 %v463
        %v1257 = vunpack.c.h.b16 %v463
        %v1258 = vunpack.c.l.b16 %v464
        %v1259 = vunpack.c.h.b16 %v464
        %v1260 = vunpack.c.l.b16 %v465
        %v1261 = vunpack.c.h.b16 %v465
        %v1262 = vunpack.c.l.b16 %v466
        %v1263 = vunpack.c.h.b16 %v466
        %v1264 = vunpack.c.l.b16 %v467
        %v1265 = vunpack.c.h.b16 %v467
        %v1266 = vunpack.c.l.b16 %v468
        %v1267 = vunpack.c.h.b16 %v468
        %v1268 = vunpack.c.l.b16 %v469
        %v1269 = vunpack.c.h.b16 %v469
        %v1270 = vunpack.c.l.b16 %v470
        %v1271 = vunpack.c.h.b16 %v470
        %v1272 = vunpack.c.l.b16 %v471
        %v1273 = vunpack.c.h.b16 %v471
        %v1274 = vunpack.c.l.b16 %v472
        %v1275 = vunpack.c.h.b16 %v472
        %v1276 = vunpack.c.l.b16 %v473
        %v1277 = vunpack.c.h.b16 %v473
        %v1278 = vunpack.c.l.b16 %v474
        %v1279 = vunpack.c.h.b16 %v474
        %v1280 = vunpack.c.l.b16 %v475
        %v1281 = vunpack.c.h.b16 %v475
        %v1282 = vunpack.c.l.b16 %v476
        %v1283 = vunpack.c.h.b16 %v476
        %v1284 = vunpack.c.l.b16 %v477
        %v1285 = vunpack.c.h.b16 %v477
        %v1286 = vunpack.c.l.b16 %v478
        %v1287 = vunpack.c.h.b16 %v478
        %v1288 = vunpack.c.l.b16 %v479
        %v1289 = vunpack.c.h.b16 %v479
        %v1290 = vunpack.c.l.b16 %v480
        %v1291 = vunpack.c.h.b16 %v480
        %v1292 = vunpack.c.l.b16 %v481
        %v1293 = vunpack.c.h.b16 %v481
        %v1294 = vunpack.c.l.b16 %v482
        %v1295 = vunpack.c.h.b16 %v482
        %v1296 = vunpack.c.l.b16 %v483
        %v1297 = vunpack.c.h.b16 %v483
        %v1298 = vunpack.c.l.b16 %v484
        %v1299 = vunpack.c.h.b16 %v484
        %v1300 = vunpack.c.l.b16 %v485
        %v1301 = vunpack.c.h.b16 %v485
        %v1302 = vunpack.c.l.b16 %v486
        %v1303 = vunpack.c.h.b16 %v486
        %v1304 = vunpack.c.l.b16 %v487
        %v1305 = vunpack.c.h.b16 %v487
        %v1306 = vunpack.c.l.b16 %v488
        %v1307 = vunpack.c.h.b16 %v488
        %v1308 = vunpack.c.l.b16 %v489
        %v1309 = vunpack.c.h.b16 %v489
        %v1310 = vunpack.c.l.b16 %v490
        %v1311 = vunpack.c.h.b16 %v490
        %v1312 = vunpack.c.l.b16 %v491
        %v1313 = vunpack.c.h.b16 %v491
        %v1314 = vunpack.c.l.b16 %v492
        %v1315 = vunpack.c.h.b16 %v492
        %v1316 = vunpack.c.l.b16 %v493
        %v1317 = vunpack.c.h.b16 %v493
        %v1318 = vunpack.c.l.b16 %v494
        %v1319 = vunpack.c.h.b16 %v494
        %v1320 = vunpack.c.l.b16 %v495
        %v1321 = vunpack.c.h.b16 %v495
        %v1322 = vunpack.c.l.b16 %v496
        %v1323 = vunpack.c.h.b16 %v496
        %v1324 = vunpack.c.l.b16 %v497
        %v1325 = vunpack.c.h.b16 %v497
        %v1326 = vunpack.c.l.b16 %v498
        %v1327 = vunpack.c.h.b16 %v498
        %v1328 = vunpack.c.l.b16 %v499
        %v1329 = vunpack.c.h.b16 %v499
        %v1330 = vunpack.c.l.b16 %v500
        %v1331 = vunpack.c.h.b16 %v500
        %v1332 = vunpack.c.l.b16 %v501
        %v1333 = vunpack.c.h.b16 %v501
        %v1334 = vunpack.c.l.b16 %v502
        %v1335 = vunpack.c.h.b16 %v502
        %v1336 = vunpack.c.l.b16 %v503
        %v1337 = vunpack.c.h.b16 %v503
        %v1338 = vunpack.c.l.b16 %v504
        %v1339 = vunpack.c.h.b16 %v504
        %v1340 = vunpack.c.l.b16 %v505
        %v1341 = vunpack.c.h.b16 %v505
        %v1342 = vunpack.c.l.b16 %v506
        %v1343 = vunpack.c.h.b16 %v506
        %v1344 = vunpack.c.l.b16 %v507
        %v1345 = vunpack.c.h.b16 %v507
        %v1346 = vunpack.c.l.b16 %v508
        %v1347 = vunpack.c.h.b16 %v508
        %v1348 = vunpack.c.l.b16 %v509
        %v1349 = vunpack.c.h.b16 %v509
        %v1350 = vunpack.c.l.b16 %v510
        %v1351 = vunpack.c.h.b16 %v510
        %v1352 = vunpack.c.l.b16 %v511
        %v1353 = vunpack.c.h.b16 %v511
        %v1354 = vunpack.c.l.b16 %v512
        %v1355 = vunpack.c.h.b16 %v512
        %v1356 = vunpack.c.l.b16 %v513
        %v1357 = vunpack.c.h.b16 %v513
        %v1358 = vunpack.c.l.b16 %v514
        %v1359 = vunpack.c.h.b16 %v514
        %v1360 = vunpack.c.l.b16 %v515
        %v1361 = vunpack.c.h.b16 %v515
        %v1362 = vunpack.c.l.b16 %v516
        %v1363 = vunpack.c.h.b16 %v516
        %v1364 = vunpack.c.l.b16 %v517
        %v1365 = vunpack.c.h.b16 %v517
        %v1366 = vunpack.c.l.b16 %v518
        %v1367 = vunpack.c.h.b16 %v518
        %v1368 = vunpack.c.l.b16 %v519
        %v1369 = vunpack.c.h.b16 %v519
        %v1370 = vunpack.c.l.b16 %v520
        %v1371 = vunpack.c.h.b16 %v520
        %v1372 = vunpack.c.l.b16 %v521
        %v1373 = vunpack.c.h.b16 %v521
        %v1374 = vunpack.c.l.b16 %v522
        %v1375 = vunpack.c.h.b16 %v522
        %v1376 = vunpack.c.l.b16 %v523
        %v1377 = vunpack.c.h.b16 %v523
        %v1378 = vunpack.c.l.b16 %v524
        %v1379 = vunpack.c.h.b16 %v524
        %v1380 = vunpack.c.l.b16 %v525
        %v1381 = vunpack.c.h.b16 %v525
        %v1382 = vunpack.c.l.b16 %v526
        %v1383 = vunpack.c.h.b16 %v526
        %v1384 = vunpack.c.l.b16 %v527
        %v1385 = vunpack.c.h.b16 %v527
        %v1386 = vunpack.c.l.b16 %v528
        %v1387 = vunpack.c.h.b16 %v528
        %v1388 = vunpack.c.l.b16 %v529
        %v1389 = vunpack.c.h.b16 %v529
        %v1390 = vunpack.c.l.b16 %v530
        %v1391 = vunpack.c.h.b16 %v530
        %v1392 = vunpack.c.l.b16 %v531
        %v1393 = vunpack.c.h.b16 %v531
        %v1394 = vunpack.c.l.b16 %v532
        %v1395 = vunpack.c.h.b16 %v532
        %v1396 = vunpack.c.l.b16 %v533
        %v1397 = vunpack.c.h.b16 %v533
        %v1398 = vunpack.c.l.b16 %v534
        %v1399 = vunpack.c.h.b16 %v534
        %v1400 = vunpack.c.l.b16 %v535
        %v1401 = vunpack.c.h.b16 %v535
        %v1402 = vunpack.c.l.b16 %v536
        %v1403 = vunpack.c.h.b16 %v536
        %v1404 = vunpack.c.l.b16 %v537
        %v1405 = vunpack.c.h.b16 %v537
        %v1406 = vunpack.c.l.b16 %v538
        %v1407 = vunpack.c.h.b16 %v538
        %v1408 = vunpack.c.l.b16 %v539
        %v1409 = vunpack.c.h.b16 %v539
        %v1410 = vunpack.c.l.b16 %v540
        %v1411 = vunpack.c.h.b16 %v540
        %v1412 = vunpack.c.l.b16 %v541
        %v1413 = vunpack.c.h.b16 %v541
        %v1414 = vunpack.c.l.b16 %v542
        %v1415 = vunpack.c.h.b16 %v542
        %v1416 = vunpack.c.l.b16 %v543
        %v1417 = vunpack.c.h.b16 %v543
        %v1418 = vunpack.c.l.b16 %v544
        %v1419 = vunpack.c.h.b16 %v544
        %v1420 = vunpack.c.l.b16 %v545
        %v1421 = vunpack.c.h.b16 %v545
        %v1422 = vunpack.c.l.b16 %v546
        %v1423 = vunpack.c.h.b16 %v546
        %v1424 = vunpack.c.l.b16 %v547
        %v1425 = vunpack.c.h.b16 %v547
        %v1426 = vunpack.c.l.b16 %v548
        %v1427 = vunpack.c.h.b16 %v548
        %v1428 = vunpack.c.l.b16 %v549
        %v1429 = vunpack.c.h.b16 %v549
        %v1430 = vunpack.c.l.b16 %v550
        %v1431 = vunpack.c.h.b16 %v550
        %v1432 = vunpack.c.l.b16 %v551
        %v1433 = vunpack.c.h.b16 %v551
        %v1434 = vunpack.c.l.b16 %v552
        %v1435 = vunpack.c.h.b16 %v552
        %v1436 = vunpack.c.l.b16 %v553
        %v1437 = vunpack.c.h.b16 %v553
        %v1438 = vunpack.c.l.b16 %v554
        %v1439 = vunpack.c.h.b16 %v554
        %v1440 = vunpack.c.l.b16 %v555
        %v1441 = vunpack.c.h.b16 %v555
        %v1442 = vunpack.c.l.b16 %v556
        %v1443 = vunpack.c.h.b16 %v556
        %v1444 = vunpack.c.l.b16 %v557
        %v1445 = vunpack.c.h.b16 %v557
        %v1446 = vunpack.c.l.b16 %v558
        %v1447 = vunpack.c.h.b16 %v558
        %v1448 = vunpack.c.l.b16 %v559
        %v1449 = vunpack.c.h.b16 %v559
        %v1450 = vunpack.c.l.b16 %v560
        %v1451 = vunpack.c.h.b16 %v560
        %v1452 = vunpack.c.l.b16 %v561
        %v1453 = vunpack.c.h.b16 %v561
        %v1454 = vunpack.c.l.b16 %v562
        %v1455 = vunpack.c.h.b16 %v562
        %v1456 = vunpack.c.l.b16 %v563
        %v1457 = vunpack.c.h.b16 %v563
        %v1458 = vunpack.c.l.b16 %v564
        %v1459 = vunpack.c.h.b16 %v564
        %v1460 = vunpack.c.l.b16 %v565
        %v1461 = vunpack.c.h.b16 %v565
        %v1462 = vunpack.c.l.b16 %v566
        %v1463 = vunpack.c.h.b16 %v566
        %v1464 = vunpack.c.l.b16 %v567
        %v1465 = vunpack.c.h.b16 %v567
        %v1466 = vunpack.c.l.b16 %v568
        %v1467 = vunpack.c.h.b16 %v568
        %v1468 = vunpack.c.l.b16 %v569
        %v1469 = vunpack.c.h.b16 %v569
        %v1470 = vunpack.c.l.b16 %v570
        %v1471 = vunpack.c.h.b16 %v570
        %v1472 = vunpack.c.l.b16 %v571
        %v1473 = vunpack.c.h.b16 %v571
        %v1474 = vunpack.c.l.b16 %v572
        %v1475 = vunpack.c.h.b16 %v572
        %v1476 = vunpack.c.l.b16 %v573
        %v1477 = vunpack.c.h.b16 %v573
        %v1478 = vunpack.c.l.b16 %v574
        %v1479 = vunpack.c.h.b16 %v574
        %v1480 = vunpack.c.l.b16 %v575
        %v1481 = vunpack.c.h.b16 %v575
        %v1482 = vunpack.c.l.b16 %v576
        %v1483 = vunpack.c.h.b16 %v576
        %v1484 = vunpack.c.l.b16 %v577
        %v1485 = vunpack.c.h.b16 %v577
        %v1486 = vunpack.c.l.b16 %v578
        %v1487 = vunpack.c.h.b16 %v578
        %v1488 = vunpack.c.l.b16 %v579
        %v1489 = vunpack.c.h.b16 %v579
        %v1490 = vunpack.c.l.b16 %v580
        %v1491 = vunpack.c.h.b16 %v580
        %v1492 = vunpack.c.l.b16 %v581
        %v1493 = vunpack.c.h.b16 %v581
        %v1494 = vunpack.c.l.b16 %v582
        %v1495 = vunpack.c.h.b16 %v582
        %v1496 = vunpack.c.l.b16 %v583
        %v1497 = vunpack.c.h.b16 %v583
        %v1498 = vunpack.c.l.b16 %v584
        %v1499 = vunpack.c.h.b16 %v584
        %v1500 = vunpack.c.l.b16 %v585
        %v1501 = vunpack.c.h.b16 %v585
        %v1502 = vunpack.c.l.b16 %v586
        %v1503 = vunpack.c.h.b16 %v586
        %v1504 = vunpack.c.l.b16 %v587
        %v1505 = vunpack.c.h.b16 %v587
        %v1506 = vunpack.c.l.b16 %v588
        %v1507 = vunpack.c.h.b16 %v588
        %v1508 = vunpack.c.l.b16 %v589
        %v1509 = vunpack.c.h.b16 %v589
        %v1510 = vunpack.c.l.b16 %v590
        %v1511 = vunpack.c.h.b16 %v590
        %v1512 = vunpack.c.l.b16 %v591
        %v1513 = vunpack.c.h.b16 %v591
        %v1514 = vunpack.c.l.b16 %v592
        %v1515 = vunpack.c.h.b16 %v592
        %v1516 = vunpack.c.l.b16 %v593
        %v1517 = vunpack.c.h.b16 %v593
        %v1518 = vunpack.c.l.b16 %v594
        %v1519 = vunpack.c.h.b16 %v594
        %v1520 = vunpack.c.l.b16 %v595
        %v1521 = vunpack.c.h.b16 %v595
        %v1522 = vunpack.c.l.b16 %v596
        %v1523 = vunpack.c.h.b16 %v596
        %v1524 = vunpack.c.l.b16 %v597
        %v1525 = vunpack.c.h.b16 %v597
        %v1526 = vunpack.c.l.b16 %v598
        %v1527 = vunpack.c.h.b16 %v598
        %v1528 = vunpack.c.l.b16 %v599
        %v1529 = vunpack.c.h.b16 %v599
        %v1530 = vunpack.c.l.b16 %v600
        %v1531 = vunpack.c.h.b16 %v600
        %v1532 = vunpack.c.l.b16 %v601
        %v1533 = vunpack.c.h.b16 %v601
        %v1534 = vunpack.c.l.b16 %v602
        %v1535 = vunpack.c.h.b16 %v602
        %v1536 = vunpack.c.l.b16 %v603
        %v1537 = vunpack.c.h.b16 %v603
        %v1538 = vunpack.c.l.b16 %v604
        %v1539 = vunpack.c.h.b16 %v604
        %v1540 = vunpack.c.l.b16 %v605
        %v1541 = vunpack.c.h.b16 %v605
        %v1542 = vunpack.c.l.b16 %v606
        %v1543 = vunpack.c.h.b16 %v606
        %v1544 = vunpack.c.l.b16 %v607
        %v1545 = vunpack.c.h.b16 %v607
        %v1546 = vunpack.c.l.b16 %v608
        %v1547 = vunpack.c.h.b16 %v608
        %v1548 = vunpack.c.l.b16 %v609
        %v1549 = vunpack.c.h.b16 %v609
        %v1550 = vunpack.c.l.b16 %v610
        %v1551 = vunpack.c.h.b16 %v610
        %v1552 = vunpack.c.l.b16 %v611
        %v1553 = vunpack.c.h.b16 %v611
        %v1554 = vunpack.c.l.b16 %v612
        %v1555 = vunpack.c.h.b16 %v612
        %v1556 = vunpack.c.l.b16 %v613
        %v1557 = vunpack.c.h.b16 %v613
        %v1558 = vunpack.c.l.b16 %v614
        %v1559 = vunpack.c.h.b16 %v614
        %v1560 = vunpack.c.l.b16 %v615
        %v1561 = vunpack.c.h.b16 %v615
        %v1562 = vunpack.c.l.b16 %v616
        %v1563 = vunpack.c.h.b16 %v616
        %v1564 = vunpack.c.l.b16 %v617
        %v1565 = vunpack.c.h.b16 %v617
        %v1566 = vunpack.c.l.b16 %v618
        %v1567 = vunpack.c.h.b16 %v618
        %v1568 = vunpack.c.l.b16 %v619
        %v1569 = vunpack.c.h.b16 %v619
        %v1570 = vunpack.c.l.b16 %v620
        %v1571 = vunpack.c.h.b16 %v620
        %v1572 = vunpack.c.l.b16 %v621
        %v1573 = vunpack.c.h.b16 %v621
        %v1574 = vunpack.c.l.b16 %v622
        %v1575 = vunpack.c.h.b16 %v622
        %v1576 = vunpack.c.l.b16 %v623
        %v1577 = vunpack.c.h.b16 %v623
        %v1578 = vunpack.c.l.b16 %v624
        %v1579 = vunpack.c.h.b16 %v624
        %v1580 = vunpack.c.l.b16 %v625
        %v1581 = vunpack.c.h.b16 %v625
        %v1582 = vunpack.c.l.b16 %v626
        %v1583 = vunpack.c.h.b16 %v626
        %v1584 = vunpack.c.l.b16 %v627
        %v1585 = vunpack.c.h.b16 %v627
        %v1586 = vunpack.c.l.b16 %v628
        %v1587 = vunpack.c.h.b16 %v628
        %v1588 = vunpack.c.l.b16 %v629
        %v1589 = vunpack.c.h.b16 %v629
        %v1590 = vunpack.c.l.b16 %v630
        %v1591 = vunpack.c.h.b16 %v630
        %v1592 = vunpack.c.l.b16 %v631
        %v1593 = vunpack.c.h.b16 %v631
        %v1594 = vunpack.c.l.b16 %v632
        %v1595 = vunpack.c.h.b16 %v632
        %v1596 = vunpack.c.l.b16 %v633
        %v1597 = vunpack.c.h.b16 %v633
        %v1598 = vunpack.c.l.b16 %v634
        %v1599 = vunpack.c.h.b16 %v634
        %v1600 = vunpack.c.l.b16 %v635
        %v1601 = vunpack.c.h.b16 %v635
        %v1602 = vunpack.c.l.b16 %v636
        %v1603 = vunpack.c.h.b16 %v636
        %v1604 = vunpack.c.l.b16 %v637
        %v1605 = vunpack.c.h.b16 %v637
        %v1606 = vunpack.c.l.b16 %v638
        %v1607 = vunpack.c.h.b16 %v638
        %v1608 = vunpack.c.l.b16 %v639
        %v1609 = vunpack.c.h.b16 %v639
        %v1610 = vunpack.c.l.b16 %v640
        %v1611 = vunpack.c.h.b16 %v640
        %v1612 = vunpack.c.l.b16 %v641
        %v1613 = vunpack.c.h.b16 %v641
        %v1614 = vunpack.c.l.b16 %v642
        %v1615 = vunpack.c.h.b16 %v642
        %v1616 = vunpack.c.l.b16 %v643
        %v1617 = vunpack.c.h.b16 %v643
        %v1618 = vunpack.c.l.b16 %v644
        %v1619 = vunpack.c.h.b16 %v644
        %v1620 = vunpack.c.l.b16 %v645
        %v1621 = vunpack.c.h.b16 %v645
        %v1622 = vunpack.c.l.b16 %v646
        %v1623 = vunpack.c.h.b16 %v646
        %v1624 = vunpack.c.l.b16 %v647
        %v1625 = vunpack.c.h.b16 %v647
        %v1626 = vunpack.c.l.b16 %v648
        %v1627 = vunpack.c.h.b16 %v648
        %v1628 = vunpack.c.l.b16 %v649
        %v1629 = vunpack.c.h.b16 %v649
        %v1630 = vunpack.c.l.b16 %v650
        %v1631 = vunpack.c.h.b16 %v650
        %v1632 = vunpack.c.l.b16 %v651
        %v1633 = vunpack.c.h.b16 %v651
        %v1634 = vunpack.c.l.b16 %v652
        %v1635 = vunpack.c.h.b16 %v652
        %v1636 = vunpack.c.l.b16 %v653
        %v1637 = vunpack.c.h.b16 %v653
        %v1638 = vunpack.c.l.b16 %v654
        %v1639 = vunpack.c.h.b16 %v654
        %v1640 = vunpack.c.l.b16 %v655
        %v1641 = vunpack.c.h.b16 %v655
        %v1642 = vunpack.c.l.b16 %v656
        %v1643 = vunpack.c.h.b16 %v656
        %v1644 = vunpack.c.l.b16 %v657
        %v1645 = vunpack.c.h.b16 %v657
        %v1646 = vunpack.c.l.b16 %v658
        %v1647 = vunpack.c.h.b16 %v658
        %v1648 = vunpack.c.l.b16 %v659
        %v1649 = vunpack.c.h.b16 %v659
        %v1650 = vunpack.c.l.b16 %v660
        %v1651 = vunpack.c.h.b16 %v660
        %v1652 = vunpack.c.l.b16 %v661
        %v1653 = vunpack.c.h.b16 %v661
        %v1654 = vunpack.c.l.b16 %v662
        %v1655 = vunpack.c.h.b16 %v662
        %v1656 = vunpack.c.l.b16 %v663
        %v1657 = vunpack.c.h.b16 %v663
        %v1658 = vpack.c.b16 %v1018, %v1002
        %v1659 = vpack.c.b16 %v1019, %v1003
        %v1660 = vpack.c.b16 %v1020, %v1004
        %v1661 = vpack.c.b16 %v1021, %v1005
        %v1662 = vpack.c.b16 %v1022, %v1006
        %v1663 = vpack.c.b16 %v1023, %v1007
        %v1664 = vpack.c.b16 %v1024, %v1008
        %v1665 = vpack.c.b16 %v1025, %v1009
        %v1666 = vpack.c.b16 %v1026, %v1010
        %v1667 = vpack.c.b16 %v1027, %v1011
        %v1668 = vpack.c.b16 %v1028, %v1012
        %v1669 = vpack.c.b16 %v1029, %v1013
        %v1670 = vpack.c.b16 %v1030, %v1014
        %v1671 = vpack.c.b16 %v1031, %v1015
        %v1672 = vpack.c.b16 %v1032, %v1016
        %v1673 = vpack.c.b16 %v1033, %v1017
        %v1674 = vpack.c.b16 %v1050, %v1034
        %v1675 = vpack.c.b16 %v1051, %v1035
        %v1676 = vpack.c.b16 %v1052, %v1036
        %v1677 = vpack.c.b16 %v1053, %v1037
        %v1678 = vpack.c.b16 %v1054, %v1038
        %v1679 = vpack.c.b16 %v1055, %v1039
        %v1680 = vpack.c.b16 %v1056, %v1040
        %v1681 = vpack.c.b16 %v1057, %v1041
        %v1682 = vpack.c.b16 %v1058, %v1042
        %v1683 = vpack.c.b16 %v1059, %v1043
        %v1684 = vpack.c.b16 %v1060, %v1044
        %v1685 = vpack.c.b16 %v1061, %v1045
        %v1686 = vpack.c.b16 %v1062, %v1046
        %v1687 = vpack.c.b16 %v1063, %v1047
        %v1688 = vpack.c.b16 %v1064, %v1048
        %v1689 = vpack.c.b16 %v1065, %v1049
        %v1690 = vpack.c.b16 %v1082, %v1066
        %v1691 = vpack.c.b16 %v1083, %v1067
        %v1692 = vpack.c.b16 %v1084, %v1068
        %v1693 = vpack.c.b16 %v1085, %v1069
        %v1694 = vpack.c.b16 %v1086, %v1070
        %v1695 = vpack.c.b16 %v1087, %v1071
        %v1696 = vpack.c.b16 %v1088, %v1072
        %v1697 = vpack.c.b16 %v1089, %v1073
        %v1698 = vpack.c.b16 %v1090, %v1074
        %v1699 = vpack.c.b16 %v1091, %v1075
        %v1700 = vpack.c.b16 %v1092, %v1076
        %v1701 = vpack.c.b16 %v1093, %v1077
        %v1702 = vpack.c.b16 %v1094, %v1078
        %v1703 = vpack.c.b16 %v1095, %v1079
        %v1704 = vpack.c.b16 %v1096, %v1080
        %v1705 = vpack.c.b16 %v1097, %v1081
        %v1706 = vpack.c.b16 %v1114, %v1098
        %v1707 = vpack.c.b16 %v1115, %v1099
        %v1708 = vpack.c.b16 %v1116, %v1100
        %v1709 = vpack.c.b16 %v1117, %v1101
        %v1710 = vpack.c.b16 %v1118, %v1102
        %v1711 = vpack.c.b16 %v1119, %v1103
        %v1712 = vpack.c.b16 %v1120, %v1104
        %v1713 = vpack.c.b16 %v1121, %v1105
        %v1714 = vpack.c.b16 %v1122, %v1106
        %v1715 = vpack.c.b16 %v1123, %v1107
        %v1716 = vpack.c.b16 %v1124, %v1108
        %v1717 = vpack.c.b16 %v1125, %v1109
        %v1718 = vpack.c.b16 %v1126, %v1110
        %v1719 = vpack.c.b16 %v1127, %v1111
        %v1720 = vpack.c.b16 %v1128, %v1112
        %v1721 = vpack.c.b16 %v1129, %v1113
        %v1722 = vpack.c.b16 %v1146, %v1130
        %v1723 = vpack.c.b16 %v1147, %v1131
        %v1724 = vpack.c.b16 %v1148, %v1132
        %v1725 = vpack.c.b16 %v1149, %v1133
        %v1726 = vpack.c.b16 %v1150, %v1134
        %v1727 = vpack.c.b16 %v1151, %v1135
        %v1728 = vpack.c.b16 %v1152, %v1136
        %v1729 = vpack.c.b16 %v1153, %v1137
        %v1730 = vpack.c.b16 %v1154, %v1138
        %v1731 = vpack.c.b16 %v1155, %v1139
        %v1732 = vpack.c.b16 %v1156, %v1140
        %v1733 = vpack.c.b16 %v1157, %v1141
        %v1734 = vpack.c.b16 %v1158, %v1142
        %v1735 = vpack.c.b16 %v1159, %v1143
        %v1736 = vpack.c.b16 %v1160, %v1144
        %v1737 = vpack.c.b16 %v1161, %v1145
        %v1738 = vpack.c.b16 %v1178, %v1162
        %v1739 = vpack.c.b16 %v1179, %v1163
        %v1740 = vpack.c.b16 %v1180, %v1164
        %v1741 = vpack.c.b16 %v1181, %v1165
        %v1742 = vpack.c.b16 %v1182, %v1166
        %v1743 = vpack.c.b16 %v1183, %v1167
        %v1744 = vpack.c.b16 %v1184, %v1168
        %v1745 = vpack.c.b16 %v1185, %v1169
        %v1746 = vpack.c.b16 %v1186, %v1170
        %v1747 = vpack.c.b16 %v1187, %v1171
        %v1748 = vpack.c.b16 %v1188, %v1172
        %v1749 = vpack.c.b16 %v1189, %v1173
        %v1750 = vpack.c.b16 %v1190, %v1174
        %v1751 = vpack.c.b16 %v1191, %v1175
        %v1752 = vpack.c.b16 %v1192, %v1176
        %v1753 = vpack.c.b16 %v1193, %v1177
        %v1754 = vpack.c.b16 %v1210, %v1194
        %v1755 = vpack.c.b16 %v1211, %v1195
        %v1756 = vpack.c.b16 %v1212, %v1196
        %v1757 = vpack.c.b16 %v1213, %v1197
        %v1758 = vpack.c.b16 %v1214, %v1198
        %v1759 = vpack.c.b16 %v1215, %v1199
        %v1760 = vpack.c.b16 %v1216, %v1200
        %v1761 = vpack.c.b16 %v1217, %v1201
        %v1762 = vpack.c.b16 %v1218, %v1202
        %v1763 = vpack.c.b16 %v1219, %v1203
        %v1764 = vpack.c.b16 %v1220, %v1204
        %v1765 = vpack.c.b16 %v1221, %v1205
        %v1766 = vpack.c.b16 %v1222, %v1206
        %v1767 = vpack.c.b16 %v1223, %v1207
        %v1768 = vpack.c.b16 %v1224, %v1208
        %v1769 = vpack.c.b16 %v1225, %v1209
        %v1770 = vpack.c.b16 %v1242, %v1226
        %v1771 = vpack.c.b16 %v1243, %v1227
        %v1772 = vpack.c.b16 %v1244, %v1228
        %v1773 = vpack.c.b16 %v1245, %v1229
        %v1774 = vpack.c.b16 %v1246, %v1230
        %v1775 = vpack.c.b16 %v1247, %v1231
        %v1776 = vpack.c.b16 %v1248, %v1232
        %v1777 = vpack.c.b16 %v1249, %v1233
        %v1778 = vpack.c.b16 %v1250, %v1234
        %v1779 = vpack.c.b16 %v1251, %v1235
        %v1780 = vpack.c.b16 %v1252, %v1236
        %v1781 = vpack.c.b16 %v1253, %v1237
        %v1782 = vpack.c.b16 %v1254, %v1238
        %v1783 = vpack.c.b16 %v1255, %v1239
        %v1784 = vpack.c.b16 %v1256, %v1240
        %v1785 = vpack.c.b16 %v1257, %v1241
        %v1786 = vpack.c.b16 %v1274, %v1258
        %v1787 = vpack.c.b16 %v1275, %v1259
        %v1788 = vpack.c.b16 %v1276, %v1260
        %v1789 = vpack.c.b16 %v1277, %v1261
        %v1790 = vpack.c.b16 %v1278, %v1262
        %v1791 = vpack.c.b16 %v1279, %v1263
        %v1792 = vpack.c.b16 %v1280, %v1264
        %v1793 = vpack.c.b16 %v1281, %v1265
        %v1794 = vpack.c.b16 %v1282, %v1266
        %v1795 = vpack.c.b16 %v1283, %v1267
        %v1796 = vpack.c.b16 %v1284, %v1268
        %v1797 = vpack.c.b16 %v1285, %v1269
        %v1798 = vpack.c.b16 %v1286, %v1270
        %v1799 = vpack.c.b16 %v1287, %v1271
        %v1800 = vpack.c.b16 %v1288, %v1272
        %v1801 = vpack.c.b16 %v1289, %v1273
        %v1802 = vpack.c.b16 %v1306, %v1290
        %v1803 = vpack.c.b16 %v1307, %v1291
        %v1804 = vpack.c.b16 %v1308, %v1292
        %v1805 = vpack.c.b16 %v1309, %v1293
        %v1806 = vpack.c.b16 %v1310, %v1294
        %v1807 = vpack.c.b16 %v1311, %v1295
        %v1808 = vpack.c.b16 %v1312, %v1296
        %v1809 = vpack.c.b16 %v1313, %v1297
        %v1810 = vpack.c.b16 %v1314, %v1298
        %v1811 = vpack.c.b16 %v1315, %v1299
        %v1812 = vpack.c.b16 %v1316, %v1300
        %v1813 = vpack.c.b16 %v1317, %v1301
        %v1814 = vpack.c.b16 %v1318, %v1302
        %v1815 = vpack.c.b16 %v1319, %v1303
        %v1816 = vpack.c.b16 %v1320, %v1304
        %v1817 = vpack.c.b16 %v1321, %v1305
        %v1818 = vpack.c.b16 %v1338, %v1322
        %v1819 = vpack.c.b16 %v1339, %v1323
        %v1820 = vpack.c.b16 %v1340, %v1324
        %v1821 = vpack.c.b16 %v1341, %v1325
        %v1822 = vpack.c.b16 %v1342, %v1326
        %v1823 = vpack.c.b16 %v1343, %v1327
        %v1824 = vpack.c.b16 %v1344, %v1328
        %v1825 = vpack.c.b16 %v1345, %v1329
        %v1826 = vpack.c.b16 %v1346, %v1330
        %v1827 = vpack.c.b16 %v1347, %v1331
        %v1828 = vpack.c.b16 %v1348, %v1332
        %v1829 = vpack.c.b16 %v1349, %v1333
        %v1830 = vpack.c.b16 %v1350, %v1334
        %v1831 = vpack.c.b16 %v1351, %v1335
        %v1832 = vpack.c.b16 %v1352, %v1336
        %v1833 = vpack.c.b16 %v1353, %v1337
        %v1834 = vpack.c.b16 %v1370, %v1354
        %v1835 = vpack.c.b16 %v1371, %v1355
        %v1836 = vpack.c.b16 %v1372, %v1356
        %v1837 = vpack.c.b16 %v1373, %v1357
        %v1838 = vpack.c.b16 %v1374, %v1358
        %v1839 = vpack.c.b16 %v1375, %v1359
        %v1840 = vpack.c.b16 %v1376, %v1360
        %v1841 = vpack.c.b16 %v1377, %v1361
        %v1842 = vpack.c.b16 %v1378, %v1362
        %v1843 = vpack.c.b16 %v1379, %v1363
        %v1844 = vpack.c.b16 %v1380, %v1364
        %v1845 = vpack.c.b16 %v1381, %v1365
        %v1846 = vpack.c.b16 %v1382, %v1366
        %v1847 = vpack.c.b16 %v1383, %v1367
        %v1848 = vpack.c.b16 %v1384, %v1368
        %v1849 = vpack.c.b16 %v1385, %v1369
        %v1850 = vpack.c.b16 %v1402, %v1386
        %v1851 = vpack.c.b16 %v1403, %v1387
        %v1852 = vpack.c.b16 %v1404, %v1388
        %v1853 = vpack.c.b16 %v1405, %v1389
        %v1854 = vpack.c.b16 %v1406, %v1390
        %v1855 = vpack.c.b16 %v1407, %v1391
        %v1856 = vpack.c.b16 %v1408, %v1392
        %v1857 = vpack.c.b16 %v1409, %v1393
        %v1858 = vpack.c.b16 %v1410, %v1394
        %v1859 = vpack.c.b16 %v1411, %v1395
        %v1860 = vpack.c.b16 %v1412, %v1396
        %v1861 = vpack.c.b16 %v1413, %v1397
        %v1862 = vpack.c.b16 %v1414, %v1398
        %v1863 = vpack.c.b16 %v1415, %v1399
        %v1864 = vpack.c.b16 %v1416, %v1400
        %v1865 = vpack.c.b16 %v1417, %v1401
        %v1866 = vpack.c.b16 %v1434, %v1418
        %v1867 = vpack.c.b16 %v1435, %v1419
        %v1868 = vpack.c.b16 %v1436, %v1420
        %v1869 = vpack.c.b16 %v1437, %v1421
        %v1870 = vpack.c.b16 %v1438, %v1422
        %v1871 = vpack.c.b16 %v1439, %v1423
        %v1872 = vpack.c.b16 %v1440, %v1424
        %v1873 = vpack.c.b16 %v1441, %v1425
        %v1874 = vpack.c.b16 %v1442, %v1426
        %v1875 = vpack.c.b16 %v1443, %v1427
        %v1876 = vpack.c.b16 %v1444, %v1428
        %v1877 = vpack.c.b16 %v1445, %v1429
        %v1878 = vpack.c.b16 %v1446, %v1430
        %v1879 = vpack.c.b16 %v1447, %v1431
        %v1880 = vpack.c.b16 %v1448, %v1432
        %v1881 = vpack.c.b16 %v1449, %v1433
        %v1882 = vpack.c.b16 %v1466, %v1450
        %v1883 = vpack.c.b16 %v1467, %v1451
        %v1884 = vpack.c.b16 %v1468, %v1452
        %v1885 = vpack.c.b16 %v1469, %v1453
        %v1886 = vpack.c.b16 %v1470, %v1454
        %v1887 = vpack.c.b16 %v1471, %v1455
        %v1888 = vpack.c.b16 %v1472, %v1456
        %v1889 = vpack.c.b16 %v1473, %v1457
        %v1890 = vpack.c.b16 %v1474, %v1458
        %v1891 = vpack.c.b16 %v1475, %v1459
        %v1892 = vpack.c.b16 %v1476, %v1460
        %v1893 = vpack.c.b16 %v1477, %v1461
        %v1894 = vpack.c.b16 %v1478, %v1462
        %v1895 = vpack.c.b16 %v1479, %v1463
        %v1896 = vpack.c.b16 %v1480, %v1464
        %v1897 = vpack.c.b16 %v1481, %v1465
        %v1898 = vpack.c.b16 %v1498, %v1482
        %v1899 = vpack.c.b16 %v1499, %v1483
        %v1900 = vpack.c.b16 %v1500, %v1484
        %v1901 = vpack.c.b16 %v1501, %v1485
        %v1902 = vpack.c.b16 %v1502, %v1486
        %v1903 = vpack.c.b16 %v1503, %v1487
        %v1904 = vpack.c.b16 %v1504, %v1488
        %v1905 = vpack.c.b16 %v1505, %v1489
        %v1906 = vpack.c.b16 %v1506, %v1490
        %v1907 = vpack.c.b16 %v1507, %v1491
        %v1908 = vpack.c.b16 %v1508, %v1492
        %v1909 = vpack.c.b16 %v1509, %v1493
        %v1910 = vpack.c.b16 %v1510, %v1494
        %v1911 = vpack.c.b16 %v1511, %v1495
        %v1912 = vpack.c.b16 %v1512, %v1496
        %v1913 = vpack.c.b16 %v1513, %v1497
        %v1914 = vpack.c.b16 %v1530, %v1514
        %v1915 = vpack.c.b16 %v1531, %v1515
        %v1916 = vpack.c.b16 %v1532, %v1516
        %v1917 = vpack.c.b16 %v1533, %v1517
        %v1918 = vpack.c.b16 %v1534, %v1518
        %v1919 = vpack.c.b16 %v1535, %v1519
        %v1920 = vpack.c.b16 %v1536, %v1520
        %v1921 = vpack.c.b16 %v1537, %v1521
        %v1922 = vpack.c.b16 %v1538, %v1522
        %v1923 = vpack.c.b16 %v1539, %v1523
        %v1924 = vpack.c.b16 %v1540, %v1524
        %v1925 = vpack.c.b16 %v1541, %v1525
        %v1926 = vpack.c.b16 %v1542, %v1526
        %v1927 = vpack.c.b16 %v1543, %v1527
        %v1928 = vpack.c.b16 %v1544, %v1528
        %v1929 = vpack.c.b16 %v1545, %v1529
        %v1930 = vpack.c.b16 %v1562, %v1546
        %v1931 = vpack.c.b16 %v1563, %v1547
        %v1932 = vpack.c.b16 %v1564, %v1548
        %v1933 = vpack.c.b16 %v1565, %v1549
        %v1934 = vpack.c.b16 %v1566, %v1550
        %v1935 = vpack.c.b16 %v1567, %v1551
        %v1936 = vpack.c.b16 %v1568, %v1552
        %v1937 = vpack.c.b16 %v1569, %v1553
        %v1938 = vpack.c.b16 %v1570, %v1554
        %v1939 = vpack.c.b16 %v1571, %v1555
        %v1940 = vpack.c.b16 %v1572, %v1556
        %v1941 = vpack.c.b16 %v1573, %v1557
        %v1942 = vpack.c.b16 %v1574, %v1558
        %v1943 = vpack.c.b16 %v1575, %v1559
        %v1944 = vpack.c.b16 %v1576, %v1560
        %v1945 = vpack.c.b16 %v1577, %v1561
        %v1946 = vpack.c.b16 %v1594, %v1578
        %v1947 = vpack.c.b16 %v1595, %v1579
        %v1948 = vpack.c.b16 %v1596, %v1580
        %v1949 = vpack.c.b16 %v1597, %v1581
        %v1950 = vpack.c.b16 %v1598, %v1582
        %v1951 = vpack.c.b16 %v1599, %v1583
        %v1952 = vpack.c.b16 %v1600, %v1584
        %v1953 = vpack.c.b16 %v1601, %v1585
        %v1954 = vpack.c.b16 %v1602, %v1586
        %v1955 = vpack.c.b16 %v1603, %v1587
        %v1956 = vpack.c.b16 %v1604, %v1588
        %v1957 = vpack.c.b16 %v1605, %v1589
        %v1958 = vpack.c.b16 %v1606, %v1590
        %v1959 = vpack.c.b16 %v1607, %v1591
        %v1960 = vpack.c.b16 %v1608, %v1592
        %v1961 = vpack.c.b16 %v1609, %v1593
        %v1962 = vpack.c.b16 %v1626, %v1610
        %v1963 = vpack.c.b16 %v1627, %v1611
        %v1964 = vpack.c.b16 %v1628, %v1612
        %v1965 = vpack.c.b16 %v1629, %v1613
        %v1966 = vpack.c.b16 %v1630, %v1614
        %v1967 = vpack.c.b16 %v1631, %v1615
        %v1968 = vpack.c.b16 %v1632, %v1616
        %v1969 = vpack.c.b16 %v1633, %v1617
        %v1970 = vpack.c.b16 %v1634, %v1618
        %v1971 = vpack.c.b16 %v1635, %v1619
        %v1972 = vpack.c.b16 %v1636, %v1620
        %v1973 = vpack.c.b16 %v1637, %v1621
        %v1974 = vpack.c.b16 %v1638, %v1622
        %v1975 = vpack.c.b16 %v1639, %v1623
        %v1976 = vpack.c.b16 %v1640, %v1624
        %v1977 = vpack.c.b16 %v1641, %v1625
        %v1978 = vpack.c.b16 %v1642, %v1642
        %v1979 = vpack.c.b16 %v1643, %v1643
        %v1980 = vpack.c.b16 %v1644, %v1644
        %v1981 = vpack.c.b16 %v1645, %v1645
        %v1982 = vpack.c.b16 %v1646, %v1646
        %v1983 = vpack.c.b16 %v1647, %v1647
        %v1984 = vpack.c.b16 %v1648, %v1648
        %v1985 = vpack.c.b16 %v1649, %v1649
        %v1986 = vpack.c.b16 %v1650, %v1650
        %v1987 = vpack.c.b16 %v1651, %v1651
        %v1988 = vpack.c.b16 %v1652, %v1652
        %v1989 = vpack.c.b16 %v1653, %v1653
        %v1990 = vpack.c.b16 %v1654, %v1654
        %v1991 = vpack.c.b16 %v1655, %v1655
        %v1992 = vpack.c.b16 %v1656, %v1656
        %v1993 = vpack.c.b16 %v1657, %v1657
        %vm2314 = vcmask 556032
        %v2316 = vsel %vm2314, %v671, 0
        %vm2318 = vcmask 1041408
        %v2320 = vsel %vm2318, %v1978, 0
        %v2323 = vsel %vm2318, %v1979, 0
        %v2326 = vsel %vm2318, %v1980, 0
        %v2329 = vsel %vm2318, %v1981, 0
        %v2332 = vsel %vm2318, %v1982, 0
        %v2335 = vsel %vm2318, %v1983, 0
        %v2338 = vsel %vm2318, %v1984, 0
        %v2341 = vsel %vm2318, %v1985, 0
        %v2344 = vsel %vm2318, %v1986, 0
        %v2347 = vsel %vm2318, %v1987, 0
        %v2350 = vsel %vm2318, %v1988, 0
        %v2353 = vsel %vm2318, %v1989, 0
        %v2356 = vsel %vm2318, %v1990, 0
        %v2359 = vsel %vm2318, %v1991, 0
        %v2362 = vsel %vm2318, %v1992, 0
        %v2365 = vsel %vm2318, %v1993, 0
        %2367 = vmatprep.subr.bf16.mxu0 %v1771
        %2368 = vmatpush1.bf16.msra.mxu0 %v1770
        %2369 = vmatprep.subr.bf16.mxu0 %v1755
        %2370 = vmatpush1.bf16.msra.mxu0 %v1754
        %2371 = vmatprep.subr.bf16.mxu0 %v1739
        %2372 = vmatpush1.bf16.msra.mxu0 %v1738
        %2373 = vmatprep.subr.bf16.mxu0 %v1723
        %2374 = vmatpush1.bf16.msra.mxu0 %v1722
        %2375 = vmatprep.subr.bf16.mxu0 %v1707
        %2376 = vmatpush1.bf16.msra.mxu0 %v1706
        %2377 = vmatprep.subr.bf16.mxu0 %v1691
        %2378 = vmatpush1.bf16.msra.mxu0 %v1690
        %2379 = vmatprep.subr.bf16.mxu0 %v1675
        %2380 = vmatpush1.bf16.msra.mxu0 %v1674
        %2381 = vmatprep.subr.bf16.mxu0 %v1659
        %2382 = vmatpush1.bf16.msra.mxu0 %v1658
        %2383 = vmatprep.subr.bf16.mxu0 %v1899
        %2384 = vmatpush2.bf16.msra.mxu0 %v1898
        %2385 = vmatprep.subr.bf16.mxu0 %v1883
        %2386 = vmatpush2.bf16.msra.mxu0 %v1882
        %2387 = vmatprep.subr.bf16.mxu0 %v1867
        %2388 = vmatpush2.bf16.msra.mxu0 %v1866
        %2389 = vmatprep.subr.bf16.mxu0 %v1851
        %2390 = vmatpush2.bf16.msra.mxu0 %v1850
        %2391 = vmatprep.subr.bf16.mxu0 %v1835
        %2392 = vmatpush2.bf16.msra.mxu0 %v1834
        %2393 = vmatprep.subr.bf16.mxu0 %v1819
        %2394 = vmatpush2.bf16.msra.mxu0 %v1818
        %2395 = vmatprep.subr.bf16.mxu0 %v1803
        %2396 = vmatpush2.bf16.msra.mxu0 %v1802
        %2397 = vmatprep.subr.bf16.mxu0 %v1787
        %2398 = vmatpush2.bf16.msra.mxu0 %v1786
        %2399 = vmatprep.mubr.bf16.mxu0 %v670
        %2400 = vmatmul.mubr.bf16.gmra.mxu0 %v669
        %v2401 = vpop.f32.mrf.mxu0
        %v2402 = vadd.f32 0.0, %v2401
        %v2403 = vpop.f32.mrf.mxu0
        %v2404 = vadd.f32 0.0, %v2403
        %v2405 = vpop.f32.mrf.mxu0
        %v2406 = vpop.f32.mrf.mxu0
        %2407 = vdwg.mxu0
        %2408 = vmatprep.subr.bf16.mxu0 0
        %2409 = vmatpush1.bf16.msra.mxu0 0
        %2410 = vmatprep.subr.bf16.mxu0 0
        %2411 = vmatpush1.bf16.msra.mxu0 0
        %2412 = vmatprep.subr.bf16.mxu0 0
        %2413 = vmatpush1.bf16.msra.mxu0 0
        %2414 = vmatprep.subr.bf16.mxu0 %v2323
        %2415 = vmatpush1.bf16.msra.mxu0 %v2320
        %2416 = vmatprep.subr.bf16.mxu0 %v1963
        %2417 = vmatpush1.bf16.msra.mxu0 %v1962
        %2418 = vmatprep.subr.bf16.mxu0 %v1947
        %2419 = vmatpush1.bf16.msra.mxu0 %v1946
        %2420 = vmatprep.subr.bf16.mxu0 %v1931
        %2421 = vmatpush1.bf16.msra.mxu0 %v1930
        %2422 = vmatprep.subr.bf16.mxu0 %v1915
        %2423 = vmatpush1.bf16.msra.mxu0 %v1914
        %2424 = vmatprep.subr.bf16.mxu0 0
        %2425 = vmatpush2.bf16.msra.mxu0 0
        %2426 = vmatprep.subr.bf16.mxu0 0
        %2427 = vmatpush2.bf16.msra.mxu0 0
        %2428 = vmatprep.subr.bf16.mxu0 0
        %2429 = vmatpush2.bf16.msra.mxu0 0
        %2430 = vmatprep.subr.bf16.mxu0 0
        %2431 = vmatpush2.bf16.msra.mxu0 0
        %2432 = vmatprep.subr.bf16.mxu0 0
        %2433 = vmatpush2.bf16.msra.mxu0 0
        %2434 = vmatprep.subr.bf16.mxu0 0
        %2435 = vmatpush2.bf16.msra.mxu0 0
        %2436 = vmatprep.subr.bf16.mxu0 0
        %2437 = vmatpush2.bf16.msra.mxu0 0
        %2438 = vmatprep.subr.bf16.mxu0 0
        %2439 = vmatpush2.bf16.msra.mxu0 0
        %2440 = vmatprep.mubr.bf16.mxu0 0
        %2441 = vmatmul.mubr.bf16.gmra.mxu0 %v2316
        %v2442 = vpop.f32.mrf.mxu0
        %v2443 = vadd.f32 %v2402, %v2442
        %v2444 = vpop.f32.mrf.mxu0
        %v2445 = vadd.f32 %v2404, %v2444
        %v2446 = vpop.f32.mrf.mxu0
        %v2447 = vpop.f32.mrf.mxu0
        %2448 = vdwg.mxu0
        %2449 = vmatprep.subr.bf16.mxu0 %v1773
        %2450 = vmatpush1.bf16.msra.mxu0 %v1772
        %2451 = vmatprep.subr.bf16.mxu0 %v1757
        %2452 = vmatpush1.bf16.msra.mxu0 %v1756
        %2453 = vmatprep.subr.bf16.mxu0 %v1741
        %2454 = vmatpush1.bf16.msra.mxu0 %v1740
        %2455 = vmatprep.subr.bf16.mxu0 %v1725
        %2456 = vmatpush1.bf16.msra.mxu0 %v1724
        %2457 = vmatprep.subr.bf16.mxu0 %v1709
        %2458 = vmatpush1.bf16.msra.mxu0 %v1708
        %2459 = vmatprep.subr.bf16.mxu0 %v1693
        %2460 = vmatpush1.bf16.msra.mxu0 %v1692
        %2461 = vmatprep.subr.bf16.mxu0 %v1677
        %2462 = vmatpush1.bf16.msra.mxu0 %v1676
        %2463 = vmatprep.subr.bf16.mxu0 %v1661
        %2464 = vmatpush1.bf16.msra.mxu0 %v1660
        %2465 = vmatprep.subr.bf16.mxu0 %v1901
        %2466 = vmatpush2.bf16.msra.mxu0 %v1900
        %2467 = vmatprep.subr.bf16.mxu0 %v1885
        %2468 = vmatpush2.bf16.msra.mxu0 %v1884
        %2469 = vmatprep.subr.bf16.mxu0 %v1869
        %2470 = vmatpush2.bf16.msra.mxu0 %v1868
        %2471 = vmatprep.subr.bf16.mxu0 %v1853
        %2472 = vmatpush2.bf16.msra.mxu0 %v1852
        %2473 = vmatprep.subr.bf16.mxu0 %v1837
        %2474 = vmatpush2.bf16.msra.mxu0 %v1836
        %2475 = vmatprep.subr.bf16.mxu0 %v1821
        %2476 = vmatpush2.bf16.msra.mxu0 %v1820
        %2477 = vmatprep.subr.bf16.mxu0 %v1805
        %2478 = vmatpush2.bf16.msra.mxu0 %v1804
        %2479 = vmatprep.subr.bf16.mxu0 %v1789
        %2480 = vmatpush2.bf16.msra.mxu0 %v1788
        %2481 = vmatprep.mubr.bf16.mxu0 %v670
        %2482 = vmatmul.mubr.bf16.gmra.mxu0 %v669
        %v2483 = vpop.f32.mrf.mxu0
        %v2484 = vadd.f32 0.0, %v2483
        %v2485 = vpop.f32.mrf.mxu0
        %v2486 = vadd.f32 0.0, %v2485
        %v2487 = vpop.f32.mrf.mxu0
        %v2488 = vpop.f32.mrf.mxu0
        %2489 = vdwg.mxu0
        %2490 = vmatprep.subr.bf16.mxu0 0
        %2491 = vmatpush1.bf16.msra.mxu0 0
        %2492 = vmatprep.subr.bf16.mxu0 0
        %2493 = vmatpush1.bf16.msra.mxu0 0
        %2494 = vmatprep.subr.bf16.mxu0 0
        %2495 = vmatpush1.bf16.msra.mxu0 0
        %2496 = vmatprep.subr.bf16.mxu0 %v2329
        %2497 = vmatpush1.bf16.msra.mxu0 %v2326
        %2498 = vmatprep.subr.bf16.mxu0 %v1965
        %2499 = vmatpush1.bf16.msra.mxu0 %v1964
        %2500 = vmatprep.subr.bf16.mxu0 %v1949
        %2501 = vmatpush1.bf16.msra.mxu0 %v1948
        %2502 = vmatprep.subr.bf16.mxu0 %v1933
        %2503 = vmatpush1.bf16.msra.mxu0 %v1932
        %2504 = vmatprep.subr.bf16.mxu0 %v1917
        %2505 = vmatpush1.bf16.msra.mxu0 %v1916
        %2506 = vmatprep.subr.bf16.mxu0 0
        %2507 = vmatpush2.bf16.msra.mxu0 0
        %2508 = vmatprep.subr.bf16.mxu0 0
        %2509 = vmatpush2.bf16.msra.mxu0 0
        %2510 = vmatprep.subr.bf16.mxu0 0
        %2511 = vmatpush2.bf16.msra.mxu0 0
        %2512 = vmatprep.subr.bf16.mxu0 0
        %2513 = vmatpush2.bf16.msra.mxu0 0
        %2514 = vmatprep.subr.bf16.mxu0 0
        %2515 = vmatpush2.bf16.msra.mxu0 0
        %2516 = vmatprep.subr.bf16.mxu0 0
        %2517 = vmatpush2.bf16.msra.mxu0 0
        %2518 = vmatprep.subr.bf16.mxu0 0
        %2519 = vmatpush2.bf16.msra.mxu0 0
        %2520 = vmatprep.subr.bf16.mxu0 0
        %2521 = vmatpush2.bf16.msra.mxu0 0
        %2522 = vmatprep.mubr.bf16.mxu0 0
        %2523 = vmatmul.mubr.bf16.gmra.mxu0 %v2316
        %v2524 = vpop.f32.mrf.mxu0
        %v2525 = vadd.f32 %v2484, %v2524
        %v2526 = vpop.f32.mrf.mxu0
        %v2527 = vadd.f32 %v2486, %v2526
        %v2528 = vpop.f32.mrf.mxu0
        %v2529 = vpop.f32.mrf.mxu0
        %2530 = vdwg.mxu0
        %2531 = vmatprep.subr.bf16.mxu0 %v1775
        %2532 = vmatpush1.bf16.msra.mxu0 %v1774
        %2533 = vmatprep.subr.bf16.mxu0 %v1759
        %2534 = vmatpush1.bf16.msra.mxu0 %v1758
        %2535 = vmatprep.subr.bf16.mxu0 %v1743
        %2536 = vmatpush1.bf16.msra.mxu0 %v1742
        %2537 = vmatprep.subr.bf16.mxu0 %v1727
        %2538 = vmatpush1.bf16.msra.mxu0 %v1726
        %2539 = vmatprep.subr.bf16.mxu0 %v1711
        %2540 = vmatpush1.bf16.msra.mxu0 %v1710
        %2541 = vmatprep.subr.bf16.mxu0 %v1695
        %2542 = vmatpush1.bf16.msra.mxu0 %v1694
        %2543 = vmatprep.subr.bf16.mxu0 %v1679
        %2544 = vmatpush1.bf16.msra.mxu0 %v1678
        %2545 = vmatprep.subr.bf16.mxu0 %v1663
        %2546 = vmatpush1.bf16.msra.mxu0 %v1662
        %2547 = vmatprep.subr.bf16.mxu0 %v1903
        %2548 = vmatpush2.bf16.msra.mxu0 %v1902
        %2549 = vmatprep.subr.bf16.mxu0 %v1887
        %2550 = vmatpush2.bf16.msra.mxu0 %v1886
        %2551 = vmatprep.subr.bf16.mxu0 %v1871
        %2552 = vmatpush2.bf16.msra.mxu0 %v1870
        %2553 = vmatprep.subr.bf16.mxu0 %v1855
        %2554 = vmatpush2.bf16.msra.mxu0 %v1854
        %2555 = vmatprep.subr.bf16.mxu0 %v1839
        %2556 = vmatpush2.bf16.msra.mxu0 %v1838
        %2557 = vmatprep.subr.bf16.mxu0 %v1823
        %2558 = vmatpush2.bf16.msra.mxu0 %v1822
        %2559 = vmatprep.subr.bf16.mxu0 %v1807
        %2560 = vmatpush2.bf16.msra.mxu0 %v1806
        %2561 = vmatprep.subr.bf16.mxu0 %v1791
        %2562 = vmatpush2.bf16.msra.mxu0 %v1790
        %2563 = vmatprep.mubr.bf16.mxu0 %v670
        %2564 = vmatmul.mubr.bf16.gmra.mxu0 %v669
        %v2565 = vpop.f32.mrf.mxu0
        %v2566 = vadd.f32 0.0, %v2565
        %v2567 = vpop.f32.mrf.mxu0
        %v2568 = vadd.f32 0.0, %v2567
        %v2569 = vpop.f32.mrf.mxu0
        %v2570 = vpop.f32.mrf.mxu0
        %2571 = vdwg.mxu0
        %2572 = vmatprep.subr.bf16.mxu0 0
        %2573 = vmatpush1.bf16.msra.mxu0 0
        %2574 = vmatprep.subr.bf16.mxu0 0
        %2575 = vmatpush1.bf16.msra.mxu0 0
        %2576 = vmatprep.subr.bf16.mxu0 0
        %2577 = vmatpush1.bf16.msra.mxu0 0
        %2578 = vmatprep.subr.bf16.mxu0 %v2335
        %2579 = vmatpush1.bf16.msra.mxu0 %v2332
        %2580 = vmatprep.subr.bf16.mxu0 %v1967
        %2581 = vmatpush1.bf16.msra.mxu0 %v1966
        %2582 = vmatprep.subr.bf16.mxu0 %v1951
        %2583 = vmatpush1.bf16.msra.mxu0 %v1950
        %2584 = vmatprep.subr.bf16.mxu0 %v1935
        %2585 = vmatpush1.bf16.msra.mxu0 %v1934
        %2586 = vmatprep.subr.bf16.mxu0 %v1919
        %2587 = vmatpush1.bf16.msra.mxu0 %v1918
        %2588 = vmatprep.subr.bf16.mxu0 0
        %2589 = vmatpush2.bf16.msra.mxu0 0
        %2590 = vmatprep.subr.bf16.mxu0 0
        %2591 = vmatpush2.bf16.msra.mxu0 0
        %2592 = vmatprep.subr.bf16.mxu0 0
        %2593 = vmatpush2.bf16.msra.mxu0 0
        %2594 = vmatprep.subr.bf16.mxu0 0
        %2595 = vmatpush2.bf16.msra.mxu0 0
        %2596 = vmatprep.subr.bf16.mxu0 0
        %2597 = vmatpush2.bf16.msra.mxu0 0
        %2598 = vmatprep.subr.bf16.mxu0 0
        %2599 = vmatpush2.bf16.msra.mxu0 0
        %2600 = vmatprep.subr.bf16.mxu0 0
        %2601 = vmatpush2.bf16.msra.mxu0 0
        %2602 = vmatprep.subr.bf16.mxu0 0
        %2603 = vmatpush2.bf16.msra.mxu0 0
        %2604 = vmatprep.mubr.bf16.mxu0 0
        %2605 = vmatmul.mubr.bf16.gmra.mxu0 %v2316
        %v2606 = vpop.f32.mrf.mxu0
        %v2607 = vadd.f32 %v2566, %v2606
        %v2608 = vpop.f32.mrf.mxu0
        %v2609 = vadd.f32 %v2568, %v2608
        %v2610 = vpop.f32.mrf.mxu0
        %v2611 = vpop.f32.mrf.mxu0
        %2612 = vdwg.mxu0
        %2613 = vmatprep.subr.bf16.mxu0 %v1777
        %2614 = vmatpush1.bf16.msra.mxu0 %v1776
        %2615 = vmatprep.subr.bf16.mxu0 %v1761
        %2616 = vmatpush1.bf16.msra.mxu0 %v1760
        %2617 = vmatprep.subr.bf16.mxu0 %v1745
        %2618 = vmatpush1.bf16.msra.mxu0 %v1744
        %2619 = vmatprep.subr.bf16.mxu0 %v1729
        %2620 = vmatpush1.bf16.msra.mxu0 %v1728
        %2621 = vmatprep.subr.bf16.mxu0 %v1713
        %2622 = vmatpush1.bf16.msra.mxu0 %v1712
        %2623 = vmatprep.subr.bf16.mxu0 %v1697
        %2624 = vmatpush1.bf16.msra.mxu0 %v1696
        %2625 = vmatprep.subr.bf16.mxu0 %v1681
        %2626 = vmatpush1.bf16.msra.mxu0 %v1680
        %2627 = vmatprep.subr.bf16.mxu0 %v1665
        %2628 = vmatpush1.bf16.msra.mxu0 %v1664
        %2629 = vmatprep.subr.bf16.mxu0 %v1905
        %2630 = vmatpush2.bf16.msra.mxu0 %v1904
        %2631 = vmatprep.subr.bf16.mxu0 %v1889
        %2632 = vmatpush2.bf16.msra.mxu0 %v1888
        %2633 = vmatprep.subr.bf16.mxu0 %v1873
        %2634 = vmatpush2.bf16.msra.mxu0 %v1872
        %2635 = vmatprep.subr.bf16.mxu0 %v1857
        %2636 = vmatpush2.bf16.msra.mxu0 %v1856
        %2637 = vmatprep.subr.bf16.mxu0 %v1841
        %2638 = vmatpush2.bf16.msra.mxu0 %v1840
        %2639 = vmatprep.subr.bf16.mxu0 %v1825
        %2640 = vmatpush2.bf16.msra.mxu0 %v1824
        %2641 = vmatprep.subr.bf16.mxu0 %v1809
        %2642 = vmatpush2.bf16.msra.mxu0 %v1808
        %2643 = vmatprep.subr.bf16.mxu0 %v1793
        %2644 = vmatpush2.bf16.msra.mxu0 %v1792
        %2645 = vmatprep.mubr.bf16.mxu0 %v670
        %2646 = vmatmul.mubr.bf16.gmra.mxu0 %v669
        %v2647 = vpop.f32.mrf.mxu0
        %v2648 = vadd.f32 0.0, %v2647
        %v2649 = vpop.f32.mrf.mxu0
        %v2650 = vadd.f32 0.0, %v2649
        %v2651 = vpop.f32.mrf.mxu0
        %v2652 = vpop.f32.mrf.mxu0
        %2653 = vdwg.mxu0
        %2654 = vmatprep.subr.bf16.mxu0 0
        %2655 = vmatpush1.bf16.msra.mxu0 0
        %2656 = vmatprep.subr.bf16.mxu0 0
        %2657 = vmatpush1.bf16.msra.mxu0 0
        %2658 = vmatprep.subr.bf16.mxu0 0
        %2659 = vmatpush1.bf16.msra.mxu0 0
        %2660 = vmatprep.subr.bf16.mxu0 %v2341
        %2661 = vmatpush1.bf16.msra.mxu0 %v2338
        %2662 = vmatprep.subr.bf16.mxu0 %v1969
        %2663 = vmatpush1.bf16.msra.mxu0 %v1968
        %2664 = vmatprep.subr.bf16.mxu0 %v1953
        %2665 = vmatpush1.bf16.msra.mxu0 %v1952
        %2666 = vmatprep.subr.bf16.mxu0 %v1937
        %2667 = vmatpush1.bf16.msra.mxu0 %v1936
        %2668 = vmatprep.subr.bf16.mxu0 %v1921
        %2669 = vmatpush1.bf16.msra.mxu0 %v1920
        %2670 = vmatprep.subr.bf16.mxu0 0
        %2671 = vmatpush2.bf16.msra.mxu0 0
        %2672 = vmatprep.subr.bf16.mxu0 0
        %2673 = vmatpush2.bf16.msra.mxu0 0
        %2674 = vmatprep.subr.bf16.mxu0 0
        %2675 = vmatpush2.bf16.msra.mxu0 0
        %2676 = vmatprep.subr.bf16.mxu0 0
        %2677 = vmatpush2.bf16.msra.mxu0 0
        %2678 = vmatprep.subr.bf16.mxu0 0
        %2679 = vmatpush2.bf16.msra.mxu0 0
        %2680 = vmatprep.subr.bf16.mxu0 0
        %2681 = vmatpush2.bf16.msra.mxu0 0
        %2682 = vmatprep.subr.bf16.mxu0 0
        %2683 = vmatpush2.bf16.msra.mxu0 0
        %2684 = vmatprep.subr.bf16.mxu0 0
        %2685 = vmatpush2.bf16.msra.mxu0 0
        %2686 = vmatprep.mubr.bf16.mxu0 0
        %2687 = vmatmul.mubr.bf16.gmra.mxu0 %v2316
        %v2688 = vpop.f32.mrf.mxu0
        %v2689 = vadd.f32 %v2648, %v2688
        %v2690 = vpop.f32.mrf.mxu0
        %v2691 = vadd.f32 %v2650, %v2690
        %v2692 = vpop.f32.mrf.mxu0
        %v2693 = vpop.f32.mrf.mxu0
        %2694 = vdwg.mxu0
        %2695 = vmatprep.subr.bf16.mxu0 %v1779
        %2696 = vmatpush1.bf16.msra.mxu0 %v1778
        %2697 = vmatprep.subr.bf16.mxu0 %v1763
        %2698 = vmatpush1.bf16.msra.mxu0 %v1762
        %2699 = vmatprep.subr.bf16.mxu0 %v1747
        %2700 = vmatpush1.bf16.msra.mxu0 %v1746
        %2701 = vmatprep.subr.bf16.mxu0 %v1731
        %2702 = vmatpush1.bf16.msra.mxu0 %v1730
        %2703 = vmatprep.subr.bf16.mxu0 %v1715
        %2704 = vmatpush1.bf16.msra.mxu0 %v1714
        %2705 = vmatprep.subr.bf16.mxu0 %v1699
        %2706 = vmatpush1.bf16.msra.mxu0 %v1698
        %2707 = vmatprep.subr.bf16.mxu0 %v1683
        %2708 = vmatpush1.bf16.msra.mxu0 %v1682
        %2709 = vmatprep.subr.bf16.mxu0 %v1667
        %2710 = vmatpush1.bf16.msra.mxu0 %v1666
        %2711 = vmatprep.subr.bf16.mxu0 %v1907
        %2712 = vmatpush2.bf16.msra.mxu0 %v1906
        %2713 = vmatprep.subr.bf16.mxu0 %v1891
        %2714 = vmatpush2.bf16.msra.mxu0 %v1890
        %2715 = vmatprep.subr.bf16.mxu0 %v1875
        %2716 = vmatpush2.bf16.msra.mxu0 %v1874
        %2717 = vmatprep.subr.bf16.mxu0 %v1859
        %2718 = vmatpush2.bf16.msra.mxu0 %v1858
        %2719 = vmatprep.subr.bf16.mxu0 %v1843
        %2720 = vmatpush2.bf16.msra.mxu0 %v1842
        %2721 = vmatprep.subr.bf16.mxu0 %v1827
        %2722 = vmatpush2.bf16.msra.mxu0 %v1826
        %2723 = vmatprep.subr.bf16.mxu0 %v1811
        %2724 = vmatpush2.bf16.msra.mxu0 %v1810
        %2725 = vmatprep.subr.bf16.mxu0 %v1795
        %2726 = vmatpush2.bf16.msra.mxu0 %v1794
        %2727 = vmatprep.mubr.bf16.mxu0 %v670
        %2728 = vmatmul.mubr.bf16.gmra.mxu0 %v669
        %v2729 = vpop.f32.mrf.mxu0
        %v2730 = vadd.f32 0.0, %v2729
        %v2731 = vpop.f32.mrf.mxu0
        %v2732 = vadd.f32 0.0, %v2731
        %v2733 = vpop.f32.mrf.mxu0
        %v2734 = vpop.f32.mrf.mxu0
        %2735 = vdwg.mxu0
        %2736 = vmatprep.subr.bf16.mxu0 0
        %2737 = vmatpush1.bf16.msra.mxu0 0
        %2738 = vmatprep.subr.bf16.mxu0 0
        %2739 = vmatpush1.bf16.msra.mxu0 0
        %2740 = vmatprep.subr.bf16.mxu0 0
        %2741 = vmatpush1.bf16.msra.mxu0 0
        %2742 = vmatprep.subr.bf16.mxu0 %v2347
        %2743 = vmatpush1.bf16.msra.mxu0 %v2344
        %2744 = vmatprep.subr.bf16.mxu0 %v1971
        %2745 = vmatpush1.bf16.msra.mxu0 %v1970
        %2746 = vmatprep.subr.bf16.mxu0 %v1955
        %2747 = vmatpush1.bf16.msra.mxu0 %v1954
        %2748 = vmatprep.subr.bf16.mxu0 %v1939
        %2749 = vmatpush1.bf16.msra.mxu0 %v1938
        %2750 = vmatprep.subr.bf16.mxu0 %v1923
        %2751 = vmatpush1.bf16.msra.mxu0 %v1922
        %2752 = vmatprep.subr.bf16.mxu0 0
        %2753 = vmatpush2.bf16.msra.mxu0 0
        %2754 = vmatprep.subr.bf16.mxu0 0
        %2755 = vmatpush2.bf16.msra.mxu0 0
        %2756 = vmatprep.subr.bf16.mxu0 0
        %2757 = vmatpush2.bf16.msra.mxu0 0
        %2758 = vmatprep.subr.bf16.mxu0 0
        %2759 = vmatpush2.bf16.msra.mxu0 0
        %2760 = vmatprep.subr.bf16.mxu0 0
        %2761 = vmatpush2.bf16.msra.mxu0 0
        %2762 = vmatprep.subr.bf16.mxu0 0
        %2763 = vmatpush2.bf16.msra.mxu0 0
        %2764 = vmatprep.subr.bf16.mxu0 0
        %2765 = vmatpush2.bf16.msra.mxu0 0
        %2766 = vmatprep.subr.bf16.mxu0 0
        %2767 = vmatpush2.bf16.msra.mxu0 0
        %2768 = vmatprep.mubr.bf16.mxu0 0
        %2769 = vmatmul.mubr.bf16.gmra.mxu0 %v2316
        %v2770 = vpop.f32.mrf.mxu0
        %v2771 = vadd.f32 %v2730, %v2770
        %v2772 = vpop.f32.mrf.mxu0
        %v2773 = vadd.f32 %v2732, %v2772
        %v2774 = vpop.f32.mrf.mxu0
        %v2775 = vpop.f32.mrf.mxu0
        %2776 = vdwg.mxu0
        %2777 = vmatprep.subr.bf16.mxu0 %v1781
        %2778 = vmatpush1.bf16.msra.mxu0 %v1780
        %2779 = vmatprep.subr.bf16.mxu0 %v1765
        %2780 = vmatpush1.bf16.msra.mxu0 %v1764
        %2781 = vmatprep.subr.bf16.mxu0 %v1749
        %2782 = vmatpush1.bf16.msra.mxu0 %v1748
        %2783 = vmatprep.subr.bf16.mxu0 %v1733
        %2784 = vmatpush1.bf16.msra.mxu0 %v1732
        %2785 = vmatprep.subr.bf16.mxu0 %v1717
        %2786 = vmatpush1.bf16.msra.mxu0 %v1716
        %2787 = vmatprep.subr.bf16.mxu0 %v1701
        %2788 = vmatpush1.bf16.msra.mxu0 %v1700
        %2789 = vmatprep.subr.bf16.mxu0 %v1685
        %2790 = vmatpush1.bf16.msra.mxu0 %v1684
        %2791 = vmatprep.subr.bf16.mxu0 %v1669
        %2792 = vmatpush1.bf16.msra.mxu0 %v1668
        %2793 = vmatprep.subr.bf16.mxu0 %v1909
        %2794 = vmatpush2.bf16.msra.mxu0 %v1908
        %2795 = vmatprep.subr.bf16.mxu0 %v1893
        %2796 = vmatpush2.bf16.msra.mxu0 %v1892
        %2797 = vmatprep.subr.bf16.mxu0 %v1877
        %2798 = vmatpush2.bf16.msra.mxu0 %v1876
        %2799 = vmatprep.subr.bf16.mxu0 %v1861
        %2800 = vmatpush2.bf16.msra.mxu0 %v1860
        %2801 = vmatprep.subr.bf16.mxu0 %v1845
        %2802 = vmatpush2.bf16.msra.mxu0 %v1844
        %2803 = vmatprep.subr.bf16.mxu0 %v1829
        %2804 = vmatpush2.bf16.msra.mxu0 %v1828
        %2805 = vmatprep.subr.bf16.mxu0 %v1813
        %2806 = vmatpush2.bf16.msra.mxu0 %v1812
        %2807 = vmatprep.subr.bf16.mxu0 %v1797
        %2808 = vmatpush2.bf16.msra.mxu0 %v1796
        %2809 = vmatprep.mubr.bf16.mxu0 %v670
        %2810 = vmatmul.mubr.bf16.gmra.mxu0 %v669
        %v2811 = vpop.f32.mrf.mxu0
        %v2812 = vadd.f32 0.0, %v2811
        %v2813 = vpop.f32.mrf.mxu0
        %v2814 = vadd.f32 0.0, %v2813
        %v2815 = vpop.f32.mrf.mxu0
        %v2816 = vpop.f32.mrf.mxu0
        %2817 = vdwg.mxu0
        %2818 = vmatprep.subr.bf16.mxu0 0
        %2819 = vmatpush1.bf16.msra.mxu0 0
        %2820 = vmatprep.subr.bf16.mxu0 0
        %2821 = vmatpush1.bf16.msra.mxu0 0
        %2822 = vmatprep.subr.bf16.mxu0 0
        %2823 = vmatpush1.bf16.msra.mxu0 0
        %2824 = vmatprep.subr.bf16.mxu0 %v2353
        %2825 = vmatpush1.bf16.msra.mxu0 %v2350
        %2826 = vmatprep.subr.bf16.mxu0 %v1973
        %2827 = vmatpush1.bf16.msra.mxu0 %v1972
        %2828 = vmatprep.subr.bf16.mxu0 %v1957
        %2829 = vmatpush1.bf16.msra.mxu0 %v1956
        %2830 = vmatprep.subr.bf16.mxu0 %v1941
        %2831 = vmatpush1.bf16.msra.mxu0 %v1940
        %2832 = vmatprep.subr.bf16.mxu0 %v1925
        %2833 = vmatpush1.bf16.msra.mxu0 %v1924
        %2834 = vmatprep.subr.bf16.mxu0 0
        %2835 = vmatpush2.bf16.msra.mxu0 0
        %2836 = vmatprep.subr.bf16.mxu0 0
        %2837 = vmatpush2.bf16.msra.mxu0 0
        %2838 = vmatprep.subr.bf16.mxu0 0
        %2839 = vmatpush2.bf16.msra.mxu0 0
        %2840 = vmatprep.subr.bf16.mxu0 0
        %2841 = vmatpush2.bf16.msra.mxu0 0
        %2842 = vmatprep.subr.bf16.mxu0 0
        %2843 = vmatpush2.bf16.msra.mxu0 0
        %2844 = vmatprep.subr.bf16.mxu0 0
        %2845 = vmatpush2.bf16.msra.mxu0 0
        %2846 = vmatprep.subr.bf16.mxu0 0
        %2847 = vmatpush2.bf16.msra.mxu0 0
        %2848 = vmatprep.subr.bf16.mxu0 0
        %2849 = vmatpush2.bf16.msra.mxu0 0
        %2850 = vmatprep.mubr.bf16.mxu0 0
        %2851 = vmatmul.mubr.bf16.gmra.mxu0 %v2316
        %v2852 = vpop.f32.mrf.mxu0
        %v2853 = vadd.f32 %v2812, %v2852
        %v2854 = vpop.f32.mrf.mxu0
        %v2855 = vadd.f32 %v2814, %v2854
        %v2856 = vpop.f32.mrf.mxu0
        %v2857 = vpop.f32.mrf.mxu0
        %2858 = vdwg.mxu0
        %2859 = vmatprep.subr.bf16.mxu0 %v1783
        %2860 = vmatpush1.bf16.msra.mxu0 %v1782
        %2861 = vmatprep.subr.bf16.mxu0 %v1767
        %2862 = vmatpush1.bf16.msra.mxu0 %v1766
        %2863 = vmatprep.subr.bf16.mxu0 %v1751
        %2864 = vmatpush1.bf16.msra.mxu0 %v1750
        %2865 = vmatprep.subr.bf16.mxu0 %v1735
        %2866 = vmatpush1.bf16.msra.mxu0 %v1734
        %2867 = vmatprep.subr.bf16.mxu0 %v1719
        %2868 = vmatpush1.bf16.msra.mxu0 %v1718
        %2869 = vmatprep.subr.bf16.mxu0 %v1703
        %2870 = vmatpush1.bf16.msra.mxu0 %v1702
        %2871 = vmatprep.subr.bf16.mxu0 %v1687
        %2872 = vmatpush1.bf16.msra.mxu0 %v1686
        %2873 = vmatprep.subr.bf16.mxu0 %v1671
        %2874 = vmatpush1.bf16.msra.mxu0 %v1670
        %2875 = vmatprep.subr.bf16.mxu0 %v1911
        %2876 = vmatpush2.bf16.msra.mxu0 %v1910
        %2877 = vmatprep.subr.bf16.mxu0 %v1895
        %2878 = vmatpush2.bf16.msra.mxu0 %v1894
        %2879 = vmatprep.subr.bf16.mxu0 %v1879
        %2880 = vmatpush2.bf16.msra.mxu0 %v1878
        %2881 = vmatprep.subr.bf16.mxu0 %v1863
        %2882 = vmatpush2.bf16.msra.mxu0 %v1862
        %2883 = vmatprep.subr.bf16.mxu0 %v1847
        %2884 = vmatpush2.bf16.msra.mxu0 %v1846
        %2885 = vmatprep.subr.bf16.mxu0 %v1831
        %2886 = vmatpush2.bf16.msra.mxu0 %v1830
        %2887 = vmatprep.subr.bf16.mxu0 %v1815
        %2888 = vmatpush2.bf16.msra.mxu0 %v1814
        %2889 = vmatprep.subr.bf16.mxu0 %v1799
        %2890 = vmatpush2.bf16.msra.mxu0 %v1798
        %2891 = vmatprep.mubr.bf16.mxu0 %v670
        %2892 = vmatmul.mubr.bf16.gmra.mxu0 %v669
        %v2893 = vpop.f32.mrf.mxu0
        %v2894 = vadd.f32 0.0, %v2893
        %v2895 = vpop.f32.mrf.mxu0
        %v2896 = vadd.f32 0.0, %v2895
        %v2897 = vpop.f32.mrf.mxu0
        %v2898 = vpop.f32.mrf.mxu0
        %2899 = vdwg.mxu0
        %2900 = vmatprep.subr.bf16.mxu0 0
        %2901 = vmatpush1.bf16.msra.mxu0 0
        %2902 = vmatprep.subr.bf16.mxu0 0
        %2903 = vmatpush1.bf16.msra.mxu0 0
        %2904 = vmatprep.subr.bf16.mxu0 0
        %2905 = vmatpush1.bf16.msra.mxu0 0
        %2906 = vmatprep.subr.bf16.mxu0 %v2359
        %2907 = vmatpush1.bf16.msra.mxu0 %v2356
        %2908 = vmatprep.subr.bf16.mxu0 %v1975
        %2909 = vmatpush1.bf16.msra.mxu0 %v1974
        %2910 = vmatprep.subr.bf16.mxu0 %v1959
        %2911 = vmatpush1.bf16.msra.mxu0 %v1958
        %2912 = vmatprep.subr.bf16.mxu0 %v1943
        %2913 = vmatpush1.bf16.msra.mxu0 %v1942
        %2914 = vmatprep.subr.bf16.mxu0 %v1927
        %2915 = vmatpush1.bf16.msra.mxu0 %v1926
        %2916 = vmatprep.subr.bf16.mxu0 0
        %2917 = vmatpush2.bf16.msra.mxu0 0
        %2918 = vmatprep.subr.bf16.mxu0 0
        %2919 = vmatpush2.bf16.msra.mxu0 0
        %2920 = vmatprep.subr.bf16.mxu0 0
        %2921 = vmatpush2.bf16.msra.mxu0 0
        %2922 = vmatprep.subr.bf16.mxu0 0
        %2923 = vmatpush2.bf16.msra.mxu0 0
        %2924 = vmatprep.subr.bf16.mxu0 0
        %2925 = vmatpush2.bf16.msra.mxu0 0
        %2926 = vmatprep.subr.bf16.mxu0 0
        %2927 = vmatpush2.bf16.msra.mxu0 0
        %2928 = vmatprep.subr.bf16.mxu0 0
        %2929 = vmatpush2.bf16.msra.mxu0 0
        %2930 = vmatprep.subr.bf16.mxu0 0
        %2931 = vmatpush2.bf16.msra.mxu0 0
        %2932 = vmatprep.mubr.bf16.mxu0 0
        %2933 = vmatmul.mubr.bf16.gmra.mxu0 %v2316
        %v2934 = vpop.f32.mrf.mxu0
        %v2935 = vadd.f32 %v2894, %v2934
        %v2936 = vpop.f32.mrf.mxu0
        %v2937 = vadd.f32 %v2896, %v2936
        %v2938 = vpop.f32.mrf.mxu0
        %v2939 = vpop.f32.mrf.mxu0
        %2940 = vdwg.mxu0
        %2941 = vmatprep.subr.bf16.mxu0 %v1785
        %2942 = vmatpush1.bf16.msra.mxu0 %v1784
        %2943 = vmatprep.subr.bf16.mxu0 %v1769
        %2944 = vmatpush1.bf16.msra.mxu0 %v1768
        %2945 = vmatprep.subr.bf16.mxu0 %v1753
        %2946 = vmatpush1.bf16.msra.mxu0 %v1752
        %2947 = vmatprep.subr.bf16.mxu0 %v1737
        %2948 = vmatpush1.bf16.msra.mxu0 %v1736
        %2949 = vmatprep.subr.bf16.mxu0 %v1721
        %2950 = vmatpush1.bf16.msra.mxu0 %v1720
        %2951 = vmatprep.subr.bf16.mxu0 %v1705
        %2952 = vmatpush1.bf16.msra.mxu0 %v1704
        %2953 = vmatprep.subr.bf16.mxu0 %v1689
        %2954 = vmatpush1.bf16.msra.mxu0 %v1688
        %2955 = vmatprep.subr.bf16.mxu0 %v1673
        %2956 = vmatpush1.bf16.msra.mxu0 %v1672
        %2957 = vmatprep.subr.bf16.mxu0 %v1913
        %2958 = vmatpush2.bf16.msra.mxu0 %v1912
        %2959 = vmatprep.subr.bf16.mxu0 %v1897
        %2960 = vmatpush2.bf16.msra.mxu0 %v1896
        %2961 = vmatprep.subr.bf16.mxu0 %v1881
        %2962 = vmatpush2.bf16.msra.mxu0 %v1880
        %2963 = vmatprep.subr.bf16.mxu0 %v1865
        %2964 = vmatpush2.bf16.msra.mxu0 %v1864
        %2965 = vmatprep.subr.bf16.mxu0 %v1849
        %2966 = vmatpush2.bf16.msra.mxu0 %v1848
        %2967 = vmatprep.subr.bf16.mxu0 %v1833
        %2968 = vmatpush2.bf16.msra.mxu0 %v1832
        %2969 = vmatprep.subr.bf16.mxu0 %v1817
        %2970 = vmatpush2.bf16.msra.mxu0 %v1816
        %2971 = vmatprep.subr.bf16.mxu0 %v1801
        %2972 = vmatpush2.bf16.msra.mxu0 %v1800
        %2973 = vmatprep.mubr.bf16.mxu0 %v670
        %2974 = vmatmul.mubr.bf16.gmra.mxu0 %v669
        %v2975 = vpop.f32.mrf.mxu0
        %v2976 = vadd.f32 0.0, %v2975
        %v2977 = vpop.f32.mrf.mxu0
        %v2978 = vadd.f32 0.0, %v2977
        %v2979 = vpop.f32.mrf.mxu0
        %v2980 = vpop.f32.mrf.mxu0
        %2981 = vdwg.mxu0
        %2982 = vmatprep.subr.bf16.mxu0 0
        %2983 = vmatpush1.bf16.msra.mxu0 0
        %2984 = vmatprep.subr.bf16.mxu0 0
        %2985 = vmatpush1.bf16.msra.mxu0 0
        %2986 = vmatprep.subr.bf16.mxu0 0
        %2987 = vmatpush1.bf16.msra.mxu0 0
        %2988 = vmatprep.subr.bf16.mxu0 %v2365
        %2989 = vmatpush1.bf16.msra.mxu0 %v2362
        %2990 = vmatprep.subr.bf16.mxu0 %v1977
        %2991 = vmatpush1.bf16.msra.mxu0 %v1976
        %2992 = vmatprep.subr.bf16.mxu0 %v1961
        %2993 = vmatpush1.bf16.msra.mxu0 %v1960
        %2994 = vmatprep.subr.bf16.mxu0 %v1945
        %2995 = vmatpush1.bf16.msra.mxu0 %v1944
        %2996 = vmatprep.subr.bf16.mxu0 %v1929
        %2997 = vmatpush1.bf16.msra.mxu0 %v1928
        %2998 = vmatprep.subr.bf16.mxu0 0
        %2999 = vmatpush2.bf16.msra.mxu0 0
        %3000 = vmatprep.subr.bf16.mxu0 0
        %3001 = vmatpush2.bf16.msra.mxu0 0
        %3002 = vmatprep.subr.bf16.mxu0 0
        %3003 = vmatpush2.bf16.msra.mxu0 0
        %3004 = vmatprep.subr.bf16.mxu0 0
        %3005 = vmatpush2.bf16.msra.mxu0 0
        %3006 = vmatprep.subr.bf16.mxu0 0
        %3007 = vmatpush2.bf16.msra.mxu0 0
        %3008 = vmatprep.subr.bf16.mxu0 0
        %3009 = vmatpush2.bf16.msra.mxu0 0
        %3010 = vmatprep.subr.bf16.mxu0 0
        %3011 = vmatpush2.bf16.msra.mxu0 0
        %3012 = vmatprep.subr.bf16.mxu0 0
        %3013 = vmatpush2.bf16.msra.mxu0 0
        %3014 = vmatprep.mubr.bf16.mxu0 0
        %3015 = vmatmul.mubr.bf16.gmra.mxu0 %v2316
        %v3016 = vpop.f32.mrf.mxu0
        %v3017 = vadd.f32 %v2976, %v3016
        %v3018 = vpop.f32.mrf.mxu0
        %v3019 = vadd.f32 %v2978, %v3018
        %v3020 = vpop.f32.mrf.mxu0
        %v3021 = vpop.f32.mrf.mxu0
        %3022 = vdwg.mxu0
        %vm3023 = vcmp.gt.f32.partialorder %v2443, 0.0
        %vm3024 = vcmp.gt.f32.partialorder %v2445, 0.0
        %vm3025 = vcmp.gt.f32.partialorder %v2525, 0.0
        %vm3026 = vcmp.gt.f32.partialorder %v2527, 0.0
        %vm3027 = vcmp.gt.f32.partialorder %v2607, 0.0
        %vm3028 = vcmp.gt.f32.partialorder %v2609, 0.0
        %vm3029 = vcmp.gt.f32.partialorder %v2689, 0.0
        %vm3030 = vcmp.gt.f32.partialorder %v2691, 0.0
        %vm3031 = vcmp.gt.f32.partialorder %v2771, 0.0
        %vm3032 = vcmp.gt.f32.partialorder %v2773, 0.0
        %vm3033 = vcmp.gt.f32.partialorder %v2853, 0.0
        %vm3034 = vcmp.gt.f32.partialorder %v2855, 0.0
        %vm3035 = vcmp.gt.f32.partialorder %v2935, 0.0
        %vm3036 = vcmp.gt.f32.partialorder %v2937, 0.0
        %vm3037 = vcmp.gt.f32.partialorder %v3017, 0.0
        %vm3038 = vcmp.gt.f32.partialorder %v3019, 0.0
        %v3039 = vmul.f32 %v2443, 0.2
        %v3040 = vmul.f32 %v2445, 0.2
        %v3041 = vmul.f32 %v2525, 0.2
        %v3042 = vmul.f32 %v2527, 0.2
        %v3043 = vmul.f32 %v2607, 0.2
        %v3044 = vmul.f32 %v2609, 0.2
        %v3045 = vmul.f32 %v2689, 0.2
        %v3046 = vmul.f32 %v2691, 0.2
        %v3047 = vmul.f32 %v2771, 0.2
        %v3048 = vmul.f32 %v2773, 0.2
        %v3049 = vmul.f32 %v2853, 0.2
        %v3050 = vmul.f32 %v2855, 0.2
        %v3051 = vmul.f32 %v2935, 0.2
        %v3052 = vmul.f32 %v2937, 0.2
        %v3053 = vmul.f32 %v3017, 0.2
        %v3054 = vmul.f32 %v3019, 0.2
        %v3055 = vsel %vm3023, %v2443, %v3039
        %v3056 = vsel %vm3024, %v2445, %v3040
        %v3057 = vsel %vm3025, %v2525, %v3041
        %v3058 = vsel %vm3026, %v2527, %v3042
        %v3059 = vsel %vm3027, %v2607, %v3043
        %v3060 = vsel %vm3028, %v2609, %v3044
        %v3061 = vsel %vm3029, %v2689, %v3045
        %v3062 = vsel %vm3030, %v2691, %v3046
        %v3063 = vsel %vm3031, %v2771, %v3047
        %v3064 = vsel %vm3032, %v2773, %v3048
        %v3065 = vsel %vm3033, %v2853, %v3049
        %v3066 = vsel %vm3034, %v2855, %v3050
        %v3067 = vsel %vm3035, %v2935, %v3051
        %v3068 = vsel %vm3036, %v2937, %v3052
        %v3069 = vsel %vm3037, %v3017, %v3053
        %v3070 = vsel %vm3038, %v3019, %v3054
        %v3071 = vpack.c.bf16 %v3055, %v3055
        %v3072 = vpack.c.bf16 %v3056, %v3056
        %v3073 = vpack.c.bf16 %v3057, %v3057
        %v3074 = vpack.c.bf16 %v3058, %v3058
        %v3075 = vpack.c.bf16 %v3059, %v3059
        %v3076 = vpack.c.bf16 %v3060, %v3060
        %v3077 = vpack.c.bf16 %v3061, %v3061
        %v3078 = vpack.c.bf16 %v3062, %v3062
        %v3079 = vpack.c.bf16 %v3063, %v3063
        %v3080 = vpack.c.bf16 %v3064, %v3064
        %v3081 = vpack.c.bf16 %v3065, %v3065
        %v3082 = vpack.c.bf16 %v3066, %v3066
        %v3083 = vpack.c.bf16 %v3067, %v3067
        %v3084 = vpack.c.bf16 %v3068, %v3068
        %v3085 = vpack.c.bf16 %v3069, %v3069
        %v3086 = vpack.c.bf16 %v3070, %v3070
        %v3087 = vld [vmem:[#allocation6] sm:$0xff]
        %v3088 = vld [vmem:[#allocation6 + $0x8] sm:$0xff]
        %v3089 = vld [vmem:[#allocation6 + $0x10] sm:$0xff]
        %v3090 = vld [vmem:[#allocation6 + $0x18] sm:$0xff]
        %v3091 = vld [vmem:[#allocation6 + $0x20] sm:$0xff]
        %v3092 = vld [vmem:[#allocation6 + $0x28] sm:$0xff]
        %v3093 = vld [vmem:[#allocation6 + $0x30] sm:$0xff]
        %v3094 = vld [vmem:[#allocation6 + $0x38] sm:$0xff]
        %v3095 = vld [vmem:[#allocation6 + $0x40] sm:$0xff]
        %v3096 = vld [vmem:[#allocation6 + $0x48] sm:$0xff]
        %v3097 = vld [vmem:[#allocation6 + $0x50] sm:$0xff]
        %v3098 = vld [vmem:[#allocation6 + $0x58] sm:$0xff]
        %v3099 = vld [vmem:[#allocation6 + $0x60] sm:$0xff]
        %v3100 = vld [vmem:[#allocation6 + $0x68] sm:$0xff]
        %v3101 = vld [vmem:[#allocation6 + $0x70] sm:$0xff]
        %v3102 = vld [vmem:[#allocation6 + $0x78] sm:$0xff]
        %v3103 = vld [vmem:[#allocation6 + $0x80] sm:$0xff]
        %v3104 = vld [vmem:[#allocation6 + $0x88] sm:$0xff]
        %v3105 = vld [vmem:[#allocation6 + $0x90] sm:$0xff]
        %v3106 = vld [vmem:[#allocation6 + $0x98] sm:$0xff]
        %v3107 = vld [vmem:[#allocation6 + $0xa0] sm:$0xff]
        %v3108 = vld [vmem:[#allocation6 + $0xa8] sm:$0xff]
        %v3109 = vld [vmem:[#allocation6 + $0xb0] sm:$0xff]
        %v3110 = vld [vmem:[#allocation6 + $0xb8] sm:$0xff]
        %v3111 = vld [vmem:[#allocation6 + $0xc0] sm:$0xff]
        %v3112 = vld [vmem:[#allocation6 + $0xc8] sm:$0xff]
        %v3113 = vld [vmem:[#allocation6 + $0xd0] sm:$0xff]
        %v3114 = vld [vmem:[#allocation6 + $0xd8] sm:$0xff]
        %v3115 = vld [vmem:[#allocation6 + $0xe0] sm:$0xff]
        %v3116 = vld [vmem:[#allocation6 + $0xe8] sm:$0xff]
        %v3117 = vld [vmem:[#allocation6 + $0xf0] sm:$0xff]
        %v3118 = vld [vmem:[#allocation6 + $0xf8] sm:$0xff]
        %v3119 = vld [vmem:[#allocation6 + $0x100] sm:$0xff]
        %v3120 = vld [vmem:[#allocation6 + $0x108] sm:$0xff]
        %v3121 = vld [vmem:[#allocation6 + $0x110] sm:$0xff]
        %v3122 = vld [vmem:[#allocation6 + $0x118] sm:$0xff]
        %v3123 = vld [vmem:[#allocation6 + $0x120] sm:$0xff]
        %v3124 = vld [vmem:[#allocation6 + $0x128] sm:$0xff]
        %v3125 = vld [vmem:[#allocation6 + $0x130] sm:$0xff]
        %v3126 = vld [vmem:[#allocation6 + $0x138] sm:$0xff]
        %v3127 = vld [vmem:[#allocation6 + $0x140] sm:$0xff]
        %v3128 = vld [vmem:[#allocation6 + $0x148] sm:$0xff]
        %v3129 = vld [vmem:[#allocation6 + $0x150] sm:$0xff]
        %v3130 = vld [vmem:[#allocation6 + $0x158] sm:$0xff]
        %v3131 = vld [vmem:[#allocation6 + $0x160] sm:$0xff]
        %v3132 = vld [vmem:[#allocation6 + $0x168] sm:$0xff]
        %v3133 = vld [vmem:[#allocation6 + $0x170] sm:$0xff]
        %v3134 = vld [vmem:[#allocation6 + $0x178] sm:$0xff]
        %v3135 = vld [vmem:[#allocation6 + $0x180] sm:$0xff]
        %v3136 = vld [vmem:[#allocation6 + $0x188] sm:$0xff]
        %v3137 = vld [vmem:[#allocation6 + $0x190] sm:$0xff]
        %v3138 = vld [vmem:[#allocation6 + $0x198] sm:$0xff]
        %v3139 = vld [vmem:[#allocation6 + $0x1a0] sm:$0xff]
        %v3140 = vld [vmem:[#allocation6 + $0x1a8] sm:$0xff]
        %v3141 = vld [vmem:[#allocation6 + $0x1b0] sm:$0xff]
        %v3142 = vld [vmem:[#allocation6 + $0x1b8] sm:$0xff]
        %v3143 = vld [vmem:[#allocation6 + $0x1c0] sm:$0xff]
        %v3144 = vld [vmem:[#allocation6 + $0x1c8] sm:$0xff]
        %v3145 = vld [vmem:[#allocation6 + $0x1d0] sm:$0xff]
        %v3146 = vld [vmem:[#allocation6 + $0x1d8] sm:$0xff]
        %v3147 = vld [vmem:[#allocation6 + $0x1e0] sm:$0xff]
        %v3148 = vld [vmem:[#allocation6 + $0x1e8] sm:$0xff]
        %v3149 = vld [vmem:[#allocation6 + $0x1f0] sm:$0xff]
        %v3150 = vld [vmem:[#allocation6 + $0x1f8] sm:$0xff]
        %v3151 = vld [vmem:[#allocation6 + $0x200] sm:$0xff]
        %v3152 = vld [vmem:[#allocation6 + $0x208] sm:$0xff]
        %v3153 = vld [vmem:[#allocation6 + $0x210] sm:$0xff]
        %v3154 = vld [vmem:[#allocation6 + $0x218] sm:$0xff]
        %v3155 = vld [vmem:[#allocation6 + $0x220] sm:$0xff]
        %v3156 = vld [vmem:[#allocation6 + $0x228] sm:$0xff]
        %v3157 = vld [vmem:[#allocation6 + $0x230] sm:$0xff]
        %v3158 = vld [vmem:[#allocation6 + $0x238] sm:$0xff]
        %v3159 = vld [vmem:[#allocation6 + $0x240] sm:$0xff]
        %v3160 = vld [vmem:[#allocation6 + $0x248] sm:$0xff]
        %v3161 = vld [vmem:[#allocation6 + $0x250] sm:$0xff]
        %v3162 = vld [vmem:[#allocation6 + $0x258] sm:$0xff]
        %v3163 = vld [vmem:[#allocation6 + $0x260] sm:$0xff]
        %v3164 = vld [vmem:[#allocation6 + $0x268] sm:$0xff]
        %v3165 = vld [vmem:[#allocation6 + $0x270] sm:$0xff]
        %v3166 = vld [vmem:[#allocation6 + $0x278] sm:$0xff]
        %v3167 = vld [vmem:[#allocation6 + $0x280] sm:$0xff]
        %v3168 = vld [vmem:[#allocation6 + $0x288] sm:$0xff]
        %v3169 = vld [vmem:[#allocation6 + $0x290] sm:$0xff]
        %v3170 = vld [vmem:[#allocation6 + $0x298] sm:$0xff]
        %v3171 = vld [vmem:[#allocation6 + $0x2a0] sm:$0xff]
        %v3172 = vld [vmem:[#allocation6 + $0x2a8] sm:$0xff]
        %v3173 = vld [vmem:[#allocation6 + $0x2b0] sm:$0xff]
        %v3174 = vld [vmem:[#allocation6 + $0x2b8] sm:$0xff]
        %v3175 = vld [vmem:[#allocation6 + $0x2c0] sm:$0xff]
        %v3176 = vld [vmem:[#allocation6 + $0x2c8] sm:$0xff]
        %v3177 = vld [vmem:[#allocation6 + $0x2d0] sm:$0xff]
        %v3178 = vld [vmem:[#allocation6 + $0x2d8] sm:$0xff]
        %v3179 = vld [vmem:[#allocation6 + $0x2e0] sm:$0xff]
        %v3180 = vld [vmem:[#allocation6 + $0x2e8] sm:$0xff]
        %v3181 = vld [vmem:[#allocation6 + $0x2f0] sm:$0xff]
        %v3182 = vld [vmem:[#allocation6 + $0x2f8] sm:$0xff]
        %v3183 = vld [vmem:[#allocation6 + $0x300] sm:$0xff]
        %v3184 = vld [vmem:[#allocation6 + $0x308] sm:$0xff]
        %v3185 = vld [vmem:[#allocation6 + $0x310] sm:$0xff]
        %v3186 = vld [vmem:[#allocation6 + $0x318] sm:$0xff]
        %v3187 = vld [vmem:[#allocation6 + $0x320] sm:$0xff]
        %v3188 = vld [vmem:[#allocation6 + $0x328] sm:$0xff]
        %v3189 = vld [vmem:[#allocation6 + $0x330] sm:$0xff]
        %v3190 = vld [vmem:[#allocation6 + $0x338] sm:$0xff]
        %v3191 = vld [vmem:[#allocation6 + $0x340] sm:$0xff]
        %v3192 = vld [vmem:[#allocation6 + $0x348] sm:$0xff]
        %v3193 = vld [vmem:[#allocation6 + $0x350] sm:$0xff]
        %v3194 = vld [vmem:[#allocation6 + $0x358] sm:$0xff]
        %v3195 = vld [vmem:[#allocation6 + $0x360] sm:$0xff]
        %v3196 = vld [vmem:[#allocation6 + $0x368] sm:$0xff]
        %v3197 = vld [vmem:[#allocation6 + $0x370] sm:$0xff]
        %v3198 = vld [vmem:[#allocation6 + $0x378] sm:$0xff]
        %v3199 = vld [vmem:[#allocation6 + $0x380] sm:$0xff]
        %v3200 = vld [vmem:[#allocation6 + $0x388] sm:$0xff]
        %v3201 = vld [vmem:[#allocation6 + $0x390] sm:$0xff]
        %v3202 = vld [vmem:[#allocation6 + $0x398] sm:$0xff]
        %v3203 = vld [vmem:[#allocation6 + $0x3a0] sm:$0xff]
        %v3204 = vld [vmem:[#allocation6 + $0x3a8] sm:$0xff]
        %v3205 = vld [vmem:[#allocation6 + $0x3b0] sm:$0xff]
        %v3206 = vld [vmem:[#allocation6 + $0x3b8] sm:$0xff]
        %v3207 = vld [vmem:[#allocation6 + $0x3c0] sm:$0xff]
        %v3208 = vld [vmem:[#allocation6 + $0x3c8] sm:$0xff]
        %v3209 = vld [vmem:[#allocation6 + $0x3d0] sm:$0xff]
        %v3210 = vld [vmem:[#allocation6 + $0x3d8] sm:$0xff]
        %v3211 = vld [vmem:[#allocation6 + $0x3e0] sm:$0xff]
        %v3212 = vld [vmem:[#allocation6 + $0x3e8] sm:$0xff]
        %v3213 = vld [vmem:[#allocation6 + $0x3f0] sm:$0xff]
        %v3214 = vld [vmem:[#allocation6 + $0x3f8] sm:$0xff]
        %v3215 = vld [vmem:[#allocation6 + $0x400] sm:$0xff]
        %v3216 = vld [vmem:[#allocation6 + $0x408] sm:$0xff]
        %v3217 = vld [vmem:[#allocation6 + $0x410] sm:$0xff]
        %v3218 = vld [vmem:[#allocation6 + $0x418] sm:$0xff]
        %v3219 = vld [vmem:[#allocation6 + $0x420] sm:$0xff]
        %v3220 = vld [vmem:[#allocation6 + $0x428] sm:$0xff]
        %v3221 = vld [vmem:[#allocation6 + $0x430] sm:$0xff]
        %v3222 = vld [vmem:[#allocation6 + $0x438] sm:$0xff]
        %v3223 = vld [vmem:[#allocation6 + $0x440] sm:$0xff]
        %v3224 = vld [vmem:[#allocation6 + $0x448] sm:$0xff]
        %v3225 = vld [vmem:[#allocation6 + $0x450] sm:$0xff]
        %v3226 = vld [vmem:[#allocation6 + $0x458] sm:$0xff]
        %v3227 = vld [vmem:[#allocation6 + $0x460] sm:$0xff]
        %v3228 = vld [vmem:[#allocation6 + $0x468] sm:$0xff]
        %v3229 = vld [vmem:[#allocation6 + $0x470] sm:$0xff]
        %v3230 = vld [vmem:[#allocation6 + $0x478] sm:$0xff]
        %v3231 = vld [vmem:[#allocation6 + $0x480] sm:$0xff]
        %v3232 = vld [vmem:[#allocation6 + $0x488] sm:$0xff]
        %v3233 = vld [vmem:[#allocation6 + $0x490] sm:$0xff]
        %v3234 = vld [vmem:[#allocation6 + $0x498] sm:$0xff]
        %v3235 = vld [vmem:[#allocation6 + $0x4a0] sm:$0xff]
        %v3236 = vld [vmem:[#allocation6 + $0x4a8] sm:$0xff]
        %v3237 = vld [vmem:[#allocation6 + $0x4b0] sm:$0xff]
        %v3238 = vld [vmem:[#allocation6 + $0x4b8] sm:$0xff]
        %v3239 = vld [vmem:[#allocation6 + $0x4c0] sm:$0xff]
        %v3240 = vld [vmem:[#allocation6 + $0x4c8] sm:$0xff]
        %v3241 = vld [vmem:[#allocation6 + $0x4d0] sm:$0xff]
        %v3242 = vld [vmem:[#allocation6 + $0x4d8] sm:$0xff]
        %v3243 = vld [vmem:[#allocation6 + $0x4e0] sm:$0xff]
        %v3244 = vld [vmem:[#allocation6 + $0x4e8] sm:$0xff]
        %v3245 = vld [vmem:[#allocation6 + $0x4f0] sm:$0xff]
        %v3246 = vld [vmem:[#allocation6 + $0x4f8] sm:$0xff]
        %v3247 = vld [vmem:[#allocation6 + $0x500] sm:$0xff]
        %v3248 = vld [vmem:[#allocation6 + $0x508] sm:$0xff]
        %v3249 = vld [vmem:[#allocation6 + $0x510] sm:$0xff]
        %v3250 = vld [vmem:[#allocation6 + $0x518] sm:$0xff]
        %v3251 = vld [vmem:[#allocation6 + $0x520] sm:$0xff]
        %v3252 = vld [vmem:[#allocation6 + $0x528] sm:$0xff]
        %v3253 = vld [vmem:[#allocation6 + $0x530] sm:$0xff]
        %v3254 = vld [vmem:[#allocation6 + $0x538] sm:$0xff]
        %v3255 = vld [vmem:[#allocation6 + $0x540] sm:$0xff]
        %v3256 = vld [vmem:[#allocation6 + $0x548] sm:$0xff]
        %v3257 = vld [vmem:[#allocation6 + $0x550] sm:$0xff]
        %v3258 = vld [vmem:[#allocation6 + $0x558] sm:$0xff]
        %v3259 = vld [vmem:[#allocation6 + $0x560] sm:$0xff]
        %v3260 = vld [vmem:[#allocation6 + $0x568] sm:$0xff]
        %v3261 = vld [vmem:[#allocation6 + $0x570] sm:$0xff]
        %v3262 = vld [vmem:[#allocation6 + $0x578] sm:$0xff]
        %v3263 = vld [vmem:[#allocation6 + $0x580] sm:$0xff]
        %v3264 = vld [vmem:[#allocation6 + $0x588] sm:$0xff]
        %v3265 = vld [vmem:[#allocation6 + $0x590] sm:$0xff]
        %v3266 = vld [vmem:[#allocation6 + $0x598] sm:$0xff]
        %v3267 = vld [vmem:[#allocation6 + $0x5a0] sm:$0xff]
        %v3268 = vld [vmem:[#allocation6 + $0x5a8] sm:$0xff]
        %v3269 = vld [vmem:[#allocation6 + $0x5b0] sm:$0xff]
        %v3270 = vld [vmem:[#allocation6 + $0x5b8] sm:$0xff]
        %v3271 = vld [vmem:[#allocation6 + $0x5c0] sm:$0xff]
        %v3272 = vld [vmem:[#allocation6 + $0x5c8] sm:$0xff]
        %v3273 = vld [vmem:[#allocation6 + $0x5d0] sm:$0xff]
        %v3274 = vld [vmem:[#allocation6 + $0x5d8] sm:$0xff]
        %v3275 = vld [vmem:[#allocation6 + $0x5e0] sm:$0xff]
        %v3276 = vld [vmem:[#allocation6 + $0x5e8] sm:$0xff]
        %v3277 = vld [vmem:[#allocation6 + $0x5f0] sm:$0xff]
        %v3278 = vld [vmem:[#allocation6 + $0x5f8] sm:$0xff]
        %v3279 = vld [vmem:[#allocation6 + $0x600] sm:$0xff]
        %v3280 = vld [vmem:[#allocation6 + $0x608] sm:$0xff]
        %v3281 = vld [vmem:[#allocation6 + $0x610] sm:$0xff]
        %v3282 = vld [vmem:[#allocation6 + $0x618] sm:$0xff]
        %v3283 = vld [vmem:[#allocation6 + $0x620] sm:$0xff]
        %v3284 = vld [vmem:[#allocation6 + $0x628] sm:$0xff]
        %v3285 = vld [vmem:[#allocation6 + $0x630] sm:$0xff]
        %v3286 = vld [vmem:[#allocation6 + $0x638] sm:$0xff]
        %v3287 = vld [vmem:[#allocation6 + $0x640] sm:$0xff]
        %v3288 = vld [vmem:[#allocation6 + $0x648] sm:$0xff]
        %v3289 = vld [vmem:[#allocation6 + $0x650] sm:$0xff]
        %v3290 = vld [vmem:[#allocation6 + $0x658] sm:$0xff]
        %v3291 = vld [vmem:[#allocation6 + $0x660] sm:$0xff]
        %v3292 = vld [vmem:[#allocation6 + $0x668] sm:$0xff]
        %v3293 = vld [vmem:[#allocation6 + $0x670] sm:$0xff]
        %v3294 = vld [vmem:[#allocation6 + $0x678] sm:$0xff]
        %v3295 = vld [vmem:[#allocation6 + $0x680] sm:$0xff]
        %v3296 = vld [vmem:[#allocation6 + $0x688] sm:$0xff]
        %v3297 = vld [vmem:[#allocation6 + $0x690] sm:$0xff]
        %v3298 = vld [vmem:[#allocation6 + $0x698] sm:$0xff]
        %v3299 = vld [vmem:[#allocation6 + $0x6a0] sm:$0xff]
        %v3300 = vld [vmem:[#allocation6 + $0x6a8] sm:$0xff]
        %v3301 = vld [vmem:[#allocation6 + $0x6b0] sm:$0xff]
        %v3302 = vld [vmem:[#allocation6 + $0x6b8] sm:$0xff]
        %v3303 = vld [vmem:[#allocation6 + $0x6c0] sm:$0xff]
        %v3304 = vld [vmem:[#allocation6 + $0x6c8] sm:$0xff]
        %v3305 = vld [vmem:[#allocation6 + $0x6d0] sm:$0xff]
        %v3306 = vld [vmem:[#allocation6 + $0x6d8] sm:$0xff]
        %v3307 = vld [vmem:[#allocation6 + $0x6e0] sm:$0xff]
        %v3308 = vld [vmem:[#allocation6 + $0x6e8] sm:$0xff]
        %v3309 = vld [vmem:[#allocation6 + $0x6f0] sm:$0xff]
        %v3310 = vld [vmem:[#allocation6 + $0x6f8] sm:$0xff]
        %v3311 = vld [vmem:[#allocation6 + $0x700] sm:$0xff]
        %v3312 = vld [vmem:[#allocation6 + $0x708] sm:$0xff]
        %v3313 = vld [vmem:[#allocation6 + $0x710] sm:$0xff]
        %v3314 = vld [vmem:[#allocation6 + $0x718] sm:$0xff]
        %v3315 = vld [vmem:[#allocation6 + $0x720] sm:$0xff]
        %v3316 = vld [vmem:[#allocation6 + $0x728] sm:$0xff]
        %v3317 = vld [vmem:[#allocation6 + $0x730] sm:$0xff]
        %v3318 = vld [vmem:[#allocation6 + $0x738] sm:$0xff]
        %v3319 = vld [vmem:[#allocation6 + $0x740] sm:$0xff]
        %v3320 = vld [vmem:[#allocation6 + $0x748] sm:$0xff]
        %v3321 = vld [vmem:[#allocation6 + $0x750] sm:$0xff]
        %v3322 = vld [vmem:[#allocation6 + $0x758] sm:$0xff]
        %v3323 = vld [vmem:[#allocation6 + $0x760] sm:$0xff]
        %v3324 = vld [vmem:[#allocation6 + $0x768] sm:$0xff]
        %v3325 = vld [vmem:[#allocation6 + $0x770] sm:$0xff]
        %v3326 = vld [vmem:[#allocation6 + $0x778] sm:$0xff]
        %v3327 = vld [vmem:[#allocation6 + $0x780] sm:$0xff]
        %v3328 = vld [vmem:[#allocation6 + $0x788] sm:$0xff]
        %v3329 = vld [vmem:[#allocation6 + $0x790] sm:$0xff]
        %v3330 = vld [vmem:[#allocation6 + $0x798] sm:$0xff]
        %v3331 = vld [vmem:[#allocation6 + $0x7a0] sm:$0xff]
        %v3332 = vld [vmem:[#allocation6 + $0x7a8] sm:$0xff]
        %v3333 = vld [vmem:[#allocation6 + $0x7b0] sm:$0xff]
        %v3334 = vld [vmem:[#allocation6 + $0x7b8] sm:$0xff]
        %v3335 = vld [vmem:[#allocation6 + $0x7c0] sm:$0xff]
        %v3336 = vld [vmem:[#allocation6 + $0x7c8] sm:$0xff]
        %v3337 = vld [vmem:[#allocation6 + $0x7d0] sm:$0xff]
        %v3338 = vld [vmem:[#allocation6 + $0x7d8] sm:$0xff]
        %v3339 = vld [vmem:[#allocation6 + $0x7e0] sm:$0xff]
        %v3340 = vld [vmem:[#allocation6 + $0x7e8] sm:$0xff]
        %v3341 = vld [vmem:[#allocation6 + $0x7f0] sm:$0xff]
        %v3342 = vld [vmem:[#allocation6 + $0x7f8] sm:$0xff]
        %v3343 = vld [vmem:[#allocation6 + $0x800] sm:$0xff]
        %v3344 = vld [vmem:[#allocation6 + $0x808] sm:$0xff]
        %v3345 = vld [vmem:[#allocation6 + $0x810] sm:$0xff]
        %v3346 = vld [vmem:[#allocation6 + $0x818] sm:$0xff]
        %v3347 = vld [vmem:[#allocation6 + $0x820] sm:$0xff]
        %v3348 = vld [vmem:[#allocation6 + $0x828] sm:$0xff]
        %v3349 = vld [vmem:[#allocation6 + $0x830] sm:$0xff]
        %v3350 = vld [vmem:[#allocation6 + $0x838] sm:$0xff]
        %v3351 = vld [vmem:[#allocation6 + $0x840] sm:$0xff]
        %v3352 = vld [vmem:[#allocation6 + $0x848] sm:$0xff]
        %v3353 = vld [vmem:[#allocation6 + $0x850] sm:$0xff]
        %v3354 = vld [vmem:[#allocation6 + $0x858] sm:$0xff]
        %v3355 = vld [vmem:[#allocation6 + $0x860] sm:$0xff]
        %v3356 = vld [vmem:[#allocation6 + $0x868] sm:$0xff]
        %v3357 = vld [vmem:[#allocation6 + $0x870] sm:$0xff]
        %v3358 = vld [vmem:[#allocation6 + $0x878] sm:$0xff]
        %v3359 = vld [vmem:[#allocation6 + $0x880] sm:$0xff]
        %v3360 = vld [vmem:[#allocation6 + $0x888] sm:$0xff]
        %v3361 = vld [vmem:[#allocation6 + $0x890] sm:$0xff]
        %v3362 = vld [vmem:[#allocation6 + $0x898] sm:$0xff]
        %v3363 = vld [vmem:[#allocation6 + $0x8a0] sm:$0xff]
        %v3364 = vld [vmem:[#allocation6 + $0x8a8] sm:$0xff]
        %v3365 = vld [vmem:[#allocation6 + $0x8b0] sm:$0xff]
        %v3366 = vld [vmem:[#allocation6 + $0x8b8] sm:$0xff]
        %v3367 = vld [vmem:[#allocation6 + $0x8c0] sm:$0xff]
        %v3368 = vld [vmem:[#allocation6 + $0x8c8] sm:$0xff]
        %v3369 = vld [vmem:[#allocation6 + $0x8d0] sm:$0xff]
        %v3370 = vld [vmem:[#allocation6 + $0x8d8] sm:$0xff]
        %v3371 = vld [vmem:[#allocation6 + $0x8e0] sm:$0xff]
        %v3372 = vld [vmem:[#allocation6 + $0x8e8] sm:$0xff]
        %v3373 = vld [vmem:[#allocation6 + $0x8f0] sm:$0xff]
        %v3374 = vld [vmem:[#allocation6 + $0x8f8] sm:$0xff]
        %v3375 = vld [vmem:[#allocation6 + $0x900] sm:$0xff]
        %v3376 = vld [vmem:[#allocation6 + $0x908] sm:$0xff]
        %v3377 = vld [vmem:[#allocation6 + $0x910] sm:$0xff]
        %v3378 = vld [vmem:[#allocation6 + $0x918] sm:$0xff]
        %v3379 = vld [vmem:[#allocation6 + $0x920] sm:$0xff]
        %v3380 = vld [vmem:[#allocation6 + $0x928] sm:$0xff]
        %v3381 = vld [vmem:[#allocation6 + $0x930] sm:$0xff]
        %v3382 = vld [vmem:[#allocation6 + $0x938] sm:$0xff]
        %v3383 = vld [vmem:[#allocation6 + $0x940] sm:$0xff]
        %v3384 = vld [vmem:[#allocation6 + $0x948] sm:$0xff]
        %v3385 = vld [vmem:[#allocation6 + $0x950] sm:$0xff]
        %v3386 = vld [vmem:[#allocation6 + $0x958] sm:$0xff]
        %v3387 = vld [vmem:[#allocation6 + $0x960] sm:$0xff]
        %v3388 = vld [vmem:[#allocation6 + $0x968] sm:$0xff]
        %v3389 = vld [vmem:[#allocation6 + $0x970] sm:$0xff]
        %v3390 = vld [vmem:[#allocation6 + $0x978] sm:$0xff]
        %v3391 = vld [vmem:[#allocation6 + $0x980] sm:$0xff]
        %v3392 = vld [vmem:[#allocation6 + $0x988] sm:$0xff]
        %v3393 = vld [vmem:[#allocation6 + $0x990] sm:$0xff]
        %v3394 = vld [vmem:[#allocation6 + $0x998] sm:$0xff]
        %v3395 = vld [vmem:[#allocation6 + $0x9a0] sm:$0xff]
        %v3396 = vld [vmem:[#allocation6 + $0x9a8] sm:$0xff]
        %v3397 = vld [vmem:[#allocation6 + $0x9b0] sm:$0xff]
        %v3398 = vld [vmem:[#allocation6 + $0x9b8] sm:$0xff]
        %v3399 = vld [vmem:[#allocation6 + $0x9c0] sm:$0xff]
        %v3400 = vld [vmem:[#allocation6 + $0x9c8] sm:$0xff]
        %v3401 = vld [vmem:[#allocation6 + $0x9d0] sm:$0xff]
        %v3402 = vld [vmem:[#allocation6 + $0x9d8] sm:$0xff]
        %v3403 = vld [vmem:[#allocation6 + $0x9e0] sm:$0xff]
        %v3404 = vld [vmem:[#allocation6 + $0x9e8] sm:$0xff]
        %v3405 = vld [vmem:[#allocation6 + $0x9f0] sm:$0xff]
        %v3406 = vld [vmem:[#allocation6 + $0x9f8] sm:$0xff]
        %v3407 = vld [vmem:[#allocation6 + $0xa00] sm:$0xff]
        %v3408 = vld [vmem:[#allocation6 + $0xa08] sm:$0xff]
        %v3409 = vld [vmem:[#allocation6 + $0xa10] sm:$0xff]
        %v3410 = vld [vmem:[#allocation6 + $0xa18] sm:$0xff]
        %v3411 = vld [vmem:[#allocation6 + $0xa20] sm:$0xff]
        %v3412 = vld [vmem:[#allocation6 + $0xa28] sm:$0xff]
        %v3413 = vld [vmem:[#allocation6 + $0xa30] sm:$0xff]
        %v3414 = vld [vmem:[#allocation6 + $0xa38] sm:$0xff]
        %v3415 = vld [vmem:[#allocation6 + $0xa40] sm:$0xff]
        %v3416 = vld [vmem:[#allocation6 + $0xa48] sm:$0xff]
        %v3417 = vld [vmem:[#allocation6 + $0xa50] sm:$0xff]
        %v3418 = vld [vmem:[#allocation6 + $0xa58] sm:$0xff]
        %v3419 = vld [vmem:[#allocation6 + $0xa60] sm:$0xff]
        %v3420 = vld [vmem:[#allocation6 + $0xa68] sm:$0xff]
        %v3421 = vld [vmem:[#allocation6 + $0xa70] sm:$0xff]
        %v3422 = vld [vmem:[#allocation6 + $0xa78] sm:$0xff]
        %v3423 = vld [vmem:[#allocation6 + $0xa80] sm:$0xff]
        %v3424 = vld [vmem:[#allocation6 + $0xa88] sm:$0xff]
        %v3425 = vld [vmem:[#allocation6 + $0xa90] sm:$0xff]
        %v3426 = vld [vmem:[#allocation6 + $0xa98] sm:$0xff]
        %v3427 = vld [vmem:[#allocation6 + $0xaa0] sm:$0xff]
        %v3428 = vld [vmem:[#allocation6 + $0xaa8] sm:$0xff]
        %v3429 = vld [vmem:[#allocation6 + $0xab0] sm:$0xff]
        %v3430 = vld [vmem:[#allocation6 + $0xab8] sm:$0xff]
        %v3431 = vld [vmem:[#allocation6 + $0xac0] sm:$0xff]
        %v3432 = vld [vmem:[#allocation6 + $0xac8] sm:$0xff]
        %v3433 = vld [vmem:[#allocation6 + $0xad0] sm:$0xff]
        %v3434 = vld [vmem:[#allocation6 + $0xad8] sm:$0xff]
        %v3435 = vld [vmem:[#allocation6 + $0xae0] sm:$0xff]
        %v3436 = vld [vmem:[#allocation6 + $0xae8] sm:$0xff]
        %v3437 = vld [vmem:[#allocation6 + $0xaf0] sm:$0xff]
        %v3438 = vld [vmem:[#allocation6 + $0xaf8] sm:$0xff]
        %v3439 = vld [vmem:[#allocation6 + $0xb00] sm:$0xff]
        %v3440 = vld [vmem:[#allocation6 + $0xb08] sm:$0xff]
        %v3441 = vld [vmem:[#allocation6 + $0xb10] sm:$0xff]
        %v3442 = vld [vmem:[#allocation6 + $0xb18] sm:$0xff]
        %v3443 = vld [vmem:[#allocation6 + $0xb20] sm:$0xff]
        %v3444 = vld [vmem:[#allocation6 + $0xb28] sm:$0xff]
        %v3445 = vld [vmem:[#allocation6 + $0xb30] sm:$0xff]
        %v3446 = vld [vmem:[#allocation6 + $0xb38] sm:$0xff]
        %v3447 = vld [vmem:[#allocation6 + $0xb40] sm:$0xff]
        %v3448 = vld [vmem:[#allocation6 + $0xb48] sm:$0xff]
        %v3449 = vld [vmem:[#allocation6 + $0xb50] sm:$0xff]
        %v3450 = vld [vmem:[#allocation6 + $0xb58] sm:$0xff]
        %v3451 = vld [vmem:[#allocation6 + $0xb60] sm:$0xff]
        %v3452 = vld [vmem:[#allocation6 + $0xb68] sm:$0xff]
        %v3453 = vld [vmem:[#allocation6 + $0xb70] sm:$0xff]
        %v3454 = vld [vmem:[#allocation6 + $0xb78] sm:$0xff]
        %v3455 = vld [vmem:[#allocation6 + $0xb80] sm:$0xff]
        %v3456 = vld [vmem:[#allocation6 + $0xb88] sm:$0xff]
        %v3457 = vld [vmem:[#allocation6 + $0xb90] sm:$0xff]
        %v3458 = vld [vmem:[#allocation6 + $0xb98] sm:$0xff]
        %v3459 = vld [vmem:[#allocation6 + $0xba0] sm:$0xff]
        %v3460 = vld [vmem:[#allocation6 + $0xba8] sm:$0xff]
        %v3461 = vld [vmem:[#allocation6 + $0xbb0] sm:$0xff]
        %v3462 = vld [vmem:[#allocation6 + $0xbb8] sm:$0xff]
        %v3463 = vld [vmem:[#allocation6 + $0xbc0] sm:$0xff]
        %v3464 = vld [vmem:[#allocation6 + $0xbc8] sm:$0xff]
        %v3465 = vld [vmem:[#allocation6 + $0xbd0] sm:$0xff]
        %v3466 = vld [vmem:[#allocation6 + $0xbd8] sm:$0xff]
        %v3467 = vld [vmem:[#allocation6 + $0xbe0] sm:$0xff]
        %v3468 = vld [vmem:[#allocation6 + $0xbe8] sm:$0xff]
        %v3469 = vld [vmem:[#allocation6 + $0xbf0] sm:$0xff]
        %v3470 = vld [vmem:[#allocation6 + $0xbf8] sm:$0xff]
        %v3471 = vld [vmem:[#allocation6 + $0xc00] sm:$0xff]
        %v3472 = vld [vmem:[#allocation6 + $0xc08] sm:$0xff]
        %v3473 = vld [vmem:[#allocation6 + $0xc10] sm:$0xff]
        %v3474 = vld [vmem:[#allocation6 + $0xc18] sm:$0xff]
        %v3475 = vld [vmem:[#allocation6 + $0xc20] sm:$0xff]
        %v3476 = vld [vmem:[#allocation6 + $0xc28] sm:$0xff]
        %v3477 = vld [vmem:[#allocation6 + $0xc30] sm:$0xff]
        %v3478 = vld [vmem:[#allocation6 + $0xc38] sm:$0xff]
        %v3479 = vld [vmem:[#allocation6 + $0xc40] sm:$0xff]
        %v3480 = vld [vmem:[#allocation6 + $0xc48] sm:$0xff]
        %v3481 = vld [vmem:[#allocation6 + $0xc50] sm:$0xff]
        %v3482 = vld [vmem:[#allocation6 + $0xc58] sm:$0xff]
        %v3483 = vld [vmem:[#allocation6 + $0xc60] sm:$0xff]
        %v3484 = vld [vmem:[#allocation6 + $0xc68] sm:$0xff]
        %v3485 = vld [vmem:[#allocation6 + $0xc70] sm:$0xff]
        %v3486 = vld [vmem:[#allocation6 + $0xc78] sm:$0xff]
        %v3487 = vld [vmem:[#allocation6 + $0xc80] sm:$0xff]
        %v3488 = vld [vmem:[#allocation6 + $0xc88] sm:$0xff]
        %v3489 = vld [vmem:[#allocation6 + $0xc90] sm:$0xff]
        %v3490 = vld [vmem:[#allocation6 + $0xc98] sm:$0xff]
        %v3491 = vld [vmem:[#allocation6 + $0xca0] sm:$0xff]
        %v3492 = vld [vmem:[#allocation6 + $0xca8] sm:$0xff]
        %v3493 = vld [vmem:[#allocation6 + $0xcb0] sm:$0xff]
        %v3494 = vld [vmem:[#allocation6 + $0xcb8] sm:$0xff]
        %v3495 = vld [vmem:[#allocation6 + $0xcc0] sm:$0xff]
        %v3496 = vld [vmem:[#allocation6 + $0xcc8] sm:$0xff]
        %v3497 = vld [vmem:[#allocation6 + $0xcd0] sm:$0xff]
        %v3498 = vld [vmem:[#allocation6 + $0xcd8] sm:$0xff]
        %v3499 = vld [vmem:[#allocation6 + $0xce0] sm:$0xff]
        %v3500 = vld [vmem:[#allocation6 + $0xce8] sm:$0xff]
        %v3501 = vld [vmem:[#allocation6 + $0xcf0] sm:$0xff]
        %v3502 = vld [vmem:[#allocation6 + $0xcf8] sm:$0xff]
        %v3503 = vld [vmem:[#allocation6 + $0xd00] sm:$0xff]
        %v3504 = vld [vmem:[#allocation6 + $0xd08] sm:$0xff]
        %v3505 = vld [vmem:[#allocation6 + $0xd10] sm:$0xff]
        %v3506 = vld [vmem:[#allocation6 + $0xd18] sm:$0xff]
        %v3507 = vld [vmem:[#allocation6 + $0xd20] sm:$0xff]
        %v3508 = vld [vmem:[#allocation6 + $0xd28] sm:$0xff]
        %v3509 = vld [vmem:[#allocation6 + $0xd30] sm:$0xff]
        %v3510 = vld [vmem:[#allocation6 + $0xd38] sm:$0xff]
        %v3511 = vld [vmem:[#allocation6 + $0xd40] sm:$0xff]
        %v3512 = vld [vmem:[#allocation6 + $0xd48] sm:$0xff]
        %v3513 = vld [vmem:[#allocation6 + $0xd50] sm:$0xff]
        %v3514 = vld [vmem:[#allocation6 + $0xd58] sm:$0xff]
        %v3515 = vld [vmem:[#allocation6 + $0xd60] sm:$0xff]
        %v3516 = vld [vmem:[#allocation6 + $0xd68] sm:$0xff]
        %v3517 = vld [vmem:[#allocation6 + $0xd70] sm:$0xff]
        %v3518 = vld [vmem:[#allocation6 + $0xd78] sm:$0xff]
        %v3519 = vld [vmem:[#allocation6 + $0xd80] sm:$0xff]
        %v3520 = vld [vmem:[#allocation6 + $0xd88] sm:$0xff]
        %v3521 = vld [vmem:[#allocation6 + $0xd90] sm:$0xff]
        %v3522 = vld [vmem:[#allocation6 + $0xd98] sm:$0xff]
        %v3523 = vld [vmem:[#allocation6 + $0xda0] sm:$0xff]
        %v3524 = vld [vmem:[#allocation6 + $0xda8] sm:$0xff]
        %v3525 = vld [vmem:[#allocation6 + $0xdb0] sm:$0xff]
        %v3526 = vld [vmem:[#allocation6 + $0xdb8] sm:$0xff]
        %v3527 = vld [vmem:[#allocation6 + $0xdc0] sm:$0xff]
        %v3528 = vld [vmem:[#allocation6 + $0xdc8] sm:$0xff]
        %v3529 = vld [vmem:[#allocation6 + $0xdd0] sm:$0xff]
        %v3530 = vld [vmem:[#allocation6 + $0xdd8] sm:$0xff]
        %v3531 = vld [vmem:[#allocation6 + $0xde0] sm:$0xff]
        %v3532 = vld [vmem:[#allocation6 + $0xde8] sm:$0xff]
        %v3533 = vld [vmem:[#allocation6 + $0xdf0] sm:$0xff]
        %v3534 = vld [vmem:[#allocation6 + $0xdf8] sm:$0xff]
        %v3535 = vld [vmem:[#allocation6 + $0xe00] sm:$0xff]
        %v3536 = vld [vmem:[#allocation6 + $0xe08] sm:$0xff]
        %v3537 = vld [vmem:[#allocation6 + $0xe10] sm:$0xff]
        %v3538 = vld [vmem:[#allocation6 + $0xe18] sm:$0xff]
        %v3539 = vld [vmem:[#allocation6 + $0xe20] sm:$0xff]
        %v3540 = vld [vmem:[#allocation6 + $0xe28] sm:$0xff]
        %v3541 = vld [vmem:[#allocation6 + $0xe30] sm:$0xff]
        %v3542 = vld [vmem:[#allocation6 + $0xe38] sm:$0xff]
        %v3543 = vld [vmem:[#allocation6 + $0xe40] sm:$0xff]
        %v3544 = vld [vmem:[#allocation6 + $0xe48] sm:$0xff]
        %v3545 = vld [vmem:[#allocation6 + $0xe50] sm:$0xff]
        %v3546 = vld [vmem:[#allocation6 + $0xe58] sm:$0xff]
        %v3547 = vld [vmem:[#allocation6 + $0xe60] sm:$0xff]
        %v3548 = vld [vmem:[#allocation6 + $0xe68] sm:$0xff]
        %v3549 = vld [vmem:[#allocation6 + $0xe70] sm:$0xff]
        %v3550 = vld [vmem:[#allocation6 + $0xe78] sm:$0xff]
        %v3551 = vld [vmem:[#allocation6 + $0xe80] sm:$0xff]
        %v3552 = vld [vmem:[#allocation6 + $0xe88] sm:$0xff]
        %v3553 = vld [vmem:[#allocation6 + $0xe90] sm:$0xff]
        %v3554 = vld [vmem:[#allocation6 + $0xe98] sm:$0xff]
        %v3555 = vld [vmem:[#allocation6 + $0xea0] sm:$0xff]
        %v3556 = vld [vmem:[#allocation6 + $0xea8] sm:$0xff]
        %v3557 = vld [vmem:[#allocation6 + $0xeb0] sm:$0xff]
        %v3558 = vld [vmem:[#allocation6 + $0xeb8] sm:$0xff]
        %v3559 = vld [vmem:[#allocation6 + $0xec0] sm:$0xff]
        %v3560 = vld [vmem:[#allocation6 + $0xec8] sm:$0xff]
        %v3561 = vld [vmem:[#allocation6 + $0xed0] sm:$0xff]
        %v3562 = vld [vmem:[#allocation6 + $0xed8] sm:$0xff]
        %v3563 = vld [vmem:[#allocation6 + $0xee0] sm:$0xff]
        %v3564 = vld [vmem:[#allocation6 + $0xee8] sm:$0xff]
        %v3565 = vld [vmem:[#allocation6 + $0xef0] sm:$0xff]
        %v3566 = vld [vmem:[#allocation6 + $0xef8] sm:$0xff]
        %v3567 = vld [vmem:[#allocation6 + $0xf00] sm:$0xff]
        %v3568 = vld [vmem:[#allocation6 + $0xf08] sm:$0xff]
        %v3569 = vld [vmem:[#allocation6 + $0xf10] sm:$0xff]
        %v3570 = vld [vmem:[#allocation6 + $0xf18] sm:$0xff]
        %v3571 = vld [vmem:[#allocation6 + $0xf20] sm:$0xff]
        %v3572 = vld [vmem:[#allocation6 + $0xf28] sm:$0xff]
        %v3573 = vld [vmem:[#allocation6 + $0xf30] sm:$0xff]
        %v3574 = vld [vmem:[#allocation6 + $0xf38] sm:$0xff]
        %v3575 = vld [vmem:[#allocation6 + $0xf40] sm:$0xff]
        %v3576 = vld [vmem:[#allocation6 + $0xf48] sm:$0xff]
        %v3577 = vld [vmem:[#allocation6 + $0xf50] sm:$0xff]
        %v3578 = vld [vmem:[#allocation6 + $0xf58] sm:$0xff]
        %v3579 = vld [vmem:[#allocation6 + $0xf60] sm:$0xff]
        %v3580 = vld [vmem:[#allocation6 + $0xf68] sm:$0xff]
        %v3581 = vld [vmem:[#allocation6 + $0xf70] sm:$0xff]
        %v3582 = vld [vmem:[#allocation6 + $0xf78] sm:$0xff]
        %v3583 = vld [vmem:[#allocation6 + $0xf80] sm:$0xff]
        %v3584 = vld [vmem:[#allocation6 + $0xf88] sm:$0xff]
        %v3585 = vld [vmem:[#allocation6 + $0xf90] sm:$0xff]
        %v3586 = vld [vmem:[#allocation6 + $0xf98] sm:$0xff]
        %v3587 = vld [vmem:[#allocation6 + $0xfa0] sm:$0xff]
        %v3588 = vld [vmem:[#allocation6 + $0xfa8] sm:$0xff]
        %v3589 = vld [vmem:[#allocation6 + $0xfb0] sm:$0xff]
        %v3590 = vld [vmem:[#allocation6 + $0xfb8] sm:$0xff]
        %v3591 = vld [vmem:[#allocation6 + $0xfc0] sm:$0xff]
        %v3592 = vld [vmem:[#allocation6 + $0xfc8] sm:$0xff]
        %v3593 = vld [vmem:[#allocation6 + $0xfd0] sm:$0xff]
        %v3594 = vld [vmem:[#allocation6 + $0xfd8] sm:$0xff]
        %v3595 = vld [vmem:[#allocation6 + $0xfe0] sm:$0xff]
        %v3596 = vld [vmem:[#allocation6 + $0xfe8] sm:$0xff]
        %v3597 = vld [vmem:[#allocation6 + $0xff0] sm:$0xff]
        %v3598 = vld [vmem:[#allocation6 + $0xff8] sm:$0xff]
        %v3599 = vld [vmem:[#allocation6 + $0x1000] sm:$0xff]
        %v3600 = vld [vmem:[#allocation6 + $0x1008] sm:$0xff]
        %v3601 = vld [vmem:[#allocation6 + $0x1010] sm:$0xff]
        %v3602 = vld [vmem:[#allocation6 + $0x1018] sm:$0xff]
        %v3603 = vld [vmem:[#allocation6 + $0x1020] sm:$0xff]
        %v3604 = vld [vmem:[#allocation6 + $0x1028] sm:$0xff]
        %v3605 = vld [vmem:[#allocation6 + $0x1030] sm:$0xff]
        %v3606 = vld [vmem:[#allocation6 + $0x1038] sm:$0xff]
        %v3607 = vld [vmem:[#allocation6 + $0x1040] sm:$0xff]
        %v3608 = vld [vmem:[#allocation6 + $0x1048] sm:$0xff]
        %v3609 = vld [vmem:[#allocation6 + $0x1050] sm:$0xff]
        %v3610 = vld [vmem:[#allocation6 + $0x1058] sm:$0xff]
        %v3611 = vld [vmem:[#allocation6 + $0x1060] sm:$0xff]
        %v3612 = vld [vmem:[#allocation6 + $0x1068] sm:$0xff]
        %v3613 = vld [vmem:[#allocation6 + $0x1070] sm:$0xff]
        %v3614 = vld [vmem:[#allocation6 + $0x1078] sm:$0xff]
        %v3615 = vld [vmem:[#allocation6 + $0x1080] sm:$0xff]
        %v3616 = vld [vmem:[#allocation6 + $0x1088] sm:$0xff]
        %v3617 = vld [vmem:[#allocation6 + $0x1090] sm:$0xff]
        %v3618 = vld [vmem:[#allocation6 + $0x1098] sm:$0xff]
        %v3619 = vld [vmem:[#allocation6 + $0x10a0] sm:$0xff]
        %v3620 = vld [vmem:[#allocation6 + $0x10a8] sm:$0xff]
        %v3621 = vld [vmem:[#allocation6 + $0x10b0] sm:$0xff]
        %v3622 = vld [vmem:[#allocation6 + $0x10b8] sm:$0xff]
        %v3623 = vld [vmem:[#allocation6 + $0x10c0] sm:$0xff]
        %v3624 = vld [vmem:[#allocation6 + $0x10c8] sm:$0xff]
        %v3625 = vld [vmem:[#allocation6 + $0x10d0] sm:$0xff]
        %v3626 = vld [vmem:[#allocation6 + $0x10d8] sm:$0xff]
        %v3627 = vld [vmem:[#allocation6 + $0x10e0] sm:$0xff]
        %v3628 = vld [vmem:[#allocation6 + $0x10e8] sm:$0xff]
        %v3629 = vld [vmem:[#allocation6 + $0x10f0] sm:$0xff]
        %v3630 = vld [vmem:[#allocation6 + $0x10f8] sm:$0xff]
        %v3631 = vld [vmem:[#allocation6 + $0x1100] sm:$0xff]
        %v3632 = vld [vmem:[#allocation6 + $0x1108] sm:$0xff]
        %v3633 = vld [vmem:[#allocation6 + $0x1110] sm:$0xff]
        %v3634 = vld [vmem:[#allocation6 + $0x1118] sm:$0xff]
        %v3635 = vld [vmem:[#allocation6 + $0x1120] sm:$0xff]
        %v3636 = vld [vmem:[#allocation6 + $0x1128] sm:$0xff]
        %v3637 = vld [vmem:[#allocation6 + $0x1130] sm:$0xff]
        %v3638 = vld [vmem:[#allocation6 + $0x1138] sm:$0xff]
        %v3639 = vld [vmem:[#allocation6 + $0x1140] sm:$0xff]
        %v3640 = vld [vmem:[#allocation6 + $0x1148] sm:$0xff]
        %v3641 = vld [vmem:[#allocation6 + $0x1150] sm:$0xff]
        %v3642 = vld [vmem:[#allocation6 + $0x1158] sm:$0xff]
        %v3643 = vld [vmem:[#allocation6 + $0x1160] sm:$0xff]
        %v3644 = vld [vmem:[#allocation6 + $0x1168] sm:$0xff]
        %v3645 = vld [vmem:[#allocation6 + $0x1170] sm:$0xff]
        %v3646 = vld [vmem:[#allocation6 + $0x1178] sm:$0xff]
        %v3647 = vld [vmem:[#allocation6 + $0x1180] sm:$0xff]
        %v3648 = vld [vmem:[#allocation6 + $0x1188] sm:$0xff]
        %v3649 = vld [vmem:[#allocation6 + $0x1190] sm:$0xff]
        %v3650 = vld [vmem:[#allocation6 + $0x1198] sm:$0xff]
        %v3651 = vld [vmem:[#allocation6 + $0x11a0] sm:$0xff]
        %v3652 = vld [vmem:[#allocation6 + $0x11a8] sm:$0xff]
        %v3653 = vld [vmem:[#allocation6 + $0x11b0] sm:$0xff]
        %v3654 = vld [vmem:[#allocation6 + $0x11b8] sm:$0xff]
        %v3655 = vld [vmem:[#allocation6 + $0x11c0] sm:$0xff]
        %v3656 = vld [vmem:[#allocation6 + $0x11c8] sm:$0xff]
        %v3657 = vld [vmem:[#allocation6 + $0x11d0] sm:$0xff]
        %v3658 = vld [vmem:[#allocation6 + $0x11d8] sm:$0xff]
        %v3659 = vld [vmem:[#allocation6 + $0x11e0] sm:$0xff]
        %v3660 = vld [vmem:[#allocation6 + $0x11e8] sm:$0xff]
        %v3661 = vld [vmem:[#allocation6 + $0x11f0] sm:$0xff]
        %v3662 = vld [vmem:[#allocation6 + $0x11f8] sm:$0xff]
        %v3663 = vld [vmem:[#allocation6 + $0x1200] sm:$0xff]
        %v3664 = vld [vmem:[#allocation6 + $0x1208] sm:$0xff]
        %v3665 = vld [vmem:[#allocation6 + $0x1210] sm:$0xff]
        %v3666 = vld [vmem:[#allocation6 + $0x1218] sm:$0xff]
        %v3667 = vld [vmem:[#allocation6 + $0x1220] sm:$0xff]
        %v3668 = vld [vmem:[#allocation6 + $0x1228] sm:$0xff]
        %v3669 = vld [vmem:[#allocation6 + $0x1230] sm:$0xff]
        %v3670 = vld [vmem:[#allocation6 + $0x1238] sm:$0xff]
        %v3671 = vld [vmem:[#allocation6 + $0x1240] sm:$0xff]
        %v3672 = vld [vmem:[#allocation6 + $0x1248] sm:$0xff]
        %v3673 = vld [vmem:[#allocation6 + $0x1250] sm:$0xff]
        %v3674 = vld [vmem:[#allocation6 + $0x1258] sm:$0xff]
        %v3675 = vld [vmem:[#allocation6 + $0x1260] sm:$0xff]
        %v3676 = vld [vmem:[#allocation6 + $0x1268] sm:$0xff]
        %v3677 = vld [vmem:[#allocation6 + $0x1270] sm:$0xff]
        %v3678 = vld [vmem:[#allocation6 + $0x1278] sm:$0xff]
        %v3679 = vld [vmem:[#allocation6 + $0x1280] sm:$0xff]
        %v3680 = vld [vmem:[#allocation6 + $0x1288] sm:$0xff]
        %v3681 = vld [vmem:[#allocation6 + $0x1290] sm:$0xff]
        %v3682 = vld [vmem:[#allocation6 + $0x1298] sm:$0xff]
        %v3683 = vld [vmem:[#allocation6 + $0x12a0] sm:$0xff]
        %v3684 = vld [vmem:[#allocation6 + $0x12a8] sm:$0xff]
        %v3685 = vld [vmem:[#allocation6 + $0x12b0] sm:$0xff]
        %v3686 = vld [vmem:[#allocation6 + $0x12b8] sm:$0xff]
        %v3687 = vld [vmem:[#allocation6 + $0x12c0] sm:$0xff]
        %v3688 = vld [vmem:[#allocation6 + $0x12c8] sm:$0xff]
        %v3689 = vld [vmem:[#allocation6 + $0x12d0] sm:$0xff]
        %v3690 = vld [vmem:[#allocation6 + $0x12d8] sm:$0xff]
        %v3691 = vld [vmem:[#allocation6 + $0x12e0] sm:$0xff]
        %v3692 = vld [vmem:[#allocation6 + $0x12e8] sm:$0xff]
        %v3693 = vld [vmem:[#allocation6 + $0x12f0] sm:$0xff]
        %v3694 = vld [vmem:[#allocation6 + $0x12f8] sm:$0xff]
        %v3695 = vld [vmem:[#allocation6 + $0x1300] sm:$0xff]
        %v3696 = vld [vmem:[#allocation6 + $0x1308] sm:$0xff]
        %v3697 = vld [vmem:[#allocation6 + $0x1310] sm:$0xff]
        %v3698 = vld [vmem:[#allocation6 + $0x1318] sm:$0xff]
        %v3699 = vld [vmem:[#allocation6 + $0x1320] sm:$0xff]
        %v3700 = vld [vmem:[#allocation6 + $0x1328] sm:$0xff]
        %v3701 = vld [vmem:[#allocation6 + $0x1330] sm:$0xff]
        %v3702 = vld [vmem:[#allocation6 + $0x1338] sm:$0xff]
        %v3703 = vld [vmem:[#allocation6 + $0x1340] sm:$0xff]
        %v3704 = vld [vmem:[#allocation6 + $0x1348] sm:$0xff]
        %v3705 = vld [vmem:[#allocation6 + $0x1350] sm:$0xff]
        %v3706 = vld [vmem:[#allocation6 + $0x1358] sm:$0xff]
        %v3707 = vld [vmem:[#allocation6 + $0x1360] sm:$0xff]
        %v3708 = vld [vmem:[#allocation6 + $0x1368] sm:$0xff]
        %v3709 = vld [vmem:[#allocation6 + $0x1370] sm:$0xff]
        %v3710 = vld [vmem:[#allocation6 + $0x1378] sm:$0xff]
        %v3711 = vld [vmem:[#allocation6 + $0x1380] sm:$0xff]
        %v3712 = vld [vmem:[#allocation6 + $0x1388] sm:$0xff]
        %v3713 = vld [vmem:[#allocation6 + $0x1390] sm:$0xff]
        %v3714 = vld [vmem:[#allocation6 + $0x1398] sm:$0xff]
        %v3715 = vld [vmem:[#allocation6 + $0x13a0] sm:$0xff]
        %v3716 = vld [vmem:[#allocation6 + $0x13a8] sm:$0xff]
        %v3717 = vld [vmem:[#allocation6 + $0x13b0] sm:$0xff]
        %v3718 = vld [vmem:[#allocation6 + $0x13b8] sm:$0xff]
        %v3719 = vld [vmem:[#allocation6 + $0x13c0] sm:$0xff]
        %v3720 = vld [vmem:[#allocation6 + $0x13c8] sm:$0xff]
        %v3721 = vld [vmem:[#allocation6 + $0x13d0] sm:$0xff]
        %v3722 = vld [vmem:[#allocation6 + $0x13d8] sm:$0xff]
        %v3723 = vld [vmem:[#allocation6 + $0x13e0] sm:$0xff]
        %v3724 = vld [vmem:[#allocation6 + $0x13e8] sm:$0xff]
        %v3725 = vld [vmem:[#allocation6 + $0x13f0] sm:$0xff]
        %v3726 = vld [vmem:[#allocation6 + $0x13f8] sm:$0xff]
        %v3727 = vld [vmem:[#allocation6 + $0x1400] sm:$0xff]
        %v3728 = vld [vmem:[#allocation6 + $0x1408] sm:$0xff]
        %v3729 = vld [vmem:[#allocation6 + $0x1410] sm:$0xff]
        %v3730 = vld [vmem:[#allocation6 + $0x1418] sm:$0xff]
        %v3731 = vld [vmem:[#allocation6 + $0x1420] sm:$0xff]
        %v3732 = vld [vmem:[#allocation6 + $0x1428] sm:$0xff]
        %v3733 = vld [vmem:[#allocation6 + $0x1430] sm:$0xff]
        %v3734 = vld [vmem:[#allocation6 + $0x1438] sm:$0xff]
        %v3735 = vld [vmem:[#allocation6 + $0x1440] sm:$0xff]
        %v3736 = vld [vmem:[#allocation6 + $0x1448] sm:$0xff]
        %v3737 = vld [vmem:[#allocation6 + $0x1450] sm:$0xff]
        %v3738 = vld [vmem:[#allocation6 + $0x1458] sm:$0xff]
        %v3739 = vld [vmem:[#allocation6 + $0x1460] sm:$0xff]
        %v3740 = vld [vmem:[#allocation6 + $0x1468] sm:$0xff]
        %v3741 = vld [vmem:[#allocation6 + $0x1470] sm:$0xff]
        %v3742 = vld [vmem:[#allocation6 + $0x1478] sm:$0xff]
        %v3743 = vld [vmem:[#allocation6 + $0x1480] sm:$0xff]
        %v3744 = vld [vmem:[#allocation6 + $0x1488] sm:$0xff]
        %v3745 = vld [vmem:[#allocation6 + $0x1490] sm:$0xff]
        %v3746 = vld [vmem:[#allocation6 + $0x1498] sm:$0xff]
        %v3747 = vld [vmem:[#allocation6 + $0x14a0] sm:$0xff]
        %v3748 = vld [vmem:[#allocation6 + $0x14a8] sm:$0xff]
        %v3749 = vld [vmem:[#allocation6 + $0x14b0] sm:$0xff]
        %v3750 = vld [vmem:[#allocation6 + $0x14b8] sm:$0xff]
        %v3751 = vld [vmem:[#allocation6 + $0x14c0] sm:$0xff]
        %v3752 = vld [vmem:[#allocation6 + $0x14c8] sm:$0xff]
        %v3753 = vld [vmem:[#allocation6 + $0x14d0] sm:$0xff]
        %v3754 = vld [vmem:[#allocation6 + $0x14d8] sm:$0xff]
        %v3755 = vld [vmem:[#allocation6 + $0x14e0] sm:$0xff]
        %v3756 = vld [vmem:[#allocation6 + $0x14e8] sm:$0xff]
        %v3757 = vld [vmem:[#allocation6 + $0x14f0] sm:$0xff]
        %v3758 = vld [vmem:[#allocation6 + $0x14f8] sm:$0xff]
        %v3759 = vld [vmem:[#allocation6 + $0x1500] sm:$0xff]
        %v3760 = vld [vmem:[#allocation6 + $0x1508] sm:$0xff]
        %v3761 = vld [vmem:[#allocation6 + $0x1510] sm:$0xff]
        %v3762 = vld [vmem:[#allocation6 + $0x1518] sm:$0xff]
        %v3763 = vld [vmem:[#allocation6 + $0x1520] sm:$0xff]
        %v3764 = vld [vmem:[#allocation6 + $0x1528] sm:$0xff]
        %v3765 = vld [vmem:[#allocation6 + $0x1530] sm:$0xff]
        %v3766 = vld [vmem:[#allocation6 + $0x1538] sm:$0xff]
        %v3767 = vld [vmem:[#allocation6 + $0x1540] sm:$0xff]
        %v3768 = vld [vmem:[#allocation6 + $0x1548] sm:$0xff]
        %v3769 = vld [vmem:[#allocation6 + $0x1550] sm:$0xff]
        %v3770 = vld [vmem:[#allocation6 + $0x1558] sm:$0xff]
        %v3771 = vld [vmem:[#allocation6 + $0x1560] sm:$0xff]
        %v3772 = vld [vmem:[#allocation6 + $0x1568] sm:$0xff]
        %v3773 = vld [vmem:[#allocation6 + $0x1570] sm:$0xff]
        %v3774 = vld [vmem:[#allocation6 + $0x1578] sm:$0xff]
        %v3775 = vld [vmem:[#allocation6 + $0x1580] sm:$0xff]
        %v3776 = vld [vmem:[#allocation6 + $0x1588] sm:$0xff]
        %v3777 = vld [vmem:[#allocation6 + $0x1590] sm:$0xff]
        %v3778 = vld [vmem:[#allocation6 + $0x1598] sm:$0xff]
        %v3779 = vld [vmem:[#allocation6 + $0x15a0] sm:$0xff]
        %v3780 = vld [vmem:[#allocation6 + $0x15a8] sm:$0xff]
        %v3781 = vld [vmem:[#allocation6 + $0x15b0] sm:$0xff]
        %v3782 = vld [vmem:[#allocation6 + $0x15b8] sm:$0xff]
        %v3783 = vld [vmem:[#allocation6 + $0x15c0] sm:$0xff]
        %v3784 = vld [vmem:[#allocation6 + $0x15c8] sm:$0xff]
        %v3785 = vld [vmem:[#allocation6 + $0x15d0] sm:$0xff]
        %v3786 = vld [vmem:[#allocation6 + $0x15d8] sm:$0xff]
        %v3787 = vld [vmem:[#allocation6 + $0x15e0] sm:$0xff]
        %v3788 = vld [vmem:[#allocation6 + $0x15e8] sm:$0xff]
        %v3789 = vld [vmem:[#allocation6 + $0x15f0] sm:$0xff]
        %v3790 = vld [vmem:[#allocation6 + $0x15f8] sm:$0xff]
        %v3791 = vld [vmem:[#allocation6 + $0x1600] sm:$0xff]
        %v3792 = vld [vmem:[#allocation6 + $0x1608] sm:$0xff]
        %v3793 = vld [vmem:[#allocation6 + $0x1610] sm:$0xff]
        %v3794 = vld [vmem:[#allocation6 + $0x1618] sm:$0xff]
        %v3795 = vld [vmem:[#allocation6 + $0x1620] sm:$0xff]
        %v3796 = vld [vmem:[#allocation6 + $0x1628] sm:$0xff]
        %v3797 = vld [vmem:[#allocation6 + $0x1630] sm:$0xff]
        %v3798 = vld [vmem:[#allocation6 + $0x1638] sm:$0xff]
        %v3799 = vld [vmem:[#allocation6 + $0x1640] sm:$0xff]
        %v3800 = vld [vmem:[#allocation6 + $0x1648] sm:$0xff]
        %v3801 = vld [vmem:[#allocation6 + $0x1650] sm:$0xff]
        %v3802 = vld [vmem:[#allocation6 + $0x1658] sm:$0xff]
        %v3803 = vld [vmem:[#allocation6 + $0x1660] sm:$0xff]
        %v3804 = vld [vmem:[#allocation6 + $0x1668] sm:$0xff]
        %v3805 = vld [vmem:[#allocation6 + $0x1670] sm:$0xff]
        %v3806 = vld [vmem:[#allocation6 + $0x1678] sm:$0xff]
        %v3807 = vld [vmem:[#allocation6 + $0x1680] sm:$0xff]
        %v3808 = vld [vmem:[#allocation6 + $0x1688] sm:$0xff]
        %v3809 = vld [vmem:[#allocation6 + $0x1690] sm:$0xff]
        %v3810 = vld [vmem:[#allocation6 + $0x1698] sm:$0xff]
        %v3811 = vld [vmem:[#allocation6 + $0x16a0] sm:$0xff]
        %v3812 = vld [vmem:[#allocation6 + $0x16a8] sm:$0xff]
        %v3813 = vld [vmem:[#allocation6 + $0x16b0] sm:$0xff]
        %v3814 = vld [vmem:[#allocation6 + $0x16b8] sm:$0xff]
        %v3815 = vld [vmem:[#allocation6 + $0x16c0] sm:$0xff]
        %v3816 = vld [vmem:[#allocation6 + $0x16c8] sm:$0xff]
        %v3817 = vld [vmem:[#allocation6 + $0x16d0] sm:$0xff]
        %v3818 = vld [vmem:[#allocation6 + $0x16d8] sm:$0xff]
        %v3819 = vld [vmem:[#allocation6 + $0x16e0] sm:$0xff]
        %v3820 = vld [vmem:[#allocation6 + $0x16e8] sm:$0xff]
        %v3821 = vld [vmem:[#allocation6 + $0x16f0] sm:$0xff]
        %v3822 = vld [vmem:[#allocation6 + $0x16f8] sm:$0xff]
        %v3823 = vld [vmem:[#allocation6 + $0x1700] sm:$0xff]
        %v3824 = vld [vmem:[#allocation6 + $0x1708] sm:$0xff]
        %v3825 = vld [vmem:[#allocation6 + $0x1710] sm:$0xff]
        %v3826 = vld [vmem:[#allocation6 + $0x1718] sm:$0xff]
        %v3827 = vld [vmem:[#allocation6 + $0x1720] sm:$0xff]
        %v3828 = vld [vmem:[#allocation6 + $0x1728] sm:$0xff]
        %v3829 = vld [vmem:[#allocation6 + $0x1730] sm:$0xff]
        %v3830 = vld [vmem:[#allocation6 + $0x1738] sm:$0xff]
        %v3831 = vld [vmem:[#allocation6 + $0x1740] sm:$0xff]
        %v3832 = vld [vmem:[#allocation6 + $0x1748] sm:$0xff]
        %v3833 = vld [vmem:[#allocation6 + $0x1750] sm:$0xff]
        %v3834 = vld [vmem:[#allocation6 + $0x1758] sm:$0xff]
        %v3835 = vld [vmem:[#allocation6 + $0x1760] sm:$0xff]
        %v3836 = vld [vmem:[#allocation6 + $0x1768] sm:$0xff]
        %v3837 = vld [vmem:[#allocation6 + $0x1770] sm:$0xff]
        %v3838 = vld [vmem:[#allocation6 + $0x1778] sm:$0xff]
        %v3839 = vld [vmem:[#allocation6 + $0x1780] sm:$0xff]
        %v3840 = vld [vmem:[#allocation6 + $0x1788] sm:$0xff]
        %v3841 = vld [vmem:[#allocation6 + $0x1790] sm:$0xff]
        %v3842 = vld [vmem:[#allocation6 + $0x1798] sm:$0xff]
        %v3843 = vld [vmem:[#allocation6 + $0x17a0] sm:$0xff]
        %v3844 = vld [vmem:[#allocation6 + $0x17a8] sm:$0xff]
        %v3845 = vld [vmem:[#allocation6 + $0x17b0] sm:$0xff]
        %v3846 = vld [vmem:[#allocation6 + $0x17b8] sm:$0xff]
        %v3847 = vld [vmem:[#allocation6 + $0x17c0] sm:$0xff]
        %v3848 = vld [vmem:[#allocation6 + $0x17c8] sm:$0xff]
        %v3849 = vld [vmem:[#allocation6 + $0x17d0] sm:$0xff]
        %v3850 = vld [vmem:[#allocation6 + $0x17d8] sm:$0xff]
        %v3851 = vld [vmem:[#allocation6 + $0x17e0] sm:$0xff]
        %v3852 = vld [vmem:[#allocation6 + $0x17e8] sm:$0xff]
        %v3853 = vld [vmem:[#allocation6 + $0x17f0] sm:$0xff]
        %v3854 = vld [vmem:[#allocation6 + $0x17f8] sm:$0xff]
        %v3855 = vld [vmem:[#allocation6 + $0x1800] sm:$0xff]
        %v3856 = vld [vmem:[#allocation6 + $0x1808] sm:$0xff]
        %v3857 = vld [vmem:[#allocation6 + $0x1810] sm:$0xff]
        %v3858 = vld [vmem:[#allocation6 + $0x1818] sm:$0xff]
        %v3859 = vld [vmem:[#allocation6 + $0x1820] sm:$0xff]
        %v3860 = vld [vmem:[#allocation6 + $0x1828] sm:$0xff]
        %v3861 = vld [vmem:[#allocation6 + $0x1830] sm:$0xff]
        %v3862 = vld [vmem:[#allocation6 + $0x1838] sm:$0xff]
        %v3863 = vld [vmem:[#allocation6 + $0x1840] sm:$0xff]
        %v3864 = vld [vmem:[#allocation6 + $0x1848] sm:$0xff]
        %v3865 = vld [vmem:[#allocation6 + $0x1850] sm:$0xff]
        %v3866 = vld [vmem:[#allocation6 + $0x1858] sm:$0xff]
        %v3867 = vld [vmem:[#allocation6 + $0x1860] sm:$0xff]
        %v3868 = vld [vmem:[#allocation6 + $0x1868] sm:$0xff]
        %v3869 = vld [vmem:[#allocation6 + $0x1870] sm:$0xff]
        %v3870 = vld [vmem:[#allocation6 + $0x1878] sm:$0xff]
        %v3871 = vld [vmem:[#allocation6 + $0x1880] sm:$0xff]
        %v3872 = vld [vmem:[#allocation6 + $0x1888] sm:$0xff]
        %v3873 = vld [vmem:[#allocation6 + $0x1890] sm:$0xff]
        %v3874 = vld [vmem:[#allocation6 + $0x1898] sm:$0xff]
        %v3875 = vld [vmem:[#allocation6 + $0x18a0] sm:$0xff]
        %v3876 = vld [vmem:[#allocation6 + $0x18a8] sm:$0xff]
        %v3877 = vld [vmem:[#allocation6 + $0x18b0] sm:$0xff]
        %v3878 = vld [vmem:[#allocation6 + $0x18b8] sm:$0xff]
        %v3879 = vld [vmem:[#allocation6 + $0x18c0] sm:$0xff]
        %v3880 = vld [vmem:[#allocation6 + $0x18c8] sm:$0xff]
        %v3881 = vld [vmem:[#allocation6 + $0x18d0] sm:$0xff]
        %v3882 = vld [vmem:[#allocation6 + $0x18d8] sm:$0xff]
        %v3883 = vld [vmem:[#allocation6 + $0x18e0] sm:$0xff]
        %v3884 = vld [vmem:[#allocation6 + $0x18e8] sm:$0xff]
        %v3885 = vld [vmem:[#allocation6 + $0x18f0] sm:$0xff]
        %v3886 = vld [vmem:[#allocation6 + $0x18f8] sm:$0xff]
        %v3887 = vld [vmem:[#allocation6 + $0x1900] sm:$0xff]
        %v3888 = vld [vmem:[#allocation6 + $0x1908] sm:$0xff]
        %v3889 = vld [vmem:[#allocation6 + $0x1910] sm:$0xff]
        %v3890 = vld [vmem:[#allocation6 + $0x1918] sm:$0xff]
        %v3891 = vld [vmem:[#allocation6 + $0x1920] sm:$0xff]
        %v3892 = vld [vmem:[#allocation6 + $0x1928] sm:$0xff]
        %v3893 = vld [vmem:[#allocation6 + $0x1930] sm:$0xff]
        %v3894 = vld [vmem:[#allocation6 + $0x1938] sm:$0xff]
        %v3895 = vld [vmem:[#allocation6 + $0x1940] sm:$0xff]
        %v3896 = vld [vmem:[#allocation6 + $0x1948] sm:$0xff]
        %v3897 = vld [vmem:[#allocation6 + $0x1950] sm:$0xff]
        %v3898 = vld [vmem:[#allocation6 + $0x1958] sm:$0xff]
        %v3899 = vld [vmem:[#allocation6 + $0x1960] sm:$0xff]
        %v3900 = vld [vmem:[#allocation6 + $0x1968] sm:$0xff]
        %v3901 = vld [vmem:[#allocation6 + $0x1970] sm:$0xff]
        %v3902 = vld [vmem:[#allocation6 + $0x1978] sm:$0xff]
        %v3903 = vld [vmem:[#allocation6 + $0x1980] sm:$0xff]
        %v3904 = vld [vmem:[#allocation6 + $0x1988] sm:$0xff]
        %v3905 = vld [vmem:[#allocation6 + $0x1990] sm:$0xff]
        %v3906 = vld [vmem:[#allocation6 + $0x1998] sm:$0xff]
        %v3907 = vld [vmem:[#allocation6 + $0x19a0] sm:$0xff]
        %v3908 = vld [vmem:[#allocation6 + $0x19a8] sm:$0xff]
        %v3909 = vld [vmem:[#allocation6 + $0x19b0] sm:$0xff]
        %v3910 = vld [vmem:[#allocation6 + $0x19b8] sm:$0xff]
        %v3911 = vld [vmem:[#allocation6 + $0x19c0] sm:$0xff]
        %v3912 = vld [vmem:[#allocation6 + $0x19c8] sm:$0xff]
        %v3913 = vld [vmem:[#allocation6 + $0x19d0] sm:$0xff]
        %v3914 = vld [vmem:[#allocation6 + $0x19d8] sm:$0xff]
        %v3915 = vld [vmem:[#allocation6 + $0x19e0] sm:$0xff]
        %v3916 = vld [vmem:[#allocation6 + $0x19e8] sm:$0xff]
        %v3917 = vld [vmem:[#allocation6 + $0x19f0] sm:$0xff]
        %v3918 = vld [vmem:[#allocation6 + $0x19f8] sm:$0xff]
        %v3919 = vld [vmem:[#allocation6 + $0x1a00] sm:$0xff]
        %v3920 = vld [vmem:[#allocation6 + $0x1a08] sm:$0xff]
        %v3921 = vld [vmem:[#allocation6 + $0x1a10] sm:$0xff]
        %v3922 = vld [vmem:[#allocation6 + $0x1a18] sm:$0xff]
        %v3923 = vld [vmem:[#allocation6 + $0x1a20] sm:$0xff]
        %v3924 = vld [vmem:[#allocation6 + $0x1a28] sm:$0xff]
        %v3925 = vld [vmem:[#allocation6 + $0x1a30] sm:$0xff]
        %v3926 = vld [vmem:[#allocation6 + $0x1a38] sm:$0xff]
        %v3927 = vld [vmem:[#allocation6 + $0x1a40] sm:$0xff]
        %v3928 = vld [vmem:[#allocation6 + $0x1a48] sm:$0xff]
        %v3929 = vld [vmem:[#allocation6 + $0x1a50] sm:$0xff]
        %v3930 = vld [vmem:[#allocation6 + $0x1a58] sm:$0xff]
        %v3931 = vld [vmem:[#allocation6 + $0x1a60] sm:$0xff]
        %v3932 = vld [vmem:[#allocation6 + $0x1a68] sm:$0xff]
        %v3933 = vld [vmem:[#allocation6 + $0x1a70] sm:$0xff]
        %v3934 = vld [vmem:[#allocation6 + $0x1a78] sm:$0xff]
        %v3935 = vld [vmem:[#allocation6 + $0x1a80] sm:$0xff]
        %v3936 = vld [vmem:[#allocation6 + $0x1a88] sm:$0xff]
        %v3937 = vld [vmem:[#allocation6 + $0x1a90] sm:$0xff]
        %v3938 = vld [vmem:[#allocation6 + $0x1a98] sm:$0xff]
        %v3939 = vld [vmem:[#allocation6 + $0x1aa0] sm:$0xff]
        %v3940 = vld [vmem:[#allocation6 + $0x1aa8] sm:$0xff]
        %v3941 = vld [vmem:[#allocation6 + $0x1ab0] sm:$0xff]
        %v3942 = vld [vmem:[#allocation6 + $0x1ab8] sm:$0xff]
        %v3943 = vld [vmem:[#allocation6 + $0x1ac0] sm:$0xff]
        %v3944 = vld [vmem:[#allocation6 + $0x1ac8] sm:$0xff]
        %v3945 = vld [vmem:[#allocation6 + $0x1ad0] sm:$0xff]
        %v3946 = vld [vmem:[#allocation6 + $0x1ad8] sm:$0xff]
        %v3947 = vld [vmem:[#allocation6 + $0x1ae0] sm:$0xff]
        %v3948 = vld [vmem:[#allocation6 + $0x1ae8] sm:$0xff]
        %v3949 = vld [vmem:[#allocation6 + $0x1af0] sm:$0xff]
        %v3950 = vld [vmem:[#allocation6 + $0x1af8] sm:$0xff]
        %v3951 = vld [vmem:[#allocation6 + $0x1b00] sm:$0xff]
        %v3952 = vld [vmem:[#allocation6 + $0x1b08] sm:$0xff]
        %v3953 = vld [vmem:[#allocation6 + $0x1b10] sm:$0xff]
        %v3954 = vld [vmem:[#allocation6 + $0x1b18] sm:$0xff]
        %v3955 = vld [vmem:[#allocation6 + $0x1b20] sm:$0xff]
        %v3956 = vld [vmem:[#allocation6 + $0x1b28] sm:$0xff]
        %v3957 = vld [vmem:[#allocation6 + $0x1b30] sm:$0xff]
        %v3958 = vld [vmem:[#allocation6 + $0x1b38] sm:$0xff]
        %v3959 = vld [vmem:[#allocation6 + $0x1b40] sm:$0xff]
        %v3960 = vld [vmem:[#allocation6 + $0x1b48] sm:$0xff]
        %v3961 = vld [vmem:[#allocation6 + $0x1b50] sm:$0xff]
        %v3962 = vld [vmem:[#allocation6 + $0x1b58] sm:$0xff]
        %v3963 = vld [vmem:[#allocation6 + $0x1b60] sm:$0xff]
        %v3964 = vld [vmem:[#allocation6 + $0x1b68] sm:$0xff]
        %v3965 = vld [vmem:[#allocation6 + $0x1b70] sm:$0xff]
        %v3966 = vld [vmem:[#allocation6 + $0x1b78] sm:$0xff]
        %v3967 = vld [vmem:[#allocation6 + $0x1b80] sm:$0xff]
        %v3968 = vld [vmem:[#allocation6 + $0x1b88] sm:$0xff]
        %v3969 = vld [vmem:[#allocation6 + $0x1b90] sm:$0xff]
        %v3970 = vld [vmem:[#allocation6 + $0x1b98] sm:$0xff]
        %v3971 = vld [vmem:[#allocation6 + $0x1ba0] sm:$0xff]
        %v3972 = vld [vmem:[#allocation6 + $0x1ba8] sm:$0xff]
        %v3973 = vld [vmem:[#allocation6 + $0x1bb0] sm:$0xff]
        %v3974 = vld [vmem:[#allocation6 + $0x1bb8] sm:$0xff]
        %v3975 = vld [vmem:[#allocation6 + $0x1bc0] sm:$0xff]
        %v3976 = vld [vmem:[#allocation6 + $0x1bc8] sm:$0xff]
        %v3977 = vld [vmem:[#allocation6 + $0x1bd0] sm:$0xff]
        %v3978 = vld [vmem:[#allocation6 + $0x1bd8] sm:$0xff]
        %v3979 = vld [vmem:[#allocation6 + $0x1be0] sm:$0xff]
        %v3980 = vld [vmem:[#allocation6 + $0x1be8] sm:$0xff]
        %v3981 = vld [vmem:[#allocation6 + $0x1bf0] sm:$0xff]
        %v3982 = vld [vmem:[#allocation6 + $0x1bf8] sm:$0xff]
        %v3983 = vld [vmem:[#allocation6 + $0x1c00] sm:$0xff]
        %v3984 = vld [vmem:[#allocation6 + $0x1c08] sm:$0xff]
        %v3985 = vld [vmem:[#allocation6 + $0x1c10] sm:$0xff]
        %v3986 = vld [vmem:[#allocation6 + $0x1c18] sm:$0xff]
        %v3987 = vld [vmem:[#allocation6 + $0x1c20] sm:$0xff]
        %v3988 = vld [vmem:[#allocation6 + $0x1c28] sm:$0xff]
        %v3989 = vld [vmem:[#allocation6 + $0x1c30] sm:$0xff]
        %v3990 = vld [vmem:[#allocation6 + $0x1c38] sm:$0xff]
        %v3991 = vld [vmem:[#allocation6 + $0x1c40] sm:$0xff]
        %v3992 = vld [vmem:[#allocation6 + $0x1c48] sm:$0xff]
        %v3993 = vld [vmem:[#allocation6 + $0x1c50] sm:$0xff]
        %v3994 = vld [vmem:[#allocation6 + $0x1c58] sm:$0xff]
        %v3995 = vld [vmem:[#allocation6 + $0x1c60] sm:$0xff]
        %v3996 = vld [vmem:[#allocation6 + $0x1c68] sm:$0xff]
        %v3997 = vld [vmem:[#allocation6 + $0x1c70] sm:$0xff]
        %v3998 = vld [vmem:[#allocation6 + $0x1c78] sm:$0xff]
        %v3999 = vld [vmem:[#allocation6 + $0x1c80] sm:$0xff]
        %v4000 = vld [vmem:[#allocation6 + $0x1c88] sm:$0xff]
        %v4001 = vld [vmem:[#allocation6 + $0x1c90] sm:$0xff]
        %v4002 = vld [vmem:[#allocation6 + $0x1c98] sm:$0xff]
        %v4003 = vld [vmem:[#allocation6 + $0x1ca0] sm:$0xff]
        %v4004 = vld [vmem:[#allocation6 + $0x1ca8] sm:$0xff]
        %v4005 = vld [vmem:[#allocation6 + $0x1cb0] sm:$0xff]
        %v4006 = vld [vmem:[#allocation6 + $0x1cb8] sm:$0xff]
        %v4007 = vld [vmem:[#allocation6 + $0x1cc0] sm:$0xff]
        %v4008 = vld [vmem:[#allocation6 + $0x1cc8] sm:$0xff]
        %v4009 = vld [vmem:[#allocation6 + $0x1cd0] sm:$0xff]
        %v4010 = vld [vmem:[#allocation6 + $0x1cd8] sm:$0xff]
        %v4011 = vld [vmem:[#allocation6 + $0x1ce0] sm:$0xff]
        %v4012 = vld [vmem:[#allocation6 + $0x1ce8] sm:$0xff]
        %v4013 = vld [vmem:[#allocation6 + $0x1cf0] sm:$0xff]
        %v4014 = vld [vmem:[#allocation6 + $0x1cf8] sm:$0xff]
        %v4015 = vld [vmem:[#allocation6 + $0x1d00] sm:$0xff]
        %v4016 = vld [vmem:[#allocation6 + $0x1d08] sm:$0xff]
        %v4017 = vld [vmem:[#allocation6 + $0x1d10] sm:$0xff]
        %v4018 = vld [vmem:[#allocation6 + $0x1d18] sm:$0xff]
        %v4019 = vld [vmem:[#allocation6 + $0x1d20] sm:$0xff]
        %v4020 = vld [vmem:[#allocation6 + $0x1d28] sm:$0xff]
        %v4021 = vld [vmem:[#allocation6 + $0x1d30] sm:$0xff]
        %v4022 = vld [vmem:[#allocation6 + $0x1d38] sm:$0xff]
        %v4023 = vld [vmem:[#allocation6 + $0x1d40] sm:$0xff]
        %v4024 = vld [vmem:[#allocation6 + $0x1d48] sm:$0xff]
        %v4025 = vld [vmem:[#allocation6 + $0x1d50] sm:$0xff]
        %v4026 = vld [vmem:[#allocation6 + $0x1d58] sm:$0xff]
        %v4027 = vld [vmem:[#allocation6 + $0x1d60] sm:$0xff]
        %v4028 = vld [vmem:[#allocation6 + $0x1d68] sm:$0xff]
        %v4029 = vld [vmem:[#allocation6 + $0x1d70] sm:$0xff]
        %v4030 = vld [vmem:[#allocation6 + $0x1d78] sm:$0xff]
        %v4031 = vld [vmem:[#allocation6 + $0x1d80] sm:$0xff]
        %v4032 = vld [vmem:[#allocation6 + $0x1d88] sm:$0xff]
        %v4033 = vld [vmem:[#allocation6 + $0x1d90] sm:$0xff]
        %v4034 = vld [vmem:[#allocation6 + $0x1d98] sm:$0xff]
        %v4035 = vld [vmem:[#allocation6 + $0x1da0] sm:$0xff]
        %v4036 = vld [vmem:[#allocation6 + $0x1da8] sm:$0xff]
        %v4037 = vld [vmem:[#allocation6 + $0x1db0] sm:$0xff]
        %v4038 = vld [vmem:[#allocation6 + $0x1db8] sm:$0xff]
        %v4039 = vld [vmem:[#allocation6 + $0x1dc0] sm:$0xff]
        %v4040 = vld [vmem:[#allocation6 + $0x1dc8] sm:$0xff]
        %v4041 = vld [vmem:[#allocation6 + $0x1dd0] sm:$0xff]
        %v4042 = vld [vmem:[#allocation6 + $0x1dd8] sm:$0xff]
        %v4043 = vld [vmem:[#allocation6 + $0x1de0] sm:$0xff]
        %v4044 = vld [vmem:[#allocation6 + $0x1de8] sm:$0xff]
        %v4045 = vld [vmem:[#allocation6 + $0x1df0] sm:$0xff]
        %v4046 = vld [vmem:[#allocation6 + $0x1df8] sm:$0xff]
        %v4047 = vld [vmem:[#allocation6 + $0x1e00] sm:$0xff]
        %v4048 = vld [vmem:[#allocation6 + $0x1e08] sm:$0xff]
        %v4049 = vld [vmem:[#allocation6 + $0x1e10] sm:$0xff]
        %v4050 = vld [vmem:[#allocation6 + $0x1e18] sm:$0xff]
        %v4051 = vld [vmem:[#allocation6 + $0x1e20] sm:$0xff]
        %v4052 = vld [vmem:[#allocation6 + $0x1e28] sm:$0xff]
        %v4053 = vld [vmem:[#allocation6 + $0x1e30] sm:$0xff]
        %v4054 = vld [vmem:[#allocation6 + $0x1e38] sm:$0xff]
        %v4055 = vld [vmem:[#allocation6 + $0x1e40] sm:$0xff]
        %v4056 = vld [vmem:[#allocation6 + $0x1e48] sm:$0xff]
        %v4057 = vld [vmem:[#allocation6 + $0x1e50] sm:$0xff]
        %v4058 = vld [vmem:[#allocation6 + $0x1e58] sm:$0xff]
        %v4059 = vld [vmem:[#allocation6 + $0x1e60] sm:$0xff]
        %v4060 = vld [vmem:[#allocation6 + $0x1e68] sm:$0xff]
        %v4061 = vld [vmem:[#allocation6 + $0x1e70] sm:$0xff]
        %v4062 = vld [vmem:[#allocation6 + $0x1e78] sm:$0xff]
        %v4063 = vld [vmem:[#allocation6 + $0x1e80] sm:$0xff]
        %v4064 = vld [vmem:[#allocation6 + $0x1e88] sm:$0xff]
        %v4065 = vld [vmem:[#allocation6 + $0x1e90] sm:$0xff]
        %v4066 = vld [vmem:[#allocation6 + $0x1e98] sm:$0xff]
        %v4067 = vld [vmem:[#allocation6 + $0x1ea0] sm:$0xff]
        %v4068 = vld [vmem:[#allocation6 + $0x1ea8] sm:$0xff]
        %v4069 = vld [vmem:[#allocation6 + $0x1eb0] sm:$0xff]
        %v4070 = vld [vmem:[#allocation6 + $0x1eb8] sm:$0xff]
        %v4071 = vld [vmem:[#allocation6 + $0x1ec0] sm:$0xff]
        %v4072 = vld [vmem:[#allocation6 + $0x1ec8] sm:$0xff]
        %v4073 = vld [vmem:[#allocation6 + $0x1ed0] sm:$0xff]
        %v4074 = vld [vmem:[#allocation6 + $0x1ed8] sm:$0xff]
        %v4075 = vld [vmem:[#allocation6 + $0x1ee0] sm:$0xff]
        %v4076 = vld [vmem:[#allocation6 + $0x1ee8] sm:$0xff]
        %v4077 = vld [vmem:[#allocation6 + $0x1ef0] sm:$0xff]
        %v4078 = vld [vmem:[#allocation6 + $0x1ef8] sm:$0xff]
        %v4079 = vld [vmem:[#allocation6 + $0x1f00] sm:$0xff]
        %v4080 = vld [vmem:[#allocation6 + $0x1f08] sm:$0xff]
        %v4081 = vld [vmem:[#allocation6 + $0x1f10] sm:$0xff]
        %v4082 = vld [vmem:[#allocation6 + $0x1f18] sm:$0xff]
        %v4083 = vld [vmem:[#allocation6 + $0x1f20] sm:$0xff]
        %v4084 = vld [vmem:[#allocation6 + $0x1f28] sm:$0xff]
        %v4085 = vld [vmem:[#allocation6 + $0x1f30] sm:$0xff]
        %v4086 = vld [vmem:[#allocation6 + $0x1f38] sm:$0xff]
        %v4087 = vld [vmem:[#allocation6 + $0x1f40] sm:$0xff]
        %v4088 = vld [vmem:[#allocation6 + $0x1f48] sm:$0xff]
        %v4089 = vld [vmem:[#allocation6 + $0x1f50] sm:$0xff]
        %v4090 = vld [vmem:[#allocation6 + $0x1f58] sm:$0xff]
        %v4091 = vld [vmem:[#allocation6 + $0x1f60] sm:$0xff]
        %v4092 = vld [vmem:[#allocation6 + $0x1f68] sm:$0xff]
        %v4093 = vld [vmem:[#allocation6 + $0x1f70] sm:$0xff]
        %v4094 = vld [vmem:[#allocation6 + $0x1f78] sm:$0xff]
        %v4095 = vld [vmem:[#allocation6 + $0x1f80] sm:$0xff]
        %v4096 = vld [vmem:[#allocation6 + $0x1f88] sm:$0xff]
        %v4097 = vld [vmem:[#allocation6 + $0x1f90] sm:$0xff]
        %v4098 = vld [vmem:[#allocation6 + $0x1f98] sm:$0xff]
        %v4099 = vld [vmem:[#allocation6 + $0x1fa0] sm:$0xff]
        %v4100 = vld [vmem:[#allocation6 + $0x1fa8] sm:$0xff]
        %v4101 = vld [vmem:[#allocation6 + $0x1fb0] sm:$0xff]
        %v4102 = vld [vmem:[#allocation6 + $0x1fb8] sm:$0xff]
        %v4103 = vld [vmem:[#allocation6 + $0x1fc0] sm:$0xff]
        %v4104 = vld [vmem:[#allocation6 + $0x1fc8] sm:$0xff]
        %v4105 = vld [vmem:[#allocation6 + $0x1fd0] sm:$0xff]
        %v4106 = vld [vmem:[#allocation6 + $0x1fd8] sm:$0xff]
        %v4107 = vld [vmem:[#allocation6 + $0x1fe0] sm:$0xff]
        %v4108 = vld [vmem:[#allocation6 + $0x1fe8] sm:$0xff]
        %v4109 = vld [vmem:[#allocation6 + $0x1ff0] sm:$0xff]
        %v4110 = vld [vmem:[#allocation6 + $0x1ff8] sm:$0xff]
        %v5135 = vunpack.c.l.b16 %v3087
        %v5136 = vunpack.c.h.b16 %v3087
        %v5137 = vunpack.c.l.b16 %v3088
        %v5138 = vunpack.c.h.b16 %v3088
        %v5139 = vunpack.c.l.b16 %v3089
        %v5140 = vunpack.c.h.b16 %v3089
        %v5141 = vunpack.c.l.b16 %v3090
        %v5142 = vunpack.c.h.b16 %v3090
        %v5143 = vunpack.c.l.b16 %v3091
        %v5144 = vunpack.c.h.b16 %v3091
        %v5145 = vunpack.c.l.b16 %v3092
        %v5146 = vunpack.c.h.b16 %v3092
        %v5147 = vunpack.c.l.b16 %v3093
        %v5148 = vunpack.c.h.b16 %v3093
        %v5149 = vunpack.c.l.b16 %v3094
        %v5150 = vunpack.c.h.b16 %v3094
        %v5151 = vunpack.c.l.b16 %v3095
        %v5152 = vunpack.c.h.b16 %v3095
        %v5153 = vunpack.c.l.b16 %v3096
        %v5154 = vunpack.c.h.b16 %v3096
        %v5155 = vunpack.c.l.b16 %v3097
        %v5156 = vunpack.c.h.b16 %v3097
        %v5157 = vunpack.c.l.b16 %v3098
        %v5158 = vunpack.c.h.b16 %v3098
        %v5159 = vunpack.c.l.b16 %v3099
        %v5160 = vunpack.c.h.b16 %v3099
        %v5161 = vunpack.c.l.b16 %v3100
        %v5162 = vunpack.c.h.b16 %v3100
        %v5163 = vunpack.c.l.b16 %v3101
        %v5164 = vunpack.c.h.b16 %v3101
        %v5165 = vunpack.c.l.b16 %v3102
        %v5166 = vunpack.c.h.b16 %v3102
        %v5167 = vunpack.c.l.b16 %v3103
        %v5168 = vunpack.c.h.b16 %v3103
        %v5169 = vunpack.c.l.b16 %v3104
        %v5170 = vunpack.c.h.b16 %v3104
        %v5171 = vunpack.c.l.b16 %v3105
        %v5172 = vunpack.c.h.b16 %v3105
        %v5173 = vunpack.c.l.b16 %v3106
        %v5174 = vunpack.c.h.b16 %v3106
        %v5175 = vunpack.c.l.b16 %v3107
        %v5176 = vunpack.c.h.b16 %v3107
        %v5177 = vunpack.c.l.b16 %v3108
        %v5178 = vunpack.c.h.b16 %v3108
        %v5179 = vunpack.c.l.b16 %v3109
        %v5180 = vunpack.c.h.b16 %v3109
        %v5181 = vunpack.c.l.b16 %v3110
        %v5182 = vunpack.c.h.b16 %v3110
        %v5183 = vunpack.c.l.b16 %v3111
        %v5184 = vunpack.c.h.b16 %v3111
        %v5185 = vunpack.c.l.b16 %v3112
        %v5186 = vunpack.c.h.b16 %v3112
        %v5187 = vunpack.c.l.b16 %v3113
        %v5188 = vunpack.c.h.b16 %v3113
        %v5189 = vunpack.c.l.b16 %v3114
        %v5190 = vunpack.c.h.b16 %v3114
        %v5191 = vunpack.c.l.b16 %v3115
        %v5192 = vunpack.c.h.b16 %v3115
        %v5193 = vunpack.c.l.b16 %v3116
        %v5194 = vunpack.c.h.b16 %v3116
        %v5195 = vunpack.c.l.b16 %v3117
        %v5196 = vunpack.c.h.b16 %v3117
        %v5197 = vunpack.c.l.b16 %v3118
        %v5198 = vunpack.c.h.b16 %v3118
        %v5199 = vunpack.c.l.b16 %v3119
        %v5200 = vunpack.c.h.b16 %v3119
        %v5201 = vunpack.c.l.b16 %v3120
        %v5202 = vunpack.c.h.b16 %v3120
        %v5203 = vunpack.c.l.b16 %v3121
        %v5204 = vunpack.c.h.b16 %v3121
        %v5205 = vunpack.c.l.b16 %v3122
        %v5206 = vunpack.c.h.b16 %v3122
        %v5207 = vunpack.c.l.b16 %v3123
        %v5208 = vunpack.c.h.b16 %v3123
        %v5209 = vunpack.c.l.b16 %v3124
        %v5210 = vunpack.c.h.b16 %v3124
        %v5211 = vunpack.c.l.b16 %v3125
        %v5212 = vunpack.c.h.b16 %v3125
        %v5213 = vunpack.c.l.b16 %v3126
        %v5214 = vunpack.c.h.b16 %v3126
        %v5215 = vunpack.c.l.b16 %v3127
        %v5216 = vunpack.c.h.b16 %v3127
        %v5217 = vunpack.c.l.b16 %v3128
        %v5218 = vunpack.c.h.b16 %v3128
        %v5219 = vunpack.c.l.b16 %v3129
        %v5220 = vunpack.c.h.b16 %v3129
        %v5221 = vunpack.c.l.b16 %v3130
        %v5222 = vunpack.c.h.b16 %v3130
        %v5223 = vunpack.c.l.b16 %v3131
        %v5224 = vunpack.c.h.b16 %v3131
        %v5225 = vunpack.c.l.b16 %v3132
        %v5226 = vunpack.c.h.b16 %v3132
        %v5227 = vunpack.c.l.b16 %v3133
        %v5228 = vunpack.c.h.b16 %v3133
        %v5229 = vunpack.c.l.b16 %v3134
        %v5230 = vunpack.c.h.b16 %v3134
        %v5231 = vunpack.c.l.b16 %v3135
        %v5232 = vunpack.c.h.b16 %v3135
        %v5233 = vunpack.c.l.b16 %v3136
        %v5234 = vunpack.c.h.b16 %v3136
        %v5235 = vunpack.c.l.b16 %v3137
        %v5236 = vunpack.c.h.b16 %v3137
        %v5237 = vunpack.c.l.b16 %v3138
        %v5238 = vunpack.c.h.b16 %v3138
        %v5239 = vunpack.c.l.b16 %v3139
        %v5240 = vunpack.c.h.b16 %v3139
        %v5241 = vunpack.c.l.b16 %v3140
        %v5242 = vunpack.c.h.b16 %v3140
        %v5243 = vunpack.c.l.b16 %v3141
        %v5244 = vunpack.c.h.b16 %v3141
        %v5245 = vunpack.c.l.b16 %v3142
        %v5246 = vunpack.c.h.b16 %v3142
        %v5247 = vunpack.c.l.b16 %v3143
        %v5248 = vunpack.c.h.b16 %v3143
        %v5249 = vunpack.c.l.b16 %v3144
        %v5250 = vunpack.c.h.b16 %v3144
        %v5251 = vunpack.c.l.b16 %v3145
        %v5252 = vunpack.c.h.b16 %v3145
        %v5253 = vunpack.c.l.b16 %v3146
        %v5254 = vunpack.c.h.b16 %v3146
        %v5255 = vunpack.c.l.b16 %v3147
        %v5256 = vunpack.c.h.b16 %v3147
        %v5257 = vunpack.c.l.b16 %v3148
        %v5258 = vunpack.c.h.b16 %v3148
        %v5259 = vunpack.c.l.b16 %v3149
        %v5260 = vunpack.c.h.b16 %v3149
        %v5261 = vunpack.c.l.b16 %v3150
        %v5262 = vunpack.c.h.b16 %v3150
        %v5263 = vunpack.c.l.b16 %v3151
        %v5264 = vunpack.c.h.b16 %v3151
        %v5265 = vunpack.c.l.b16 %v3152
        %v5266 = vunpack.c.h.b16 %v3152
        %v5267 = vunpack.c.l.b16 %v3153
        %v5268 = vunpack.c.h.b16 %v3153
        %v5269 = vunpack.c.l.b16 %v3154
        %v5270 = vunpack.c.h.b16 %v3154
        %v5271 = vunpack.c.l.b16 %v3155
        %v5272 = vunpack.c.h.b16 %v3155
        %v5273 = vunpack.c.l.b16 %v3156
        %v5274 = vunpack.c.h.b16 %v3156
        %v5275 = vunpack.c.l.b16 %v3157
        %v5276 = vunpack.c.h.b16 %v3157
        %v5277 = vunpack.c.l.b16 %v3158
        %v5278 = vunpack.c.h.b16 %v3158
        %v5279 = vunpack.c.l.b16 %v3159
        %v5280 = vunpack.c.h.b16 %v3159
        %v5281 = vunpack.c.l.b16 %v3160
        %v5282 = vunpack.c.h.b16 %v3160
        %v5283 = vunpack.c.l.b16 %v3161
        %v5284 = vunpack.c.h.b16 %v3161
        %v5285 = vunpack.c.l.b16 %v3162
        %v5286 = vunpack.c.h.b16 %v3162
        %v5287 = vunpack.c.l.b16 %v3163
        %v5288 = vunpack.c.h.b16 %v3163
        %v5289 = vunpack.c.l.b16 %v3164
        %v5290 = vunpack.c.h.b16 %v3164
        %v5291 = vunpack.c.l.b16 %v3165
        %v5292 = vunpack.c.h.b16 %v3165
        %v5293 = vunpack.c.l.b16 %v3166
        %v5294 = vunpack.c.h.b16 %v3166
        %v5295 = vunpack.c.l.b16 %v3167
        %v5296 = vunpack.c.h.b16 %v3167
        %v5297 = vunpack.c.l.b16 %v3168
        %v5298 = vunpack.c.h.b16 %v3168
        %v5299 = vunpack.c.l.b16 %v3169
        %v5300 = vunpack.c.h.b16 %v3169
        %v5301 = vunpack.c.l.b16 %v3170
        %v5302 = vunpack.c.h.b16 %v3170
        %v5303 = vunpack.c.l.b16 %v3171
        %v5304 = vunpack.c.h.b16 %v3171
        %v5305 = vunpack.c.l.b16 %v3172
        %v5306 = vunpack.c.h.b16 %v3172
        %v5307 = vunpack.c.l.b16 %v3173
        %v5308 = vunpack.c.h.b16 %v3173
        %v5309 = vunpack.c.l.b16 %v3174
        %v5310 = vunpack.c.h.b16 %v3174
        %v5311 = vunpack.c.l.b16 %v3175
        %v5312 = vunpack.c.h.b16 %v3175
        %v5313 = vunpack.c.l.b16 %v3176
        %v5314 = vunpack.c.h.b16 %v3176
        %v5315 = vunpack.c.l.b16 %v3177
        %v5316 = vunpack.c.h.b16 %v3177
        %v5317 = vunpack.c.l.b16 %v3178
        %v5318 = vunpack.c.h.b16 %v3178
        %v5319 = vunpack.c.l.b16 %v3179
        %v5320 = vunpack.c.h.b16 %v3179
        %v5321 = vunpack.c.l.b16 %v3180
        %v5322 = vunpack.c.h.b16 %v3180
        %v5323 = vunpack.c.l.b16 %v3181
        %v5324 = vunpack.c.h.b16 %v3181
        %v5325 = vunpack.c.l.b16 %v3182
        %v5326 = vunpack.c.h.b16 %v3182
        %v5327 = vunpack.c.l.b16 %v3183
        %v5328 = vunpack.c.h.b16 %v3183
        %v5329 = vunpack.c.l.b16 %v3184
        %v5330 = vunpack.c.h.b16 %v3184
        %v5331 = vunpack.c.l.b16 %v3185
        %v5332 = vunpack.c.h.b16 %v3185
        %v5333 = vunpack.c.l.b16 %v3186
        %v5334 = vunpack.c.h.b16 %v3186
        %v5335 = vunpack.c.l.b16 %v3187
        %v5336 = vunpack.c.h.b16 %v3187
        %v5337 = vunpack.c.l.b16 %v3188
        %v5338 = vunpack.c.h.b16 %v3188
        %v5339 = vunpack.c.l.b16 %v3189
        %v5340 = vunpack.c.h.b16 %v3189
        %v5341 = vunpack.c.l.b16 %v3190
        %v5342 = vunpack.c.h.b16 %v3190
        %v5343 = vunpack.c.l.b16 %v3191
        %v5344 = vunpack.c.h.b16 %v3191
        %v5345 = vunpack.c.l.b16 %v3192
        %v5346 = vunpack.c.h.b16 %v3192
        %v5347 = vunpack.c.l.b16 %v3193
        %v5348 = vunpack.c.h.b16 %v3193
        %v5349 = vunpack.c.l.b16 %v3194
        %v5350 = vunpack.c.h.b16 %v3194
        %v5351 = vunpack.c.l.b16 %v3195
        %v5352 = vunpack.c.h.b16 %v3195
        %v5353 = vunpack.c.l.b16 %v3196
        %v5354 = vunpack.c.h.b16 %v3196
        %v5355 = vunpack.c.l.b16 %v3197
        %v5356 = vunpack.c.h.b16 %v3197
        %v5357 = vunpack.c.l.b16 %v3198
        %v5358 = vunpack.c.h.b16 %v3198
        %v5359 = vunpack.c.l.b16 %v3199
        %v5360 = vunpack.c.h.b16 %v3199
        %v5361 = vunpack.c.l.b16 %v3200
        %v5362 = vunpack.c.h.b16 %v3200
        %v5363 = vunpack.c.l.b16 %v3201
        %v5364 = vunpack.c.h.b16 %v3201
        %v5365 = vunpack.c.l.b16 %v3202
        %v5366 = vunpack.c.h.b16 %v3202
        %v5367 = vunpack.c.l.b16 %v3203
        %v5368 = vunpack.c.h.b16 %v3203
        %v5369 = vunpack.c.l.b16 %v3204
        %v5370 = vunpack.c.h.b16 %v3204
        %v5371 = vunpack.c.l.b16 %v3205
        %v5372 = vunpack.c.h.b16 %v3205
        %v5373 = vunpack.c.l.b16 %v3206
        %v5374 = vunpack.c.h.b16 %v3206
        %v5375 = vunpack.c.l.b16 %v3207
        %v5376 = vunpack.c.h.b16 %v3207
        %v5377 = vunpack.c.l.b16 %v3208
        %v5378 = vunpack.c.h.b16 %v3208
        %v5379 = vunpack.c.l.b16 %v3209
        %v5380 = vunpack.c.h.b16 %v3209
        %v5381 = vunpack.c.l.b16 %v3210
        %v5382 = vunpack.c.h.b16 %v3210
        %v5383 = vunpack.c.l.b16 %v3211
        %v5384 = vunpack.c.h.b16 %v3211
        %v5385 = vunpack.c.l.b16 %v3212
        %v5386 = vunpack.c.h.b16 %v3212
        %v5387 = vunpack.c.l.b16 %v3213
        %v5388 = vunpack.c.h.b16 %v3213
        %v5389 = vunpack.c.l.b16 %v3214
        %v5390 = vunpack.c.h.b16 %v3214
        %v5391 = vunpack.c.l.b16 %v3215
        %v5392 = vunpack.c.h.b16 %v3215
        %v5393 = vunpack.c.l.b16 %v3216
        %v5394 = vunpack.c.h.b16 %v3216
        %v5395 = vunpack.c.l.b16 %v3217
        %v5396 = vunpack.c.h.b16 %v3217
        %v5397 = vunpack.c.l.b16 %v3218
        %v5398 = vunpack.c.h.b16 %v3218
        %v5399 = vunpack.c.l.b16 %v3219
        %v5400 = vunpack.c.h.b16 %v3219
        %v5401 = vunpack.c.l.b16 %v3220
        %v5402 = vunpack.c.h.b16 %v3220
        %v5403 = vunpack.c.l.b16 %v3221
        %v5404 = vunpack.c.h.b16 %v3221
        %v5405 = vunpack.c.l.b16 %v3222
        %v5406 = vunpack.c.h.b16 %v3222
        %v5407 = vunpack.c.l.b16 %v3223
        %v5408 = vunpack.c.h.b16 %v3223
        %v5409 = vunpack.c.l.b16 %v3224
        %v5410 = vunpack.c.h.b16 %v3224
        %v5411 = vunpack.c.l.b16 %v3225
        %v5412 = vunpack.c.h.b16 %v3225
        %v5413 = vunpack.c.l.b16 %v3226
        %v5414 = vunpack.c.h.b16 %v3226
        %v5415 = vunpack.c.l.b16 %v3227
        %v5416 = vunpack.c.h.b16 %v3227
        %v5417 = vunpack.c.l.b16 %v3228
        %v5418 = vunpack.c.h.b16 %v3228
        %v5419 = vunpack.c.l.b16 %v3229
        %v5420 = vunpack.c.h.b16 %v3229
        %v5421 = vunpack.c.l.b16 %v3230
        %v5422 = vunpack.c.h.b16 %v3230
        %v5423 = vunpack.c.l.b16 %v3231
        %v5424 = vunpack.c.h.b16 %v3231
        %v5425 = vunpack.c.l.b16 %v3232
        %v5426 = vunpack.c.h.b16 %v3232
        %v5427 = vunpack.c.l.b16 %v3233
        %v5428 = vunpack.c.h.b16 %v3233
        %v5429 = vunpack.c.l.b16 %v3234
        %v5430 = vunpack.c.h.b16 %v3234
        %v5431 = vunpack.c.l.b16 %v3235
        %v5432 = vunpack.c.h.b16 %v3235
        %v5433 = vunpack.c.l.b16 %v3236
        %v5434 = vunpack.c.h.b16 %v3236
        %v5435 = vunpack.c.l.b16 %v3237
        %v5436 = vunpack.c.h.b16 %v3237
        %v5437 = vunpack.c.l.b16 %v3238
        %v5438 = vunpack.c.h.b16 %v3238
        %v5439 = vunpack.c.l.b16 %v3239
        %v5440 = vunpack.c.h.b16 %v3239
        %v5441 = vunpack.c.l.b16 %v3240
        %v5442 = vunpack.c.h.b16 %v3240
        %v5443 = vunpack.c.l.b16 %v3241
        %v5444 = vunpack.c.h.b16 %v3241
        %v5445 = vunpack.c.l.b16 %v3242
        %v5446 = vunpack.c.h.b16 %v3242
        %v5447 = vunpack.c.l.b16 %v3243
        %v5448 = vunpack.c.h.b16 %v3243
        %v5449 = vunpack.c.l.b16 %v3244
        %v5450 = vunpack.c.h.b16 %v3244
        %v5451 = vunpack.c.l.b16 %v3245
        %v5452 = vunpack.c.h.b16 %v3245
        %v5453 = vunpack.c.l.b16 %v3246
        %v5454 = vunpack.c.h.b16 %v3246
        %v5455 = vunpack.c.l.b16 %v3247
        %v5456 = vunpack.c.h.b16 %v3247
        %v5457 = vunpack.c.l.b16 %v3248
        %v5458 = vunpack.c.h.b16 %v3248
        %v5459 = vunpack.c.l.b16 %v3249
        %v5460 = vunpack.c.h.b16 %v3249
        %v5461 = vunpack.c.l.b16 %v3250
        %v5462 = vunpack.c.h.b16 %v3250
        %v5463 = vunpack.c.l.b16 %v3251
        %v5464 = vunpack.c.h.b16 %v3251
        %v5465 = vunpack.c.l.b16 %v3252
        %v5466 = vunpack.c.h.b16 %v3252
        %v5467 = vunpack.c.l.b16 %v3253
        %v5468 = vunpack.c.h.b16 %v3253
        %v5469 = vunpack.c.l.b16 %v3254
        %v5470 = vunpack.c.h.b16 %v3254
        %v5471 = vunpack.c.l.b16 %v3255
        %v5472 = vunpack.c.h.b16 %v3255
        %v5473 = vunpack.c.l.b16 %v3256
        %v5474 = vunpack.c.h.b16 %v3256
        %v5475 = vunpack.c.l.b16 %v3257
        %v5476 = vunpack.c.h.b16 %v3257
        %v5477 = vunpack.c.l.b16 %v3258
        %v5478 = vunpack.c.h.b16 %v3258
        %v5479 = vunpack.c.l.b16 %v3259
        %v5480 = vunpack.c.h.b16 %v3259
        %v5481 = vunpack.c.l.b16 %v3260
        %v5482 = vunpack.c.h.b16 %v3260
        %v5483 = vunpack.c.l.b16 %v3261
        %v5484 = vunpack.c.h.b16 %v3261
        %v5485 = vunpack.c.l.b16 %v3262
        %v5486 = vunpack.c.h.b16 %v3262
        %v5487 = vunpack.c.l.b16 %v3263
        %v5488 = vunpack.c.h.b16 %v3263
        %v5489 = vunpack.c.l.b16 %v3264
        %v5490 = vunpack.c.h.b16 %v3264
        %v5491 = vunpack.c.l.b16 %v3265
        %v5492 = vunpack.c.h.b16 %v3265
        %v5493 = vunpack.c.l.b16 %v3266
        %v5494 = vunpack.c.h.b16 %v3266
        %v5495 = vunpack.c.l.b16 %v3267
        %v5496 = vunpack.c.h.b16 %v3267
        %v5497 = vunpack.c.l.b16 %v3268
        %v5498 = vunpack.c.h.b16 %v3268
        %v5499 = vunpack.c.l.b16 %v3269
        %v5500 = vunpack.c.h.b16 %v3269
        %v5501 = vunpack.c.l.b16 %v3270
        %v5502 = vunpack.c.h.b16 %v3270
        %v5503 = vunpack.c.l.b16 %v3271
        %v5504 = vunpack.c.h.b16 %v3271
        %v5505 = vunpack.c.l.b16 %v3272
        %v5506 = vunpack.c.h.b16 %v3272
        %v5507 = vunpack.c.l.b16 %v3273
        %v5508 = vunpack.c.h.b16 %v3273
        %v5509 = vunpack.c.l.b16 %v3274
        %v5510 = vunpack.c.h.b16 %v3274
        %v5511 = vunpack.c.l.b16 %v3275
        %v5512 = vunpack.c.h.b16 %v3275
        %v5513 = vunpack.c.l.b16 %v3276
        %v5514 = vunpack.c.h.b16 %v3276
        %v5515 = vunpack.c.l.b16 %v3277
        %v5516 = vunpack.c.h.b16 %v3277
        %v5517 = vunpack.c.l.b16 %v3278
        %v5518 = vunpack.c.h.b16 %v3278
        %v5519 = vunpack.c.l.b16 %v3279
        %v5520 = vunpack.c.h.b16 %v3279
        %v5521 = vunpack.c.l.b16 %v3280
        %v5522 = vunpack.c.h.b16 %v3280
        %v5523 = vunpack.c.l.b16 %v3281
        %v5524 = vunpack.c.h.b16 %v3281
        %v5525 = vunpack.c.l.b16 %v3282
        %v5526 = vunpack.c.h.b16 %v3282
        %v5527 = vunpack.c.l.b16 %v3283
        %v5528 = vunpack.c.h.b16 %v3283
        %v5529 = vunpack.c.l.b16 %v3284
        %v5530 = vunpack.c.h.b16 %v3284
        %v5531 = vunpack.c.l.b16 %v3285
        %v5532 = vunpack.c.h.b16 %v3285
        %v5533 = vunpack.c.l.b16 %v3286
        %v5534 = vunpack.c.h.b16 %v3286
        %v5535 = vunpack.c.l.b16 %v3287
        %v5536 = vunpack.c.h.b16 %v3287
        %v5537 = vunpack.c.l.b16 %v3288
        %v5538 = vunpack.c.h.b16 %v3288
        %v5539 = vunpack.c.l.b16 %v3289
        %v5540 = vunpack.c.h.b16 %v3289
        %v5541 = vunpack.c.l.b16 %v3290
        %v5542 = vunpack.c.h.b16 %v3290
        %v5543 = vunpack.c.l.b16 %v3291
        %v5544 = vunpack.c.h.b16 %v3291
        %v5545 = vunpack.c.l.b16 %v3292
        %v5546 = vunpack.c.h.b16 %v3292
        %v5547 = vunpack.c.l.b16 %v3293
        %v5548 = vunpack.c.h.b16 %v3293
        %v5549 = vunpack.c.l.b16 %v3294
        %v5550 = vunpack.c.h.b16 %v3294
        %v5551 = vunpack.c.l.b16 %v3295
        %v5552 = vunpack.c.h.b16 %v3295
        %v5553 = vunpack.c.l.b16 %v3296
        %v5554 = vunpack.c.h.b16 %v3296
        %v5555 = vunpack.c.l.b16 %v3297
        %v5556 = vunpack.c.h.b16 %v3297
        %v5557 = vunpack.c.l.b16 %v3298
        %v5558 = vunpack.c.h.b16 %v3298
        %v5559 = vunpack.c.l.b16 %v3299
        %v5560 = vunpack.c.h.b16 %v3299
        %v5561 = vunpack.c.l.b16 %v3300
        %v5562 = vunpack.c.h.b16 %v3300
        %v5563 = vunpack.c.l.b16 %v3301
        %v5564 = vunpack.c.h.b16 %v3301
        %v5565 = vunpack.c.l.b16 %v3302
        %v5566 = vunpack.c.h.b16 %v3302
        %v5567 = vunpack.c.l.b16 %v3303
        %v5568 = vunpack.c.h.b16 %v3303
        %v5569 = vunpack.c.l.b16 %v3304
        %v5570 = vunpack.c.h.b16 %v3304
        %v5571 = vunpack.c.l.b16 %v3305
        %v5572 = vunpack.c.h.b16 %v3305
        %v5573 = vunpack.c.l.b16 %v3306
        %v5574 = vunpack.c.h.b16 %v3306
        %v5575 = vunpack.c.l.b16 %v3307
        %v5576 = vunpack.c.h.b16 %v3307
        %v5577 = vunpack.c.l.b16 %v3308
        %v5578 = vunpack.c.h.b16 %v3308
        %v5579 = vunpack.c.l.b16 %v3309
        %v5580 = vunpack.c.h.b16 %v3309
        %v5581 = vunpack.c.l.b16 %v3310
        %v5582 = vunpack.c.h.b16 %v3310
        %v5583 = vunpack.c.l.b16 %v3311
        %v5584 = vunpack.c.h.b16 %v3311
        %v5585 = vunpack.c.l.b16 %v3312
        %v5586 = vunpack.c.h.b16 %v3312
        %v5587 = vunpack.c.l.b16 %v3313
        %v5588 = vunpack.c.h.b16 %v3313
        %v5589 = vunpack.c.l.b16 %v3314
        %v5590 = vunpack.c.h.b16 %v3314
        %v5591 = vunpack.c.l.b16 %v3315
        %v5592 = vunpack.c.h.b16 %v3315
        %v5593 = vunpack.c.l.b16 %v3316
        %v5594 = vunpack.c.h.b16 %v3316
        %v5595 = vunpack.c.l.b16 %v3317
        %v5596 = vunpack.c.h.b16 %v3317
        %v5597 = vunpack.c.l.b16 %v3318
        %v5598 = vunpack.c.h.b16 %v3318
        %v5599 = vunpack.c.l.b16 %v3319
        %v5600 = vunpack.c.h.b16 %v3319
        %v5601 = vunpack.c.l.b16 %v3320
        %v5602 = vunpack.c.h.b16 %v3320
        %v5603 = vunpack.c.l.b16 %v3321
        %v5604 = vunpack.c.h.b16 %v3321
        %v5605 = vunpack.c.l.b16 %v3322
        %v5606 = vunpack.c.h.b16 %v3322
        %v5607 = vunpack.c.l.b16 %v3323
        %v5608 = vunpack.c.h.b16 %v3323
        %v5609 = vunpack.c.l.b16 %v3324
        %v5610 = vunpack.c.h.b16 %v3324
        %v5611 = vunpack.c.l.b16 %v3325
        %v5612 = vunpack.c.h.b16 %v3325
        %v5613 = vunpack.c.l.b16 %v3326
        %v5614 = vunpack.c.h.b16 %v3326
        %v5615 = vunpack.c.l.b16 %v3327
        %v5616 = vunpack.c.h.b16 %v3327
        %v5617 = vunpack.c.l.b16 %v3328
        %v5618 = vunpack.c.h.b16 %v3328
        %v5619 = vunpack.c.l.b16 %v3329
        %v5620 = vunpack.c.h.b16 %v3329
        %v5621 = vunpack.c.l.b16 %v3330
        %v5622 = vunpack.c.h.b16 %v3330
        %v5623 = vunpack.c.l.b16 %v3331
        %v5624 = vunpack.c.h.b16 %v3331
        %v5625 = vunpack.c.l.b16 %v3332
        %v5626 = vunpack.c.h.b16 %v3332
        %v5627 = vunpack.c.l.b16 %v3333
        %v5628 = vunpack.c.h.b16 %v3333
        %v5629 = vunpack.c.l.b16 %v3334
        %v5630 = vunpack.c.h.b16 %v3334
        %v5631 = vunpack.c.l.b16 %v3335
        %v5632 = vunpack.c.h.b16 %v3335
        %v5633 = vunpack.c.l.b16 %v3336
        %v5634 = vunpack.c.h.b16 %v3336
        %v5635 = vunpack.c.l.b16 %v3337
        %v5636 = vunpack.c.h.b16 %v3337
        %v5637 = vunpack.c.l.b16 %v3338
        %v5638 = vunpack.c.h.b16 %v3338
        %v5639 = vunpack.c.l.b16 %v3339
        %v5640 = vunpack.c.h.b16 %v3339
        %v5641 = vunpack.c.l.b16 %v3340
        %v5642 = vunpack.c.h.b16 %v3340
        %v5643 = vunpack.c.l.b16 %v3341
        %v5644 = vunpack.c.h.b16 %v3341
        %v5645 = vunpack.c.l.b16 %v3342
        %v5646 = vunpack.c.h.b16 %v3342
        %v5647 = vunpack.c.l.b16 %v3343
        %v5648 = vunpack.c.h.b16 %v3343
        %v5649 = vunpack.c.l.b16 %v3344
        %v5650 = vunpack.c.h.b16 %v3344
        %v5651 = vunpack.c.l.b16 %v3345
        %v5652 = vunpack.c.h.b16 %v3345
        %v5653 = vunpack.c.l.b16 %v3346
        %v5654 = vunpack.c.h.b16 %v3346
        %v5655 = vunpack.c.l.b16 %v3347
        %v5656 = vunpack.c.h.b16 %v3347
        %v5657 = vunpack.c.l.b16 %v3348
        %v5658 = vunpack.c.h.b16 %v3348
        %v5659 = vunpack.c.l.b16 %v3349
        %v5660 = vunpack.c.h.b16 %v3349
        %v5661 = vunpack.c.l.b16 %v3350
        %v5662 = vunpack.c.h.b16 %v3350
        %v5663 = vunpack.c.l.b16 %v3351
        %v5664 = vunpack.c.h.b16 %v3351
        %v5665 = vunpack.c.l.b16 %v3352
        %v5666 = vunpack.c.h.b16 %v3352
        %v5667 = vunpack.c.l.b16 %v3353
        %v5668 = vunpack.c.h.b16 %v3353
        %v5669 = vunpack.c.l.b16 %v3354
        %v5670 = vunpack.c.h.b16 %v3354
        %v5671 = vunpack.c.l.b16 %v3355
        %v5672 = vunpack.c.h.b16 %v3355
        %v5673 = vunpack.c.l.b16 %v3356
        %v5674 = vunpack.c.h.b16 %v3356
        %v5675 = vunpack.c.l.b16 %v3357
        %v5676 = vunpack.c.h.b16 %v3357
        %v5677 = vunpack.c.l.b16 %v3358
        %v5678 = vunpack.c.h.b16 %v3358
        %v5679 = vunpack.c.l.b16 %v3359
        %v5680 = vunpack.c.h.b16 %v3359
        %v5681 = vunpack.c.l.b16 %v3360
        %v5682 = vunpack.c.h.b16 %v3360
        %v5683 = vunpack.c.l.b16 %v3361
        %v5684 = vunpack.c.h.b16 %v3361
        %v5685 = vunpack.c.l.b16 %v3362
        %v5686 = vunpack.c.h.b16 %v3362
        %v5687 = vunpack.c.l.b16 %v3363
        %v5688 = vunpack.c.h.b16 %v3363
        %v5689 = vunpack.c.l.b16 %v3364
        %v5690 = vunpack.c.h.b16 %v3364
        %v5691 = vunpack.c.l.b16 %v3365
        %v5692 = vunpack.c.h.b16 %v3365
        %v5693 = vunpack.c.l.b16 %v3366
        %v5694 = vunpack.c.h.b16 %v3366
        %v5695 = vunpack.c.l.b16 %v3367
        %v5696 = vunpack.c.h.b16 %v3367
        %v5697 = vunpack.c.l.b16 %v3368
        %v5698 = vunpack.c.h.b16 %v3368
        %v5699 = vunpack.c.l.b16 %v3369
        %v5700 = vunpack.c.h.b16 %v3369
        %v5701 = vunpack.c.l.b16 %v3370
        %v5702 = vunpack.c.h.b16 %v3370
        %v5703 = vunpack.c.l.b16 %v3371
        %v5704 = vunpack.c.h.b16 %v3371
        %v5705 = vunpack.c.l.b16 %v3372
        %v5706 = vunpack.c.h.b16 %v3372
        %v5707 = vunpack.c.l.b16 %v3373
        %v5708 = vunpack.c.h.b16 %v3373
        %v5709 = vunpack.c.l.b16 %v3374
        %v5710 = vunpack.c.h.b16 %v3374
        %v5711 = vunpack.c.l.b16 %v3375
        %v5712 = vunpack.c.h.b16 %v3375
        %v5713 = vunpack.c.l.b16 %v3376
        %v5714 = vunpack.c.h.b16 %v3376
        %v5715 = vunpack.c.l.b16 %v3377
        %v5716 = vunpack.c.h.b16 %v3377
        %v5717 = vunpack.c.l.b16 %v3378
        %v5718 = vunpack.c.h.b16 %v3378
        %v5719 = vunpack.c.l.b16 %v3379
        %v5720 = vunpack.c.h.b16 %v3379
        %v5721 = vunpack.c.l.b16 %v3380
        %v5722 = vunpack.c.h.b16 %v3380
        %v5723 = vunpack.c.l.b16 %v3381
        %v5724 = vunpack.c.h.b16 %v3381
        %v5725 = vunpack.c.l.b16 %v3382
        %v5726 = vunpack.c.h.b16 %v3382
        %v5727 = vunpack.c.l.b16 %v3383
        %v5728 = vunpack.c.h.b16 %v3383
        %v5729 = vunpack.c.l.b16 %v3384
        %v5730 = vunpack.c.h.b16 %v3384
        %v5731 = vunpack.c.l.b16 %v3385
        %v5732 = vunpack.c.h.b16 %v3385
        %v5733 = vunpack.c.l.b16 %v3386
        %v5734 = vunpack.c.h.b16 %v3386
        %v5735 = vunpack.c.l.b16 %v3387
        %v5736 = vunpack.c.h.b16 %v3387
        %v5737 = vunpack.c.l.b16 %v3388
        %v5738 = vunpack.c.h.b16 %v3388
        %v5739 = vunpack.c.l.b16 %v3389
        %v5740 = vunpack.c.h.b16 %v3389
        %v5741 = vunpack.c.l.b16 %v3390
        %v5742 = vunpack.c.h.b16 %v3390
        %v5743 = vunpack.c.l.b16 %v3391
        %v5744 = vunpack.c.h.b16 %v3391
        %v5745 = vunpack.c.l.b16 %v3392
        %v5746 = vunpack.c.h.b16 %v3392
        %v5747 = vunpack.c.l.b16 %v3393
        %v5748 = vunpack.c.h.b16 %v3393
        %v5749 = vunpack.c.l.b16 %v3394
        %v5750 = vunpack.c.h.b16 %v3394
        %v5751 = vunpack.c.l.b16 %v3395
        %v5752 = vunpack.c.h.b16 %v3395
        %v5753 = vunpack.c.l.b16 %v3396
        %v5754 = vunpack.c.h.b16 %v3396
        %v5755 = vunpack.c.l.b16 %v3397
        %v5756 = vunpack.c.h.b16 %v3397
        %v5757 = vunpack.c.l.b16 %v3398
        %v5758 = vunpack.c.h.b16 %v3398
        %v5759 = vunpack.c.l.b16 %v3399
        %v5760 = vunpack.c.h.b16 %v3399
        %v5761 = vunpack.c.l.b16 %v3400
        %v5762 = vunpack.c.h.b16 %v3400
        %v5763 = vunpack.c.l.b16 %v3401
        %v5764 = vunpack.c.h.b16 %v3401
        %v5765 = vunpack.c.l.b16 %v3402
        %v5766 = vunpack.c.h.b16 %v3402
        %v5767 = vunpack.c.l.b16 %v3403
        %v5768 = vunpack.c.h.b16 %v3403
        %v5769 = vunpack.c.l.b16 %v3404
        %v5770 = vunpack.c.h.b16 %v3404
        %v5771 = vunpack.c.l.b16 %v3405
        %v5772 = vunpack.c.h.b16 %v3405
        %v5773 = vunpack.c.l.b16 %v3406
        %v5774 = vunpack.c.h.b16 %v3406
        %v5775 = vunpack.c.l.b16 %v3407
        %v5776 = vunpack.c.h.b16 %v3407
        %v5777 = vunpack.c.l.b16 %v3408
        %v5778 = vunpack.c.h.b16 %v3408
        %v5779 = vunpack.c.l.b16 %v3409
        %v5780 = vunpack.c.h.b16 %v3409
        %v5781 = vunpack.c.l.b16 %v3410
        %v5782 = vunpack.c.h.b16 %v3410
        %v5783 = vunpack.c.l.b16 %v3411
        %v5784 = vunpack.c.h.b16 %v3411
        %v5785 = vunpack.c.l.b16 %v3412
        %v5786 = vunpack.c.h.b16 %v3412
        %v5787 = vunpack.c.l.b16 %v3413
        %v5788 = vunpack.c.h.b16 %v3413
        %v5789 = vunpack.c.l.b16 %v3414
        %v5790 = vunpack.c.h.b16 %v3414
        %v5791 = vunpack.c.l.b16 %v3415
        %v5792 = vunpack.c.h.b16 %v3415
        %v5793 = vunpack.c.l.b16 %v3416
        %v5794 = vunpack.c.h.b16 %v3416
        %v5795 = vunpack.c.l.b16 %v3417
        %v5796 = vunpack.c.h.b16 %v3417
        %v5797 = vunpack.c.l.b16 %v3418
        %v5798 = vunpack.c.h.b16 %v3418
        %v5799 = vunpack.c.l.b16 %v3419
        %v5800 = vunpack.c.h.b16 %v3419
        %v5801 = vunpack.c.l.b16 %v3420
        %v5802 = vunpack.c.h.b16 %v3420
        %v5803 = vunpack.c.l.b16 %v3421
        %v5804 = vunpack.c.h.b16 %v3421
        %v5805 = vunpack.c.l.b16 %v3422
        %v5806 = vunpack.c.h.b16 %v3422
        %v5807 = vunpack.c.l.b16 %v3423
        %v5808 = vunpack.c.h.b16 %v3423
        %v5809 = vunpack.c.l.b16 %v3424
        %v5810 = vunpack.c.h.b16 %v3424
        %v5811 = vunpack.c.l.b16 %v3425
        %v5812 = vunpack.c.h.b16 %v3425
        %v5813 = vunpack.c.l.b16 %v3426
        %v5814 = vunpack.c.h.b16 %v3426
        %v5815 = vunpack.c.l.b16 %v3427
        %v5816 = vunpack.c.h.b16 %v3427
        %v5817 = vunpack.c.l.b16 %v3428
        %v5818 = vunpack.c.h.b16 %v3428
        %v5819 = vunpack.c.l.b16 %v3429
        %v5820 = vunpack.c.h.b16 %v3429
        %v5821 = vunpack.c.l.b16 %v3430
        %v5822 = vunpack.c.h.b16 %v3430
        %v5823 = vunpack.c.l.b16 %v3431
        %v5824 = vunpack.c.h.b16 %v3431
        %v5825 = vunpack.c.l.b16 %v3432
        %v5826 = vunpack.c.h.b16 %v3432
        %v5827 = vunpack.c.l.b16 %v3433
        %v5828 = vunpack.c.h.b16 %v3433
        %v5829 = vunpack.c.l.b16 %v3434
        %v5830 = vunpack.c.h.b16 %v3434
        %v5831 = vunpack.c.l.b16 %v3435
        %v5832 = vunpack.c.h.b16 %v3435
        %v5833 = vunpack.c.l.b16 %v3436
        %v5834 = vunpack.c.h.b16 %v3436
        %v5835 = vunpack.c.l.b16 %v3437
        %v5836 = vunpack.c.h.b16 %v3437
        %v5837 = vunpack.c.l.b16 %v3438
        %v5838 = vunpack.c.h.b16 %v3438
        %v5839 = vunpack.c.l.b16 %v3439
        %v5840 = vunpack.c.h.b16 %v3439
        %v5841 = vunpack.c.l.b16 %v3440
        %v5842 = vunpack.c.h.b16 %v3440
        %v5843 = vunpack.c.l.b16 %v3441
        %v5844 = vunpack.c.h.b16 %v3441
        %v5845 = vunpack.c.l.b16 %v3442
        %v5846 = vunpack.c.h.b16 %v3442
        %v5847 = vunpack.c.l.b16 %v3443
        %v5848 = vunpack.c.h.b16 %v3443
        %v5849 = vunpack.c.l.b16 %v3444
        %v5850 = vunpack.c.h.b16 %v3444
        %v5851 = vunpack.c.l.b16 %v3445
        %v5852 = vunpack.c.h.b16 %v3445
        %v5853 = vunpack.c.l.b16 %v3446
        %v5854 = vunpack.c.h.b16 %v3446
        %v5855 = vunpack.c.l.b16 %v3447
        %v5856 = vunpack.c.h.b16 %v3447
        %v5857 = vunpack.c.l.b16 %v3448
        %v5858 = vunpack.c.h.b16 %v3448
        %v5859 = vunpack.c.l.b16 %v3449
        %v5860 = vunpack.c.h.b16 %v3449
        %v5861 = vunpack.c.l.b16 %v3450
        %v5862 = vunpack.c.h.b16 %v3450
        %v5863 = vunpack.c.l.b16 %v3451
        %v5864 = vunpack.c.h.b16 %v3451
        %v5865 = vunpack.c.l.b16 %v3452
        %v5866 = vunpack.c.h.b16 %v3452
        %v5867 = vunpack.c.l.b16 %v3453
        %v5868 = vunpack.c.h.b16 %v3453
        %v5869 = vunpack.c.l.b16 %v3454
        %v5870 = vunpack.c.h.b16 %v3454
        %v5871 = vunpack.c.l.b16 %v3455
        %v5872 = vunpack.c.h.b16 %v3455
        %v5873 = vunpack.c.l.b16 %v3456
        %v5874 = vunpack.c.h.b16 %v3456
        %v5875 = vunpack.c.l.b16 %v3457
        %v5876 = vunpack.c.h.b16 %v3457
        %v5877 = vunpack.c.l.b16 %v3458
        %v5878 = vunpack.c.h.b16 %v3458
        %v5879 = vunpack.c.l.b16 %v3459
        %v5880 = vunpack.c.h.b16 %v3459
        %v5881 = vunpack.c.l.b16 %v3460
        %v5882 = vunpack.c.h.b16 %v3460
        %v5883 = vunpack.c.l.b16 %v3461
        %v5884 = vunpack.c.h.b16 %v3461
        %v5885 = vunpack.c.l.b16 %v3462
        %v5886 = vunpack.c.h.b16 %v3462
        %v5887 = vunpack.c.l.b16 %v3463
        %v5888 = vunpack.c.h.b16 %v3463
        %v5889 = vunpack.c.l.b16 %v3464
        %v5890 = vunpack.c.h.b16 %v3464
        %v5891 = vunpack.c.l.b16 %v3465
        %v5892 = vunpack.c.h.b16 %v3465
        %v5893 = vunpack.c.l.b16 %v3466
        %v5894 = vunpack.c.h.b16 %v3466
        %v5895 = vunpack.c.l.b16 %v3467
        %v5896 = vunpack.c.h.b16 %v3467
        %v5897 = vunpack.c.l.b16 %v3468
        %v5898 = vunpack.c.h.b16 %v3468
        %v5899 = vunpack.c.l.b16 %v3469
        %v5900 = vunpack.c.h.b16 %v3469
        %v5901 = vunpack.c.l.b16 %v3470
        %v5902 = vunpack.c.h.b16 %v3470
        %v5903 = vunpack.c.l.b16 %v3471
        %v5904 = vunpack.c.h.b16 %v3471
        %v5905 = vunpack.c.l.b16 %v3472
        %v5906 = vunpack.c.h.b16 %v3472
        %v5907 = vunpack.c.l.b16 %v3473
        %v5908 = vunpack.c.h.b16 %v3473
        %v5909 = vunpack.c.l.b16 %v3474
        %v5910 = vunpack.c.h.b16 %v3474
        %v5911 = vunpack.c.l.b16 %v3475
        %v5912 = vunpack.c.h.b16 %v3475
        %v5913 = vunpack.c.l.b16 %v3476
        %v5914 = vunpack.c.h.b16 %v3476
        %v5915 = vunpack.c.l.b16 %v3477
        %v5916 = vunpack.c.h.b16 %v3477
        %v5917 = vunpack.c.l.b16 %v3478
        %v5918 = vunpack.c.h.b16 %v3478
        %v5919 = vunpack.c.l.b16 %v3479
        %v5920 = vunpack.c.h.b16 %v3479
        %v5921 = vunpack.c.l.b16 %v3480
        %v5922 = vunpack.c.h.b16 %v3480
        %v5923 = vunpack.c.l.b16 %v3481
        %v5924 = vunpack.c.h.b16 %v3481
        %v5925 = vunpack.c.l.b16 %v3482
        %v5926 = vunpack.c.h.b16 %v3482
        %v5927 = vunpack.c.l.b16 %v3483
        %v5928 = vunpack.c.h.b16 %v3483
        %v5929 = vunpack.c.l.b16 %v3484
        %v5930 = vunpack.c.h.b16 %v3484
        %v5931 = vunpack.c.l.b16 %v3485
        %v5932 = vunpack.c.h.b16 %v3485
        %v5933 = vunpack.c.l.b16 %v3486
        %v5934 = vunpack.c.h.b16 %v3486
        %v5935 = vunpack.c.l.b16 %v3487
        %v5936 = vunpack.c.h.b16 %v3487
        %v5937 = vunpack.c.l.b16 %v3488
        %v5938 = vunpack.c.h.b16 %v3488
        %v5939 = vunpack.c.l.b16 %v3489
        %v5940 = vunpack.c.h.b16 %v3489
        %v5941 = vunpack.c.l.b16 %v3490
        %v5942 = vunpack.c.h.b16 %v3490
        %v5943 = vunpack.c.l.b16 %v3491
        %v5944 = vunpack.c.h.b16 %v3491
        %v5945 = vunpack.c.l.b16 %v3492
        %v5946 = vunpack.c.h.b16 %v3492
        %v5947 = vunpack.c.l.b16 %v3493
        %v5948 = vunpack.c.h.b16 %v3493
        %v5949 = vunpack.c.l.b16 %v3494
        %v5950 = vunpack.c.h.b16 %v3494
        %v5951 = vunpack.c.l.b16 %v3495
        %v5952 = vunpack.c.h.b16 %v3495
        %v5953 = vunpack.c.l.b16 %v3496
        %v5954 = vunpack.c.h.b16 %v3496
        %v5955 = vunpack.c.l.b16 %v3497
        %v5956 = vunpack.c.h.b16 %v3497
        %v5957 = vunpack.c.l.b16 %v3498
        %v5958 = vunpack.c.h.b16 %v3498
        %v5959 = vunpack.c.l.b16 %v3499
        %v5960 = vunpack.c.h.b16 %v3499
        %v5961 = vunpack.c.l.b16 %v3500
        %v5962 = vunpack.c.h.b16 %v3500
        %v5963 = vunpack.c.l.b16 %v3501
        %v5964 = vunpack.c.h.b16 %v3501
        %v5965 = vunpack.c.l.b16 %v3502
        %v5966 = vunpack.c.h.b16 %v3502
        %v5967 = vunpack.c.l.b16 %v3503
        %v5968 = vunpack.c.h.b16 %v3503
        %v5969 = vunpack.c.l.b16 %v3504
        %v5970 = vunpack.c.h.b16 %v3504
        %v5971 = vunpack.c.l.b16 %v3505
        %v5972 = vunpack.c.h.b16 %v3505
        %v5973 = vunpack.c.l.b16 %v3506
        %v5974 = vunpack.c.h.b16 %v3506
        %v5975 = vunpack.c.l.b16 %v3507
        %v5976 = vunpack.c.h.b16 %v3507
        %v5977 = vunpack.c.l.b16 %v3508
        %v5978 = vunpack.c.h.b16 %v3508
        %v5979 = vunpack.c.l.b16 %v3509
        %v5980 = vunpack.c.h.b16 %v3509
        %v5981 = vunpack.c.l.b16 %v3510
        %v5982 = vunpack.c.h.b16 %v3510
        %v5983 = vunpack.c.l.b16 %v3511
        %v5984 = vunpack.c.h.b16 %v3511
        %v5985 = vunpack.c.l.b16 %v3512
        %v5986 = vunpack.c.h.b16 %v3512
        %v5987 = vunpack.c.l.b16 %v3513
        %v5988 = vunpack.c.h.b16 %v3513
        %v5989 = vunpack.c.l.b16 %v3514
        %v5990 = vunpack.c.h.b16 %v3514
        %v5991 = vunpack.c.l.b16 %v3515
        %v5992 = vunpack.c.h.b16 %v3515
        %v5993 = vunpack.c.l.b16 %v3516
        %v5994 = vunpack.c.h.b16 %v3516
        %v5995 = vunpack.c.l.b16 %v3517
        %v5996 = vunpack.c.h.b16 %v3517
        %v5997 = vunpack.c.l.b16 %v3518
        %v5998 = vunpack.c.h.b16 %v3518
        %v5999 = vunpack.c.l.b16 %v3519
        %v6000 = vunpack.c.h.b16 %v3519
        %v6001 = vunpack.c.l.b16 %v3520
        %v6002 = vunpack.c.h.b16 %v3520
        %v6003 = vunpack.c.l.b16 %v3521
        %v6004 = vunpack.c.h.b16 %v3521
        %v6005 = vunpack.c.l.b16 %v3522
        %v6006 = vunpack.c.h.b16 %v3522
        %v6007 = vunpack.c.l.b16 %v3523
        %v6008 = vunpack.c.h.b16 %v3523
        %v6009 = vunpack.c.l.b16 %v3524
        %v6010 = vunpack.c.h.b16 %v3524
        %v6011 = vunpack.c.l.b16 %v3525
        %v6012 = vunpack.c.h.b16 %v3525
        %v6013 = vunpack.c.l.b16 %v3526
        %v6014 = vunpack.c.h.b16 %v3526
        %v6015 = vunpack.c.l.b16 %v3527
        %v6016 = vunpack.c.h.b16 %v3527
        %v6017 = vunpack.c.l.b16 %v3528
        %v6018 = vunpack.c.h.b16 %v3528
        %v6019 = vunpack.c.l.b16 %v3529
        %v6020 = vunpack.c.h.b16 %v3529
        %v6021 = vunpack.c.l.b16 %v3530
        %v6022 = vunpack.c.h.b16 %v3530
        %v6023 = vunpack.c.l.b16 %v3531
        %v6024 = vunpack.c.h.b16 %v3531
        %v6025 = vunpack.c.l.b16 %v3532
        %v6026 = vunpack.c.h.b16 %v3532
        %v6027 = vunpack.c.l.b16 %v3533
        %v6028 = vunpack.c.h.b16 %v3533
        %v6029 = vunpack.c.l.b16 %v3534
        %v6030 = vunpack.c.h.b16 %v3534
        %v6031 = vunpack.c.l.b16 %v3535
        %v6032 = vunpack.c.h.b16 %v3535
        %v6033 = vunpack.c.l.b16 %v3536
        %v6034 = vunpack.c.h.b16 %v3536
        %v6035 = vunpack.c.l.b16 %v3537
        %v6036 = vunpack.c.h.b16 %v3537
        %v6037 = vunpack.c.l.b16 %v3538
        %v6038 = vunpack.c.h.b16 %v3538
        %v6039 = vunpack.c.l.b16 %v3539
        %v6040 = vunpack.c.h.b16 %v3539
        %v6041 = vunpack.c.l.b16 %v3540
        %v6042 = vunpack.c.h.b16 %v3540
        %v6043 = vunpack.c.l.b16 %v3541
        %v6044 = vunpack.c.h.b16 %v3541
        %v6045 = vunpack.c.l.b16 %v3542
        %v6046 = vunpack.c.h.b16 %v3542
        %v6047 = vunpack.c.l.b16 %v3543
        %v6048 = vunpack.c.h.b16 %v3543
        %v6049 = vunpack.c.l.b16 %v3544
        %v6050 = vunpack.c.h.b16 %v3544
        %v6051 = vunpack.c.l.b16 %v3545
        %v6052 = vunpack.c.h.b16 %v3545
        %v6053 = vunpack.c.l.b16 %v3546
        %v6054 = vunpack.c.h.b16 %v3546
        %v6055 = vunpack.c.l.b16 %v3547
        %v6056 = vunpack.c.h.b16 %v3547
        %v6057 = vunpack.c.l.b16 %v3548
        %v6058 = vunpack.c.h.b16 %v3548
        %v6059 = vunpack.c.l.b16 %v3549
        %v6060 = vunpack.c.h.b16 %v3549
        %v6061 = vunpack.c.l.b16 %v3550
        %v6062 = vunpack.c.h.b16 %v3550
        %v6063 = vunpack.c.l.b16 %v3551
        %v6064 = vunpack.c.h.b16 %v3551
        %v6065 = vunpack.c.l.b16 %v3552
        %v6066 = vunpack.c.h.b16 %v3552
        %v6067 = vunpack.c.l.b16 %v3553
        %v6068 = vunpack.c.h.b16 %v3553
        %v6069 = vunpack.c.l.b16 %v3554
        %v6070 = vunpack.c.h.b16 %v3554
        %v6071 = vunpack.c.l.b16 %v3555
        %v6072 = vunpack.c.h.b16 %v3555
        %v6073 = vunpack.c.l.b16 %v3556
        %v6074 = vunpack.c.h.b16 %v3556
        %v6075 = vunpack.c.l.b16 %v3557
        %v6076 = vunpack.c.h.b16 %v3557
        %v6077 = vunpack.c.l.b16 %v3558
        %v6078 = vunpack.c.h.b16 %v3558
        %v6079 = vunpack.c.l.b16 %v3559
        %v6080 = vunpack.c.h.b16 %v3559
        %v6081 = vunpack.c.l.b16 %v3560
        %v6082 = vunpack.c.h.b16 %v3560
        %v6083 = vunpack.c.l.b16 %v3561
        %v6084 = vunpack.c.h.b16 %v3561
        %v6085 = vunpack.c.l.b16 %v3562
        %v6086 = vunpack.c.h.b16 %v3562
        %v6087 = vunpack.c.l.b16 %v3563
        %v6088 = vunpack.c.h.b16 %v3563
        %v6089 = vunpack.c.l.b16 %v3564
        %v6090 = vunpack.c.h.b16 %v3564
        %v6091 = vunpack.c.l.b16 %v3565
        %v6092 = vunpack.c.h.b16 %v3565
        %v6093 = vunpack.c.l.b16 %v3566
        %v6094 = vunpack.c.h.b16 %v3566
        %v6095 = vunpack.c.l.b16 %v3567
        %v6096 = vunpack.c.h.b16 %v3567
        %v6097 = vunpack.c.l.b16 %v3568
        %v6098 = vunpack.c.h.b16 %v3568
        %v6099 = vunpack.c.l.b16 %v3569
        %v6100 = vunpack.c.h.b16 %v3569
        %v6101 = vunpack.c.l.b16 %v3570
        %v6102 = vunpack.c.h.b16 %v3570
        %v6103 = vunpack.c.l.b16 %v3571
        %v6104 = vunpack.c.h.b16 %v3571
        %v6105 = vunpack.c.l.b16 %v3572
        %v6106 = vunpack.c.h.b16 %v3572
        %v6107 = vunpack.c.l.b16 %v3573
        %v6108 = vunpack.c.h.b16 %v3573
        %v6109 = vunpack.c.l.b16 %v3574
        %v6110 = vunpack.c.h.b16 %v3574
        %v6111 = vunpack.c.l.b16 %v3575
        %v6112 = vunpack.c.h.b16 %v3575
        %v6113 = vunpack.c.l.b16 %v3576
        %v6114 = vunpack.c.h.b16 %v3576
        %v6115 = vunpack.c.l.b16 %v3577
        %v6116 = vunpack.c.h.b16 %v3577
        %v6117 = vunpack.c.l.b16 %v3578
        %v6118 = vunpack.c.h.b16 %v3578
        %v6119 = vunpack.c.l.b16 %v3579
        %v6120 = vunpack.c.h.b16 %v3579
        %v6121 = vunpack.c.l.b16 %v3580
        %v6122 = vunpack.c.h.b16 %v3580
        %v6123 = vunpack.c.l.b16 %v3581
        %v6124 = vunpack.c.h.b16 %v3581
        %v6125 = vunpack.c.l.b16 %v3582
        %v6126 = vunpack.c.h.b16 %v3582
        %v6127 = vunpack.c.l.b16 %v3583
        %v6128 = vunpack.c.h.b16 %v3583
        %v6129 = vunpack.c.l.b16 %v3584
        %v6130 = vunpack.c.h.b16 %v3584
        %v6131 = vunpack.c.l.b16 %v3585
        %v6132 = vunpack.c.h.b16 %v3585
        %v6133 = vunpack.c.l.b16 %v3586
        %v6134 = vunpack.c.h.b16 %v3586
        %v6135 = vunpack.c.l.b16 %v3587
        %v6136 = vunpack.c.h.b16 %v3587
        %v6137 = vunpack.c.l.b16 %v3588
        %v6138 = vunpack.c.h.b16 %v3588
        %v6139 = vunpack.c.l.b16 %v3589
        %v6140 = vunpack.c.h.b16 %v3589
        %v6141 = vunpack.c.l.b16 %v3590
        %v6142 = vunpack.c.h.b16 %v3590
        %v6143 = vunpack.c.l.b16 %v3591
        %v6144 = vunpack.c.h.b16 %v3591
        %v6145 = vunpack.c.l.b16 %v3592
        %v6146 = vunpack.c.h.b16 %v3592
        %v6147 = vunpack.c.l.b16 %v3593
        %v6148 = vunpack.c.h.b16 %v3593
        %v6149 = vunpack.c.l.b16 %v3594
        %v6150 = vunpack.c.h.b16 %v3594
        %v6151 = vunpack.c.l.b16 %v3595
        %v6152 = vunpack.c.h.b16 %v3595
        %v6153 = vunpack.c.l.b16 %v3596
        %v6154 = vunpack.c.h.b16 %v3596
        %v6155 = vunpack.c.l.b16 %v3597
        %v6156 = vunpack.c.h.b16 %v3597
        %v6157 = vunpack.c.l.b16 %v3598
        %v6158 = vunpack.c.h.b16 %v3598
        %v6159 = vunpack.c.l.b16 %v3599
        %v6160 = vunpack.c.h.b16 %v3599
        %v6161 = vunpack.c.l.b16 %v3600
        %v6162 = vunpack.c.h.b16 %v3600
        %v6163 = vunpack.c.l.b16 %v3601
        %v6164 = vunpack.c.h.b16 %v3601
        %v6165 = vunpack.c.l.b16 %v3602
        %v6166 = vunpack.c.h.b16 %v3602
        %v6167 = vunpack.c.l.b16 %v3603
        %v6168 = vunpack.c.h.b16 %v3603
        %v6169 = vunpack.c.l.b16 %v3604
        %v6170 = vunpack.c.h.b16 %v3604
        %v6171 = vunpack.c.l.b16 %v3605
        %v6172 = vunpack.c.h.b16 %v3605
        %v6173 = vunpack.c.l.b16 %v3606
        %v6174 = vunpack.c.h.b16 %v3606
        %v6175 = vunpack.c.l.b16 %v3607
        %v6176 = vunpack.c.h.b16 %v3607
        %v6177 = vunpack.c.l.b16 %v3608
        %v6178 = vunpack.c.h.b16 %v3608
        %v6179 = vunpack.c.l.b16 %v3609
        %v6180 = vunpack.c.h.b16 %v3609
        %v6181 = vunpack.c.l.b16 %v3610
        %v6182 = vunpack.c.h.b16 %v3610
        %v6183 = vunpack.c.l.b16 %v3611
        %v6184 = vunpack.c.h.b16 %v3611
        %v6185 = vunpack.c.l.b16 %v3612
        %v6186 = vunpack.c.h.b16 %v3612
        %v6187 = vunpack.c.l.b16 %v3613
        %v6188 = vunpack.c.h.b16 %v3613
        %v6189 = vunpack.c.l.b16 %v3614
        %v6190 = vunpack.c.h.b16 %v3614
        %v6191 = vunpack.c.l.b16 %v3615
        %v6192 = vunpack.c.h.b16 %v3615
        %v6193 = vunpack.c.l.b16 %v3616
        %v6194 = vunpack.c.h.b16 %v3616
        %v6195 = vunpack.c.l.b16 %v3617
        %v6196 = vunpack.c.h.b16 %v3617
        %v6197 = vunpack.c.l.b16 %v3618
        %v6198 = vunpack.c.h.b16 %v3618
        %v6199 = vunpack.c.l.b16 %v3619
        %v6200 = vunpack.c.h.b16 %v3619
        %v6201 = vunpack.c.l.b16 %v3620
        %v6202 = vunpack.c.h.b16 %v3620
        %v6203 = vunpack.c.l.b16 %v3621
        %v6204 = vunpack.c.h.b16 %v3621
        %v6205 = vunpack.c.l.b16 %v3622
        %v6206 = vunpack.c.h.b16 %v3622
        %v6207 = vunpack.c.l.b16 %v3623
        %v6208 = vunpack.c.h.b16 %v3623
        %v6209 = vunpack.c.l.b16 %v3624
        %v6210 = vunpack.c.h.b16 %v3624
        %v6211 = vunpack.c.l.b16 %v3625
        %v6212 = vunpack.c.h.b16 %v3625
        %v6213 = vunpack.c.l.b16 %v3626
        %v6214 = vunpack.c.h.b16 %v3626
        %v6215 = vunpack.c.l.b16 %v3627
        %v6216 = vunpack.c.h.b16 %v3627
        %v6217 = vunpack.c.l.b16 %v3628
        %v6218 = vunpack.c.h.b16 %v3628
        %v6219 = vunpack.c.l.b16 %v3629
        %v6220 = vunpack.c.h.b16 %v3629
        %v6221 = vunpack.c.l.b16 %v3630
        %v6222 = vunpack.c.h.b16 %v3630
        %v6223 = vunpack.c.l.b16 %v3631
        %v6224 = vunpack.c.h.b16 %v3631
        %v6225 = vunpack.c.l.b16 %v3632
        %v6226 = vunpack.c.h.b16 %v3632
        %v6227 = vunpack.c.l.b16 %v3633
        %v6228 = vunpack.c.h.b16 %v3633
        %v6229 = vunpack.c.l.b16 %v3634
        %v6230 = vunpack.c.h.b16 %v3634
        %v6231 = vunpack.c.l.b16 %v3635
        %v6232 = vunpack.c.h.b16 %v3635
        %v6233 = vunpack.c.l.b16 %v3636
        %v6234 = vunpack.c.h.b16 %v3636
        %v6235 = vunpack.c.l.b16 %v3637
        %v6236 = vunpack.c.h.b16 %v3637
        %v6237 = vunpack.c.l.b16 %v3638
        %v6238 = vunpack.c.h.b16 %v3638
        %v6239 = vunpack.c.l.b16 %v3639
        %v6240 = vunpack.c.h.b16 %v3639
        %v6241 = vunpack.c.l.b16 %v3640
        %v6242 = vunpack.c.h.b16 %v3640
        %v6243 = vunpack.c.l.b16 %v3641
        %v6244 = vunpack.c.h.b16 %v3641
        %v6245 = vunpack.c.l.b16 %v3642
        %v6246 = vunpack.c.h.b16 %v3642
        %v6247 = vunpack.c.l.b16 %v3643
        %v6248 = vunpack.c.h.b16 %v3643
        %v6249 = vunpack.c.l.b16 %v3644
        %v6250 = vunpack.c.h.b16 %v3644
        %v6251 = vunpack.c.l.b16 %v3645
        %v6252 = vunpack.c.h.b16 %v3645
        %v6253 = vunpack.c.l.b16 %v3646
        %v6254 = vunpack.c.h.b16 %v3646
        %v6255 = vunpack.c.l.b16 %v3647
        %v6256 = vunpack.c.h.b16 %v3647
        %v6257 = vunpack.c.l.b16 %v3648
        %v6258 = vunpack.c.h.b16 %v3648
        %v6259 = vunpack.c.l.b16 %v3649
        %v6260 = vunpack.c.h.b16 %v3649
        %v6261 = vunpack.c.l.b16 %v3650
        %v6262 = vunpack.c.h.b16 %v3650
        %v6263 = vunpack.c.l.b16 %v3651
        %v6264 = vunpack.c.h.b16 %v3651
        %v6265 = vunpack.c.l.b16 %v3652
        %v6266 = vunpack.c.h.b16 %v3652
        %v6267 = vunpack.c.l.b16 %v3653
        %v6268 = vunpack.c.h.b16 %v3653
        %v6269 = vunpack.c.l.b16 %v3654
        %v6270 = vunpack.c.h.b16 %v3654
        %v6271 = vunpack.c.l.b16 %v3655
        %v6272 = vunpack.c.h.b16 %v3655
        %v6273 = vunpack.c.l.b16 %v3656
        %v6274 = vunpack.c.h.b16 %v3656
        %v6275 = vunpack.c.l.b16 %v3657
        %v6276 = vunpack.c.h.b16 %v3657
        %v6277 = vunpack.c.l.b16 %v3658
        %v6278 = vunpack.c.h.b16 %v3658
        %v6279 = vunpack.c.l.b16 %v3659
        %v6280 = vunpack.c.h.b16 %v3659
        %v6281 = vunpack.c.l.b16 %v3660
        %v6282 = vunpack.c.h.b16 %v3660
        %v6283 = vunpack.c.l.b16 %v3661
        %v6284 = vunpack.c.h.b16 %v3661
        %v6285 = vunpack.c.l.b16 %v3662
        %v6286 = vunpack.c.h.b16 %v3662
        %v6287 = vunpack.c.l.b16 %v3663
        %v6288 = vunpack.c.h.b16 %v3663
        %v6289 = vunpack.c.l.b16 %v3664
        %v6290 = vunpack.c.h.b16 %v3664
        %v6291 = vunpack.c.l.b16 %v3665
        %v6292 = vunpack.c.h.b16 %v3665
        %v6293 = vunpack.c.l.b16 %v3666
        %v6294 = vunpack.c.h.b16 %v3666
        %v6295 = vunpack.c.l.b16 %v3667
        %v6296 = vunpack.c.h.b16 %v3667
        %v6297 = vunpack.c.l.b16 %v3668
        %v6298 = vunpack.c.h.b16 %v3668
        %v6299 = vunpack.c.l.b16 %v3669
        %v6300 = vunpack.c.h.b16 %v3669
        %v6301 = vunpack.c.l.b16 %v3670
        %v6302 = vunpack.c.h.b16 %v3670
        %v6303 = vunpack.c.l.b16 %v3671
        %v6304 = vunpack.c.h.b16 %v3671
        %v6305 = vunpack.c.l.b16 %v3672
        %v6306 = vunpack.c.h.b16 %v3672
        %v6307 = vunpack.c.l.b16 %v3673
        %v6308 = vunpack.c.h.b16 %v3673
        %v6309 = vunpack.c.l.b16 %v3674
        %v6310 = vunpack.c.h.b16 %v3674
        %v6311 = vunpack.c.l.b16 %v3675
        %v6312 = vunpack.c.h.b16 %v3675
        %v6313 = vunpack.c.l.b16 %v3676
        %v6314 = vunpack.c.h.b16 %v3676
        %v6315 = vunpack.c.l.b16 %v3677
        %v6316 = vunpack.c.h.b16 %v3677
        %v6317 = vunpack.c.l.b16 %v3678
        %v6318 = vunpack.c.h.b16 %v3678
        %v6319 = vunpack.c.l.b16 %v3679
        %v6320 = vunpack.c.h.b16 %v3679
        %v6321 = vunpack.c.l.b16 %v3680
        %v6322 = vunpack.c.h.b16 %v3680
        %v6323 = vunpack.c.l.b16 %v3681
        %v6324 = vunpack.c.h.b16 %v3681
        %v6325 = vunpack.c.l.b16 %v3682
        %v6326 = vunpack.c.h.b16 %v3682
        %v6327 = vunpack.c.l.b16 %v3683
        %v6328 = vunpack.c.h.b16 %v3683
        %v6329 = vunpack.c.l.b16 %v3684
        %v6330 = vunpack.c.h.b16 %v3684
        %v6331 = vunpack.c.l.b16 %v3685
        %v6332 = vunpack.c.h.b16 %v3685
        %v6333 = vunpack.c.l.b16 %v3686
        %v6334 = vunpack.c.h.b16 %v3686
        %v6335 = vunpack.c.l.b16 %v3687
        %v6336 = vunpack.c.h.b16 %v3687
        %v6337 = vunpack.c.l.b16 %v3688
        %v6338 = vunpack.c.h.b16 %v3688
        %v6339 = vunpack.c.l.b16 %v3689
        %v6340 = vunpack.c.h.b16 %v3689
        %v6341 = vunpack.c.l.b16 %v3690
        %v6342 = vunpack.c.h.b16 %v3690
        %v6343 = vunpack.c.l.b16 %v3691
        %v6344 = vunpack.c.h.b16 %v3691
        %v6345 = vunpack.c.l.b16 %v3692
        %v6346 = vunpack.c.h.b16 %v3692
        %v6347 = vunpack.c.l.b16 %v3693
        %v6348 = vunpack.c.h.b16 %v3693
        %v6349 = vunpack.c.l.b16 %v3694
        %v6350 = vunpack.c.h.b16 %v3694
        %v6351 = vunpack.c.l.b16 %v3695
        %v6352 = vunpack.c.h.b16 %v3695
        %v6353 = vunpack.c.l.b16 %v3696
        %v6354 = vunpack.c.h.b16 %v3696
        %v6355 = vunpack.c.l.b16 %v3697
        %v6356 = vunpack.c.h.b16 %v3697
        %v6357 = vunpack.c.l.b16 %v3698
        %v6358 = vunpack.c.h.b16 %v3698
        %v6359 = vunpack.c.l.b16 %v3699
        %v6360 = vunpack.c.h.b16 %v3699
        %v6361 = vunpack.c.l.b16 %v3700
        %v6362 = vunpack.c.h.b16 %v3700
        %v6363 = vunpack.c.l.b16 %v3701
        %v6364 = vunpack.c.h.b16 %v3701
        %v6365 = vunpack.c.l.b16 %v3702
        %v6366 = vunpack.c.h.b16 %v3702
        %v6367 = vunpack.c.l.b16 %v3703
        %v6368 = vunpack.c.h.b16 %v3703
        %v6369 = vunpack.c.l.b16 %v3704
        %v6370 = vunpack.c.h.b16 %v3704
        %v6371 = vunpack.c.l.b16 %v3705
        %v6372 = vunpack.c.h.b16 %v3705
        %v6373 = vunpack.c.l.b16 %v3706
        %v6374 = vunpack.c.h.b16 %v3706
        %v6375 = vunpack.c.l.b16 %v3707
        %v6376 = vunpack.c.h.b16 %v3707
        %v6377 = vunpack.c.l.b16 %v3708
        %v6378 = vunpack.c.h.b16 %v3708
        %v6379 = vunpack.c.l.b16 %v3709
        %v6380 = vunpack.c.h.b16 %v3709
        %v6381 = vunpack.c.l.b16 %v3710
        %v6382 = vunpack.c.h.b16 %v3710
        %v6383 = vunpack.c.l.b16 %v3711
        %v6384 = vunpack.c.h.b16 %v3711
        %v6385 = vunpack.c.l.b16 %v3712
        %v6386 = vunpack.c.h.b16 %v3712
        %v6387 = vunpack.c.l.b16 %v3713
        %v6388 = vunpack.c.h.b16 %v3713
        %v6389 = vunpack.c.l.b16 %v3714
        %v6390 = vunpack.c.h.b16 %v3714
        %v6391 = vunpack.c.l.b16 %v3715
        %v6392 = vunpack.c.h.b16 %v3715
        %v6393 = vunpack.c.l.b16 %v3716
        %v6394 = vunpack.c.h.b16 %v3716
        %v6395 = vunpack.c.l.b16 %v3717
        %v6396 = vunpack.c.h.b16 %v3717
        %v6397 = vunpack.c.l.b16 %v3718
        %v6398 = vunpack.c.h.b16 %v3718
        %v6399 = vunpack.c.l.b16 %v3719
        %v6400 = vunpack.c.h.b16 %v3719
        %v6401 = vunpack.c.l.b16 %v3720
        %v6402 = vunpack.c.h.b16 %v3720
        %v6403 = vunpack.c.l.b16 %v3721
        %v6404 = vunpack.c.h.b16 %v3721
        %v6405 = vunpack.c.l.b16 %v3722
        %v6406 = vunpack.c.h.b16 %v3722
        %v6407 = vunpack.c.l.b16 %v3723
        %v6408 = vunpack.c.h.b16 %v3723
        %v6409 = vunpack.c.l.b16 %v3724
        %v6410 = vunpack.c.h.b16 %v3724
        %v6411 = vunpack.c.l.b16 %v3725
        %v6412 = vunpack.c.h.b16 %v3725
        %v6413 = vunpack.c.l.b16 %v3726
        %v6414 = vunpack.c.h.b16 %v3726
        %v6415 = vunpack.c.l.b16 %v3727
        %v6416 = vunpack.c.h.b16 %v3727
        %v6417 = vunpack.c.l.b16 %v3728
        %v6418 = vunpack.c.h.b16 %v3728
        %v6419 = vunpack.c.l.b16 %v3729
        %v6420 = vunpack.c.h.b16 %v3729
        %v6421 = vunpack.c.l.b16 %v3730
        %v6422 = vunpack.c.h.b16 %v3730
        %v6423 = vunpack.c.l.b16 %v3731
        %v6424 = vunpack.c.h.b16 %v3731
        %v6425 = vunpack.c.l.b16 %v3732
        %v6426 = vunpack.c.h.b16 %v3732
        %v6427 = vunpack.c.l.b16 %v3733
        %v6428 = vunpack.c.h.b16 %v3733
        %v6429 = vunpack.c.l.b16 %v3734
        %v6430 = vunpack.c.h.b16 %v3734
        %v6431 = vunpack.c.l.b16 %v3735
        %v6432 = vunpack.c.h.b16 %v3735
        %v6433 = vunpack.c.l.b16 %v3736
        %v6434 = vunpack.c.h.b16 %v3736
        %v6435 = vunpack.c.l.b16 %v3737
        %v6436 = vunpack.c.h.b16 %v3737
        %v6437 = vunpack.c.l.b16 %v3738
        %v6438 = vunpack.c.h.b16 %v3738
        %v6439 = vunpack.c.l.b16 %v3739
        %v6440 = vunpack.c.h.b16 %v3739
        %v6441 = vunpack.c.l.b16 %v3740
        %v6442 = vunpack.c.h.b16 %v3740
        %v6443 = vunpack.c.l.b16 %v3741
        %v6444 = vunpack.c.h.b16 %v3741
        %v6445 = vunpack.c.l.b16 %v3742
        %v6446 = vunpack.c.h.b16 %v3742
        %v6447 = vunpack.c.l.b16 %v3743
        %v6448 = vunpack.c.h.b16 %v3743
        %v6449 = vunpack.c.l.b16 %v3744
        %v6450 = vunpack.c.h.b16 %v3744
        %v6451 = vunpack.c.l.b16 %v3745
        %v6452 = vunpack.c.h.b16 %v3745
        %v6453 = vunpack.c.l.b16 %v3746
        %v6454 = vunpack.c.h.b16 %v3746
        %v6455 = vunpack.c.l.b16 %v3747
        %v6456 = vunpack.c.h.b16 %v3747
        %v6457 = vunpack.c.l.b16 %v3748
        %v6458 = vunpack.c.h.b16 %v3748
        %v6459 = vunpack.c.l.b16 %v3749
        %v6460 = vunpack.c.h.b16 %v3749
        %v6461 = vunpack.c.l.b16 %v3750
        %v6462 = vunpack.c.h.b16 %v3750
        %v6463 = vunpack.c.l.b16 %v3751
        %v6464 = vunpack.c.h.b16 %v3751
        %v6465 = vunpack.c.l.b16 %v3752
        %v6466 = vunpack.c.h.b16 %v3752
        %v6467 = vunpack.c.l.b16 %v3753
        %v6468 = vunpack.c.h.b16 %v3753
        %v6469 = vunpack.c.l.b16 %v3754
        %v6470 = vunpack.c.h.b16 %v3754
        %v6471 = vunpack.c.l.b16 %v3755
        %v6472 = vunpack.c.h.b16 %v3755
        %v6473 = vunpack.c.l.b16 %v3756
        %v6474 = vunpack.c.h.b16 %v3756
        %v6475 = vunpack.c.l.b16 %v3757
        %v6476 = vunpack.c.h.b16 %v3757
        %v6477 = vunpack.c.l.b16 %v3758
        %v6478 = vunpack.c.h.b16 %v3758
        %v6479 = vunpack.c.l.b16 %v3759
        %v6480 = vunpack.c.h.b16 %v3759
        %v6481 = vunpack.c.l.b16 %v3760
        %v6482 = vunpack.c.h.b16 %v3760
        %v6483 = vunpack.c.l.b16 %v3761
        %v6484 = vunpack.c.h.b16 %v3761
        %v6485 = vunpack.c.l.b16 %v3762
        %v6486 = vunpack.c.h.b16 %v3762
        %v6487 = vunpack.c.l.b16 %v3763
        %v6488 = vunpack.c.h.b16 %v3763
        %v6489 = vunpack.c.l.b16 %v3764
        %v6490 = vunpack.c.h.b16 %v3764
        %v6491 = vunpack.c.l.b16 %v3765
        %v6492 = vunpack.c.h.b16 %v3765
        %v6493 = vunpack.c.l.b16 %v3766
        %v6494 = vunpack.c.h.b16 %v3766
        %v6495 = vunpack.c.l.b16 %v3767
        %v6496 = vunpack.c.h.b16 %v3767
        %v6497 = vunpack.c.l.b16 %v3768
        %v6498 = vunpack.c.h.b16 %v3768
        %v6499 = vunpack.c.l.b16 %v3769
        %v6500 = vunpack.c.h.b16 %v3769
        %v6501 = vunpack.c.l.b16 %v3770
        %v6502 = vunpack.c.h.b16 %v3770
        %v6503 = vunpack.c.l.b16 %v3771
        %v6504 = vunpack.c.h.b16 %v3771
        %v6505 = vunpack.c.l.b16 %v3772
        %v6506 = vunpack.c.h.b16 %v3772
        %v6507 = vunpack.c.l.b16 %v3773
        %v6508 = vunpack.c.h.b16 %v3773
        %v6509 = vunpack.c.l.b16 %v3774
        %v6510 = vunpack.c.h.b16 %v3774
        %v6511 = vunpack.c.l.b16 %v3775
        %v6512 = vunpack.c.h.b16 %v3775
        %v6513 = vunpack.c.l.b16 %v3776
        %v6514 = vunpack.c.h.b16 %v3776
        %v6515 = vunpack.c.l.b16 %v3777
        %v6516 = vunpack.c.h.b16 %v3777
        %v6517 = vunpack.c.l.b16 %v3778
        %v6518 = vunpack.c.h.b16 %v3778
        %v6519 = vunpack.c.l.b16 %v3779
        %v6520 = vunpack.c.h.b16 %v3779
        %v6521 = vunpack.c.l.b16 %v3780
        %v6522 = vunpack.c.h.b16 %v3780
        %v6523 = vunpack.c.l.b16 %v3781
        %v6524 = vunpack.c.h.b16 %v3781
        %v6525 = vunpack.c.l.b16 %v3782
        %v6526 = vunpack.c.h.b16 %v3782
        %v6527 = vunpack.c.l.b16 %v3783
        %v6528 = vunpack.c.h.b16 %v3783
        %v6529 = vunpack.c.l.b16 %v3784
        %v6530 = vunpack.c.h.b16 %v3784
        %v6531 = vunpack.c.l.b16 %v3785
        %v6532 = vunpack.c.h.b16 %v3785
        %v6533 = vunpack.c.l.b16 %v3786
        %v6534 = vunpack.c.h.b16 %v3786
        %v6535 = vunpack.c.l.b16 %v3787
        %v6536 = vunpack.c.h.b16 %v3787
        %v6537 = vunpack.c.l.b16 %v3788
        %v6538 = vunpack.c.h.b16 %v3788
        %v6539 = vunpack.c.l.b16 %v3789
        %v6540 = vunpack.c.h.b16 %v3789
        %v6541 = vunpack.c.l.b16 %v3790
        %v6542 = vunpack.c.h.b16 %v3790
        %v6543 = vunpack.c.l.b16 %v3791
        %v6544 = vunpack.c.h.b16 %v3791
        %v6545 = vunpack.c.l.b16 %v3792
        %v6546 = vunpack.c.h.b16 %v3792
        %v6547 = vunpack.c.l.b16 %v3793
        %v6548 = vunpack.c.h.b16 %v3793
        %v6549 = vunpack.c.l.b16 %v3794
        %v6550 = vunpack.c.h.b16 %v3794
        %v6551 = vunpack.c.l.b16 %v3795
        %v6552 = vunpack.c.h.b16 %v3795
        %v6553 = vunpack.c.l.b16 %v3796
        %v6554 = vunpack.c.h.b16 %v3796
        %v6555 = vunpack.c.l.b16 %v3797
        %v6556 = vunpack.c.h.b16 %v3797
        %v6557 = vunpack.c.l.b16 %v3798
        %v6558 = vunpack.c.h.b16 %v3798
        %v6559 = vunpack.c.l.b16 %v3799
        %v6560 = vunpack.c.h.b16 %v3799
        %v6561 = vunpack.c.l.b16 %v3800
        %v6562 = vunpack.c.h.b16 %v3800
        %v6563 = vunpack.c.l.b16 %v3801
        %v6564 = vunpack.c.h.b16 %v3801
        %v6565 = vunpack.c.l.b16 %v3802
        %v6566 = vunpack.c.h.b16 %v3802
        %v6567 = vunpack.c.l.b16 %v3803
        %v6568 = vunpack.c.h.b16 %v3803
        %v6569 = vunpack.c.l.b16 %v3804
        %v6570 = vunpack.c.h.b16 %v3804
        %v6571 = vunpack.c.l.b16 %v3805
        %v6572 = vunpack.c.h.b16 %v3805
        %v6573 = vunpack.c.l.b16 %v3806
        %v6574 = vunpack.c.h.b16 %v3806
        %v6575 = vunpack.c.l.b16 %v3807
        %v6576 = vunpack.c.h.b16 %v3807
        %v6577 = vunpack.c.l.b16 %v3808
        %v6578 = vunpack.c.h.b16 %v3808
        %v6579 = vunpack.c.l.b16 %v3809
        %v6580 = vunpack.c.h.b16 %v3809
        %v6581 = vunpack.c.l.b16 %v3810
        %v6582 = vunpack.c.h.b16 %v3810
        %v6583 = vunpack.c.l.b16 %v3811
        %v6584 = vunpack.c.h.b16 %v3811
        %v6585 = vunpack.c.l.b16 %v3812
        %v6586 = vunpack.c.h.b16 %v3812
        %v6587 = vunpack.c.l.b16 %v3813
        %v6588 = vunpack.c.h.b16 %v3813
        %v6589 = vunpack.c.l.b16 %v3814
        %v6590 = vunpack.c.h.b16 %v3814
        %v6591 = vunpack.c.l.b16 %v3815
        %v6592 = vunpack.c.h.b16 %v3815
        %v6593 = vunpack.c.l.b16 %v3816
        %v6594 = vunpack.c.h.b16 %v3816
        %v6595 = vunpack.c.l.b16 %v3817
        %v6596 = vunpack.c.h.b16 %v3817
        %v6597 = vunpack.c.l.b16 %v3818
        %v6598 = vunpack.c.h.b16 %v3818
        %v6599 = vunpack.c.l.b16 %v3819
        %v6600 = vunpack.c.h.b16 %v3819
        %v6601 = vunpack.c.l.b16 %v3820
        %v6602 = vunpack.c.h.b16 %v3820
        %v6603 = vunpack.c.l.b16 %v3821
        %v6604 = vunpack.c.h.b16 %v3821
        %v6605 = vunpack.c.l.b16 %v3822
        %v6606 = vunpack.c.h.b16 %v3822
        %v6607 = vunpack.c.l.b16 %v3823
        %v6608 = vunpack.c.h.b16 %v3823
        %v6609 = vunpack.c.l.b16 %v3824
        %v6610 = vunpack.c.h.b16 %v3824
        %v6611 = vunpack.c.l.b16 %v3825
        %v6612 = vunpack.c.h.b16 %v3825
        %v6613 = vunpack.c.l.b16 %v3826
        %v6614 = vunpack.c.h.b16 %v3826
        %v6615 = vunpack.c.l.b16 %v3827
        %v6616 = vunpack.c.h.b16 %v3827
        %v6617 = vunpack.c.l.b16 %v3828
        %v6618 = vunpack.c.h.b16 %v3828
        %v6619 = vunpack.c.l.b16 %v3829
        %v6620 = vunpack.c.h.b16 %v3829
        %v6621 = vunpack.c.l.b16 %v3830
        %v6622 = vunpack.c.h.b16 %v3830
        %v6623 = vunpack.c.l.b16 %v3831
        %v6624 = vunpack.c.h.b16 %v3831
        %v6625 = vunpack.c.l.b16 %v3832
        %v6626 = vunpack.c.h.b16 %v3832
        %v6627 = vunpack.c.l.b16 %v3833
        %v6628 = vunpack.c.h.b16 %v3833
        %v6629 = vunpack.c.l.b16 %v3834
        %v6630 = vunpack.c.h.b16 %v3834
        %v6631 = vunpack.c.l.b16 %v3835
        %v6632 = vunpack.c.h.b16 %v3835
        %v6633 = vunpack.c.l.b16 %v3836
        %v6634 = vunpack.c.h.b16 %v3836
        %v6635 = vunpack.c.l.b16 %v3837
        %v6636 = vunpack.c.h.b16 %v3837
        %v6637 = vunpack.c.l.b16 %v3838
        %v6638 = vunpack.c.h.b16 %v3838
        %v6639 = vunpack.c.l.b16 %v3839
        %v6640 = vunpack.c.h.b16 %v3839
        %v6641 = vunpack.c.l.b16 %v3840
        %v6642 = vunpack.c.h.b16 %v3840
        %v6643 = vunpack.c.l.b16 %v3841
        %v6644 = vunpack.c.h.b16 %v3841
        %v6645 = vunpack.c.l.b16 %v3842
        %v6646 = vunpack.c.h.b16 %v3842
        %v6647 = vunpack.c.l.b16 %v3843
        %v6648 = vunpack.c.h.b16 %v3843
        %v6649 = vunpack.c.l.b16 %v3844
        %v6650 = vunpack.c.h.b16 %v3844
        %v6651 = vunpack.c.l.b16 %v3845
        %v6652 = vunpack.c.h.b16 %v3845
        %v6653 = vunpack.c.l.b16 %v3846
        %v6654 = vunpack.c.h.b16 %v3846
        %v6655 = vunpack.c.l.b16 %v3847
        %v6656 = vunpack.c.h.b16 %v3847
        %v6657 = vunpack.c.l.b16 %v3848
        %v6658 = vunpack.c.h.b16 %v3848
        %v6659 = vunpack.c.l.b16 %v3849
        %v6660 = vunpack.c.h.b16 %v3849
        %v6661 = vunpack.c.l.b16 %v3850
        %v6662 = vunpack.c.h.b16 %v3850
        %v6663 = vunpack.c.l.b16 %v3851
        %v6664 = vunpack.c.h.b16 %v3851
        %v6665 = vunpack.c.l.b16 %v3852
        %v6666 = vunpack.c.h.b16 %v3852
        %v6667 = vunpack.c.l.b16 %v3853
        %v6668 = vunpack.c.h.b16 %v3853
        %v6669 = vunpack.c.l.b16 %v3854
        %v6670 = vunpack.c.h.b16 %v3854
        %v6671 = vunpack.c.l.b16 %v3855
        %v6672 = vunpack.c.h.b16 %v3855
        %v6673 = vunpack.c.l.b16 %v3856
        %v6674 = vunpack.c.h.b16 %v3856
        %v6675 = vunpack.c.l.b16 %v3857
        %v6676 = vunpack.c.h.b16 %v3857
        %v6677 = vunpack.c.l.b16 %v3858
        %v6678 = vunpack.c.h.b16 %v3858
        %v6679 = vunpack.c.l.b16 %v3859
        %v6680 = vunpack.c.h.b16 %v3859
        %v6681 = vunpack.c.l.b16 %v3860
        %v6682 = vunpack.c.h.b16 %v3860
        %v6683 = vunpack.c.l.b16 %v3861
        %v6684 = vunpack.c.h.b16 %v3861
        %v6685 = vunpack.c.l.b16 %v3862
        %v6686 = vunpack.c.h.b16 %v3862
        %v6687 = vunpack.c.l.b16 %v3863
        %v6688 = vunpack.c.h.b16 %v3863
        %v6689 = vunpack.c.l.b16 %v3864
        %v6690 = vunpack.c.h.b16 %v3864
        %v6691 = vunpack.c.l.b16 %v3865
        %v6692 = vunpack.c.h.b16 %v3865
        %v6693 = vunpack.c.l.b16 %v3866
        %v6694 = vunpack.c.h.b16 %v3866
        %v6695 = vunpack.c.l.b16 %v3867
        %v6696 = vunpack.c.h.b16 %v3867
        %v6697 = vunpack.c.l.b16 %v3868
        %v6698 = vunpack.c.h.b16 %v3868
        %v6699 = vunpack.c.l.b16 %v3869
        %v6700 = vunpack.c.h.b16 %v3869
        %v6701 = vunpack.c.l.b16 %v3870
        %v6702 = vunpack.c.h.b16 %v3870
        %v6703 = vunpack.c.l.b16 %v3871
        %v6704 = vunpack.c.h.b16 %v3871
        %v6705 = vunpack.c.l.b16 %v3872
        %v6706 = vunpack.c.h.b16 %v3872
        %v6707 = vunpack.c.l.b16 %v3873
        %v6708 = vunpack.c.h.b16 %v3873
        %v6709 = vunpack.c.l.b16 %v3874
        %v6710 = vunpack.c.h.b16 %v3874
        %v6711 = vunpack.c.l.b16 %v3875
        %v6712 = vunpack.c.h.b16 %v3875
        %v6713 = vunpack.c.l.b16 %v3876
        %v6714 = vunpack.c.h.b16 %v3876
        %v6715 = vunpack.c.l.b16 %v3877
        %v6716 = vunpack.c.h.b16 %v3877
        %v6717 = vunpack.c.l.b16 %v3878
        %v6718 = vunpack.c.h.b16 %v3878
        %v6719 = vunpack.c.l.b16 %v3879
        %v6720 = vunpack.c.h.b16 %v3879
        %v6721 = vunpack.c.l.b16 %v3880
        %v6722 = vunpack.c.h.b16 %v3880
        %v6723 = vunpack.c.l.b16 %v3881
        %v6724 = vunpack.c.h.b16 %v3881
        %v6725 = vunpack.c.l.b16 %v3882
        %v6726 = vunpack.c.h.b16 %v3882
        %v6727 = vunpack.c.l.b16 %v3883
        %v6728 = vunpack.c.h.b16 %v3883
        %v6729 = vunpack.c.l.b16 %v3884
        %v6730 = vunpack.c.h.b16 %v3884
        %v6731 = vunpack.c.l.b16 %v3885
        %v6732 = vunpack.c.h.b16 %v3885
        %v6733 = vunpack.c.l.b16 %v3886
        %v6734 = vunpack.c.h.b16 %v3886
        %v6735 = vunpack.c.l.b16 %v3887
        %v6736 = vunpack.c.h.b16 %v3887
        %v6737 = vunpack.c.l.b16 %v3888
        %v6738 = vunpack.c.h.b16 %v3888
        %v6739 = vunpack.c.l.b16 %v3889
        %v6740 = vunpack.c.h.b16 %v3889
        %v6741 = vunpack.c.l.b16 %v3890
        %v6742 = vunpack.c.h.b16 %v3890
        %v6743 = vunpack.c.l.b16 %v3891
        %v6744 = vunpack.c.h.b16 %v3891
        %v6745 = vunpack.c.l.b16 %v3892
        %v6746 = vunpack.c.h.b16 %v3892
        %v6747 = vunpack.c.l.b16 %v3893
        %v6748 = vunpack.c.h.b16 %v3893
        %v6749 = vunpack.c.l.b16 %v3894
        %v6750 = vunpack.c.h.b16 %v3894
        %v6751 = vunpack.c.l.b16 %v3895
        %v6752 = vunpack.c.h.b16 %v3895
        %v6753 = vunpack.c.l.b16 %v3896
        %v6754 = vunpack.c.h.b16 %v3896
        %v6755 = vunpack.c.l.b16 %v3897
        %v6756 = vunpack.c.h.b16 %v3897
        %v6757 = vunpack.c.l.b16 %v3898
        %v6758 = vunpack.c.h.b16 %v3898
        %v6759 = vunpack.c.l.b16 %v3899
        %v6760 = vunpack.c.h.b16 %v3899
        %v6761 = vunpack.c.l.b16 %v3900
        %v6762 = vunpack.c.h.b16 %v3900
        %v6763 = vunpack.c.l.b16 %v3901
        %v6764 = vunpack.c.h.b16 %v3901
        %v6765 = vunpack.c.l.b16 %v3902
        %v6766 = vunpack.c.h.b16 %v3902
        %v6767 = vunpack.c.l.b16 %v3903
        %v6768 = vunpack.c.h.b16 %v3903
        %v6769 = vunpack.c.l.b16 %v3904
        %v6770 = vunpack.c.h.b16 %v3904
        %v6771 = vunpack.c.l.b16 %v3905
        %v6772 = vunpack.c.h.b16 %v3905
        %v6773 = vunpack.c.l.b16 %v3906
        %v6774 = vunpack.c.h.b16 %v3906
        %v6775 = vunpack.c.l.b16 %v3907
        %v6776 = vunpack.c.h.b16 %v3907
        %v6777 = vunpack.c.l.b16 %v3908
        %v6778 = vunpack.c.h.b16 %v3908
        %v6779 = vunpack.c.l.b16 %v3909
        %v6780 = vunpack.c.h.b16 %v3909
        %v6781 = vunpack.c.l.b16 %v3910
        %v6782 = vunpack.c.h.b16 %v3910
        %v6783 = vunpack.c.l.b16 %v3911
        %v6784 = vunpack.c.h.b16 %v3911
        %v6785 = vunpack.c.l.b16 %v3912
        %v6786 = vunpack.c.h.b16 %v3912
        %v6787 = vunpack.c.l.b16 %v3913
        %v6788 = vunpack.c.h.b16 %v3913
        %v6789 = vunpack.c.l.b16 %v3914
        %v6790 = vunpack.c.h.b16 %v3914
        %v6791 = vunpack.c.l.b16 %v3915
        %v6792 = vunpack.c.h.b16 %v3915
        %v6793 = vunpack.c.l.b16 %v3916
        %v6794 = vunpack.c.h.b16 %v3916
        %v6795 = vunpack.c.l.b16 %v3917
        %v6796 = vunpack.c.h.b16 %v3917
        %v6797 = vunpack.c.l.b16 %v3918
        %v6798 = vunpack.c.h.b16 %v3918
        %v6799 = vunpack.c.l.b16 %v3919
        %v6800 = vunpack.c.h.b16 %v3919
        %v6801 = vunpack.c.l.b16 %v3920
        %v6802 = vunpack.c.h.b16 %v3920
        %v6803 = vunpack.c.l.b16 %v3921
        %v6804 = vunpack.c.h.b16 %v3921
        %v6805 = vunpack.c.l.b16 %v3922
        %v6806 = vunpack.c.h.b16 %v3922
        %v6807 = vunpack.c.l.b16 %v3923
        %v6808 = vunpack.c.h.b16 %v3923
        %v6809 = vunpack.c.l.b16 %v3924
        %v6810 = vunpack.c.h.b16 %v3924
        %v6811 = vunpack.c.l.b16 %v3925
        %v6812 = vunpack.c.h.b16 %v3925
        %v6813 = vunpack.c.l.b16 %v3926
        %v6814 = vunpack.c.h.b16 %v3926
        %v6815 = vunpack.c.l.b16 %v3927
        %v6816 = vunpack.c.h.b16 %v3927
        %v6817 = vunpack.c.l.b16 %v3928
        %v6818 = vunpack.c.h.b16 %v3928
        %v6819 = vunpack.c.l.b16 %v3929
        %v6820 = vunpack.c.h.b16 %v3929
        %v6821 = vunpack.c.l.b16 %v3930
        %v6822 = vunpack.c.h.b16 %v3930
        %v6823 = vunpack.c.l.b16 %v3931
        %v6824 = vunpack.c.h.b16 %v3931
        %v6825 = vunpack.c.l.b16 %v3932
        %v6826 = vunpack.c.h.b16 %v3932
        %v6827 = vunpack.c.l.b16 %v3933
        %v6828 = vunpack.c.h.b16 %v3933
        %v6829 = vunpack.c.l.b16 %v3934
        %v6830 = vunpack.c.h.b16 %v3934
        %v6831 = vunpack.c.l.b16 %v3935
        %v6832 = vunpack.c.h.b16 %v3935
        %v6833 = vunpack.c.l.b16 %v3936
        %v6834 = vunpack.c.h.b16 %v3936
        %v6835 = vunpack.c.l.b16 %v3937
        %v6836 = vunpack.c.h.b16 %v3937
        %v6837 = vunpack.c.l.b16 %v3938
        %v6838 = vunpack.c.h.b16 %v3938
        %v6839 = vunpack.c.l.b16 %v3939
        %v6840 = vunpack.c.h.b16 %v3939
        %v6841 = vunpack.c.l.b16 %v3940
        %v6842 = vunpack.c.h.b16 %v3940
        %v6843 = vunpack.c.l.b16 %v3941
        %v6844 = vunpack.c.h.b16 %v3941
        %v6845 = vunpack.c.l.b16 %v3942
        %v6846 = vunpack.c.h.b16 %v3942
        %v6847 = vunpack.c.l.b16 %v3943
        %v6848 = vunpack.c.h.b16 %v3943
        %v6849 = vunpack.c.l.b16 %v3944
        %v6850 = vunpack.c.h.b16 %v3944
        %v6851 = vunpack.c.l.b16 %v3945
        %v6852 = vunpack.c.h.b16 %v3945
        %v6853 = vunpack.c.l.b16 %v3946
        %v6854 = vunpack.c.h.b16 %v3946
        %v6855 = vunpack.c.l.b16 %v3947
        %v6856 = vunpack.c.h.b16 %v3947
        %v6857 = vunpack.c.l.b16 %v3948
        %v6858 = vunpack.c.h.b16 %v3948
        %v6859 = vunpack.c.l.b16 %v3949
        %v6860 = vunpack.c.h.b16 %v3949
        %v6861 = vunpack.c.l.b16 %v3950
        %v6862 = vunpack.c.h.b16 %v3950
        %v6863 = vunpack.c.l.b16 %v3951
        %v6864 = vunpack.c.h.b16 %v3951
        %v6865 = vunpack.c.l.b16 %v3952
        %v6866 = vunpack.c.h.b16 %v3952
        %v6867 = vunpack.c.l.b16 %v3953
        %v6868 = vunpack.c.h.b16 %v3953
        %v6869 = vunpack.c.l.b16 %v3954
        %v6870 = vunpack.c.h.b16 %v3954
        %v6871 = vunpack.c.l.b16 %v3955
        %v6872 = vunpack.c.h.b16 %v3955
        %v6873 = vunpack.c.l.b16 %v3956
        %v6874 = vunpack.c.h.b16 %v3956
        %v6875 = vunpack.c.l.b16 %v3957
        %v6876 = vunpack.c.h.b16 %v3957
        %v6877 = vunpack.c.l.b16 %v3958
        %v6878 = vunpack.c.h.b16 %v3958
        %v6879 = vunpack.c.l.b16 %v3959
        %v6880 = vunpack.c.h.b16 %v3959
        %v6881 = vunpack.c.l.b16 %v3960
        %v6882 = vunpack.c.h.b16 %v3960
        %v6883 = vunpack.c.l.b16 %v3961
        %v6884 = vunpack.c.h.b16 %v3961
        %v6885 = vunpack.c.l.b16 %v3962
        %v6886 = vunpack.c.h.b16 %v3962
        %v6887 = vunpack.c.l.b16 %v3963
        %v6888 = vunpack.c.h.b16 %v3963
        %v6889 = vunpack.c.l.b16 %v3964
        %v6890 = vunpack.c.h.b16 %v3964
        %v6891 = vunpack.c.l.b16 %v3965
        %v6892 = vunpack.c.h.b16 %v3965
        %v6893 = vunpack.c.l.b16 %v3966
        %v6894 = vunpack.c.h.b16 %v3966
        %v6895 = vunpack.c.l.b16 %v3967
        %v6896 = vunpack.c.h.b16 %v3967
        %v6897 = vunpack.c.l.b16 %v3968
        %v6898 = vunpack.c.h.b16 %v3968
        %v6899 = vunpack.c.l.b16 %v3969
        %v6900 = vunpack.c.h.b16 %v3969
        %v6901 = vunpack.c.l.b16 %v3970
        %v6902 = vunpack.c.h.b16 %v3970
        %v6903 = vunpack.c.l.b16 %v3971
        %v6904 = vunpack.c.h.b16 %v3971
        %v6905 = vunpack.c.l.b16 %v3972
        %v6906 = vunpack.c.h.b16 %v3972
        %v6907 = vunpack.c.l.b16 %v3973
        %v6908 = vunpack.c.h.b16 %v3973
        %v6909 = vunpack.c.l.b16 %v3974
        %v6910 = vunpack.c.h.b16 %v3974
        %v6911 = vunpack.c.l.b16 %v3975
        %v6912 = vunpack.c.h.b16 %v3975
        %v6913 = vunpack.c.l.b16 %v3976
        %v6914 = vunpack.c.h.b16 %v3976
        %v6915 = vunpack.c.l.b16 %v3977
        %v6916 = vunpack.c.h.b16 %v3977
        %v6917 = vunpack.c.l.b16 %v3978
        %v6918 = vunpack.c.h.b16 %v3978
        %v6919 = vunpack.c.l.b16 %v3979
        %v6920 = vunpack.c.h.b16 %v3979
        %v6921 = vunpack.c.l.b16 %v3980
        %v6922 = vunpack.c.h.b16 %v3980
        %v6923 = vunpack.c.l.b16 %v3981
        %v6924 = vunpack.c.h.b16 %v3981
        %v6925 = vunpack.c.l.b16 %v3982
        %v6926 = vunpack.c.h.b16 %v3982
        %v6927 = vunpack.c.l.b16 %v3983
        %v6928 = vunpack.c.h.b16 %v3983
        %v6929 = vunpack.c.l.b16 %v3984
        %v6930 = vunpack.c.h.b16 %v3984
        %v6931 = vunpack.c.l.b16 %v3985
        %v6932 = vunpack.c.h.b16 %v3985
        %v6933 = vunpack.c.l.b16 %v3986
        %v6934 = vunpack.c.h.b16 %v3986
        %v6935 = vunpack.c.l.b16 %v3987
        %v6936 = vunpack.c.h.b16 %v3987
        %v6937 = vunpack.c.l.b16 %v3988
        %v6938 = vunpack.c.h.b16 %v3988
        %v6939 = vunpack.c.l.b16 %v3989
        %v6940 = vunpack.c.h.b16 %v3989
        %v6941 = vunpack.c.l.b16 %v3990
        %v6942 = vunpack.c.h.b16 %v3990
        %v6943 = vunpack.c.l.b16 %v3991
        %v6944 = vunpack.c.h.b16 %v3991
        %v6945 = vunpack.c.l.b16 %v3992
        %v6946 = vunpack.c.h.b16 %v3992
        %v6947 = vunpack.c.l.b16 %v3993
        %v6948 = vunpack.c.h.b16 %v3993
        %v6949 = vunpack.c.l.b16 %v3994
        %v6950 = vunpack.c.h.b16 %v3994
        %v6951 = vunpack.c.l.b16 %v3995
        %v6952 = vunpack.c.h.b16 %v3995
        %v6953 = vunpack.c.l.b16 %v3996
        %v6954 = vunpack.c.h.b16 %v3996
        %v6955 = vunpack.c.l.b16 %v3997
        %v6956 = vunpack.c.h.b16 %v3997
        %v6957 = vunpack.c.l.b16 %v3998
        %v6958 = vunpack.c.h.b16 %v3998
        %v6959 = vunpack.c.l.b16 %v3999
        %v6960 = vunpack.c.h.b16 %v3999
        %v6961 = vunpack.c.l.b16 %v4000
        %v6962 = vunpack.c.h.b16 %v4000
        %v6963 = vunpack.c.l.b16 %v4001
        %v6964 = vunpack.c.h.b16 %v4001
        %v6965 = vunpack.c.l.b16 %v4002
        %v6966 = vunpack.c.h.b16 %v4002
        %v6967 = vunpack.c.l.b16 %v4003
        %v6968 = vunpack.c.h.b16 %v4003
        %v6969 = vunpack.c.l.b16 %v4004
        %v6970 = vunpack.c.h.b16 %v4004
        %v6971 = vunpack.c.l.b16 %v4005
        %v6972 = vunpack.c.h.b16 %v4005
        %v6973 = vunpack.c.l.b16 %v4006
        %v6974 = vunpack.c.h.b16 %v4006
        %v6975 = vunpack.c.l.b16 %v4007
        %v6976 = vunpack.c.h.b16 %v4007
        %v6977 = vunpack.c.l.b16 %v4008
        %v6978 = vunpack.c.h.b16 %v4008
        %v6979 = vunpack.c.l.b16 %v4009
        %v6980 = vunpack.c.h.b16 %v4009
        %v6981 = vunpack.c.l.b16 %v4010
        %v6982 = vunpack.c.h.b16 %v4010
        %v6983 = vunpack.c.l.b16 %v4011
        %v6984 = vunpack.c.h.b16 %v4011
        %v6985 = vunpack.c.l.b16 %v4012
        %v6986 = vunpack.c.h.b16 %v4012
        %v6987 = vunpack.c.l.b16 %v4013
        %v6988 = vunpack.c.h.b16 %v4013
        %v6989 = vunpack.c.l.b16 %v4014
        %v6990 = vunpack.c.h.b16 %v4014
        %v6991 = vunpack.c.l.b16 %v4015
        %v6992 = vunpack.c.h.b16 %v4015
        %v6993 = vunpack.c.l.b16 %v4016
        %v6994 = vunpack.c.h.b16 %v4016
        %v6995 = vunpack.c.l.b16 %v4017
        %v6996 = vunpack.c.h.b16 %v4017
        %v6997 = vunpack.c.l.b16 %v4018
        %v6998 = vunpack.c.h.b16 %v4018
        %v6999 = vunpack.c.l.b16 %v4019
        %v7000 = vunpack.c.h.b16 %v4019
        %v7001 = vunpack.c.l.b16 %v4020
        %v7002 = vunpack.c.h.b16 %v4020
        %v7003 = vunpack.c.l.b16 %v4021
        %v7004 = vunpack.c.h.b16 %v4021
        %v7005 = vunpack.c.l.b16 %v4022
        %v7006 = vunpack.c.h.b16 %v4022
        %v7007 = vunpack.c.l.b16 %v4023
        %v7008 = vunpack.c.h.b16 %v4023
        %v7009 = vunpack.c.l.b16 %v4024
        %v7010 = vunpack.c.h.b16 %v4024
        %v7011 = vunpack.c.l.b16 %v4025
        %v7012 = vunpack.c.h.b16 %v4025
        %v7013 = vunpack.c.l.b16 %v4026
        %v7014 = vunpack.c.h.b16 %v4026
        %v7015 = vunpack.c.l.b16 %v4027
        %v7016 = vunpack.c.h.b16 %v4027
        %v7017 = vunpack.c.l.b16 %v4028
        %v7018 = vunpack.c.h.b16 %v4028
        %v7019 = vunpack.c.l.b16 %v4029
        %v7020 = vunpack.c.h.b16 %v4029
        %v7021 = vunpack.c.l.b16 %v4030
        %v7022 = vunpack.c.h.b16 %v4030
        %v7023 = vunpack.c.l.b16 %v4031
        %v7024 = vunpack.c.h.b16 %v4031
        %v7025 = vunpack.c.l.b16 %v4032
        %v7026 = vunpack.c.h.b16 %v4032
        %v7027 = vunpack.c.l.b16 %v4033
        %v7028 = vunpack.c.h.b16 %v4033
        %v7029 = vunpack.c.l.b16 %v4034
        %v7030 = vunpack.c.h.b16 %v4034
        %v7031 = vunpack.c.l.b16 %v4035
        %v7032 = vunpack.c.h.b16 %v4035
        %v7033 = vunpack.c.l.b16 %v4036
        %v7034 = vunpack.c.h.b16 %v4036
        %v7035 = vunpack.c.l.b16 %v4037
        %v7036 = vunpack.c.h.b16 %v4037
        %v7037 = vunpack.c.l.b16 %v4038
        %v7038 = vunpack.c.h.b16 %v4038
        %v7039 = vunpack.c.l.b16 %v4039
        %v7040 = vunpack.c.h.b16 %v4039
        %v7041 = vunpack.c.l.b16 %v4040
        %v7042 = vunpack.c.h.b16 %v4040
        %v7043 = vunpack.c.l.b16 %v4041
        %v7044 = vunpack.c.h.b16 %v4041
        %v7045 = vunpack.c.l.b16 %v4042
        %v7046 = vunpack.c.h.b16 %v4042
        %v7047 = vunpack.c.l.b16 %v4043
        %v7048 = vunpack.c.h.b16 %v4043
        %v7049 = vunpack.c.l.b16 %v4044
        %v7050 = vunpack.c.h.b16 %v4044
        %v7051 = vunpack.c.l.b16 %v4045
        %v7052 = vunpack.c.h.b16 %v4045
        %v7053 = vunpack.c.l.b16 %v4046
        %v7054 = vunpack.c.h.b16 %v4046
        %v7055 = vunpack.c.l.b16 %v4047
        %v7056 = vunpack.c.h.b16 %v4047
        %v7057 = vunpack.c.l.b16 %v4048
        %v7058 = vunpack.c.h.b16 %v4048
        %v7059 = vunpack.c.l.b16 %v4049
        %v7060 = vunpack.c.h.b16 %v4049
        %v7061 = vunpack.c.l.b16 %v4050
        %v7062 = vunpack.c.h.b16 %v4050
        %v7063 = vunpack.c.l.b16 %v4051
        %v7064 = vunpack.c.h.b16 %v4051
        %v7065 = vunpack.c.l.b16 %v4052
        %v7066 = vunpack.c.h.b16 %v4052
        %v7067 = vunpack.c.l.b16 %v4053
        %v7068 = vunpack.c.h.b16 %v4053
        %v7069 = vunpack.c.l.b16 %v4054
        %v7070 = vunpack.c.h.b16 %v4054
        %v7071 = vunpack.c.l.b16 %v4055
        %v7072 = vunpack.c.h.b16 %v4055
        %v7073 = vunpack.c.l.b16 %v4056
        %v7074 = vunpack.c.h.b16 %v4056
        %v7075 = vunpack.c.l.b16 %v4057
        %v7076 = vunpack.c.h.b16 %v4057
        %v7077 = vunpack.c.l.b16 %v4058
        %v7078 = vunpack.c.h.b16 %v4058
        %v7079 = vunpack.c.l.b16 %v4059
        %v7080 = vunpack.c.h.b16 %v4059
        %v7081 = vunpack.c.l.b16 %v4060
        %v7082 = vunpack.c.h.b16 %v4060
        %v7083 = vunpack.c.l.b16 %v4061
        %v7084 = vunpack.c.h.b16 %v4061
        %v7085 = vunpack.c.l.b16 %v4062
        %v7086 = vunpack.c.h.b16 %v4062
        %v7087 = vunpack.c.l.b16 %v4063
        %v7088 = vunpack.c.h.b16 %v4063
        %v7089 = vunpack.c.l.b16 %v4064
        %v7090 = vunpack.c.h.b16 %v4064
        %v7091 = vunpack.c.l.b16 %v4065
        %v7092 = vunpack.c.h.b16 %v4065
        %v7093 = vunpack.c.l.b16 %v4066
        %v7094 = vunpack.c.h.b16 %v4066
        %v7095 = vunpack.c.l.b16 %v4067
        %v7096 = vunpack.c.h.b16 %v4067
        %v7097 = vunpack.c.l.b16 %v4068
        %v7098 = vunpack.c.h.b16 %v4068
        %v7099 = vunpack.c.l.b16 %v4069
        %v7100 = vunpack.c.h.b16 %v4069
        %v7101 = vunpack.c.l.b16 %v4070
        %v7102 = vunpack.c.h.b16 %v4070
        %v7103 = vunpack.c.l.b16 %v4071
        %v7104 = vunpack.c.h.b16 %v4071
        %v7105 = vunpack.c.l.b16 %v4072
        %v7106 = vunpack.c.h.b16 %v4072
        %v7107 = vunpack.c.l.b16 %v4073
        %v7108 = vunpack.c.h.b16 %v4073
        %v7109 = vunpack.c.l.b16 %v4074
        %v7110 = vunpack.c.h.b16 %v4074
        %v7111 = vunpack.c.l.b16 %v4075
        %v7112 = vunpack.c.h.b16 %v4075
        %v7113 = vunpack.c.l.b16 %v4076
        %v7114 = vunpack.c.h.b16 %v4076
        %v7115 = vunpack.c.l.b16 %v4077
        %v7116 = vunpack.c.h.b16 %v4077
        %v7117 = vunpack.c.l.b16 %v4078
        %v7118 = vunpack.c.h.b16 %v4078
        %v7119 = vunpack.c.l.b16 %v4079
        %v7120 = vunpack.c.h.b16 %v4079
        %v7121 = vunpack.c.l.b16 %v4080
        %v7122 = vunpack.c.h.b16 %v4080
        %v7123 = vunpack.c.l.b16 %v4081
        %v7124 = vunpack.c.h.b16 %v4081
        %v7125 = vunpack.c.l.b16 %v4082
        %v7126 = vunpack.c.h.b16 %v4082
        %v7127 = vunpack.c.l.b16 %v4083
        %v7128 = vunpack.c.h.b16 %v4083
        %v7129 = vunpack.c.l.b16 %v4084
        %v7130 = vunpack.c.h.b16 %v4084
        %v7131 = vunpack.c.l.b16 %v4085
        %v7132 = vunpack.c.h.b16 %v4085
        %v7133 = vunpack.c.l.b16 %v4086
        %v7134 = vunpack.c.h.b16 %v4086
        %v7135 = vunpack.c.l.b16 %v4087
        %v7136 = vunpack.c.h.b16 %v4087
        %v7137 = vunpack.c.l.b16 %v4088
        %v7138 = vunpack.c.h.b16 %v4088
        %v7139 = vunpack.c.l.b16 %v4089
        %v7140 = vunpack.c.h.b16 %v4089
        %v7141 = vunpack.c.l.b16 %v4090
        %v7142 = vunpack.c.h.b16 %v4090
        %v7143 = vunpack.c.l.b16 %v4091
        %v7144 = vunpack.c.h.b16 %v4091
        %v7145 = vunpack.c.l.b16 %v4092
        %v7146 = vunpack.c.h.b16 %v4092
        %v7147 = vunpack.c.l.b16 %v4093
        %v7148 = vunpack.c.h.b16 %v4093
        %v7149 = vunpack.c.l.b16 %v4094
        %v7150 = vunpack.c.h.b16 %v4094
        %v7151 = vunpack.c.l.b16 %v4095
        %v7152 = vunpack.c.h.b16 %v4095
        %v7153 = vunpack.c.l.b16 %v4096
        %v7154 = vunpack.c.h.b16 %v4096
        %v7155 = vunpack.c.l.b16 %v4097
        %v7156 = vunpack.c.h.b16 %v4097
        %v7157 = vunpack.c.l.b16 %v4098
        %v7158 = vunpack.c.h.b16 %v4098
        %v7159 = vunpack.c.l.b16 %v4099
        %v7160 = vunpack.c.h.b16 %v4099
        %v7161 = vunpack.c.l.b16 %v4100
        %v7162 = vunpack.c.h.b16 %v4100
        %v7163 = vunpack.c.l.b16 %v4101
        %v7164 = vunpack.c.h.b16 %v4101
        %v7165 = vunpack.c.l.b16 %v4102
        %v7166 = vunpack.c.h.b16 %v4102
        %v7167 = vunpack.c.l.b16 %v4103
        %v7168 = vunpack.c.h.b16 %v4103
        %v7169 = vunpack.c.l.b16 %v4104
        %v7170 = vunpack.c.h.b16 %v4104
        %v7171 = vunpack.c.l.b16 %v4105
        %v7172 = vunpack.c.h.b16 %v4105
        %v7173 = vunpack.c.l.b16 %v4106
        %v7174 = vunpack.c.h.b16 %v4106
        %v7175 = vunpack.c.l.b16 %v4107
        %v7176 = vunpack.c.h.b16 %v4107
        %v7177 = vunpack.c.l.b16 %v4108
        %v7178 = vunpack.c.h.b16 %v4108
        %v7179 = vunpack.c.l.b16 %v4109
        %v7180 = vunpack.c.h.b16 %v4109
        %v7181 = vunpack.c.l.b16 %v4110
        %v7182 = vunpack.c.h.b16 %v4110
        %v7183 = vpack.c.b16 %v5143, %v5135
        %v7184 = vpack.c.b16 %v5144, %v5136
        %v7185 = vpack.c.b16 %v5145, %v5137
        %v7186 = vpack.c.b16 %v5146, %v5138
        %v7187 = vpack.c.b16 %v5147, %v5139
        %v7188 = vpack.c.b16 %v5148, %v5140
        %v7189 = vpack.c.b16 %v5149, %v5141
        %v7190 = vpack.c.b16 %v5150, %v5142
        %v7191 = vpack.c.b16 %v5159, %v5151
        %v7192 = vpack.c.b16 %v5160, %v5152
        %v7193 = vpack.c.b16 %v5161, %v5153
        %v7194 = vpack.c.b16 %v5162, %v5154
        %v7195 = vpack.c.b16 %v5163, %v5155
        %v7196 = vpack.c.b16 %v5164, %v5156
        %v7197 = vpack.c.b16 %v5165, %v5157
        %v7198 = vpack.c.b16 %v5166, %v5158
        %v7199 = vpack.c.b16 %v5175, %v5167
        %v7200 = vpack.c.b16 %v5176, %v5168
        %v7201 = vpack.c.b16 %v5177, %v5169
        %v7202 = vpack.c.b16 %v5178, %v5170
        %v7203 = vpack.c.b16 %v5179, %v5171
        %v7204 = vpack.c.b16 %v5180, %v5172
        %v7205 = vpack.c.b16 %v5181, %v5173
        %v7206 = vpack.c.b16 %v5182, %v5174
        %v7207 = vpack.c.b16 %v5191, %v5183
        %v7208 = vpack.c.b16 %v5192, %v5184
        %v7209 = vpack.c.b16 %v5193, %v5185
        %v7210 = vpack.c.b16 %v5194, %v5186
        %v7211 = vpack.c.b16 %v5195, %v5187
        %v7212 = vpack.c.b16 %v5196, %v5188
        %v7213 = vpack.c.b16 %v5197, %v5189
        %v7214 = vpack.c.b16 %v5198, %v5190
        %v7215 = vpack.c.b16 %v5207, %v5199
        %v7216 = vpack.c.b16 %v5208, %v5200
        %v7217 = vpack.c.b16 %v5209, %v5201
        %v7218 = vpack.c.b16 %v5210, %v5202
        %v7219 = vpack.c.b16 %v5211, %v5203
        %v7220 = vpack.c.b16 %v5212, %v5204
        %v7221 = vpack.c.b16 %v5213, %v5205
        %v7222 = vpack.c.b16 %v5214, %v5206
        %v7223 = vpack.c.b16 %v5223, %v5215
        %v7224 = vpack.c.b16 %v5224, %v5216
        %v7225 = vpack.c.b16 %v5225, %v5217
        %v7226 = vpack.c.b16 %v5226, %v5218
        %v7227 = vpack.c.b16 %v5227, %v5219
        %v7228 = vpack.c.b16 %v5228, %v5220
        %v7229 = vpack.c.b16 %v5229, %v5221
        %v7230 = vpack.c.b16 %v5230, %v5222
        %v7231 = vpack.c.b16 %v5239, %v5231
        %v7232 = vpack.c.b16 %v5240, %v5232
        %v7233 = vpack.c.b16 %v5241, %v5233
        %v7234 = vpack.c.b16 %v5242, %v5234
        %v7235 = vpack.c.b16 %v5243, %v5235
        %v7236 = vpack.c.b16 %v5244, %v5236
        %v7237 = vpack.c.b16 %v5245, %v5237
        %v7238 = vpack.c.b16 %v5246, %v5238
        %v7239 = vpack.c.b16 %v5255, %v5247
        %v7240 = vpack.c.b16 %v5256, %v5248
        %v7241 = vpack.c.b16 %v5257, %v5249
        %v7242 = vpack.c.b16 %v5258, %v5250
        %v7243 = vpack.c.b16 %v5259, %v5251
        %v7244 = vpack.c.b16 %v5260, %v5252
        %v7245 = vpack.c.b16 %v5261, %v5253
        %v7246 = vpack.c.b16 %v5262, %v5254
        %v7247 = vpack.c.b16 %v5271, %v5263
        %v7248 = vpack.c.b16 %v5272, %v5264
        %v7249 = vpack.c.b16 %v5273, %v5265
        %v7250 = vpack.c.b16 %v5274, %v5266
        %v7251 = vpack.c.b16 %v5275, %v5267
        %v7252 = vpack.c.b16 %v5276, %v5268
        %v7253 = vpack.c.b16 %v5277, %v5269
        %v7254 = vpack.c.b16 %v5278, %v5270
        %v7255 = vpack.c.b16 %v5287, %v5279
        %v7256 = vpack.c.b16 %v5288, %v5280
        %v7257 = vpack.c.b16 %v5289, %v5281
        %v7258 = vpack.c.b16 %v5290, %v5282
        %v7259 = vpack.c.b16 %v5291, %v5283
        %v7260 = vpack.c.b16 %v5292, %v5284
        %v7261 = vpack.c.b16 %v5293, %v5285
        %v7262 = vpack.c.b16 %v5294, %v5286
        %v7263 = vpack.c.b16 %v5303, %v5295
        %v7264 = vpack.c.b16 %v5304, %v5296
        %v7265 = vpack.c.b16 %v5305, %v5297
        %v7266 = vpack.c.b16 %v5306, %v5298
        %v7267 = vpack.c.b16 %v5307, %v5299
        %v7268 = vpack.c.b16 %v5308, %v5300
        %v7269 = vpack.c.b16 %v5309, %v5301
        %v7270 = vpack.c.b16 %v5310, %v5302
        %v7271 = vpack.c.b16 %v5319, %v5311
        %v7272 = vpack.c.b16 %v5320, %v5312
        %v7273 = vpack.c.b16 %v5321, %v5313
        %v7274 = vpack.c.b16 %v5322, %v5314
        %v7275 = vpack.c.b16 %v5323, %v5315
        %v7276 = vpack.c.b16 %v5324, %v5316
        %v7277 = vpack.c.b16 %v5325, %v5317
        %v7278 = vpack.c.b16 %v5326, %v5318
        %v7279 = vpack.c.b16 %v5335, %v5327
        %v7280 = vpack.c.b16 %v5336, %v5328
        %v7281 = vpack.c.b16 %v5337, %v5329
        %v7282 = vpack.c.b16 %v5338, %v5330
        %v7283 = vpack.c.b16 %v5339, %v5331
        %v7284 = vpack.c.b16 %v5340, %v5332
        %v7285 = vpack.c.b16 %v5341, %v5333
        %v7286 = vpack.c.b16 %v5342, %v5334
        %v7287 = vpack.c.b16 %v5351, %v5343
        %v7288 = vpack.c.b16 %v5352, %v5344
        %v7289 = vpack.c.b16 %v5353, %v5345
        %v7290 = vpack.c.b16 %v5354, %v5346
        %v7291 = vpack.c.b16 %v5355, %v5347
        %v7292 = vpack.c.b16 %v5356, %v5348
        %v7293 = vpack.c.b16 %v5357, %v5349
        %v7294 = vpack.c.b16 %v5358, %v5350
        %v7295 = vpack.c.b16 %v5367, %v5359
        %v7296 = vpack.c.b16 %v5368, %v5360
        %v7297 = vpack.c.b16 %v5369, %v5361
        %v7298 = vpack.c.b16 %v5370, %v5362
        %v7299 = vpack.c.b16 %v5371, %v5363
        %v7300 = vpack.c.b16 %v5372, %v5364
        %v7301 = vpack.c.b16 %v5373, %v5365
        %v7302 = vpack.c.b16 %v5374, %v5366
        %v7303 = vpack.c.b16 %v5383, %v5375
        %v7304 = vpack.c.b16 %v5384, %v5376
        %v7305 = vpack.c.b16 %v5385, %v5377
        %v7306 = vpack.c.b16 %v5386, %v5378
        %v7307 = vpack.c.b16 %v5387, %v5379
        %v7308 = vpack.c.b16 %v5388, %v5380
        %v7309 = vpack.c.b16 %v5389, %v5381
        %v7310 = vpack.c.b16 %v5390, %v5382
        %v7311 = vpack.c.b16 %v5399, %v5391
        %v7312 = vpack.c.b16 %v5400, %v5392
        %v7313 = vpack.c.b16 %v5401, %v5393
        %v7314 = vpack.c.b16 %v5402, %v5394
        %v7315 = vpack.c.b16 %v5403, %v5395
        %v7316 = vpack.c.b16 %v5404, %v5396
        %v7317 = vpack.c.b16 %v5405, %v5397
        %v7318 = vpack.c.b16 %v5406, %v5398
        %v7319 = vpack.c.b16 %v5415, %v5407
        %v7320 = vpack.c.b16 %v5416, %v5408
        %v7321 = vpack.c.b16 %v5417, %v5409
        %v7322 = vpack.c.b16 %v5418, %v5410
        %v7323 = vpack.c.b16 %v5419, %v5411
        %v7324 = vpack.c.b16 %v5420, %v5412
        %v7325 = vpack.c.b16 %v5421, %v5413
        %v7326 = vpack.c.b16 %v5422, %v5414
        %v7327 = vpack.c.b16 %v5431, %v5423
        %v7328 = vpack.c.b16 %v5432, %v5424
        %v7329 = vpack.c.b16 %v5433, %v5425
        %v7330 = vpack.c.b16 %v5434, %v5426
        %v7331 = vpack.c.b16 %v5435, %v5427
        %v7332 = vpack.c.b16 %v5436, %v5428
        %v7333 = vpack.c.b16 %v5437, %v5429
        %v7334 = vpack.c.b16 %v5438, %v5430
        %v7335 = vpack.c.b16 %v5447, %v5439
        %v7336 = vpack.c.b16 %v5448, %v5440
        %v7337 = vpack.c.b16 %v5449, %v5441
        %v7338 = vpack.c.b16 %v5450, %v5442
        %v7339 = vpack.c.b16 %v5451, %v5443
        %v7340 = vpack.c.b16 %v5452, %v5444
        %v7341 = vpack.c.b16 %v5453, %v5445
        %v7342 = vpack.c.b16 %v5454, %v5446
        %v7343 = vpack.c.b16 %v5463, %v5455
        %v7344 = vpack.c.b16 %v5464, %v5456
        %v7345 = vpack.c.b16 %v5465, %v5457
        %v7346 = vpack.c.b16 %v5466, %v5458
        %v7347 = vpack.c.b16 %v5467, %v5459
        %v7348 = vpack.c.b16 %v5468, %v5460
        %v7349 = vpack.c.b16 %v5469, %v5461
        %v7350 = vpack.c.b16 %v5470, %v5462
        %v7351 = vpack.c.b16 %v5479, %v5471
        %v7352 = vpack.c.b16 %v5480, %v5472
        %v7353 = vpack.c.b16 %v5481, %v5473
        %v7354 = vpack.c.b16 %v5482, %v5474
        %v7355 = vpack.c.b16 %v5483, %v5475
        %v7356 = vpack.c.b16 %v5484, %v5476
        %v7357 = vpack.c.b16 %v5485, %v5477
        %v7358 = vpack.c.b16 %v5486, %v5478
        %v7359 = vpack.c.b16 %v5495, %v5487
        %v7360 = vpack.c.b16 %v5496, %v5488
        %v7361 = vpack.c.b16 %v5497, %v5489
        %v7362 = vpack.c.b16 %v5498, %v5490
        %v7363 = vpack.c.b16 %v5499, %v5491
        %v7364 = vpack.c.b16 %v5500, %v5492
        %v7365 = vpack.c.b16 %v5501, %v5493
        %v7366 = vpack.c.b16 %v5502, %v5494
        %v7367 = vpack.c.b16 %v5511, %v5503
        %v7368 = vpack.c.b16 %v5512, %v5504
        %v7369 = vpack.c.b16 %v5513, %v5505
        %v7370 = vpack.c.b16 %v5514, %v5506
        %v7371 = vpack.c.b16 %v5515, %v5507
        %v7372 = vpack.c.b16 %v5516, %v5508
        %v7373 = vpack.c.b16 %v5517, %v5509
        %v7374 = vpack.c.b16 %v5518, %v5510
        %v7375 = vpack.c.b16 %v5527, %v5519
        %v7376 = vpack.c.b16 %v5528, %v5520
        %v7377 = vpack.c.b16 %v5529, %v5521
        %v7378 = vpack.c.b16 %v5530, %v5522
        %v7379 = vpack.c.b16 %v5531, %v5523
        %v7380 = vpack.c.b16 %v5532, %v5524
        %v7381 = vpack.c.b16 %v5533, %v5525
        %v7382 = vpack.c.b16 %v5534, %v5526
        %v7383 = vpack.c.b16 %v5543, %v5535
        %v7384 = vpack.c.b16 %v5544, %v5536
        %v7385 = vpack.c.b16 %v5545, %v5537
        %v7386 = vpack.c.b16 %v5546, %v5538
        %v7387 = vpack.c.b16 %v5547, %v5539
        %v7388 = vpack.c.b16 %v5548, %v5540
        %v7389 = vpack.c.b16 %v5549, %v5541
        %v7390 = vpack.c.b16 %v5550, %v5542
        %v7391 = vpack.c.b16 %v5559, %v5551
        %v7392 = vpack.c.b16 %v5560, %v5552
        %v7393 = vpack.c.b16 %v5561, %v5553
        %v7394 = vpack.c.b16 %v5562, %v5554
        %v7395 = vpack.c.b16 %v5563, %v5555
        %v7396 = vpack.c.b16 %v5564, %v5556
        %v7397 = vpack.c.b16 %v5565, %v5557
        %v7398 = vpack.c.b16 %v5566, %v5558
        %v7399 = vpack.c.b16 %v5575, %v5567
        %v7400 = vpack.c.b16 %v5576, %v5568
        %v7401 = vpack.c.b16 %v5577, %v5569
        %v7402 = vpack.c.b16 %v5578, %v5570
        %v7403 = vpack.c.b16 %v5579, %v5571
        %v7404 = vpack.c.b16 %v5580, %v5572
        %v7405 = vpack.c.b16 %v5581, %v5573
        %v7406 = vpack.c.b16 %v5582, %v5574
        %v7407 = vpack.c.b16 %v5591, %v5583
        %v7408 = vpack.c.b16 %v5592, %v5584
        %v7409 = vpack.c.b16 %v5593, %v5585
        %v7410 = vpack.c.b16 %v5594, %v5586
        %v7411 = vpack.c.b16 %v5595, %v5587
        %v7412 = vpack.c.b16 %v5596, %v5588
        %v7413 = vpack.c.b16 %v5597, %v5589
        %v7414 = vpack.c.b16 %v5598, %v5590
        %v7415 = vpack.c.b16 %v5607, %v5599
        %v7416 = vpack.c.b16 %v5608, %v5600
        %v7417 = vpack.c.b16 %v5609, %v5601
        %v7418 = vpack.c.b16 %v5610, %v5602
        %v7419 = vpack.c.b16 %v5611, %v5603
        %v7420 = vpack.c.b16 %v5612, %v5604
        %v7421 = vpack.c.b16 %v5613, %v5605
        %v7422 = vpack.c.b16 %v5614, %v5606
        %v7423 = vpack.c.b16 %v5623, %v5615
        %v7424 = vpack.c.b16 %v5624, %v5616
        %v7425 = vpack.c.b16 %v5625, %v5617
        %v7426 = vpack.c.b16 %v5626, %v5618
        %v7427 = vpack.c.b16 %v5627, %v5619
        %v7428 = vpack.c.b16 %v5628, %v5620
        %v7429 = vpack.c.b16 %v5629, %v5621
        %v7430 = vpack.c.b16 %v5630, %v5622
        %v7431 = vpack.c.b16 %v5639, %v5631
        %v7432 = vpack.c.b16 %v5640, %v5632
        %v7433 = vpack.c.b16 %v5641, %v5633
        %v7434 = vpack.c.b16 %v5642, %v5634
        %v7435 = vpack.c.b16 %v5643, %v5635
        %v7436 = vpack.c.b16 %v5644, %v5636
        %v7437 = vpack.c.b16 %v5645, %v5637
        %v7438 = vpack.c.b16 %v5646, %v5638
        %v7439 = vpack.c.b16 %v5655, %v5647
        %v7440 = vpack.c.b16 %v5656, %v5648
        %v7441 = vpack.c.b16 %v5657, %v5649
        %v7442 = vpack.c.b16 %v5658, %v5650
        %v7443 = vpack.c.b16 %v5659, %v5651
        %v7444 = vpack.c.b16 %v5660, %v5652
        %v7445 = vpack.c.b16 %v5661, %v5653
        %v7446 = vpack.c.b16 %v5662, %v5654
        %v7447 = vpack.c.b16 %v5671, %v5663
        %v7448 = vpack.c.b16 %v5672, %v5664
        %v7449 = vpack.c.b16 %v5673, %v5665
        %v7450 = vpack.c.b16 %v5674, %v5666
        %v7451 = vpack.c.b16 %v5675, %v5667
        %v7452 = vpack.c.b16 %v5676, %v5668
        %v7453 = vpack.c.b16 %v5677, %v5669
        %v7454 = vpack.c.b16 %v5678, %v5670
        %v7455 = vpack.c.b16 %v5687, %v5679
        %v7456 = vpack.c.b16 %v5688, %v5680
        %v7457 = vpack.c.b16 %v5689, %v5681
        %v7458 = vpack.c.b16 %v5690, %v5682
        %v7459 = vpack.c.b16 %v5691, %v5683
        %v7460 = vpack.c.b16 %v5692, %v5684
        %v7461 = vpack.c.b16 %v5693, %v5685
        %v7462 = vpack.c.b16 %v5694, %v5686
        %v7463 = vpack.c.b16 %v5703, %v5695
        %v7464 = vpack.c.b16 %v5704, %v5696
        %v7465 = vpack.c.b16 %v5705, %v5697
        %v7466 = vpack.c.b16 %v5706, %v5698
        %v7467 = vpack.c.b16 %v5707, %v5699
        %v7468 = vpack.c.b16 %v5708, %v5700
        %v7469 = vpack.c.b16 %v5709, %v5701
        %v7470 = vpack.c.b16 %v5710, %v5702
        %v7471 = vpack.c.b16 %v5719, %v5711
        %v7472 = vpack.c.b16 %v5720, %v5712
        %v7473 = vpack.c.b16 %v5721, %v5713
        %v7474 = vpack.c.b16 %v5722, %v5714
        %v7475 = vpack.c.b16 %v5723, %v5715
        %v7476 = vpack.c.b16 %v5724, %v5716
        %v7477 = vpack.c.b16 %v5725, %v5717
        %v7478 = vpack.c.b16 %v5726, %v5718
        %v7479 = vpack.c.b16 %v5735, %v5727
        %v7480 = vpack.c.b16 %v5736, %v5728
        %v7481 = vpack.c.b16 %v5737, %v5729
        %v7482 = vpack.c.b16 %v5738, %v5730
        %v7483 = vpack.c.b16 %v5739, %v5731
        %v7484 = vpack.c.b16 %v5740, %v5732
        %v7485 = vpack.c.b16 %v5741, %v5733
        %v7486 = vpack.c.b16 %v5742, %v5734
        %v7487 = vpack.c.b16 %v5751, %v5743
        %v7488 = vpack.c.b16 %v5752, %v5744
        %v7489 = vpack.c.b16 %v5753, %v5745
        %v7490 = vpack.c.b16 %v5754, %v5746
        %v7491 = vpack.c.b16 %v5755, %v5747
        %v7492 = vpack.c.b16 %v5756, %v5748
        %v7493 = vpack.c.b16 %v5757, %v5749
        %v7494 = vpack.c.b16 %v5758, %v5750
        %v7495 = vpack.c.b16 %v5767, %v5759
        %v7496 = vpack.c.b16 %v5768, %v5760
        %v7497 = vpack.c.b16 %v5769, %v5761
        %v7498 = vpack.c.b16 %v5770, %v5762
        %v7499 = vpack.c.b16 %v5771, %v5763
        %v7500 = vpack.c.b16 %v5772, %v5764
        %v7501 = vpack.c.b16 %v5773, %v5765
        %v7502 = vpack.c.b16 %v5774, %v5766
        %v7503 = vpack.c.b16 %v5783, %v5775
        %v7504 = vpack.c.b16 %v5784, %v5776
        %v7505 = vpack.c.b16 %v5785, %v5777
        %v7506 = vpack.c.b16 %v5786, %v5778
        %v7507 = vpack.c.b16 %v5787, %v5779
        %v7508 = vpack.c.b16 %v5788, %v5780
        %v7509 = vpack.c.b16 %v5789, %v5781
        %v7510 = vpack.c.b16 %v5790, %v5782
        %v7511 = vpack.c.b16 %v5799, %v5791
        %v7512 = vpack.c.b16 %v5800, %v5792
        %v7513 = vpack.c.b16 %v5801, %v5793
        %v7514 = vpack.c.b16 %v5802, %v5794
        %v7515 = vpack.c.b16 %v5803, %v5795
        %v7516 = vpack.c.b16 %v5804, %v5796
        %v7517 = vpack.c.b16 %v5805, %v5797
        %v7518 = vpack.c.b16 %v5806, %v5798
        %v7519 = vpack.c.b16 %v5815, %v5807
        %v7520 = vpack.c.b16 %v5816, %v5808
        %v7521 = vpack.c.b16 %v5817, %v5809
        %v7522 = vpack.c.b16 %v5818, %v5810
        %v7523 = vpack.c.b16 %v5819, %v5811
        %v7524 = vpack.c.b16 %v5820, %v5812
        %v7525 = vpack.c.b16 %v5821, %v5813
        %v7526 = vpack.c.b16 %v5822, %v5814
        %v7527 = vpack.c.b16 %v5831, %v5823
        %v7528 = vpack.c.b16 %v5832, %v5824
        %v7529 = vpack.c.b16 %v5833, %v5825
        %v7530 = vpack.c.b16 %v5834, %v5826
        %v7531 = vpack.c.b16 %v5835, %v5827
        %v7532 = vpack.c.b16 %v5836, %v5828
        %v7533 = vpack.c.b16 %v5837, %v5829
        %v7534 = vpack.c.b16 %v5838, %v5830
        %v7535 = vpack.c.b16 %v5847, %v5839
        %v7536 = vpack.c.b16 %v5848, %v5840
        %v7537 = vpack.c.b16 %v5849, %v5841
        %v7538 = vpack.c.b16 %v5850, %v5842
        %v7539 = vpack.c.b16 %v5851, %v5843
        %v7540 = vpack.c.b16 %v5852, %v5844
        %v7541 = vpack.c.b16 %v5853, %v5845
        %v7542 = vpack.c.b16 %v5854, %v5846
        %v7543 = vpack.c.b16 %v5863, %v5855
        %v7544 = vpack.c.b16 %v5864, %v5856
        %v7545 = vpack.c.b16 %v5865, %v5857
        %v7546 = vpack.c.b16 %v5866, %v5858
        %v7547 = vpack.c.b16 %v5867, %v5859
        %v7548 = vpack.c.b16 %v5868, %v5860
        %v7549 = vpack.c.b16 %v5869, %v5861
        %v7550 = vpack.c.b16 %v5870, %v5862
        %v7551 = vpack.c.b16 %v5879, %v5871
        %v7552 = vpack.c.b16 %v5880, %v5872
        %v7553 = vpack.c.b16 %v5881, %v5873
        %v7554 = vpack.c.b16 %v5882, %v5874
        %v7555 = vpack.c.b16 %v5883, %v5875
        %v7556 = vpack.c.b16 %v5884, %v5876
        %v7557 = vpack.c.b16 %v5885, %v5877
        %v7558 = vpack.c.b16 %v5886, %v5878
        %v7559 = vpack.c.b16 %v5895, %v5887
        %v7560 = vpack.c.b16 %v5896, %v5888
        %v7561 = vpack.c.b16 %v5897, %v5889
        %v7562 = vpack.c.b16 %v5898, %v5890
        %v7563 = vpack.c.b16 %v5899, %v5891
        %v7564 = vpack.c.b16 %v5900, %v5892
        %v7565 = vpack.c.b16 %v5901, %v5893
        %v7566 = vpack.c.b16 %v5902, %v5894
        %v7567 = vpack.c.b16 %v5911, %v5903
        %v7568 = vpack.c.b16 %v5912, %v5904
        %v7569 = vpack.c.b16 %v5913, %v5905
        %v7570 = vpack.c.b16 %v5914, %v5906
        %v7571 = vpack.c.b16 %v5915, %v5907
        %v7572 = vpack.c.b16 %v5916, %v5908
        %v7573 = vpack.c.b16 %v5917, %v5909
        %v7574 = vpack.c.b16 %v5918, %v5910
        %v7575 = vpack.c.b16 %v5927, %v5919
        %v7576 = vpack.c.b16 %v5928, %v5920
        %v7577 = vpack.c.b16 %v5929, %v5921
        %v7578 = vpack.c.b16 %v5930, %v5922
        %v7579 = vpack.c.b16 %v5931, %v5923
        %v7580 = vpack.c.b16 %v5932, %v5924
        %v7581 = vpack.c.b16 %v5933, %v5925
        %v7582 = vpack.c.b16 %v5934, %v5926
        %v7583 = vpack.c.b16 %v5943, %v5935
        %v7584 = vpack.c.b16 %v5944, %v5936
        %v7585 = vpack.c.b16 %v5945, %v5937
        %v7586 = vpack.c.b16 %v5946, %v5938
        %v7587 = vpack.c.b16 %v5947, %v5939
        %v7588 = vpack.c.b16 %v5948, %v5940
        %v7589 = vpack.c.b16 %v5949, %v5941
        %v7590 = vpack.c.b16 %v5950, %v5942
        %v7591 = vpack.c.b16 %v5959, %v5951
        %v7592 = vpack.c.b16 %v5960, %v5952
        %v7593 = vpack.c.b16 %v5961, %v5953
        %v7594 = vpack.c.b16 %v5962, %v5954
        %v7595 = vpack.c.b16 %v5963, %v5955
        %v7596 = vpack.c.b16 %v5964, %v5956
        %v7597 = vpack.c.b16 %v5965, %v5957
        %v7598 = vpack.c.b16 %v5966, %v5958
        %v7599 = vpack.c.b16 %v5975, %v5967
        %v7600 = vpack.c.b16 %v5976, %v5968
        %v7601 = vpack.c.b16 %v5977, %v5969
        %v7602 = vpack.c.b16 %v5978, %v5970
        %v7603 = vpack.c.b16 %v5979, %v5971
        %v7604 = vpack.c.b16 %v5980, %v5972
        %v7605 = vpack.c.b16 %v5981, %v5973
        %v7606 = vpack.c.b16 %v5982, %v5974
        %v7607 = vpack.c.b16 %v5991, %v5983
        %v7608 = vpack.c.b16 %v5992, %v5984
        %v7609 = vpack.c.b16 %v5993, %v5985
        %v7610 = vpack.c.b16 %v5994, %v5986
        %v7611 = vpack.c.b16 %v5995, %v5987
        %v7612 = vpack.c.b16 %v5996, %v5988
        %v7613 = vpack.c.b16 %v5997, %v5989
        %v7614 = vpack.c.b16 %v5998, %v5990
        %v7615 = vpack.c.b16 %v6007, %v5999
        %v7616 = vpack.c.b16 %v6008, %v6000
        %v7617 = vpack.c.b16 %v6009, %v6001
        %v7618 = vpack.c.b16 %v6010, %v6002
        %v7619 = vpack.c.b16 %v6011, %v6003
        %v7620 = vpack.c.b16 %v6012, %v6004
        %v7621 = vpack.c.b16 %v6013, %v6005
        %v7622 = vpack.c.b16 %v6014, %v6006
        %v7623 = vpack.c.b16 %v6023, %v6015
        %v7624 = vpack.c.b16 %v6024, %v6016
        %v7625 = vpack.c.b16 %v6025, %v6017
        %v7626 = vpack.c.b16 %v6026, %v6018
        %v7627 = vpack.c.b16 %v6027, %v6019
        %v7628 = vpack.c.b16 %v6028, %v6020
        %v7629 = vpack.c.b16 %v6029, %v6021
        %v7630 = vpack.c.b16 %v6030, %v6022
        %v7631 = vpack.c.b16 %v6039, %v6031
        %v7632 = vpack.c.b16 %v6040, %v6032
        %v7633 = vpack.c.b16 %v6041, %v6033
        %v7634 = vpack.c.b16 %v6042, %v6034
        %v7635 = vpack.c.b16 %v6043, %v6035
        %v7636 = vpack.c.b16 %v6044, %v6036
        %v7637 = vpack.c.b16 %v6045, %v6037
        %v7638 = vpack.c.b16 %v6046, %v6038
        %v7639 = vpack.c.b16 %v6055, %v6047
        %v7640 = vpack.c.b16 %v6056, %v6048
        %v7641 = vpack.c.b16 %v6057, %v6049
        %v7642 = vpack.c.b16 %v6058, %v6050
        %v7643 = vpack.c.b16 %v6059, %v6051
        %v7644 = vpack.c.b16 %v6060, %v6052
        %v7645 = vpack.c.b16 %v6061, %v6053
        %v7646 = vpack.c.b16 %v6062, %v6054
        %v7647 = vpack.c.b16 %v6071, %v6063
        %v7648 = vpack.c.b16 %v6072, %v6064
        %v7649 = vpack.c.b16 %v6073, %v6065
        %v7650 = vpack.c.b16 %v6074, %v6066
        %v7651 = vpack.c.b16 %v6075, %v6067
        %v7652 = vpack.c.b16 %v6076, %v6068
        %v7653 = vpack.c.b16 %v6077, %v6069
        %v7654 = vpack.c.b16 %v6078, %v6070
        %v7655 = vpack.c.b16 %v6087, %v6079
        %v7656 = vpack.c.b16 %v6088, %v6080
        %v7657 = vpack.c.b16 %v6089, %v6081
        %v7658 = vpack.c.b16 %v6090, %v6082
        %v7659 = vpack.c.b16 %v6091, %v6083
        %v7660 = vpack.c.b16 %v6092, %v6084
        %v7661 = vpack.c.b16 %v6093, %v6085
        %v7662 = vpack.c.b16 %v6094, %v6086
        %v7663 = vpack.c.b16 %v6103, %v6095
        %v7664 = vpack.c.b16 %v6104, %v6096
        %v7665 = vpack.c.b16 %v6105, %v6097
        %v7666 = vpack.c.b16 %v6106, %v6098
        %v7667 = vpack.c.b16 %v6107, %v6099
        %v7668 = vpack.c.b16 %v6108, %v6100
        %v7669 = vpack.c.b16 %v6109, %v6101
        %v7670 = vpack.c.b16 %v6110, %v6102
        %v7671 = vpack.c.b16 %v6119, %v6111
        %v7672 = vpack.c.b16 %v6120, %v6112
        %v7673 = vpack.c.b16 %v6121, %v6113
        %v7674 = vpack.c.b16 %v6122, %v6114
        %v7675 = vpack.c.b16 %v6123, %v6115
        %v7676 = vpack.c.b16 %v6124, %v6116
        %v7677 = vpack.c.b16 %v6125, %v6117
        %v7678 = vpack.c.b16 %v6126, %v6118
        %v7679 = vpack.c.b16 %v6135, %v6127
        %v7680 = vpack.c.b16 %v6136, %v6128
        %v7681 = vpack.c.b16 %v6137, %v6129
        %v7682 = vpack.c.b16 %v6138, %v6130
        %v7683 = vpack.c.b16 %v6139, %v6131
        %v7684 = vpack.c.b16 %v6140, %v6132
        %v7685 = vpack.c.b16 %v6141, %v6133
        %v7686 = vpack.c.b16 %v6142, %v6134
        %v7687 = vpack.c.b16 %v6151, %v6143
        %v7688 = vpack.c.b16 %v6152, %v6144
        %v7689 = vpack.c.b16 %v6153, %v6145
        %v7690 = vpack.c.b16 %v6154, %v6146
        %v7691 = vpack.c.b16 %v6155, %v6147
        %v7692 = vpack.c.b16 %v6156, %v6148
        %v7693 = vpack.c.b16 %v6157, %v6149
        %v7694 = vpack.c.b16 %v6158, %v6150
        %v7695 = vpack.c.b16 %v6167, %v6159
        %v7696 = vpack.c.b16 %v6168, %v6160
        %v7697 = vpack.c.b16 %v6169, %v6161
        %v7698 = vpack.c.b16 %v6170, %v6162
        %v7699 = vpack.c.b16 %v6171, %v6163
        %v7700 = vpack.c.b16 %v6172, %v6164
        %v7701 = vpack.c.b16 %v6173, %v6165
        %v7702 = vpack.c.b16 %v6174, %v6166
        %v7703 = vpack.c.b16 %v6183, %v6175
        %v7704 = vpack.c.b16 %v6184, %v6176
        %v7705 = vpack.c.b16 %v6185, %v6177
        %v7706 = vpack.c.b16 %v6186, %v6178
        %v7707 = vpack.c.b16 %v6187, %v6179
        %v7708 = vpack.c.b16 %v6188, %v6180
        %v7709 = vpack.c.b16 %v6189, %v6181
        %v7710 = vpack.c.b16 %v6190, %v6182
        %v7711 = vpack.c.b16 %v6199, %v6191
        %v7712 = vpack.c.b16 %v6200, %v6192
        %v7713 = vpack.c.b16 %v6201, %v6193
        %v7714 = vpack.c.b16 %v6202, %v6194
        %v7715 = vpack.c.b16 %v6203, %v6195
        %v7716 = vpack.c.b16 %v6204, %v6196
        %v7717 = vpack.c.b16 %v6205, %v6197
        %v7718 = vpack.c.b16 %v6206, %v6198
        %v7719 = vpack.c.b16 %v6215, %v6207
        %v7720 = vpack.c.b16 %v6216, %v6208
        %v7721 = vpack.c.b16 %v6217, %v6209
        %v7722 = vpack.c.b16 %v6218, %v6210
        %v7723 = vpack.c.b16 %v6219, %v6211
        %v7724 = vpack.c.b16 %v6220, %v6212
        %v7725 = vpack.c.b16 %v6221, %v6213
        %v7726 = vpack.c.b16 %v6222, %v6214
        %v7727 = vpack.c.b16 %v6231, %v6223
        %v7728 = vpack.c.b16 %v6232, %v6224
        %v7729 = vpack.c.b16 %v6233, %v6225
        %v7730 = vpack.c.b16 %v6234, %v6226
        %v7731 = vpack.c.b16 %v6235, %v6227
        %v7732 = vpack.c.b16 %v6236, %v6228
        %v7733 = vpack.c.b16 %v6237, %v6229
        %v7734 = vpack.c.b16 %v6238, %v6230
        %v7735 = vpack.c.b16 %v6247, %v6239
        %v7736 = vpack.c.b16 %v6248, %v6240
        %v7737 = vpack.c.b16 %v6249, %v6241
        %v7738 = vpack.c.b16 %v6250, %v6242
        %v7739 = vpack.c.b16 %v6251, %v6243
        %v7740 = vpack.c.b16 %v6252, %v6244
        %v7741 = vpack.c.b16 %v6253, %v6245
        %v7742 = vpack.c.b16 %v6254, %v6246
        %v7743 = vpack.c.b16 %v6263, %v6255
        %v7744 = vpack.c.b16 %v6264, %v6256
        %v7745 = vpack.c.b16 %v6265, %v6257
        %v7746 = vpack.c.b16 %v6266, %v6258
        %v7747 = vpack.c.b16 %v6267, %v6259
        %v7748 = vpack.c.b16 %v6268, %v6260
        %v7749 = vpack.c.b16 %v6269, %v6261
        %v7750 = vpack.c.b16 %v6270, %v6262
        %v7751 = vpack.c.b16 %v6279, %v6271
        %v7752 = vpack.c.b16 %v6280, %v6272
        %v7753 = vpack.c.b16 %v6281, %v6273
        %v7754 = vpack.c.b16 %v6282, %v6274
        %v7755 = vpack.c.b16 %v6283, %v6275
        %v7756 = vpack.c.b16 %v6284, %v6276
        %v7757 = vpack.c.b16 %v6285, %v6277
        %v7758 = vpack.c.b16 %v6286, %v6278
        %v7759 = vpack.c.b16 %v6295, %v6287
        %v7760 = vpack.c.b16 %v6296, %v6288
        %v7761 = vpack.c.b16 %v6297, %v6289
        %v7762 = vpack.c.b16 %v6298, %v6290
        %v7763 = vpack.c.b16 %v6299, %v6291
        %v7764 = vpack.c.b16 %v6300, %v6292
        %v7765 = vpack.c.b16 %v6301, %v6293
        %v7766 = vpack.c.b16 %v6302, %v6294
        %v7767 = vpack.c.b16 %v6311, %v6303
        %v7768 = vpack.c.b16 %v6312, %v6304
        %v7769 = vpack.c.b16 %v6313, %v6305
        %v7770 = vpack.c.b16 %v6314, %v6306
        %v7771 = vpack.c.b16 %v6315, %v6307
        %v7772 = vpack.c.b16 %v6316, %v6308
        %v7773 = vpack.c.b16 %v6317, %v6309
        %v7774 = vpack.c.b16 %v6318, %v6310
        %v7775 = vpack.c.b16 %v6327, %v6319
        %v7776 = vpack.c.b16 %v6328, %v6320
        %v7777 = vpack.c.b16 %v6329, %v6321
        %v7778 = vpack.c.b16 %v6330, %v6322
        %v7779 = vpack.c.b16 %v6331, %v6323
        %v7780 = vpack.c.b16 %v6332, %v6324
        %v7781 = vpack.c.b16 %v6333, %v6325
        %v7782 = vpack.c.b16 %v6334, %v6326
        %v7783 = vpack.c.b16 %v6343, %v6335
        %v7784 = vpack.c.b16 %v6344, %v6336
        %v7785 = vpack.c.b16 %v6345, %v6337
        %v7786 = vpack.c.b16 %v6346, %v6338
        %v7787 = vpack.c.b16 %v6347, %v6339
        %v7788 = vpack.c.b16 %v6348, %v6340
        %v7789 = vpack.c.b16 %v6349, %v6341
        %v7790 = vpack.c.b16 %v6350, %v6342
        %v7791 = vpack.c.b16 %v6359, %v6351
        %v7792 = vpack.c.b16 %v6360, %v6352
        %v7793 = vpack.c.b16 %v6361, %v6353
        %v7794 = vpack.c.b16 %v6362, %v6354
        %v7795 = vpack.c.b16 %v6363, %v6355
        %v7796 = vpack.c.b16 %v6364, %v6356
        %v7797 = vpack.c.b16 %v6365, %v6357
        %v7798 = vpack.c.b16 %v6366, %v6358
        %v7799 = vpack.c.b16 %v6375, %v6367
        %v7800 = vpack.c.b16 %v6376, %v6368
        %v7801 = vpack.c.b16 %v6377, %v6369
        %v7802 = vpack.c.b16 %v6378, %v6370
        %v7803 = vpack.c.b16 %v6379, %v6371
        %v7804 = vpack.c.b16 %v6380, %v6372
        %v7805 = vpack.c.b16 %v6381, %v6373
        %v7806 = vpack.c.b16 %v6382, %v6374
        %v7807 = vpack.c.b16 %v6391, %v6383
        %v7808 = vpack.c.b16 %v6392, %v6384
        %v7809 = vpack.c.b16 %v6393, %v6385
        %v7810 = vpack.c.b16 %v6394, %v6386
        %v7811 = vpack.c.b16 %v6395, %v6387
        %v7812 = vpack.c.b16 %v6396, %v6388
        %v7813 = vpack.c.b16 %v6397, %v6389
        %v7814 = vpack.c.b16 %v6398, %v6390
        %v7815 = vpack.c.b16 %v6407, %v6399
        %v7816 = vpack.c.b16 %v6408, %v6400
        %v7817 = vpack.c.b16 %v6409, %v6401
        %v7818 = vpack.c.b16 %v6410, %v6402
        %v7819 = vpack.c.b16 %v6411, %v6403
        %v7820 = vpack.c.b16 %v6412, %v6404
        %v7821 = vpack.c.b16 %v6413, %v6405
        %v7822 = vpack.c.b16 %v6414, %v6406
        %v7823 = vpack.c.b16 %v6423, %v6415
        %v7824 = vpack.c.b16 %v6424, %v6416
        %v7825 = vpack.c.b16 %v6425, %v6417
        %v7826 = vpack.c.b16 %v6426, %v6418
        %v7827 = vpack.c.b16 %v6427, %v6419
        %v7828 = vpack.c.b16 %v6428, %v6420
        %v7829 = vpack.c.b16 %v6429, %v6421
        %v7830 = vpack.c.b16 %v6430, %v6422
        %v7831 = vpack.c.b16 %v6439, %v6431
        %v7832 = vpack.c.b16 %v6440, %v6432
        %v7833 = vpack.c.b16 %v6441, %v6433
        %v7834 = vpack.c.b16 %v6442, %v6434
        %v7835 = vpack.c.b16 %v6443, %v6435
        %v7836 = vpack.c.b16 %v6444, %v6436
        %v7837 = vpack.c.b16 %v6445, %v6437
        %v7838 = vpack.c.b16 %v6446, %v6438
        %v7839 = vpack.c.b16 %v6455, %v6447
        %v7840 = vpack.c.b16 %v6456, %v6448
        %v7841 = vpack.c.b16 %v6457, %v6449
        %v7842 = vpack.c.b16 %v6458, %v6450
        %v7843 = vpack.c.b16 %v6459, %v6451
        %v7844 = vpack.c.b16 %v6460, %v6452
        %v7845 = vpack.c.b16 %v6461, %v6453
        %v7846 = vpack.c.b16 %v6462, %v6454
        %v7847 = vpack.c.b16 %v6471, %v6463
        %v7848 = vpack.c.b16 %v6472, %v6464
        %v7849 = vpack.c.b16 %v6473, %v6465
        %v7850 = vpack.c.b16 %v6474, %v6466
        %v7851 = vpack.c.b16 %v6475, %v6467
        %v7852 = vpack.c.b16 %v6476, %v6468
        %v7853 = vpack.c.b16 %v6477, %v6469
        %v7854 = vpack.c.b16 %v6478, %v6470
        %v7855 = vpack.c.b16 %v6487, %v6479
        %v7856 = vpack.c.b16 %v6488, %v6480
        %v7857 = vpack.c.b16 %v6489, %v6481
        %v7858 = vpack.c.b16 %v6490, %v6482
        %v7859 = vpack.c.b16 %v6491, %v6483
        %v7860 = vpack.c.b16 %v6492, %v6484
        %v7861 = vpack.c.b16 %v6493, %v6485
        %v7862 = vpack.c.b16 %v6494, %v6486
        %v7863 = vpack.c.b16 %v6503, %v6495
        %v7864 = vpack.c.b16 %v6504, %v6496
        %v7865 = vpack.c.b16 %v6505, %v6497
        %v7866 = vpack.c.b16 %v6506, %v6498
        %v7867 = vpack.c.b16 %v6507, %v6499
        %v7868 = vpack.c.b16 %v6508, %v6500
        %v7869 = vpack.c.b16 %v6509, %v6501
        %v7870 = vpack.c.b16 %v6510, %v6502
        %v7871 = vpack.c.b16 %v6519, %v6511
        %v7872 = vpack.c.b16 %v6520, %v6512
        %v7873 = vpack.c.b16 %v6521, %v6513
        %v7874 = vpack.c.b16 %v6522, %v6514
        %v7875 = vpack.c.b16 %v6523, %v6515
        %v7876 = vpack.c.b16 %v6524, %v6516
        %v7877 = vpack.c.b16 %v6525, %v6517
        %v7878 = vpack.c.b16 %v6526, %v6518
        %v7879 = vpack.c.b16 %v6535, %v6527
        %v7880 = vpack.c.b16 %v6536, %v6528
        %v7881 = vpack.c.b16 %v6537, %v6529
        %v7882 = vpack.c.b16 %v6538, %v6530
        %v7883 = vpack.c.b16 %v6539, %v6531
        %v7884 = vpack.c.b16 %v6540, %v6532
        %v7885 = vpack.c.b16 %v6541, %v6533
        %v7886 = vpack.c.b16 %v6542, %v6534
        %v7887 = vpack.c.b16 %v6551, %v6543
        %v7888 = vpack.c.b16 %v6552, %v6544
        %v7889 = vpack.c.b16 %v6553, %v6545
        %v7890 = vpack.c.b16 %v6554, %v6546
        %v7891 = vpack.c.b16 %v6555, %v6547
        %v7892 = vpack.c.b16 %v6556, %v6548
        %v7893 = vpack.c.b16 %v6557, %v6549
        %v7894 = vpack.c.b16 %v6558, %v6550
        %v7895 = vpack.c.b16 %v6567, %v6559
        %v7896 = vpack.c.b16 %v6568, %v6560
        %v7897 = vpack.c.b16 %v6569, %v6561
        %v7898 = vpack.c.b16 %v6570, %v6562
        %v7899 = vpack.c.b16 %v6571, %v6563
        %v7900 = vpack.c.b16 %v6572, %v6564
        %v7901 = vpack.c.b16 %v6573, %v6565
        %v7902 = vpack.c.b16 %v6574, %v6566
        %v7903 = vpack.c.b16 %v6583, %v6575
        %v7904 = vpack.c.b16 %v6584, %v6576
        %v7905 = vpack.c.b16 %v6585, %v6577
        %v7906 = vpack.c.b16 %v6586, %v6578
        %v7907 = vpack.c.b16 %v6587, %v6579
        %v7908 = vpack.c.b16 %v6588, %v6580
        %v7909 = vpack.c.b16 %v6589, %v6581
        %v7910 = vpack.c.b16 %v6590, %v6582
        %v7911 = vpack.c.b16 %v6599, %v6591
        %v7912 = vpack.c.b16 %v6600, %v6592
        %v7913 = vpack.c.b16 %v6601, %v6593
        %v7914 = vpack.c.b16 %v6602, %v6594
        %v7915 = vpack.c.b16 %v6603, %v6595
        %v7916 = vpack.c.b16 %v6604, %v6596
        %v7917 = vpack.c.b16 %v6605, %v6597
        %v7918 = vpack.c.b16 %v6606, %v6598
        %v7919 = vpack.c.b16 %v6615, %v6607
        %v7920 = vpack.c.b16 %v6616, %v6608
        %v7921 = vpack.c.b16 %v6617, %v6609
        %v7922 = vpack.c.b16 %v6618, %v6610
        %v7923 = vpack.c.b16 %v6619, %v6611
        %v7924 = vpack.c.b16 %v6620, %v6612
        %v7925 = vpack.c.b16 %v6621, %v6613
        %v7926 = vpack.c.b16 %v6622, %v6614
        %v7927 = vpack.c.b16 %v6631, %v6623
        %v7928 = vpack.c.b16 %v6632, %v6624
        %v7929 = vpack.c.b16 %v6633, %v6625
        %v7930 = vpack.c.b16 %v6634, %v6626
        %v7931 = vpack.c.b16 %v6635, %v6627
        %v7932 = vpack.c.b16 %v6636, %v6628
        %v7933 = vpack.c.b16 %v6637, %v6629
        %v7934 = vpack.c.b16 %v6638, %v6630
        %v7935 = vpack.c.b16 %v6647, %v6639
        %v7936 = vpack.c.b16 %v6648, %v6640
        %v7937 = vpack.c.b16 %v6649, %v6641
        %v7938 = vpack.c.b16 %v6650, %v6642
        %v7939 = vpack.c.b16 %v6651, %v6643
        %v7940 = vpack.c.b16 %v6652, %v6644
        %v7941 = vpack.c.b16 %v6653, %v6645
        %v7942 = vpack.c.b16 %v6654, %v6646
        %v7943 = vpack.c.b16 %v6663, %v6655
        %v7944 = vpack.c.b16 %v6664, %v6656
        %v7945 = vpack.c.b16 %v6665, %v6657
        %v7946 = vpack.c.b16 %v6666, %v6658
        %v7947 = vpack.c.b16 %v6667, %v6659
        %v7948 = vpack.c.b16 %v6668, %v6660
        %v7949 = vpack.c.b16 %v6669, %v6661
        %v7950 = vpack.c.b16 %v6670, %v6662
        %v7951 = vpack.c.b16 %v6679, %v6671
        %v7952 = vpack.c.b16 %v6680, %v6672
        %v7953 = vpack.c.b16 %v6681, %v6673
        %v7954 = vpack.c.b16 %v6682, %v6674
        %v7955 = vpack.c.b16 %v6683, %v6675
        %v7956 = vpack.c.b16 %v6684, %v6676
        %v7957 = vpack.c.b16 %v6685, %v6677
        %v7958 = vpack.c.b16 %v6686, %v6678
        %v7959 = vpack.c.b16 %v6695, %v6687
        %v7960 = vpack.c.b16 %v6696, %v6688
        %v7961 = vpack.c.b16 %v6697, %v6689
        %v7962 = vpack.c.b16 %v6698, %v6690
        %v7963 = vpack.c.b16 %v6699, %v6691
        %v7964 = vpack.c.b16 %v6700, %v6692
        %v7965 = vpack.c.b16 %v6701, %v6693
        %v7966 = vpack.c.b16 %v6702, %v6694
        %v7967 = vpack.c.b16 %v6711, %v6703
        %v7968 = vpack.c.b16 %v6712, %v6704
        %v7969 = vpack.c.b16 %v6713, %v6705
        %v7970 = vpack.c.b16 %v6714, %v6706
        %v7971 = vpack.c.b16 %v6715, %v6707
        %v7972 = vpack.c.b16 %v6716, %v6708
        %v7973 = vpack.c.b16 %v6717, %v6709
        %v7974 = vpack.c.b16 %v6718, %v6710
        %v7975 = vpack.c.b16 %v6727, %v6719
        %v7976 = vpack.c.b16 %v6728, %v6720
        %v7977 = vpack.c.b16 %v6729, %v6721
        %v7978 = vpack.c.b16 %v6730, %v6722
        %v7979 = vpack.c.b16 %v6731, %v6723
        %v7980 = vpack.c.b16 %v6732, %v6724
        %v7981 = vpack.c.b16 %v6733, %v6725
        %v7982 = vpack.c.b16 %v6734, %v6726
        %v7983 = vpack.c.b16 %v6743, %v6735
        %v7984 = vpack.c.b16 %v6744, %v6736
        %v7985 = vpack.c.b16 %v6745, %v6737
        %v7986 = vpack.c.b16 %v6746, %v6738
        %v7987 = vpack.c.b16 %v6747, %v6739
        %v7988 = vpack.c.b16 %v6748, %v6740
        %v7989 = vpack.c.b16 %v6749, %v6741
        %v7990 = vpack.c.b16 %v6750, %v6742
        %v7991 = vpack.c.b16 %v6759, %v6751
        %v7992 = vpack.c.b16 %v6760, %v6752
        %v7993 = vpack.c.b16 %v6761, %v6753
        %v7994 = vpack.c.b16 %v6762, %v6754
        %v7995 = vpack.c.b16 %v6763, %v6755
        %v7996 = vpack.c.b16 %v6764, %v6756
        %v7997 = vpack.c.b16 %v6765, %v6757
        %v7998 = vpack.c.b16 %v6766, %v6758
        %v7999 = vpack.c.b16 %v6775, %v6767
        %v8000 = vpack.c.b16 %v6776, %v6768
        %v8001 = vpack.c.b16 %v6777, %v6769
        %v8002 = vpack.c.b16 %v6778, %v6770
        %v8003 = vpack.c.b16 %v6779, %v6771
        %v8004 = vpack.c.b16 %v6780, %v6772
        %v8005 = vpack.c.b16 %v6781, %v6773
        %v8006 = vpack.c.b16 %v6782, %v6774
        %v8007 = vpack.c.b16 %v6791, %v6783
        %v8008 = vpack.c.b16 %v6792, %v6784
        %v8009 = vpack.c.b16 %v6793, %v6785
        %v8010 = vpack.c.b16 %v6794, %v6786
        %v8011 = vpack.c.b16 %v6795, %v6787
        %v8012 = vpack.c.b16 %v6796, %v6788
        %v8013 = vpack.c.b16 %v6797, %v6789
        %v8014 = vpack.c.b16 %v6798, %v6790
        %v8015 = vpack.c.b16 %v6807, %v6799
        %v8016 = vpack.c.b16 %v6808, %v6800
        %v8017 = vpack.c.b16 %v6809, %v6801
        %v8018 = vpack.c.b16 %v6810, %v6802
        %v8019 = vpack.c.b16 %v6811, %v6803
        %v8020 = vpack.c.b16 %v6812, %v6804
        %v8021 = vpack.c.b16 %v6813, %v6805
        %v8022 = vpack.c.b16 %v6814, %v6806
        %v8023 = vpack.c.b16 %v6823, %v6815
        %v8024 = vpack.c.b16 %v6824, %v6816
        %v8025 = vpack.c.b16 %v6825, %v6817
        %v8026 = vpack.c.b16 %v6826, %v6818
        %v8027 = vpack.c.b16 %v6827, %v6819
        %v8028 = vpack.c.b16 %v6828, %v6820
        %v8029 = vpack.c.b16 %v6829, %v6821
        %v8030 = vpack.c.b16 %v6830, %v6822
        %v8031 = vpack.c.b16 %v6839, %v6831
        %v8032 = vpack.c.b16 %v6840, %v6832
        %v8033 = vpack.c.b16 %v6841, %v6833
        %v8034 = vpack.c.b16 %v6842, %v6834
        %v8035 = vpack.c.b16 %v6843, %v6835
        %v8036 = vpack.c.b16 %v6844, %v6836
        %v8037 = vpack.c.b16 %v6845, %v6837
        %v8038 = vpack.c.b16 %v6846, %v6838
        %v8039 = vpack.c.b16 %v6855, %v6847
        %v8040 = vpack.c.b16 %v6856, %v6848
        %v8041 = vpack.c.b16 %v6857, %v6849
        %v8042 = vpack.c.b16 %v6858, %v6850
        %v8043 = vpack.c.b16 %v6859, %v6851
        %v8044 = vpack.c.b16 %v6860, %v6852
        %v8045 = vpack.c.b16 %v6861, %v6853
        %v8046 = vpack.c.b16 %v6862, %v6854
        %v8047 = vpack.c.b16 %v6871, %v6863
        %v8048 = vpack.c.b16 %v6872, %v6864
        %v8049 = vpack.c.b16 %v6873, %v6865
        %v8050 = vpack.c.b16 %v6874, %v6866
        %v8051 = vpack.c.b16 %v6875, %v6867
        %v8052 = vpack.c.b16 %v6876, %v6868
        %v8053 = vpack.c.b16 %v6877, %v6869
        %v8054 = vpack.c.b16 %v6878, %v6870
        %v8055 = vpack.c.b16 %v6887, %v6879
        %v8056 = vpack.c.b16 %v6888, %v6880
        %v8057 = vpack.c.b16 %v6889, %v6881
        %v8058 = vpack.c.b16 %v6890, %v6882
        %v8059 = vpack.c.b16 %v6891, %v6883
        %v8060 = vpack.c.b16 %v6892, %v6884
        %v8061 = vpack.c.b16 %v6893, %v6885
        %v8062 = vpack.c.b16 %v6894, %v6886
        %v8063 = vpack.c.b16 %v6903, %v6895
        %v8064 = vpack.c.b16 %v6904, %v6896
        %v8065 = vpack.c.b16 %v6905, %v6897
        %v8066 = vpack.c.b16 %v6906, %v6898
        %v8067 = vpack.c.b16 %v6907, %v6899
        %v8068 = vpack.c.b16 %v6908, %v6900
        %v8069 = vpack.c.b16 %v6909, %v6901
        %v8070 = vpack.c.b16 %v6910, %v6902
        %v8071 = vpack.c.b16 %v6919, %v6911
        %v8072 = vpack.c.b16 %v6920, %v6912
        %v8073 = vpack.c.b16 %v6921, %v6913
        %v8074 = vpack.c.b16 %v6922, %v6914
        %v8075 = vpack.c.b16 %v6923, %v6915
        %v8076 = vpack.c.b16 %v6924, %v6916
        %v8077 = vpack.c.b16 %v6925, %v6917
        %v8078 = vpack.c.b16 %v6926, %v6918
        %v8079 = vpack.c.b16 %v6935, %v6927
        %v8080 = vpack.c.b16 %v6936, %v6928
        %v8081 = vpack.c.b16 %v6937, %v6929
        %v8082 = vpack.c.b16 %v6938, %v6930
        %v8083 = vpack.c.b16 %v6939, %v6931
        %v8084 = vpack.c.b16 %v6940, %v6932
        %v8085 = vpack.c.b16 %v6941, %v6933
        %v8086 = vpack.c.b16 %v6942, %v6934
        %v8087 = vpack.c.b16 %v6951, %v6943
        %v8088 = vpack.c.b16 %v6952, %v6944
        %v8089 = vpack.c.b16 %v6953, %v6945
        %v8090 = vpack.c.b16 %v6954, %v6946
        %v8091 = vpack.c.b16 %v6955, %v6947
        %v8092 = vpack.c.b16 %v6956, %v6948
        %v8093 = vpack.c.b16 %v6957, %v6949
        %v8094 = vpack.c.b16 %v6958, %v6950
        %v8095 = vpack.c.b16 %v6967, %v6959
        %v8096 = vpack.c.b16 %v6968, %v6960
        %v8097 = vpack.c.b16 %v6969, %v6961
        %v8098 = vpack.c.b16 %v6970, %v6962
        %v8099 = vpack.c.b16 %v6971, %v6963
        %v8100 = vpack.c.b16 %v6972, %v6964
        %v8101 = vpack.c.b16 %v6973, %v6965
        %v8102 = vpack.c.b16 %v6974, %v6966
        %v8103 = vpack.c.b16 %v6983, %v6975
        %v8104 = vpack.c.b16 %v6984, %v6976
        %v8105 = vpack.c.b16 %v6985, %v6977
        %v8106 = vpack.c.b16 %v6986, %v6978
        %v8107 = vpack.c.b16 %v6987, %v6979
        %v8108 = vpack.c.b16 %v6988, %v6980
        %v8109 = vpack.c.b16 %v6989, %v6981
        %v8110 = vpack.c.b16 %v6990, %v6982
        %v8111 = vpack.c.b16 %v6999, %v6991
        %v8112 = vpack.c.b16 %v7000, %v6992
        %v8113 = vpack.c.b16 %v7001, %v6993
        %v8114 = vpack.c.b16 %v7002, %v6994
        %v8115 = vpack.c.b16 %v7003, %v6995
        %v8116 = vpack.c.b16 %v7004, %v6996
        %v8117 = vpack.c.b16 %v7005, %v6997
        %v8118 = vpack.c.b16 %v7006, %v6998
        %v8119 = vpack.c.b16 %v7015, %v7007
        %v8120 = vpack.c.b16 %v7016, %v7008
        %v8121 = vpack.c.b16 %v7017, %v7009
        %v8122 = vpack.c.b16 %v7018, %v7010
        %v8123 = vpack.c.b16 %v7019, %v7011
        %v8124 = vpack.c.b16 %v7020, %v7012
        %v8125 = vpack.c.b16 %v7021, %v7013
        %v8126 = vpack.c.b16 %v7022, %v7014
        %v8127 = vpack.c.b16 %v7031, %v7023
        %v8128 = vpack.c.b16 %v7032, %v7024
        %v8129 = vpack.c.b16 %v7033, %v7025
        %v8130 = vpack.c.b16 %v7034, %v7026
        %v8131 = vpack.c.b16 %v7035, %v7027
        %v8132 = vpack.c.b16 %v7036, %v7028
        %v8133 = vpack.c.b16 %v7037, %v7029
        %v8134 = vpack.c.b16 %v7038, %v7030
        %v8135 = vpack.c.b16 %v7047, %v7039
        %v8136 = vpack.c.b16 %v7048, %v7040
        %v8137 = vpack.c.b16 %v7049, %v7041
        %v8138 = vpack.c.b16 %v7050, %v7042
        %v8139 = vpack.c.b16 %v7051, %v7043
        %v8140 = vpack.c.b16 %v7052, %v7044
        %v8141 = vpack.c.b16 %v7053, %v7045
        %v8142 = vpack.c.b16 %v7054, %v7046
        %v8143 = vpack.c.b16 %v7063, %v7055
        %v8144 = vpack.c.b16 %v7064, %v7056
        %v8145 = vpack.c.b16 %v7065, %v7057
        %v8146 = vpack.c.b16 %v7066, %v7058
        %v8147 = vpack.c.b16 %v7067, %v7059
        %v8148 = vpack.c.b16 %v7068, %v7060
        %v8149 = vpack.c.b16 %v7069, %v7061
        %v8150 = vpack.c.b16 %v7070, %v7062
        %v8151 = vpack.c.b16 %v7079, %v7071
        %v8152 = vpack.c.b16 %v7080, %v7072
        %v8153 = vpack.c.b16 %v7081, %v7073
        %v8154 = vpack.c.b16 %v7082, %v7074
        %v8155 = vpack.c.b16 %v7083, %v7075
        %v8156 = vpack.c.b16 %v7084, %v7076
        %v8157 = vpack.c.b16 %v7085, %v7077
        %v8158 = vpack.c.b16 %v7086, %v7078
        %v8159 = vpack.c.b16 %v7095, %v7087
        %v8160 = vpack.c.b16 %v7096, %v7088
        %v8161 = vpack.c.b16 %v7097, %v7089
        %v8162 = vpack.c.b16 %v7098, %v7090
        %v8163 = vpack.c.b16 %v7099, %v7091
        %v8164 = vpack.c.b16 %v7100, %v7092
        %v8165 = vpack.c.b16 %v7101, %v7093
        %v8166 = vpack.c.b16 %v7102, %v7094
        %v8167 = vpack.c.b16 %v7111, %v7103
        %v8168 = vpack.c.b16 %v7112, %v7104
        %v8169 = vpack.c.b16 %v7113, %v7105
        %v8170 = vpack.c.b16 %v7114, %v7106
        %v8171 = vpack.c.b16 %v7115, %v7107
        %v8172 = vpack.c.b16 %v7116, %v7108
        %v8173 = vpack.c.b16 %v7117, %v7109
        %v8174 = vpack.c.b16 %v7118, %v7110
        %v8175 = vpack.c.b16 %v7127, %v7119
        %v8176 = vpack.c.b16 %v7128, %v7120
        %v8177 = vpack.c.b16 %v7129, %v7121
        %v8178 = vpack.c.b16 %v7130, %v7122
        %v8179 = vpack.c.b16 %v7131, %v7123
        %v8180 = vpack.c.b16 %v7132, %v7124
        %v8181 = vpack.c.b16 %v7133, %v7125
        %v8182 = vpack.c.b16 %v7134, %v7126
        %v8183 = vpack.c.b16 %v7143, %v7135
        %v8184 = vpack.c.b16 %v7144, %v7136
        %v8185 = vpack.c.b16 %v7145, %v7137
        %v8186 = vpack.c.b16 %v7146, %v7138
        %v8187 = vpack.c.b16 %v7147, %v7139
        %v8188 = vpack.c.b16 %v7148, %v7140
        %v8189 = vpack.c.b16 %v7149, %v7141
        %v8190 = vpack.c.b16 %v7150, %v7142
        %v8191 = vpack.c.b16 %v7159, %v7151
        %v8192 = vpack.c.b16 %v7160, %v7152
        %v8193 = vpack.c.b16 %v7161, %v7153
        %v8194 = vpack.c.b16 %v7162, %v7154
        %v8195 = vpack.c.b16 %v7163, %v7155
        %v8196 = vpack.c.b16 %v7164, %v7156
        %v8197 = vpack.c.b16 %v7165, %v7157
        %v8198 = vpack.c.b16 %v7166, %v7158
        %v8199 = vpack.c.b16 %v7175, %v7167
        %v8200 = vpack.c.b16 %v7176, %v7168
        %v8201 = vpack.c.b16 %v7177, %v7169
        %v8202 = vpack.c.b16 %v7178, %v7170
        %v8203 = vpack.c.b16 %v7179, %v7171
        %v8204 = vpack.c.b16 %v7180, %v7172
        %v8205 = vpack.c.b16 %v7181, %v7173
        %v8206 = vpack.c.b16 %v7182, %v7174
        %9231 = vmatprep.subr.bf16.mxu0 %v7240
        %9232 = vmatpush1.bf16.msra.mxu0 %v7239
        %9233 = vmatprep.subr.bf16.mxu0 %v7232
        %9234 = vmatpush1.bf16.msra.mxu0 %v7231
        %9235 = vmatprep.subr.bf16.mxu0 %v7224
        %9236 = vmatpush1.bf16.msra.mxu0 %v7223
        %9237 = vmatprep.subr.bf16.mxu0 %v7216
        %9238 = vmatpush1.bf16.msra.mxu0 %v7215
        %9239 = vmatprep.subr.bf16.mxu0 %v7208
        %9240 = vmatpush1.bf16.msra.mxu0 %v7207
        %9241 = vmatprep.subr.bf16.mxu0 %v7200
        %9242 = vmatpush1.bf16.msra.mxu0 %v7199
        %9243 = vmatprep.subr.bf16.mxu0 %v7192
        %9244 = vmatpush1.bf16.msra.mxu0 %v7191
        %9245 = vmatprep.subr.bf16.mxu0 %v7184
        %9246 = vmatpush1.bf16.msra.mxu0 %v7183
        %9247 = vmatprep.subr.bf16.mxu0 %v7304
        %9248 = vmatpush2.bf16.msra.mxu0 %v7303
        %9249 = vmatprep.subr.bf16.mxu0 %v7296
        %9250 = vmatpush2.bf16.msra.mxu0 %v7295
        %9251 = vmatprep.subr.bf16.mxu0 %v7288
        %9252 = vmatpush2.bf16.msra.mxu0 %v7287
        %9253 = vmatprep.subr.bf16.mxu0 %v7280
        %9254 = vmatpush2.bf16.msra.mxu0 %v7279
        %9255 = vmatprep.subr.bf16.mxu0 %v7272
        %9256 = vmatpush2.bf16.msra.mxu0 %v7271
        %9257 = vmatprep.subr.bf16.mxu0 %v7264
        %9258 = vmatpush2.bf16.msra.mxu0 %v7263
        %9259 = vmatprep.subr.bf16.mxu0 %v7256
        %9260 = vmatpush2.bf16.msra.mxu0 %v7255
        %9261 = vmatprep.subr.bf16.mxu0 %v7248
        %9262 = vmatpush2.bf16.msra.mxu0 %v7247
        %9263 = vmatprep.mubr.bf16.mxu0 %v3072
        %9264 = vmatmul.mubr.bf16.gmra.mxu0 %v3071
        %v9265 = vpop.f32.mrf.mxu0
        %v9266 = vadd.f32 0.0, %v9265
        %v9267 = vpop.f32.mrf.mxu0
        %v9268 = vadd.f32 0.0, %v9267
        %v9269 = vpop.f32.mrf.mxu0
        %v9270 = vpop.f32.mrf.mxu0
        %9271 = vdwg.mxu0
        %9272 = vmatprep.subr.bf16.mxu0 %v7368
        %9273 = vmatpush1.bf16.msra.mxu0 %v7367
        %9274 = vmatprep.subr.bf16.mxu0 %v7360
        %9275 = vmatpush1.bf16.msra.mxu0 %v7359
        %9276 = vmatprep.subr.bf16.mxu0 %v7352
        %9277 = vmatpush1.bf16.msra.mxu0 %v7351
        %9278 = vmatprep.subr.bf16.mxu0 %v7344
        %9279 = vmatpush1.bf16.msra.mxu0 %v7343
        %9280 = vmatprep.subr.bf16.mxu0 %v7336
        %9281 = vmatpush1.bf16.msra.mxu0 %v7335
        %9282 = vmatprep.subr.bf16.mxu0 %v7328
        %9283 = vmatpush1.bf16.msra.mxu0 %v7327
        %9284 = vmatprep.subr.bf16.mxu0 %v7320
        %9285 = vmatpush1.bf16.msra.mxu0 %v7319
        %9286 = vmatprep.subr.bf16.mxu0 %v7312
        %9287 = vmatpush1.bf16.msra.mxu0 %v7311
        %9288 = vmatprep.subr.bf16.mxu0 %v7432
        %9289 = vmatpush2.bf16.msra.mxu0 %v7431
        %9290 = vmatprep.subr.bf16.mxu0 %v7424
        %9291 = vmatpush2.bf16.msra.mxu0 %v7423
        %9292 = vmatprep.subr.bf16.mxu0 %v7416
        %9293 = vmatpush2.bf16.msra.mxu0 %v7415
        %9294 = vmatprep.subr.bf16.mxu0 %v7408
        %9295 = vmatpush2.bf16.msra.mxu0 %v7407
        %9296 = vmatprep.subr.bf16.mxu0 %v7400
        %9297 = vmatpush2.bf16.msra.mxu0 %v7399
        %9298 = vmatprep.subr.bf16.mxu0 %v7392
        %9299 = vmatpush2.bf16.msra.mxu0 %v7391
        %9300 = vmatprep.subr.bf16.mxu0 %v7384
        %9301 = vmatpush2.bf16.msra.mxu0 %v7383
        %9302 = vmatprep.subr.bf16.mxu0 %v7376
        %9303 = vmatpush2.bf16.msra.mxu0 %v7375
        %9304 = vmatprep.mubr.bf16.mxu0 %v3074
        %9305 = vmatmul.mubr.bf16.gmra.mxu0 %v3073
        %v9306 = vpop.f32.mrf.mxu0
        %v9307 = vadd.f32 %v9266, %v9306
        %v9308 = vpop.f32.mrf.mxu0
        %v9309 = vadd.f32 %v9268, %v9308
        %v9310 = vpop.f32.mrf.mxu0
        %v9311 = vpop.f32.mrf.mxu0
        %9312 = vdwg.mxu0
        %9313 = vmatprep.subr.bf16.mxu0 %v7496
        %9314 = vmatpush1.bf16.msra.mxu0 %v7495
        %9315 = vmatprep.subr.bf16.mxu0 %v7488
        %9316 = vmatpush1.bf16.msra.mxu0 %v7487
        %9317 = vmatprep.subr.bf16.mxu0 %v7480
        %9318 = vmatpush1.bf16.msra.mxu0 %v7479
        %9319 = vmatprep.subr.bf16.mxu0 %v7472
        %9320 = vmatpush1.bf16.msra.mxu0 %v7471
        %9321 = vmatprep.subr.bf16.mxu0 %v7464
        %9322 = vmatpush1.bf16.msra.mxu0 %v7463
        %9323 = vmatprep.subr.bf16.mxu0 %v7456
        %9324 = vmatpush1.bf16.msra.mxu0 %v7455
        %9325 = vmatprep.subr.bf16.mxu0 %v7448
        %9326 = vmatpush1.bf16.msra.mxu0 %v7447
        %9327 = vmatprep.subr.bf16.mxu0 %v7440
        %9328 = vmatpush1.bf16.msra.mxu0 %v7439
        %9329 = vmatprep.subr.bf16.mxu0 %v7560
        %9330 = vmatpush2.bf16.msra.mxu0 %v7559
        %9331 = vmatprep.subr.bf16.mxu0 %v7552
        %9332 = vmatpush2.bf16.msra.mxu0 %v7551
        %9333 = vmatprep.subr.bf16.mxu0 %v7544
        %9334 = vmatpush2.bf16.msra.mxu0 %v7543
        %9335 = vmatprep.subr.bf16.mxu0 %v7536
        %9336 = vmatpush2.bf16.msra.mxu0 %v7535
        %9337 = vmatprep.subr.bf16.mxu0 %v7528
        %9338 = vmatpush2.bf16.msra.mxu0 %v7527
        %9339 = vmatprep.subr.bf16.mxu0 %v7520
        %9340 = vmatpush2.bf16.msra.mxu0 %v7519
        %9341 = vmatprep.subr.bf16.mxu0 %v7512
        %9342 = vmatpush2.bf16.msra.mxu0 %v7511
        %9343 = vmatprep.subr.bf16.mxu0 %v7504
        %9344 = vmatpush2.bf16.msra.mxu0 %v7503
        %9345 = vmatprep.mubr.bf16.mxu0 %v3076
        %9346 = vmatmul.mubr.bf16.gmra.mxu0 %v3075
        %v9347 = vpop.f32.mrf.mxu0
        %v9348 = vadd.f32 %v9307, %v9347
        %v9349 = vpop.f32.mrf.mxu0
        %v9350 = vadd.f32 %v9309, %v9349
        %v9351 = vpop.f32.mrf.mxu0
        %v9352 = vpop.f32.mrf.mxu0
        %9353 = vdwg.mxu0
        %9354 = vmatprep.subr.bf16.mxu0 %v7624
        %9355 = vmatpush1.bf16.msra.mxu0 %v7623
        %9356 = vmatprep.subr.bf16.mxu0 %v7616
        %9357 = vmatpush1.bf16.msra.mxu0 %v7615
        %9358 = vmatprep.subr.bf16.mxu0 %v7608
        %9359 = vmatpush1.bf16.msra.mxu0 %v7607
        %9360 = vmatprep.subr.bf16.mxu0 %v7600
        %9361 = vmatpush1.bf16.msra.mxu0 %v7599
        %9362 = vmatprep.subr.bf16.mxu0 %v7592
        %9363 = vmatpush1.bf16.msra.mxu0 %v7591
        %9364 = vmatprep.subr.bf16.mxu0 %v7584
        %9365 = vmatpush1.bf16.msra.mxu0 %v7583
        %9366 = vmatprep.subr.bf16.mxu0 %v7576
        %9367 = vmatpush1.bf16.msra.mxu0 %v7575
        %9368 = vmatprep.subr.bf16.mxu0 %v7568
        %9369 = vmatpush1.bf16.msra.mxu0 %v7567
        %9370 = vmatprep.subr.bf16.mxu0 %v7688
        %9371 = vmatpush2.bf16.msra.mxu0 %v7687
        %9372 = vmatprep.subr.bf16.mxu0 %v7680
        %9373 = vmatpush2.bf16.msra.mxu0 %v7679
        %9374 = vmatprep.subr.bf16.mxu0 %v7672
        %9375 = vmatpush2.bf16.msra.mxu0 %v7671
        %9376 = vmatprep.subr.bf16.mxu0 %v7664
        %9377 = vmatpush2.bf16.msra.mxu0 %v7663
        %9378 = vmatprep.subr.bf16.mxu0 %v7656
        %9379 = vmatpush2.bf16.msra.mxu0 %v7655
        %9380 = vmatprep.subr.bf16.mxu0 %v7648
        %9381 = vmatpush2.bf16.msra.mxu0 %v7647
        %9382 = vmatprep.subr.bf16.mxu0 %v7640
        %9383 = vmatpush2.bf16.msra.mxu0 %v7639
        %9384 = vmatprep.subr.bf16.mxu0 %v7632
        %9385 = vmatpush2.bf16.msra.mxu0 %v7631
        %9386 = vmatprep.mubr.bf16.mxu0 %v3078
        %9387 = vmatmul.mubr.bf16.gmra.mxu0 %v3077
        %v9388 = vpop.f32.mrf.mxu0
        %v9389 = vadd.f32 %v9348, %v9388
        %v9390 = vpop.f32.mrf.mxu0
        %v9391 = vadd.f32 %v9350, %v9390
        %v9392 = vpop.f32.mrf.mxu0
        %v9393 = vpop.f32.mrf.mxu0
        %9394 = vdwg.mxu0
        %9395 = vmatprep.subr.bf16.mxu0 %v7752
        %9396 = vmatpush1.bf16.msra.mxu0 %v7751
        %9397 = vmatprep.subr.bf16.mxu0 %v7744
        %9398 = vmatpush1.bf16.msra.mxu0 %v7743
        %9399 = vmatprep.subr.bf16.mxu0 %v7736
        %9400 = vmatpush1.bf16.msra.mxu0 %v7735
        %9401 = vmatprep.subr.bf16.mxu0 %v7728
        %9402 = vmatpush1.bf16.msra.mxu0 %v7727
        %9403 = vmatprep.subr.bf16.mxu0 %v7720
        %9404 = vmatpush1.bf16.msra.mxu0 %v7719
        %9405 = vmatprep.subr.bf16.mxu0 %v7712
        %9406 = vmatpush1.bf16.msra.mxu0 %v7711
        %9407 = vmatprep.subr.bf16.mxu0 %v7704
        %9408 = vmatpush1.bf16.msra.mxu0 %v7703
        %9409 = vmatprep.subr.bf16.mxu0 %v7696
        %9410 = vmatpush1.bf16.msra.mxu0 %v7695
        %9411 = vmatprep.subr.bf16.mxu0 %v7816
        %9412 = vmatpush2.bf16.msra.mxu0 %v7815
        %9413 = vmatprep.subr.bf16.mxu0 %v7808
        %9414 = vmatpush2.bf16.msra.mxu0 %v7807
        %9415 = vmatprep.subr.bf16.mxu0 %v7800
        %9416 = vmatpush2.bf16.msra.mxu0 %v7799
        %9417 = vmatprep.subr.bf16.mxu0 %v7792
        %9418 = vmatpush2.bf16.msra.mxu0 %v7791
        %9419 = vmatprep.subr.bf16.mxu0 %v7784
        %9420 = vmatpush2.bf16.msra.mxu0 %v7783
        %9421 = vmatprep.subr.bf16.mxu0 %v7776
        %9422 = vmatpush2.bf16.msra.mxu0 %v7775
        %9423 = vmatprep.subr.bf16.mxu0 %v7768
        %9424 = vmatpush2.bf16.msra.mxu0 %v7767
        %9425 = vmatprep.subr.bf16.mxu0 %v7760
        %9426 = vmatpush2.bf16.msra.mxu0 %v7759
        %9427 = vmatprep.mubr.bf16.mxu0 %v3080
        %9428 = vmatmul.mubr.bf16.gmra.mxu0 %v3079
        %v9429 = vpop.f32.mrf.mxu0
        %v9430 = vadd.f32 %v9389, %v9429
        %v9431 = vpop.f32.mrf.mxu0
        %v9432 = vadd.f32 %v9391, %v9431
        %v9433 = vpop.f32.mrf.mxu0
        %v9434 = vpop.f32.mrf.mxu0
        %9435 = vdwg.mxu0
        %9436 = vmatprep.subr.bf16.mxu0 %v7880
        %9437 = vmatpush1.bf16.msra.mxu0 %v7879
        %9438 = vmatprep.subr.bf16.mxu0 %v7872
        %9439 = vmatpush1.bf16.msra.mxu0 %v7871
        %9440 = vmatprep.subr.bf16.mxu0 %v7864
        %9441 = vmatpush1.bf16.msra.mxu0 %v7863
        %9442 = vmatprep.subr.bf16.mxu0 %v7856
        %9443 = vmatpush1.bf16.msra.mxu0 %v7855
        %9444 = vmatprep.subr.bf16.mxu0 %v7848
        %9445 = vmatpush1.bf16.msra.mxu0 %v7847
        %9446 = vmatprep.subr.bf16.mxu0 %v7840
        %9447 = vmatpush1.bf16.msra.mxu0 %v7839
        %9448 = vmatprep.subr.bf16.mxu0 %v7832
        %9449 = vmatpush1.bf16.msra.mxu0 %v7831
        %9450 = vmatprep.subr.bf16.mxu0 %v7824
        %9451 = vmatpush1.bf16.msra.mxu0 %v7823
        %9452 = vmatprep.subr.bf16.mxu0 %v7944
        %9453 = vmatpush2.bf16.msra.mxu0 %v7943
        %9454 = vmatprep.subr.bf16.mxu0 %v7936
        %9455 = vmatpush2.bf16.msra.mxu0 %v7935
        %9456 = vmatprep.subr.bf16.mxu0 %v7928
        %9457 = vmatpush2.bf16.msra.mxu0 %v7927
        %9458 = vmatprep.subr.bf16.mxu0 %v7920
        %9459 = vmatpush2.bf16.msra.mxu0 %v7919
        %9460 = vmatprep.subr.bf16.mxu0 %v7912
        %9461 = vmatpush2.bf16.msra.mxu0 %v7911
        %9462 = vmatprep.subr.bf16.mxu0 %v7904
        %9463 = vmatpush2.bf16.msra.mxu0 %v7903
        %9464 = vmatprep.subr.bf16.mxu0 %v7896
        %9465 = vmatpush2.bf16.msra.mxu0 %v7895
        %9466 = vmatprep.subr.bf16.mxu0 %v7888
        %9467 = vmatpush2.bf16.msra.mxu0 %v7887
        %9468 = vmatprep.mubr.bf16.mxu0 %v3082
        %9469 = vmatmul.mubr.bf16.gmra.mxu0 %v3081
        %v9470 = vpop.f32.mrf.mxu0
        %v9471 = vadd.f32 %v9430, %v9470
        %v9472 = vpop.f32.mrf.mxu0
        %v9473 = vadd.f32 %v9432, %v9472
        %v9474 = vpop.f32.mrf.mxu0
        %v9475 = vpop.f32.mrf.mxu0
        %9476 = vdwg.mxu0
        %9477 = vmatprep.subr.bf16.mxu0 %v8008
        %9478 = vmatpush1.bf16.msra.mxu0 %v8007
        %9479 = vmatprep.subr.bf16.mxu0 %v8000
        %9480 = vmatpush1.bf16.msra.mxu0 %v7999
        %9481 = vmatprep.subr.bf16.mxu0 %v7992
        %9482 = vmatpush1.bf16.msra.mxu0 %v7991
        %9483 = vmatprep.subr.bf16.mxu0 %v7984
        %9484 = vmatpush1.bf16.msra.mxu0 %v7983
        %9485 = vmatprep.subr.bf16.mxu0 %v7976
        %9486 = vmatpush1.bf16.msra.mxu0 %v7975
        %9487 = vmatprep.subr.bf16.mxu0 %v7968
        %9488 = vmatpush1.bf16.msra.mxu0 %v7967
        %9489 = vmatprep.subr.bf16.mxu0 %v7960
        %9490 = vmatpush1.bf16.msra.mxu0 %v7959
        %9491 = vmatprep.subr.bf16.mxu0 %v7952
        %9492 = vmatpush1.bf16.msra.mxu0 %v7951
        %9493 = vmatprep.subr.bf16.mxu0 %v8072
        %9494 = vmatpush2.bf16.msra.mxu0 %v8071
        %9495 = vmatprep.subr.bf16.mxu0 %v8064
        %9496 = vmatpush2.bf16.msra.mxu0 %v8063
        %9497 = vmatprep.subr.bf16.mxu0 %v8056
        %9498 = vmatpush2.bf16.msra.mxu0 %v8055
        %9499 = vmatprep.subr.bf16.mxu0 %v8048
        %9500 = vmatpush2.bf16.msra.mxu0 %v8047
        %9501 = vmatprep.subr.bf16.mxu0 %v8040
        %9502 = vmatpush2.bf16.msra.mxu0 %v8039
        %9503 = vmatprep.subr.bf16.mxu0 %v8032
        %9504 = vmatpush2.bf16.msra.mxu0 %v8031
        %9505 = vmatprep.subr.bf16.mxu0 %v8024
        %9506 = vmatpush2.bf16.msra.mxu0 %v8023
        %9507 = vmatprep.subr.bf16.mxu0 %v8016
        %9508 = vmatpush2.bf16.msra.mxu0 %v8015
        %9509 = vmatprep.mubr.bf16.mxu0 %v3084
        %9510 = vmatmul.mubr.bf16.gmra.mxu0 %v3083
        %v9511 = vpop.f32.mrf.mxu0
        %v9512 = vadd.f32 %v9471, %v9511
        %v9513 = vpop.f32.mrf.mxu0
        %v9514 = vadd.f32 %v9473, %v9513
        %v9515 = vpop.f32.mrf.mxu0
        %v9516 = vpop.f32.mrf.mxu0
        %9517 = vdwg.mxu0
        %9518 = vmatprep.subr.bf16.mxu0 %v8136
        %9519 = vmatpush1.bf16.msra.mxu0 %v8135
        %9520 = vmatprep.subr.bf16.mxu0 %v8128
        %9521 = vmatpush1.bf16.msra.mxu0 %v8127
        %9522 = vmatprep.subr.bf16.mxu0 %v8120
        %9523 = vmatpush1.bf16.msra.mxu0 %v8119
        %9524 = vmatprep.subr.bf16.mxu0 %v8112
        %9525 = vmatpush1.bf16.msra.mxu0 %v8111
        %9526 = vmatprep.subr.bf16.mxu0 %v8104
        %9527 = vmatpush1.bf16.msra.mxu0 %v8103
        %9528 = vmatprep.subr.bf16.mxu0 %v8096
        %9529 = vmatpush1.bf16.msra.mxu0 %v8095
        %9530 = vmatprep.subr.bf16.mxu0 %v8088
        %9531 = vmatpush1.bf16.msra.mxu0 %v8087
        %9532 = vmatprep.subr.bf16.mxu0 %v8080
        %9533 = vmatpush1.bf16.msra.mxu0 %v8079
        %9534 = vmatprep.subr.bf16.mxu0 %v8200
        %9535 = vmatpush2.bf16.msra.mxu0 %v8199
        %9536 = vmatprep.subr.bf16.mxu0 %v8192
        %9537 = vmatpush2.bf16.msra.mxu0 %v8191
        %9538 = vmatprep.subr.bf16.mxu0 %v8184
        %9539 = vmatpush2.bf16.msra.mxu0 %v8183
        %9540 = vmatprep.subr.bf16.mxu0 %v8176
        %9541 = vmatpush2.bf16.msra.mxu0 %v8175
        %9542 = vmatprep.subr.bf16.mxu0 %v8168
        %9543 = vmatpush2.bf16.msra.mxu0 %v8167
        %9544 = vmatprep.subr.bf16.mxu0 %v8160
        %9545 = vmatpush2.bf16.msra.mxu0 %v8159
        %9546 = vmatprep.subr.bf16.mxu0 %v8152
        %9547 = vmatpush2.bf16.msra.mxu0 %v8151
        %9548 = vmatprep.subr.bf16.mxu0 %v8144
        %9549 = vmatpush2.bf16.msra.mxu0 %v8143
        %9550 = vmatprep.mubr.bf16.mxu0 %v3086
        %9551 = vmatmul.mubr.bf16.gmra.mxu0 %v3085
        %v9552 = vpop.f32.mrf.mxu0
        %v9553 = vadd.f32 %v9512, %v9552
        %v9554 = vpop.f32.mrf.mxu0
        %v9555 = vadd.f32 %v9514, %v9554
        %v9556 = vpop.f32.mrf.mxu0
        %v9557 = vpop.f32.mrf.mxu0
        %9558 = vdwg.mxu0
        %9559 = vmatprep.subr.bf16.mxu0 %v7242
        %9560 = vmatpush1.bf16.msra.mxu0 %v7241
        %9561 = vmatprep.subr.bf16.mxu0 %v7234
        %9562 = vmatpush1.bf16.msra.mxu0 %v7233
        %9563 = vmatprep.subr.bf16.mxu0 %v7226
        %9564 = vmatpush1.bf16.msra.mxu0 %v7225
        %9565 = vmatprep.subr.bf16.mxu0 %v7218
        %9566 = vmatpush1.bf16.msra.mxu0 %v7217
        %9567 = vmatprep.subr.bf16.mxu0 %v7210
        %9568 = vmatpush1.bf16.msra.mxu0 %v7209
        %9569 = vmatprep.subr.bf16.mxu0 %v7202
        %9570 = vmatpush1.bf16.msra.mxu0 %v7201
        %9571 = vmatprep.subr.bf16.mxu0 %v7194
        %9572 = vmatpush1.bf16.msra.mxu0 %v7193
        %9573 = vmatprep.subr.bf16.mxu0 %v7186
        %9574 = vmatpush1.bf16.msra.mxu0 %v7185
        %9575 = vmatprep.subr.bf16.mxu0 %v7306
        %9576 = vmatpush2.bf16.msra.mxu0 %v7305
        %9577 = vmatprep.subr.bf16.mxu0 %v7298
        %9578 = vmatpush2.bf16.msra.mxu0 %v7297
        %9579 = vmatprep.subr.bf16.mxu0 %v7290
        %9580 = vmatpush2.bf16.msra.mxu0 %v7289
        %9581 = vmatprep.subr.bf16.mxu0 %v7282
        %9582 = vmatpush2.bf16.msra.mxu0 %v7281
        %9583 = vmatprep.subr.bf16.mxu0 %v7274
        %9584 = vmatpush2.bf16.msra.mxu0 %v7273
        %9585 = vmatprep.subr.bf16.mxu0 %v7266
        %9586 = vmatpush2.bf16.msra.mxu0 %v7265
        %9587 = vmatprep.subr.bf16.mxu0 %v7258
        %9588 = vmatpush2.bf16.msra.mxu0 %v7257
        %9589 = vmatprep.subr.bf16.mxu0 %v7250
        %9590 = vmatpush2.bf16.msra.mxu0 %v7249
        %9591 = vmatprep.mubr.bf16.mxu0 %v3072
        %9592 = vmatmul.mubr.bf16.gmra.mxu0 %v3071
        %v9593 = vpop.f32.mrf.mxu0
        %v9594 = vadd.f32 0.0, %v9593
        %v9595 = vpop.f32.mrf.mxu0
        %v9596 = vadd.f32 0.0, %v9595
        %v9597 = vpop.f32.mrf.mxu0
        %v9598 = vpop.f32.mrf.mxu0
        %9599 = vdwg.mxu0
        %9600 = vmatprep.subr.bf16.mxu0 %v7370
        %9601 = vmatpush1.bf16.msra.mxu0 %v7369
        %9602 = vmatprep.subr.bf16.mxu0 %v7362
        %9603 = vmatpush1.bf16.msra.mxu0 %v7361
        %9604 = vmatprep.subr.bf16.mxu0 %v7354
        %9605 = vmatpush1.bf16.msra.mxu0 %v7353
        %9606 = vmatprep.subr.bf16.mxu0 %v7346
        %9607 = vmatpush1.bf16.msra.mxu0 %v7345
        %9608 = vmatprep.subr.bf16.mxu0 %v7338
        %9609 = vmatpush1.bf16.msra.mxu0 %v7337
        %9610 = vmatprep.subr.bf16.mxu0 %v7330
        %9611 = vmatpush1.bf16.msra.mxu0 %v7329
        %9612 = vmatprep.subr.bf16.mxu0 %v7322
        %9613 = vmatpush1.bf16.msra.mxu0 %v7321
        %9614 = vmatprep.subr.bf16.mxu0 %v7314
        %9615 = vmatpush1.bf16.msra.mxu0 %v7313
        %9616 = vmatprep.subr.bf16.mxu0 %v7434
        %9617 = vmatpush2.bf16.msra.mxu0 %v7433
        %9618 = vmatprep.subr.bf16.mxu0 %v7426
        %9619 = vmatpush2.bf16.msra.mxu0 %v7425
        %9620 = vmatprep.subr.bf16.mxu0 %v7418
        %9621 = vmatpush2.bf16.msra.mxu0 %v7417
        %9622 = vmatprep.subr.bf16.mxu0 %v7410
        %9623 = vmatpush2.bf16.msra.mxu0 %v7409
        %9624 = vmatprep.subr.bf16.mxu0 %v7402
        %9625 = vmatpush2.bf16.msra.mxu0 %v7401
        %9626 = vmatprep.subr.bf16.mxu0 %v7394
        %9627 = vmatpush2.bf16.msra.mxu0 %v7393
        %9628 = vmatprep.subr.bf16.mxu0 %v7386
        %9629 = vmatpush2.bf16.msra.mxu0 %v7385
        %9630 = vmatprep.subr.bf16.mxu0 %v7378
        %9631 = vmatpush2.bf16.msra.mxu0 %v7377
        %9632 = vmatprep.mubr.bf16.mxu0 %v3074
        %9633 = vmatmul.mubr.bf16.gmra.mxu0 %v3073
        %v9634 = vpop.f32.mrf.mxu0
        %v9635 = vadd.f32 %v9594, %v9634
        %v9636 = vpop.f32.mrf.mxu0
        %v9637 = vadd.f32 %v9596, %v9636
        %v9638 = vpop.f32.mrf.mxu0
        %v9639 = vpop.f32.mrf.mxu0
        %9640 = vdwg.mxu0
        %9641 = vmatprep.subr.bf16.mxu0 %v7498
        %9642 = vmatpush1.bf16.msra.mxu0 %v7497
        %9643 = vmatprep.subr.bf16.mxu0 %v7490
        %9644 = vmatpush1.bf16.msra.mxu0 %v7489
        %9645 = vmatprep.subr.bf16.mxu0 %v7482
        %9646 = vmatpush1.bf16.msra.mxu0 %v7481
        %9647 = vmatprep.subr.bf16.mxu0 %v7474
        %9648 = vmatpush1.bf16.msra.mxu0 %v7473
        %9649 = vmatprep.subr.bf16.mxu0 %v7466
        %9650 = vmatpush1.bf16.msra.mxu0 %v7465
        %9651 = vmatprep.subr.bf16.mxu0 %v7458
        %9652 = vmatpush1.bf16.msra.mxu0 %v7457
        %9653 = vmatprep.subr.bf16.mxu0 %v7450
        %9654 = vmatpush1.bf16.msra.mxu0 %v7449
        %9655 = vmatprep.subr.bf16.mxu0 %v7442
        %9656 = vmatpush1.bf16.msra.mxu0 %v7441
        %9657 = vmatprep.subr.bf16.mxu0 %v7562
        %9658 = vmatpush2.bf16.msra.mxu0 %v7561
        %9659 = vmatprep.subr.bf16.mxu0 %v7554
        %9660 = vmatpush2.bf16.msra.mxu0 %v7553
        %9661 = vmatprep.subr.bf16.mxu0 %v7546
        %9662 = vmatpush2.bf16.msra.mxu0 %v7545
        %9663 = vmatprep.subr.bf16.mxu0 %v7538
        %9664 = vmatpush2.bf16.msra.mxu0 %v7537
        %9665 = vmatprep.subr.bf16.mxu0 %v7530
        %9666 = vmatpush2.bf16.msra.mxu0 %v7529
        %9667 = vmatprep.subr.bf16.mxu0 %v7522
        %9668 = vmatpush2.bf16.msra.mxu0 %v7521
        %9669 = vmatprep.subr.bf16.mxu0 %v7514
        %9670 = vmatpush2.bf16.msra.mxu0 %v7513
        %9671 = vmatprep.subr.bf16.mxu0 %v7506
        %9672 = vmatpush2.bf16.msra.mxu0 %v7505
        %9673 = vmatprep.mubr.bf16.mxu0 %v3076
        %9674 = vmatmul.mubr.bf16.gmra.mxu0 %v3075
        %v9675 = vpop.f32.mrf.mxu0
        %v9676 = vadd.f32 %v9635, %v9675
        %v9677 = vpop.f32.mrf.mxu0
        %v9678 = vadd.f32 %v9637, %v9677
        %v9679 = vpop.f32.mrf.mxu0
        %v9680 = vpop.f32.mrf.mxu0
        %9681 = vdwg.mxu0
        %9682 = vmatprep.subr.bf16.mxu0 %v7626
        %9683 = vmatpush1.bf16.msra.mxu0 %v7625
        %9684 = vmatprep.subr.bf16.mxu0 %v7618
        %9685 = vmatpush1.bf16.msra.mxu0 %v7617
        %9686 = vmatprep.subr.bf16.mxu0 %v7610
        %9687 = vmatpush1.bf16.msra.mxu0 %v7609
        %9688 = vmatprep.subr.bf16.mxu0 %v7602
        %9689 = vmatpush1.bf16.msra.mxu0 %v7601
        %9690 = vmatprep.subr.bf16.mxu0 %v7594
        %9691 = vmatpush1.bf16.msra.mxu0 %v7593
        %9692 = vmatprep.subr.bf16.mxu0 %v7586
        %9693 = vmatpush1.bf16.msra.mxu0 %v7585
        %9694 = vmatprep.subr.bf16.mxu0 %v7578
        %9695 = vmatpush1.bf16.msra.mxu0 %v7577
        %9696 = vmatprep.subr.bf16.mxu0 %v7570
        %9697 = vmatpush1.bf16.msra.mxu0 %v7569
        %9698 = vmatprep.subr.bf16.mxu0 %v7690
        %9699 = vmatpush2.bf16.msra.mxu0 %v7689
        %9700 = vmatprep.subr.bf16.mxu0 %v7682
        %9701 = vmatpush2.bf16.msra.mxu0 %v7681
        %9702 = vmatprep.subr.bf16.mxu0 %v7674
        %9703 = vmatpush2.bf16.msra.mxu0 %v7673
        %9704 = vmatprep.subr.bf16.mxu0 %v7666
        %9705 = vmatpush2.bf16.msra.mxu0 %v7665
        %9706 = vmatprep.subr.bf16.mxu0 %v7658
        %9707 = vmatpush2.bf16.msra.mxu0 %v7657
        %9708 = vmatprep.subr.bf16.mxu0 %v7650
        %9709 = vmatpush2.bf16.msra.mxu0 %v7649
        %9710 = vmatprep.subr.bf16.mxu0 %v7642
        %9711 = vmatpush2.bf16.msra.mxu0 %v7641
        %9712 = vmatprep.subr.bf16.mxu0 %v7634
        %9713 = vmatpush2.bf16.msra.mxu0 %v7633
        %9714 = vmatprep.mubr.bf16.mxu0 %v3078
        %9715 = vmatmul.mubr.bf16.gmra.mxu0 %v3077
        %v9716 = vpop.f32.mrf.mxu0
        %v9717 = vadd.f32 %v9676, %v9716
        %v9718 = vpop.f32.mrf.mxu0
        %v9719 = vadd.f32 %v9678, %v9718
        %v9720 = vpop.f32.mrf.mxu0
        %v9721 = vpop.f32.mrf.mxu0
        %9722 = vdwg.mxu0
        %9723 = vmatprep.subr.bf16.mxu0 %v7754
        %9724 = vmatpush1.bf16.msra.mxu0 %v7753
        %9725 = vmatprep.subr.bf16.mxu0 %v7746
        %9726 = vmatpush1.bf16.msra.mxu0 %v7745
        %9727 = vmatprep.subr.bf16.mxu0 %v7738
        %9728 = vmatpush1.bf16.msra.mxu0 %v7737
        %9729 = vmatprep.subr.bf16.mxu0 %v7730
        %9730 = vmatpush1.bf16.msra.mxu0 %v7729
        %9731 = vmatprep.subr.bf16.mxu0 %v7722
        %9732 = vmatpush1.bf16.msra.mxu0 %v7721
        %9733 = vmatprep.subr.bf16.mxu0 %v7714
        %9734 = vmatpush1.bf16.msra.mxu0 %v7713
        %9735 = vmatprep.subr.bf16.mxu0 %v7706
        %9736 = vmatpush1.bf16.msra.mxu0 %v7705
        %9737 = vmatprep.subr.bf16.mxu0 %v7698
        %9738 = vmatpush1.bf16.msra.mxu0 %v7697
        %9739 = vmatprep.subr.bf16.mxu0 %v7818
        %9740 = vmatpush2.bf16.msra.mxu0 %v7817
        %9741 = vmatprep.subr.bf16.mxu0 %v7810
        %9742 = vmatpush2.bf16.msra.mxu0 %v7809
        %9743 = vmatprep.subr.bf16.mxu0 %v7802
        %9744 = vmatpush2.bf16.msra.mxu0 %v7801
        %9745 = vmatprep.subr.bf16.mxu0 %v7794
        %9746 = vmatpush2.bf16.msra.mxu0 %v7793
        %9747 = vmatprep.subr.bf16.mxu0 %v7786
        %9748 = vmatpush2.bf16.msra.mxu0 %v7785
        %9749 = vmatprep.subr.bf16.mxu0 %v7778
        %9750 = vmatpush2.bf16.msra.mxu0 %v7777
        %9751 = vmatprep.subr.bf16.mxu0 %v7770
        %9752 = vmatpush2.bf16.msra.mxu0 %v7769
        %9753 = vmatprep.subr.bf16.mxu0 %v7762
        %9754 = vmatpush2.bf16.msra.mxu0 %v7761
        %9755 = vmatprep.mubr.bf16.mxu0 %v3080
        %9756 = vmatmul.mubr.bf16.gmra.mxu0 %v3079
        %v9757 = vpop.f32.mrf.mxu0
        %v9758 = vadd.f32 %v9717, %v9757
        %v9759 = vpop.f32.mrf.mxu0
        %v9760 = vadd.f32 %v9719, %v9759
        %v9761 = vpop.f32.mrf.mxu0
        %v9762 = vpop.f32.mrf.mxu0
        %9763 = vdwg.mxu0
        %9764 = vmatprep.subr.bf16.mxu0 %v7882
        %9765 = vmatpush1.bf16.msra.mxu0 %v7881
        %9766 = vmatprep.subr.bf16.mxu0 %v7874
        %9767 = vmatpush1.bf16.msra.mxu0 %v7873
        %9768 = vmatprep.subr.bf16.mxu0 %v7866
        %9769 = vmatpush1.bf16.msra.mxu0 %v7865
        %9770 = vmatprep.subr.bf16.mxu0 %v7858
        %9771 = vmatpush1.bf16.msra.mxu0 %v7857
        %9772 = vmatprep.subr.bf16.mxu0 %v7850
        %9773 = vmatpush1.bf16.msra.mxu0 %v7849
        %9774 = vmatprep.subr.bf16.mxu0 %v7842
        %9775 = vmatpush1.bf16.msra.mxu0 %v7841
        %9776 = vmatprep.subr.bf16.mxu0 %v7834
        %9777 = vmatpush1.bf16.msra.mxu0 %v7833
        %9778 = vmatprep.subr.bf16.mxu0 %v7826
        %9779 = vmatpush1.bf16.msra.mxu0 %v7825
        %9780 = vmatprep.subr.bf16.mxu0 %v7946
        %9781 = vmatpush2.bf16.msra.mxu0 %v7945
        %9782 = vmatprep.subr.bf16.mxu0 %v7938
        %9783 = vmatpush2.bf16.msra.mxu0 %v7937
        %9784 = vmatprep.subr.bf16.mxu0 %v7930
        %9785 = vmatpush2.bf16.msra.mxu0 %v7929
        %9786 = vmatprep.subr.bf16.mxu0 %v7922
        %9787 = vmatpush2.bf16.msra.mxu0 %v7921
        %9788 = vmatprep.subr.bf16.mxu0 %v7914
        %9789 = vmatpush2.bf16.msra.mxu0 %v7913
        %9790 = vmatprep.subr.bf16.mxu0 %v7906
        %9791 = vmatpush2.bf16.msra.mxu0 %v7905
        %9792 = vmatprep.subr.bf16.mxu0 %v7898
        %9793 = vmatpush2.bf16.msra.mxu0 %v7897
        %9794 = vmatprep.subr.bf16.mxu0 %v7890
        %9795 = vmatpush2.bf16.msra.mxu0 %v7889
        %9796 = vmatprep.mubr.bf16.mxu0 %v3082
        %9797 = vmatmul.mubr.bf16.gmra.mxu0 %v3081
        %v9798 = vpop.f32.mrf.mxu0
        %v9799 = vadd.f32 %v9758, %v9798
        %v9800 = vpop.f32.mrf.mxu0
        %v9801 = vadd.f32 %v9760, %v9800
        %v9802 = vpop.f32.mrf.mxu0
        %v9803 = vpop.f32.mrf.mxu0
        %9804 = vdwg.mxu0
        %9805 = vmatprep.subr.bf16.mxu0 %v8010
        %9806 = vmatpush1.bf16.msra.mxu0 %v8009
        %9807 = vmatprep.subr.bf16.mxu0 %v8002
        %9808 = vmatpush1.bf16.msra.mxu0 %v8001
        %9809 = vmatprep.subr.bf16.mxu0 %v7994
        %9810 = vmatpush1.bf16.msra.mxu0 %v7993
        %9811 = vmatprep.subr.bf16.mxu0 %v7986
        %9812 = vmatpush1.bf16.msra.mxu0 %v7985
        %9813 = vmatprep.subr.bf16.mxu0 %v7978
        %9814 = vmatpush1.bf16.msra.mxu0 %v7977
        %9815 = vmatprep.subr.bf16.mxu0 %v7970
        %9816 = vmatpush1.bf16.msra.mxu0 %v7969
        %9817 = vmatprep.subr.bf16.mxu0 %v7962
        %9818 = vmatpush1.bf16.msra.mxu0 %v7961
        %9819 = vmatprep.subr.bf16.mxu0 %v7954
        %9820 = vmatpush1.bf16.msra.mxu0 %v7953
        %9821 = vmatprep.subr.bf16.mxu0 %v8074
        %9822 = vmatpush2.bf16.msra.mxu0 %v8073
        %9823 = vmatprep.subr.bf16.mxu0 %v8066
        %9824 = vmatpush2.bf16.msra.mxu0 %v8065
        %9825 = vmatprep.subr.bf16.mxu0 %v8058
        %9826 = vmatpush2.bf16.msra.mxu0 %v8057
        %9827 = vmatprep.subr.bf16.mxu0 %v8050
        %9828 = vmatpush2.bf16.msra.mxu0 %v8049
        %9829 = vmatprep.subr.bf16.mxu0 %v8042
        %9830 = vmatpush2.bf16.msra.mxu0 %v8041
        %9831 = vmatprep.subr.bf16.mxu0 %v8034
        %9832 = vmatpush2.bf16.msra.mxu0 %v8033
        %9833 = vmatprep.subr.bf16.mxu0 %v8026
        %9834 = vmatpush2.bf16.msra.mxu0 %v8025
        %9835 = vmatprep.subr.bf16.mxu0 %v8018
        %9836 = vmatpush2.bf16.msra.mxu0 %v8017
        %9837 = vmatprep.mubr.bf16.mxu0 %v3084
        %9838 = vmatmul.mubr.bf16.gmra.mxu0 %v3083
        %v9839 = vpop.f32.mrf.mxu0
        %v9840 = vadd.f32 %v9799, %v9839
        %v9841 = vpop.f32.mrf.mxu0
        %v9842 = vadd.f32 %v9801, %v9841
        %v9843 = vpop.f32.mrf.mxu0
        %v9844 = vpop.f32.mrf.mxu0
        %9845 = vdwg.mxu0
        %9846 = vmatprep.subr.bf16.mxu0 %v8138
        %9847 = vmatpush1.bf16.msra.mxu0 %v8137
        %9848 = vmatprep.subr.bf16.mxu0 %v8130
        %9849 = vmatpush1.bf16.msra.mxu0 %v8129
        %9850 = vmatprep.subr.bf16.mxu0 %v8122
        %9851 = vmatpush1.bf16.msra.mxu0 %v8121
        %9852 = vmatprep.subr.bf16.mxu0 %v8114
        %9853 = vmatpush1.bf16.msra.mxu0 %v8113
        %9854 = vmatprep.subr.bf16.mxu0 %v8106
        %9855 = vmatpush1.bf16.msra.mxu0 %v8105
        %9856 = vmatprep.subr.bf16.mxu0 %v8098
        %9857 = vmatpush1.bf16.msra.mxu0 %v8097
        %9858 = vmatprep.subr.bf16.mxu0 %v8090
        %9859 = vmatpush1.bf16.msra.mxu0 %v8089
        %9860 = vmatprep.subr.bf16.mxu0 %v8082
        %9861 = vmatpush1.bf16.msra.mxu0 %v8081
        %9862 = vmatprep.subr.bf16.mxu0 %v8202
        %9863 = vmatpush2.bf16.msra.mxu0 %v8201
        %9864 = vmatprep.subr.bf16.mxu0 %v8194
        %9865 = vmatpush2.bf16.msra.mxu0 %v8193
        %9866 = vmatprep.subr.bf16.mxu0 %v8186
        %9867 = vmatpush2.bf16.msra.mxu0 %v8185
        %9868 = vmatprep.subr.bf16.mxu0 %v8178
        %9869 = vmatpush2.bf16.msra.mxu0 %v8177
        %9870 = vmatprep.subr.bf16.mxu0 %v8170
        %9871 = vmatpush2.bf16.msra.mxu0 %v8169
        %9872 = vmatprep.subr.bf16.mxu0 %v8162
        %9873 = vmatpush2.bf16.msra.mxu0 %v8161
        %9874 = vmatprep.subr.bf16.mxu0 %v8154
        %9875 = vmatpush2.bf16.msra.mxu0 %v8153
        %9876 = vmatprep.subr.bf16.mxu0 %v8146
        %9877 = vmatpush2.bf16.msra.mxu0 %v8145
        %9878 = vmatprep.mubr.bf16.mxu0 %v3086
        %9879 = vmatmul.mubr.bf16.gmra.mxu0 %v3085
        %v9880 = vpop.f32.mrf.mxu0
        %v9881 = vadd.f32 %v9840, %v9880
        %v9882 = vpop.f32.mrf.mxu0
        %v9883 = vadd.f32 %v9842, %v9882
        %v9884 = vpop.f32.mrf.mxu0
        %v9885 = vpop.f32.mrf.mxu0
        %9886 = vdwg.mxu0
        %9887 = vmatprep.subr.bf16.mxu0 %v7244
        %9888 = vmatpush1.bf16.msra.mxu0 %v7243
        %9889 = vmatprep.subr.bf16.mxu0 %v7236
        %9890 = vmatpush1.bf16.msra.mxu0 %v7235
        %9891 = vmatprep.subr.bf16.mxu0 %v7228
        %9892 = vmatpush1.bf16.msra.mxu0 %v7227
        %9893 = vmatprep.subr.bf16.mxu0 %v7220
        %9894 = vmatpush1.bf16.msra.mxu0 %v7219
        %9895 = vmatprep.subr.bf16.mxu0 %v7212
        %9896 = vmatpush1.bf16.msra.mxu0 %v7211
        %9897 = vmatprep.subr.bf16.mxu0 %v7204
        %9898 = vmatpush1.bf16.msra.mxu0 %v7203
        %9899 = vmatprep.subr.bf16.mxu0 %v7196
        %9900 = vmatpush1.bf16.msra.mxu0 %v7195
        %9901 = vmatprep.subr.bf16.mxu0 %v7188
        %9902 = vmatpush1.bf16.msra.mxu0 %v7187
        %9903 = vmatprep.subr.bf16.mxu0 %v7308
        %9904 = vmatpush2.bf16.msra.mxu0 %v7307
        %9905 = vmatprep.subr.bf16.mxu0 %v7300
        %9906 = vmatpush2.bf16.msra.mxu0 %v7299
        %9907 = vmatprep.subr.bf16.mxu0 %v7292
        %9908 = vmatpush2.bf16.msra.mxu0 %v7291
        %9909 = vmatprep.subr.bf16.mxu0 %v7284
        %9910 = vmatpush2.bf16.msra.mxu0 %v7283
        %9911 = vmatprep.subr.bf16.mxu0 %v7276
        %9912 = vmatpush2.bf16.msra.mxu0 %v7275
        %9913 = vmatprep.subr.bf16.mxu0 %v7268
        %9914 = vmatpush2.bf16.msra.mxu0 %v7267
        %9915 = vmatprep.subr.bf16.mxu0 %v7260
        %9916 = vmatpush2.bf16.msra.mxu0 %v7259
        %9917 = vmatprep.subr.bf16.mxu0 %v7252
        %9918 = vmatpush2.bf16.msra.mxu0 %v7251
        %9919 = vmatprep.mubr.bf16.mxu0 %v3072
        %9920 = vmatmul.mubr.bf16.gmra.mxu0 %v3071
        %v9921 = vpop.f32.mrf.mxu0
        %v9922 = vadd.f32 0.0, %v9921
        %v9923 = vpop.f32.mrf.mxu0
        %v9924 = vadd.f32 0.0, %v9923
        %v9925 = vpop.f32.mrf.mxu0
        %v9926 = vpop.f32.mrf.mxu0
        %9927 = vdwg.mxu0
        %9928 = vmatprep.subr.bf16.mxu0 %v7372
        %9929 = vmatpush1.bf16.msra.mxu0 %v7371
        %9930 = vmatprep.subr.bf16.mxu0 %v7364
        %9931 = vmatpush1.bf16.msra.mxu0 %v7363
        %9932 = vmatprep.subr.bf16.mxu0 %v7356
        %9933 = vmatpush1.bf16.msra.mxu0 %v7355
        %9934 = vmatprep.subr.bf16.mxu0 %v7348
        %9935 = vmatpush1.bf16.msra.mxu0 %v7347
        %9936 = vmatprep.subr.bf16.mxu0 %v7340
        %9937 = vmatpush1.bf16.msra.mxu0 %v7339
        %9938 = vmatprep.subr.bf16.mxu0 %v7332
        %9939 = vmatpush1.bf16.msra.mxu0 %v7331
        %9940 = vmatprep.subr.bf16.mxu0 %v7324
        %9941 = vmatpush1.bf16.msra.mxu0 %v7323
        %9942 = vmatprep.subr.bf16.mxu0 %v7316
        %9943 = vmatpush1.bf16.msra.mxu0 %v7315
        %9944 = vmatprep.subr.bf16.mxu0 %v7436
        %9945 = vmatpush2.bf16.msra.mxu0 %v7435
        %9946 = vmatprep.subr.bf16.mxu0 %v7428
        %9947 = vmatpush2.bf16.msra.mxu0 %v7427
        %9948 = vmatprep.subr.bf16.mxu0 %v7420
        %9949 = vmatpush2.bf16.msra.mxu0 %v7419
        %9950 = vmatprep.subr.bf16.mxu0 %v7412
        %9951 = vmatpush2.bf16.msra.mxu0 %v7411
        %9952 = vmatprep.subr.bf16.mxu0 %v7404
        %9953 = vmatpush2.bf16.msra.mxu0 %v7403
        %9954 = vmatprep.subr.bf16.mxu0 %v7396
        %9955 = vmatpush2.bf16.msra.mxu0 %v7395
        %9956 = vmatprep.subr.bf16.mxu0 %v7388
        %9957 = vmatpush2.bf16.msra.mxu0 %v7387
        %9958 = vmatprep.subr.bf16.mxu0 %v7380
        %9959 = vmatpush2.bf16.msra.mxu0 %v7379
        %9960 = vmatprep.mubr.bf16.mxu0 %v3074
        %9961 = vmatmul.mubr.bf16.gmra.mxu0 %v3073
        %v9962 = vpop.f32.mrf.mxu0
        %v9963 = vadd.f32 %v9922, %v9962
        %v9964 = vpop.f32.mrf.mxu0
        %v9965 = vadd.f32 %v9924, %v9964
        %v9966 = vpop.f32.mrf.mxu0
        %v9967 = vpop.f32.mrf.mxu0
        %9968 = vdwg.mxu0
        %9969 = vmatprep.subr.bf16.mxu0 %v7500
        %9970 = vmatpush1.bf16.msra.mxu0 %v7499
        %9971 = vmatprep.subr.bf16.mxu0 %v7492
        %9972 = vmatpush1.bf16.msra.mxu0 %v7491
        %9973 = vmatprep.subr.bf16.mxu0 %v7484
        %9974 = vmatpush1.bf16.msra.mxu0 %v7483
        %9975 = vmatprep.subr.bf16.mxu0 %v7476
        %9976 = vmatpush1.bf16.msra.mxu0 %v7475
        %9977 = vmatprep.subr.bf16.mxu0 %v7468
        %9978 = vmatpush1.bf16.msra.mxu0 %v7467
        %9979 = vmatprep.subr.bf16.mxu0 %v7460
        %9980 = vmatpush1.bf16.msra.mxu0 %v7459
        %9981 = vmatprep.subr.bf16.mxu0 %v7452
        %9982 = vmatpush1.bf16.msra.mxu0 %v7451
        %9983 = vmatprep.subr.bf16.mxu0 %v7444
        %9984 = vmatpush1.bf16.msra.mxu0 %v7443
        %9985 = vmatprep.subr.bf16.mxu0 %v7564
        %9986 = vmatpush2.bf16.msra.mxu0 %v7563
        %9987 = vmatprep.subr.bf16.mxu0 %v7556
        %9988 = vmatpush2.bf16.msra.mxu0 %v7555
        %9989 = vmatprep.subr.bf16.mxu0 %v7548
        %9990 = vmatpush2.bf16.msra.mxu0 %v7547
        %9991 = vmatprep.subr.bf16.mxu0 %v7540
        %9992 = vmatpush2.bf16.msra.mxu0 %v7539
        %9993 = vmatprep.subr.bf16.mxu0 %v7532
        %9994 = vmatpush2.bf16.msra.mxu0 %v7531
        %9995 = vmatprep.subr.bf16.mxu0 %v7524
        %9996 = vmatpush2.bf16.msra.mxu0 %v7523
        %9997 = vmatprep.subr.bf16.mxu0 %v7516
        %9998 = vmatpush2.bf16.msra.mxu0 %v7515
        %9999 = vmatprep.subr.bf16.mxu0 %v7508
        %10000 = vmatpush2.bf16.msra.mxu0 %v7507
        %10001 = vmatprep.mubr.bf16.mxu0 %v3076
        %10002 = vmatmul.mubr.bf16.gmra.mxu0 %v3075
        %v10003 = vpop.f32.mrf.mxu0
        %v10004 = vadd.f32 %v9963, %v10003
        %v10005 = vpop.f32.mrf.mxu0
        %v10006 = vadd.f32 %v9965, %v10005
        %v10007 = vpop.f32.mrf.mxu0
        %v10008 = vpop.f32.mrf.mxu0
        %10009 = vdwg.mxu0
        %10010 = vmatprep.subr.bf16.mxu0 %v7628
        %10011 = vmatpush1.bf16.msra.mxu0 %v7627
        %10012 = vmatprep.subr.bf16.mxu0 %v7620
        %10013 = vmatpush1.bf16.msra.mxu0 %v7619
        %10014 = vmatprep.subr.bf16.mxu0 %v7612
        %10015 = vmatpush1.bf16.msra.mxu0 %v7611
        %10016 = vmatprep.subr.bf16.mxu0 %v7604
        %10017 = vmatpush1.bf16.msra.mxu0 %v7603
        %10018 = vmatprep.subr.bf16.mxu0 %v7596
        %10019 = vmatpush1.bf16.msra.mxu0 %v7595
        %10020 = vmatprep.subr.bf16.mxu0 %v7588
        %10021 = vmatpush1.bf16.msra.mxu0 %v7587
        %10022 = vmatprep.subr.bf16.mxu0 %v7580
        %10023 = vmatpush1.bf16.msra.mxu0 %v7579
        %10024 = vmatprep.subr.bf16.mxu0 %v7572
        %10025 = vmatpush1.bf16.msra.mxu0 %v7571
        %10026 = vmatprep.subr.bf16.mxu0 %v7692
        %10027 = vmatpush2.bf16.msra.mxu0 %v7691
        %10028 = vmatprep.subr.bf16.mxu0 %v7684
        %10029 = vmatpush2.bf16.msra.mxu0 %v7683
        %10030 = vmatprep.subr.bf16.mxu0 %v7676
        %10031 = vmatpush2.bf16.msra.mxu0 %v7675
        %10032 = vmatprep.subr.bf16.mxu0 %v7668
        %10033 = vmatpush2.bf16.msra.mxu0 %v7667
        %10034 = vmatprep.subr.bf16.mxu0 %v7660
        %10035 = vmatpush2.bf16.msra.mxu0 %v7659
        %10036 = vmatprep.subr.bf16.mxu0 %v7652
        %10037 = vmatpush2.bf16.msra.mxu0 %v7651
        %10038 = vmatprep.subr.bf16.mxu0 %v7644
        %10039 = vmatpush2.bf16.msra.mxu0 %v7643
        %10040 = vmatprep.subr.bf16.mxu0 %v7636
        %10041 = vmatpush2.bf16.msra.mxu0 %v7635
        %10042 = vmatprep.mubr.bf16.mxu0 %v3078
        %10043 = vmatmul.mubr.bf16.gmra.mxu0 %v3077
        %v10044 = vpop.f32.mrf.mxu0
        %v10045 = vadd.f32 %v10004, %v10044
        %v10046 = vpop.f32.mrf.mxu0
        %v10047 = vadd.f32 %v10006, %v10046
        %v10048 = vpop.f32.mrf.mxu0
        %v10049 = vpop.f32.mrf.mxu0
        %10050 = vdwg.mxu0
        %10051 = vmatprep.subr.bf16.mxu0 %v7756
        %10052 = vmatpush1.bf16.msra.mxu0 %v7755
        %10053 = vmatprep.subr.bf16.mxu0 %v7748
        %10054 = vmatpush1.bf16.msra.mxu0 %v7747
        %10055 = vmatprep.subr.bf16.mxu0 %v7740
        %10056 = vmatpush1.bf16.msra.mxu0 %v7739
        %10057 = vmatprep.subr.bf16.mxu0 %v7732
        %10058 = vmatpush1.bf16.msra.mxu0 %v7731
        %10059 = vmatprep.subr.bf16.mxu0 %v7724
        %10060 = vmatpush1.bf16.msra.mxu0 %v7723
        %10061 = vmatprep.subr.bf16.mxu0 %v7716
        %10062 = vmatpush1.bf16.msra.mxu0 %v7715
        %10063 = vmatprep.subr.bf16.mxu0 %v7708
        %10064 = vmatpush1.bf16.msra.mxu0 %v7707
        %10065 = vmatprep.subr.bf16.mxu0 %v7700
        %10066 = vmatpush1.bf16.msra.mxu0 %v7699
        %10067 = vmatprep.subr.bf16.mxu0 %v7820
        %10068 = vmatpush2.bf16.msra.mxu0 %v7819
        %10069 = vmatprep.subr.bf16.mxu0 %v7812
        %10070 = vmatpush2.bf16.msra.mxu0 %v7811
        %10071 = vmatprep.subr.bf16.mxu0 %v7804
        %10072 = vmatpush2.bf16.msra.mxu0 %v7803
        %10073 = vmatprep.subr.bf16.mxu0 %v7796
        %10074 = vmatpush2.bf16.msra.mxu0 %v7795
        %10075 = vmatprep.subr.bf16.mxu0 %v7788
        %10076 = vmatpush2.bf16.msra.mxu0 %v7787
        %10077 = vmatprep.subr.bf16.mxu0 %v7780
        %10078 = vmatpush2.bf16.msra.mxu0 %v7779
        %10079 = vmatprep.subr.bf16.mxu0 %v7772
        %10080 = vmatpush2.bf16.msra.mxu0 %v7771
        %10081 = vmatprep.subr.bf16.mxu0 %v7764
        %10082 = vmatpush2.bf16.msra.mxu0 %v7763
        %10083 = vmatprep.mubr.bf16.mxu0 %v3080
        %10084 = vmatmul.mubr.bf16.gmra.mxu0 %v3079
        %v10085 = vpop.f32.mrf.mxu0
        %v10086 = vadd.f32 %v10045, %v10085
        %v10087 = vpop.f32.mrf.mxu0
        %v10088 = vadd.f32 %v10047, %v10087
        %v10089 = vpop.f32.mrf.mxu0
        %v10090 = vpop.f32.mrf.mxu0
        %10091 = vdwg.mxu0
        %10092 = vmatprep.subr.bf16.mxu0 %v7884
        %10093 = vmatpush1.bf16.msra.mxu0 %v7883
        %10094 = vmatprep.subr.bf16.mxu0 %v7876
        %10095 = vmatpush1.bf16.msra.mxu0 %v7875
        %10096 = vmatprep.subr.bf16.mxu0 %v7868
        %10097 = vmatpush1.bf16.msra.mxu0 %v7867
        %10098 = vmatprep.subr.bf16.mxu0 %v7860
        %10099 = vmatpush1.bf16.msra.mxu0 %v7859
        %10100 = vmatprep.subr.bf16.mxu0 %v7852
        %10101 = vmatpush1.bf16.msra.mxu0 %v7851
        %10102 = vmatprep.subr.bf16.mxu0 %v7844
        %10103 = vmatpush1.bf16.msra.mxu0 %v7843
        %10104 = vmatprep.subr.bf16.mxu0 %v7836
        %10105 = vmatpush1.bf16.msra.mxu0 %v7835
        %10106 = vmatprep.subr.bf16.mxu0 %v7828
        %10107 = vmatpush1.bf16.msra.mxu0 %v7827
        %10108 = vmatprep.subr.bf16.mxu0 %v7948
        %10109 = vmatpush2.bf16.msra.mxu0 %v7947
        %10110 = vmatprep.subr.bf16.mxu0 %v7940
        %10111 = vmatpush2.bf16.msra.mxu0 %v7939
        %10112 = vmatprep.subr.bf16.mxu0 %v7932
        %10113 = vmatpush2.bf16.msra.mxu0 %v7931
        %10114 = vmatprep.subr.bf16.mxu0 %v7924
        %10115 = vmatpush2.bf16.msra.mxu0 %v7923
        %10116 = vmatprep.subr.bf16.mxu0 %v7916
        %10117 = vmatpush2.bf16.msra.mxu0 %v7915
        %10118 = vmatprep.subr.bf16.mxu0 %v7908
        %10119 = vmatpush2.bf16.msra.mxu0 %v7907
        %10120 = vmatprep.subr.bf16.mxu0 %v7900
        %10121 = vmatpush2.bf16.msra.mxu0 %v7899
        %10122 = vmatprep.subr.bf16.mxu0 %v7892
        %10123 = vmatpush2.bf16.msra.mxu0 %v7891
        %10124 = vmatprep.mubr.bf16.mxu0 %v3082
        %10125 = vmatmul.mubr.bf16.gmra.mxu0 %v3081
        %v10126 = vpop.f32.mrf.mxu0
        %v10127 = vadd.f32 %v10086, %v10126
        %v10128 = vpop.f32.mrf.mxu0
        %v10129 = vadd.f32 %v10088, %v10128
        %v10130 = vpop.f32.mrf.mxu0
        %v10131 = vpop.f32.mrf.mxu0
        %10132 = vdwg.mxu0
        %10133 = vmatprep.subr.bf16.mxu0 %v8012
        %10134 = vmatpush1.bf16.msra.mxu0 %v8011
        %10135 = vmatprep.subr.bf16.mxu0 %v8004
        %10136 = vmatpush1.bf16.msra.mxu0 %v8003
        %10137 = vmatprep.subr.bf16.mxu0 %v7996
        %10138 = vmatpush1.bf16.msra.mxu0 %v7995
        %10139 = vmatprep.subr.bf16.mxu0 %v7988
        %10140 = vmatpush1.bf16.msra.mxu0 %v7987
        %10141 = vmatprep.subr.bf16.mxu0 %v7980
        %10142 = vmatpush1.bf16.msra.mxu0 %v7979
        %10143 = vmatprep.subr.bf16.mxu0 %v7972
        %10144 = vmatpush1.bf16.msra.mxu0 %v7971
        %10145 = vmatprep.subr.bf16.mxu0 %v7964
        %10146 = vmatpush1.bf16.msra.mxu0 %v7963
        %10147 = vmatprep.subr.bf16.mxu0 %v7956
        %10148 = vmatpush1.bf16.msra.mxu0 %v7955
        %10149 = vmatprep.subr.bf16.mxu0 %v8076
        %10150 = vmatpush2.bf16.msra.mxu0 %v8075
        %10151 = vmatprep.subr.bf16.mxu0 %v8068
        %10152 = vmatpush2.bf16.msra.mxu0 %v8067
        %10153 = vmatprep.subr.bf16.mxu0 %v8060
        %10154 = vmatpush2.bf16.msra.mxu0 %v8059
        %10155 = vmatprep.subr.bf16.mxu0 %v8052
        %10156 = vmatpush2.bf16.msra.mxu0 %v8051
        %10157 = vmatprep.subr.bf16.mxu0 %v8044
        %10158 = vmatpush2.bf16.msra.mxu0 %v8043
        %10159 = vmatprep.subr.bf16.mxu0 %v8036
        %10160 = vmatpush2.bf16.msra.mxu0 %v8035
        %10161 = vmatprep.subr.bf16.mxu0 %v8028
        %10162 = vmatpush2.bf16.msra.mxu0 %v8027
        %10163 = vmatprep.subr.bf16.mxu0 %v8020
        %10164 = vmatpush2.bf16.msra.mxu0 %v8019
        %10165 = vmatprep.mubr.bf16.mxu0 %v3084
        %10166 = vmatmul.mubr.bf16.gmra.mxu0 %v3083
        %v10167 = vpop.f32.mrf.mxu0
        %v10168 = vadd.f32 %v10127, %v10167
        %v10169 = vpop.f32.mrf.mxu0
        %v10170 = vadd.f32 %v10129, %v10169
        %v10171 = vpop.f32.mrf.mxu0
        %v10172 = vpop.f32.mrf.mxu0
        %10173 = vdwg.mxu0
        %10174 = vmatprep.subr.bf16.mxu0 %v8140
        %10175 = vmatpush1.bf16.msra.mxu0 %v8139
        %10176 = vmatprep.subr.bf16.mxu0 %v8132
        %10177 = vmatpush1.bf16.msra.mxu0 %v8131
        %10178 = vmatprep.subr.bf16.mxu0 %v8124
        %10179 = vmatpush1.bf16.msra.mxu0 %v8123
        %10180 = vmatprep.subr.bf16.mxu0 %v8116
        %10181 = vmatpush1.bf16.msra.mxu0 %v8115
        %10182 = vmatprep.subr.bf16.mxu0 %v8108
        %10183 = vmatpush1.bf16.msra.mxu0 %v8107
        %10184 = vmatprep.subr.bf16.mxu0 %v8100
        %10185 = vmatpush1.bf16.msra.mxu0 %v8099
        %10186 = vmatprep.subr.bf16.mxu0 %v8092
        %10187 = vmatpush1.bf16.msra.mxu0 %v8091
        %10188 = vmatprep.subr.bf16.mxu0 %v8084
        %10189 = vmatpush1.bf16.msra.mxu0 %v8083
        %10190 = vmatprep.subr.bf16.mxu0 %v8204
        %10191 = vmatpush2.bf16.msra.mxu0 %v8203
        %10192 = vmatprep.subr.bf16.mxu0 %v8196
        %10193 = vmatpush2.bf16.msra.mxu0 %v8195
        %10194 = vmatprep.subr.bf16.mxu0 %v8188
        %10195 = vmatpush2.bf16.msra.mxu0 %v8187
        %10196 = vmatprep.subr.bf16.mxu0 %v8180
        %10197 = vmatpush2.bf16.msra.mxu0 %v8179
        %10198 = vmatprep.subr.bf16.mxu0 %v8172
        %10199 = vmatpush2.bf16.msra.mxu0 %v8171
        %10200 = vmatprep.subr.bf16.mxu0 %v8164
        %10201 = vmatpush2.bf16.msra.mxu0 %v8163
        %10202 = vmatprep.subr.bf16.mxu0 %v8156
        %10203 = vmatpush2.bf16.msra.mxu0 %v8155
        %10204 = vmatprep.subr.bf16.mxu0 %v8148
        %10205 = vmatpush2.bf16.msra.mxu0 %v8147
        %10206 = vmatprep.mubr.bf16.mxu0 %v3086
        %10207 = vmatmul.mubr.bf16.gmra.mxu0 %v3085
        %v10208 = vpop.f32.mrf.mxu0
        %v10209 = vadd.f32 %v10168, %v10208
        %v10210 = vpop.f32.mrf.mxu0
        %v10211 = vadd.f32 %v10170, %v10210
        %v10212 = vpop.f32.mrf.mxu0
        %v10213 = vpop.f32.mrf.mxu0
        %10214 = vdwg.mxu0
        %10215 = vmatprep.subr.bf16.mxu0 %v7246
        %10216 = vmatpush1.bf16.msra.mxu0 %v7245
        %10217 = vmatprep.subr.bf16.mxu0 %v7238
        %10218 = vmatpush1.bf16.msra.mxu0 %v7237
        %10219 = vmatprep.subr.bf16.mxu0 %v7230
        %10220 = vmatpush1.bf16.msra.mxu0 %v7229
        %10221 = vmatprep.subr.bf16.mxu0 %v7222
        %10222 = vmatpush1.bf16.msra.mxu0 %v7221
        %10223 = vmatprep.subr.bf16.mxu0 %v7214
        %10224 = vmatpush1.bf16.msra.mxu0 %v7213
        %10225 = vmatprep.subr.bf16.mxu0 %v7206
        %10226 = vmatpush1.bf16.msra.mxu0 %v7205
        %10227 = vmatprep.subr.bf16.mxu0 %v7198
        %10228 = vmatpush1.bf16.msra.mxu0 %v7197
        %10229 = vmatprep.subr.bf16.mxu0 %v7190
        %10230 = vmatpush1.bf16.msra.mxu0 %v7189
        %10231 = vmatprep.subr.bf16.mxu0 %v7310
        %10232 = vmatpush2.bf16.msra.mxu0 %v7309
        %10233 = vmatprep.subr.bf16.mxu0 %v7302
        %10234 = vmatpush2.bf16.msra.mxu0 %v7301
        %10235 = vmatprep.subr.bf16.mxu0 %v7294
        %10236 = vmatpush2.bf16.msra.mxu0 %v7293
        %10237 = vmatprep.subr.bf16.mxu0 %v7286
        %10238 = vmatpush2.bf16.msra.mxu0 %v7285
        %10239 = vmatprep.subr.bf16.mxu0 %v7278
        %10240 = vmatpush2.bf16.msra.mxu0 %v7277
        %10241 = vmatprep.subr.bf16.mxu0 %v7270
        %10242 = vmatpush2.bf16.msra.mxu0 %v7269
        %10243 = vmatprep.subr.bf16.mxu0 %v7262
        %10244 = vmatpush2.bf16.msra.mxu0 %v7261
        %10245 = vmatprep.subr.bf16.mxu0 %v7254
        %10246 = vmatpush2.bf16.msra.mxu0 %v7253
        %10247 = vmatprep.mubr.bf16.mxu0 %v3072
        %10248 = vmatmul.mubr.bf16.gmra.mxu0 %v3071
        %v10249 = vpop.f32.mrf.mxu0
        %v10250 = vadd.f32 0.0, %v10249
        %v10251 = vpop.f32.mrf.mxu0
        %v10252 = vadd.f32 0.0, %v10251
        %v10253 = vpop.f32.mrf.mxu0
        %v10254 = vpop.f32.mrf.mxu0
        %10255 = vdwg.mxu0
        %10256 = vmatprep.subr.bf16.mxu0 %v7374
        %10257 = vmatpush1.bf16.msra.mxu0 %v7373
        %10258 = vmatprep.subr.bf16.mxu0 %v7366
        %10259 = vmatpush1.bf16.msra.mxu0 %v7365
        %10260 = vmatprep.subr.bf16.mxu0 %v7358
        %10261 = vmatpush1.bf16.msra.mxu0 %v7357
        %10262 = vmatprep.subr.bf16.mxu0 %v7350
        %10263 = vmatpush1.bf16.msra.mxu0 %v7349
        %10264 = vmatprep.subr.bf16.mxu0 %v7342
        %10265 = vmatpush1.bf16.msra.mxu0 %v7341
        %10266 = vmatprep.subr.bf16.mxu0 %v7334
        %10267 = vmatpush1.bf16.msra.mxu0 %v7333
        %10268 = vmatprep.subr.bf16.mxu0 %v7326
        %10269 = vmatpush1.bf16.msra.mxu0 %v7325
        %10270 = vmatprep.subr.bf16.mxu0 %v7318
        %10271 = vmatpush1.bf16.msra.mxu0 %v7317
        %10272 = vmatprep.subr.bf16.mxu0 %v7438
        %10273 = vmatpush2.bf16.msra.mxu0 %v7437
        %10274 = vmatprep.subr.bf16.mxu0 %v7430
        %10275 = vmatpush2.bf16.msra.mxu0 %v7429
        %10276 = vmatprep.subr.bf16.mxu0 %v7422
        %10277 = vmatpush2.bf16.msra.mxu0 %v7421
        %10278 = vmatprep.subr.bf16.mxu0 %v7414
        %10279 = vmatpush2.bf16.msra.mxu0 %v7413
        %10280 = vmatprep.subr.bf16.mxu0 %v7406
        %10281 = vmatpush2.bf16.msra.mxu0 %v7405
        %10282 = vmatprep.subr.bf16.mxu0 %v7398
        %10283 = vmatpush2.bf16.msra.mxu0 %v7397
        %10284 = vmatprep.subr.bf16.mxu0 %v7390
        %10285 = vmatpush2.bf16.msra.mxu0 %v7389
        %10286 = vmatprep.subr.bf16.mxu0 %v7382
        %10287 = vmatpush2.bf16.msra.mxu0 %v7381
        %10288 = vmatprep.mubr.bf16.mxu0 %v3074
        %10289 = vmatmul.mubr.bf16.gmra.mxu0 %v3073
        %v10290 = vpop.f32.mrf.mxu0
        %v10291 = vadd.f32 %v10250, %v10290
        %v10292 = vpop.f32.mrf.mxu0
        %v10293 = vadd.f32 %v10252, %v10292
        %v10294 = vpop.f32.mrf.mxu0
        %v10295 = vpop.f32.mrf.mxu0
        %10296 = vdwg.mxu0
        %10297 = vmatprep.subr.bf16.mxu0 %v7502
        %10298 = vmatpush1.bf16.msra.mxu0 %v7501
        %10299 = vmatprep.subr.bf16.mxu0 %v7494
        %10300 = vmatpush1.bf16.msra.mxu0 %v7493
        %10301 = vmatprep.subr.bf16.mxu0 %v7486
        %10302 = vmatpush1.bf16.msra.mxu0 %v7485
        %10303 = vmatprep.subr.bf16.mxu0 %v7478
        %10304 = vmatpush1.bf16.msra.mxu0 %v7477
        %10305 = vmatprep.subr.bf16.mxu0 %v7470
        %10306 = vmatpush1.bf16.msra.mxu0 %v7469
        %10307 = vmatprep.subr.bf16.mxu0 %v7462
        %10308 = vmatpush1.bf16.msra.mxu0 %v7461
        %10309 = vmatprep.subr.bf16.mxu0 %v7454
        %10310 = vmatpush1.bf16.msra.mxu0 %v7453
        %10311 = vmatprep.subr.bf16.mxu0 %v7446
        %10312 = vmatpush1.bf16.msra.mxu0 %v7445
        %10313 = vmatprep.subr.bf16.mxu0 %v7566
        %10314 = vmatpush2.bf16.msra.mxu0 %v7565
        %10315 = vmatprep.subr.bf16.mxu0 %v7558
        %10316 = vmatpush2.bf16.msra.mxu0 %v7557
        %10317 = vmatprep.subr.bf16.mxu0 %v7550
        %10318 = vmatpush2.bf16.msra.mxu0 %v7549
        %10319 = vmatprep.subr.bf16.mxu0 %v7542
        %10320 = vmatpush2.bf16.msra.mxu0 %v7541
        %10321 = vmatprep.subr.bf16.mxu0 %v7534
        %10322 = vmatpush2.bf16.msra.mxu0 %v7533
        %10323 = vmatprep.subr.bf16.mxu0 %v7526
        %10324 = vmatpush2.bf16.msra.mxu0 %v7525
        %10325 = vmatprep.subr.bf16.mxu0 %v7518
        %10326 = vmatpush2.bf16.msra.mxu0 %v7517
        %10327 = vmatprep.subr.bf16.mxu0 %v7510
        %10328 = vmatpush2.bf16.msra.mxu0 %v7509
        %10329 = vmatprep.mubr.bf16.mxu0 %v3076
        %10330 = vmatmul.mubr.bf16.gmra.mxu0 %v3075
        %v10331 = vpop.f32.mrf.mxu0
        %v10332 = vadd.f32 %v10291, %v10331
        %v10333 = vpop.f32.mrf.mxu0
        %v10334 = vadd.f32 %v10293, %v10333
        %v10335 = vpop.f32.mrf.mxu0
        %v10336 = vpop.f32.mrf.mxu0
        %10337 = vdwg.mxu0
        %10338 = vmatprep.subr.bf16.mxu0 %v7630
        %10339 = vmatpush1.bf16.msra.mxu0 %v7629
        %10340 = vmatprep.subr.bf16.mxu0 %v7622
        %10341 = vmatpush1.bf16.msra.mxu0 %v7621
        %10342 = vmatprep.subr.bf16.mxu0 %v7614
        %10343 = vmatpush1.bf16.msra.mxu0 %v7613
        %10344 = vmatprep.subr.bf16.mxu0 %v7606
        %10345 = vmatpush1.bf16.msra.mxu0 %v7605
        %10346 = vmatprep.subr.bf16.mxu0 %v7598
        %10347 = vmatpush1.bf16.msra.mxu0 %v7597
        %10348 = vmatprep.subr.bf16.mxu0 %v7590
        %10349 = vmatpush1.bf16.msra.mxu0 %v7589
        %10350 = vmatprep.subr.bf16.mxu0 %v7582
        %10351 = vmatpush1.bf16.msra.mxu0 %v7581
        %10352 = vmatprep.subr.bf16.mxu0 %v7574
        %10353 = vmatpush1.bf16.msra.mxu0 %v7573
        %10354 = vmatprep.subr.bf16.mxu0 %v7694
        %10355 = vmatpush2.bf16.msra.mxu0 %v7693
        %10356 = vmatprep.subr.bf16.mxu0 %v7686
        %10357 = vmatpush2.bf16.msra.mxu0 %v7685
        %10358 = vmatprep.subr.bf16.mxu0 %v7678
        %10359 = vmatpush2.bf16.msra.mxu0 %v7677
        %10360 = vmatprep.subr.bf16.mxu0 %v7670
        %10361 = vmatpush2.bf16.msra.mxu0 %v7669
        %10362 = vmatprep.subr.bf16.mxu0 %v7662
        %10363 = vmatpush2.bf16.msra.mxu0 %v7661
        %10364 = vmatprep.subr.bf16.mxu0 %v7654
        %10365 = vmatpush2.bf16.msra.mxu0 %v7653
        %10366 = vmatprep.subr.bf16.mxu0 %v7646
        %10367 = vmatpush2.bf16.msra.mxu0 %v7645
        %10368 = vmatprep.subr.bf16.mxu0 %v7638
        %10369 = vmatpush2.bf16.msra.mxu0 %v7637
        %10370 = vmatprep.mubr.bf16.mxu0 %v3078
        %10371 = vmatmul.mubr.bf16.gmra.mxu0 %v3077
        %v10372 = vpop.f32.mrf.mxu0
        %v10373 = vadd.f32 %v10332, %v10372
        %v10374 = vpop.f32.mrf.mxu0
        %v10375 = vadd.f32 %v10334, %v10374
        %v10376 = vpop.f32.mrf.mxu0
        %v10377 = vpop.f32.mrf.mxu0
        %10378 = vdwg.mxu0
        %10379 = vmatprep.subr.bf16.mxu0 %v7758
        %10380 = vmatpush1.bf16.msra.mxu0 %v7757
        %10381 = vmatprep.subr.bf16.mxu0 %v7750
        %10382 = vmatpush1.bf16.msra.mxu0 %v7749
        %10383 = vmatprep.subr.bf16.mxu0 %v7742
        %10384 = vmatpush1.bf16.msra.mxu0 %v7741
        %10385 = vmatprep.subr.bf16.mxu0 %v7734
        %10386 = vmatpush1.bf16.msra.mxu0 %v7733
        %10387 = vmatprep.subr.bf16.mxu0 %v7726
        %10388 = vmatpush1.bf16.msra.mxu0 %v7725
        %10389 = vmatprep.subr.bf16.mxu0 %v7718
        %10390 = vmatpush1.bf16.msra.mxu0 %v7717
        %10391 = vmatprep.subr.bf16.mxu0 %v7710
        %10392 = vmatpush1.bf16.msra.mxu0 %v7709
        %10393 = vmatprep.subr.bf16.mxu0 %v7702
        %10394 = vmatpush1.bf16.msra.mxu0 %v7701
        %10395 = vmatprep.subr.bf16.mxu0 %v7822
        %10396 = vmatpush2.bf16.msra.mxu0 %v7821
        %10397 = vmatprep.subr.bf16.mxu0 %v7814
        %10398 = vmatpush2.bf16.msra.mxu0 %v7813
        %10399 = vmatprep.subr.bf16.mxu0 %v7806
        %10400 = vmatpush2.bf16.msra.mxu0 %v7805
        %10401 = vmatprep.subr.bf16.mxu0 %v7798
        %10402 = vmatpush2.bf16.msra.mxu0 %v7797
        %10403 = vmatprep.subr.bf16.mxu0 %v7790
        %10404 = vmatpush2.bf16.msra.mxu0 %v7789
        %10405 = vmatprep.subr.bf16.mxu0 %v7782
        %10406 = vmatpush2.bf16.msra.mxu0 %v7781
        %10407 = vmatprep.subr.bf16.mxu0 %v7774
        %10408 = vmatpush2.bf16.msra.mxu0 %v7773
        %10409 = vmatprep.subr.bf16.mxu0 %v7766
        %10410 = vmatpush2.bf16.msra.mxu0 %v7765
        %10411 = vmatprep.mubr.bf16.mxu0 %v3080
        %10412 = vmatmul.mubr.bf16.gmra.mxu0 %v3079
        %v10413 = vpop.f32.mrf.mxu0
        %v10414 = vadd.f32 %v10373, %v10413
        %v10415 = vpop.f32.mrf.mxu0
        %v10416 = vadd.f32 %v10375, %v10415
        %v10417 = vpop.f32.mrf.mxu0
        %v10418 = vpop.f32.mrf.mxu0
        %10419 = vdwg.mxu0
        %10420 = vmatprep.subr.bf16.mxu0 %v7886
        %10421 = vmatpush1.bf16.msra.mxu0 %v7885
        %10422 = vmatprep.subr.bf16.mxu0 %v7878
        %10423 = vmatpush1.bf16.msra.mxu0 %v7877
        %10424 = vmatprep.subr.bf16.mxu0 %v7870
        %10425 = vmatpush1.bf16.msra.mxu0 %v7869
        %10426 = vmatprep.subr.bf16.mxu0 %v7862
        %10427 = vmatpush1.bf16.msra.mxu0 %v7861
        %10428 = vmatprep.subr.bf16.mxu0 %v7854
        %10429 = vmatpush1.bf16.msra.mxu0 %v7853
        %10430 = vmatprep.subr.bf16.mxu0 %v7846
        %10431 = vmatpush1.bf16.msra.mxu0 %v7845
        %10432 = vmatprep.subr.bf16.mxu0 %v7838
        %10433 = vmatpush1.bf16.msra.mxu0 %v7837
        %10434 = vmatprep.subr.bf16.mxu0 %v7830
        %10435 = vmatpush1.bf16.msra.mxu0 %v7829
        %10436 = vmatprep.subr.bf16.mxu0 %v7950
        %10437 = vmatpush2.bf16.msra.mxu0 %v7949
        %10438 = vmatprep.subr.bf16.mxu0 %v7942
        %10439 = vmatpush2.bf16.msra.mxu0 %v7941
        %10440 = vmatprep.subr.bf16.mxu0 %v7934
        %10441 = vmatpush2.bf16.msra.mxu0 %v7933
        %10442 = vmatprep.subr.bf16.mxu0 %v7926
        %10443 = vmatpush2.bf16.msra.mxu0 %v7925
        %10444 = vmatprep.subr.bf16.mxu0 %v7918
        %10445 = vmatpush2.bf16.msra.mxu0 %v7917
        %10446 = vmatprep.subr.bf16.mxu0 %v7910
        %10447 = vmatpush2.bf16.msra.mxu0 %v7909
        %10448 = vmatprep.subr.bf16.mxu0 %v7902
        %10449 = vmatpush2.bf16.msra.mxu0 %v7901
        %10450 = vmatprep.subr.bf16.mxu0 %v7894
        %10451 = vmatpush2.bf16.msra.mxu0 %v7893
        %10452 = vmatprep.mubr.bf16.mxu0 %v3082
        %10453 = vmatmul.mubr.bf16.gmra.mxu0 %v3081
        %v10454 = vpop.f32.mrf.mxu0
        %v10455 = vadd.f32 %v10414, %v10454
        %v10456 = vpop.f32.mrf.mxu0
        %v10457 = vadd.f32 %v10416, %v10456
        %v10458 = vpop.f32.mrf.mxu0
        %v10459 = vpop.f32.mrf.mxu0
        %10460 = vdwg.mxu0
        %10461 = vmatprep.subr.bf16.mxu0 %v8014
        %10462 = vmatpush1.bf16.msra.mxu0 %v8013
        %10463 = vmatprep.subr.bf16.mxu0 %v8006
        %10464 = vmatpush1.bf16.msra.mxu0 %v8005
        %10465 = vmatprep.subr.bf16.mxu0 %v7998
        %10466 = vmatpush1.bf16.msra.mxu0 %v7997
        %10467 = vmatprep.subr.bf16.mxu0 %v7990
        %10468 = vmatpush1.bf16.msra.mxu0 %v7989
        %10469 = vmatprep.subr.bf16.mxu0 %v7982
        %10470 = vmatpush1.bf16.msra.mxu0 %v7981
        %10471 = vmatprep.subr.bf16.mxu0 %v7974
        %10472 = vmatpush1.bf16.msra.mxu0 %v7973
        %10473 = vmatprep.subr.bf16.mxu0 %v7966
        %10474 = vmatpush1.bf16.msra.mxu0 %v7965
        %10475 = vmatprep.subr.bf16.mxu0 %v7958
        %10476 = vmatpush1.bf16.msra.mxu0 %v7957
        %10477 = vmatprep.subr.bf16.mxu0 %v8078
        %10478 = vmatpush2.bf16.msra.mxu0 %v8077
        %10479 = vmatprep.subr.bf16.mxu0 %v8070
        %10480 = vmatpush2.bf16.msra.mxu0 %v8069
        %10481 = vmatprep.subr.bf16.mxu0 %v8062
        %10482 = vmatpush2.bf16.msra.mxu0 %v8061
        %10483 = vmatprep.subr.bf16.mxu0 %v8054
        %10484 = vmatpush2.bf16.msra.mxu0 %v8053
        %10485 = vmatprep.subr.bf16.mxu0 %v8046
        %10486 = vmatpush2.bf16.msra.mxu0 %v8045
        %10487 = vmatprep.subr.bf16.mxu0 %v8038
        %10488 = vmatpush2.bf16.msra.mxu0 %v8037
        %10489 = vmatprep.subr.bf16.mxu0 %v8030
        %10490 = vmatpush2.bf16.msra.mxu0 %v8029
        %10491 = vmatprep.subr.bf16.mxu0 %v8022
        %10492 = vmatpush2.bf16.msra.mxu0 %v8021
        %10493 = vmatprep.mubr.bf16.mxu0 %v3084
        %10494 = vmatmul.mubr.bf16.gmra.mxu0 %v3083
        %v10495 = vpop.f32.mrf.mxu0
        %v10496 = vadd.f32 %v10455, %v10495
        %v10497 = vpop.f32.mrf.mxu0
        %v10498 = vadd.f32 %v10457, %v10497
        %v10499 = vpop.f32.mrf.mxu0
        %v10500 = vpop.f32.mrf.mxu0
        %10501 = vdwg.mxu0
        %10502 = vmatprep.subr.bf16.mxu0 %v8142
        %10503 = vmatpush1.bf16.msra.mxu0 %v8141
        %10504 = vmatprep.subr.bf16.mxu0 %v8134
        %10505 = vmatpush1.bf16.msra.mxu0 %v8133
        %10506 = vmatprep.subr.bf16.mxu0 %v8126
        %10507 = vmatpush1.bf16.msra.mxu0 %v8125
        %10508 = vmatprep.subr.bf16.mxu0 %v8118
        %10509 = vmatpush1.bf16.msra.mxu0 %v8117
        %10510 = vmatprep.subr.bf16.mxu0 %v8110
        %10511 = vmatpush1.bf16.msra.mxu0 %v8109
        %10512 = vmatprep.subr.bf16.mxu0 %v8102
        %10513 = vmatpush1.bf16.msra.mxu0 %v8101
        %10514 = vmatprep.subr.bf16.mxu0 %v8094
        %10515 = vmatpush1.bf16.msra.mxu0 %v8093
        %10516 = vmatprep.subr.bf16.mxu0 %v8086
        %10517 = vmatpush1.bf16.msra.mxu0 %v8085
        %10518 = vmatprep.subr.bf16.mxu0 %v8206
        %10519 = vmatpush2.bf16.msra.mxu0 %v8205
        %10520 = vmatprep.subr.bf16.mxu0 %v8198
        %10521 = vmatpush2.bf16.msra.mxu0 %v8197
        %10522 = vmatprep.subr.bf16.mxu0 %v8190
        %10523 = vmatpush2.bf16.msra.mxu0 %v8189
        %10524 = vmatprep.subr.bf16.mxu0 %v8182
        %10525 = vmatpush2.bf16.msra.mxu0 %v8181
        %10526 = vmatprep.subr.bf16.mxu0 %v8174
        %10527 = vmatpush2.bf16.msra.mxu0 %v8173
        %10528 = vmatprep.subr.bf16.mxu0 %v8166
        %10529 = vmatpush2.bf16.msra.mxu0 %v8165
        %10530 = vmatprep.subr.bf16.mxu0 %v8158
        %10531 = vmatpush2.bf16.msra.mxu0 %v8157
        %10532 = vmatprep.subr.bf16.mxu0 %v8150
        %10533 = vmatpush2.bf16.msra.mxu0 %v8149
        %10534 = vmatprep.mubr.bf16.mxu0 %v3086
        %10535 = vmatmul.mubr.bf16.gmra.mxu0 %v3085
        %v10536 = vpop.f32.mrf.mxu0
        %v10537 = vadd.f32 %v10496, %v10536
        %v10538 = vpop.f32.mrf.mxu0
        %v10539 = vadd.f32 %v10498, %v10538
        %v10540 = vpop.f32.mrf.mxu0
        %v10541 = vpop.f32.mrf.mxu0
        %10542 = vdwg.mxu0
        %s10543 = smul.u32 %s23, 8
        %s10544 = sshra.s32 %s10543, 3
        %s10545 = sand.u32 %s10543, 7
        %s10546 = smul.u32 %s10544, 8
        %s10547 = smul.addr %s10546, 8
        %s10548 = scalar_lea.vmem [#allocation2], %s10547
        %10549 = vst [vmem:[%s10548] sm:$0xff] %v9553
        %10550 = vst [vmem:[%s10548 + $0x8] sm:$0xff] %v9555
        %10551 = vst [vmem:[%s10548 + $0x10] sm:$0xff] %v9881
        %10552 = vst [vmem:[%s10548 + $0x18] sm:$0xff] %v9883
        %10553 = vst [vmem:[%s10548 + $0x20] sm:$0xff] %v10209
        %10554 = vst [vmem:[%s10548 + $0x28] sm:$0xff] %v10211
        %10555 = vst [vmem:[%s10548 + $0x30] sm:$0xff] %v10537
        %10556 = vst [vmem:[%s10548 + $0x38] sm:$0xff] %v10539
        %p10557 = scmp.eq.s32.totalorder %s23, 1
        // Predicated region
        $region69: #{dcgan_netD_fc_forward.1} parent=47 // pred_check
          %p10558 = pneg %p10557
        $region70: #{dcgan_netD_fc_forward.1} parent=47 // pred_check_branch
          %10560 = sbr.rel (%p10558) target = $region72
        $region71: #{dcgan_netD_fc_forward.1} parent=47 // pred_region
          %v10561 = vld [vmem:[#allocation2] sm:$0xff]
          %v10562 = vld [vmem:[#allocation2 + $0x8] sm:$0xff]
          %v10563 = vld [vmem:[#allocation2 + $0x10] sm:$0xff]
          %v10564 = vld [vmem:[#allocation2 + $0x18] sm:$0xff]
          %v10565 = vld [vmem:[#allocation2 + $0x20] sm:$0xff]
          %v10566 = vld [vmem:[#allocation2 + $0x28] sm:$0xff]
          %v10567 = vld [vmem:[#allocation2 + $0x30] sm:$0xff]
          %v10568 = vld [vmem:[#allocation2 + $0x38] sm:$0xff]
          %v10569 = vld [vmem:[#allocation2 + $0x40] sm:$0xff]
          %v10570 = vld [vmem:[#allocation2 + $0x48] sm:$0xff]
          %v10571 = vld [vmem:[#allocation2 + $0x50] sm:$0xff]
          %v10572 = vld [vmem:[#allocation2 + $0x58] sm:$0xff]
          %v10573 = vld [vmem:[#allocation2 + $0x60] sm:$0xff]
          %v10574 = vld [vmem:[#allocation2 + $0x68] sm:$0xff]
          %v10575 = vld [vmem:[#allocation2 + $0x70] sm:$0xff]
          %v10576 = vld [vmem:[#allocation2 + $0x78] sm:$0xff]
          %v10577 = vadd.f32 %v10561, %v10569
          %v10578 = vrot.slane %v10577, 4
          %v10579 = vadd.f32 %v10577, %v10578
          %v10580 = vrot.slane %v10579, 2
          %v10581 = vadd.f32 %v10579, %v10580
          %v10582 = vrot.slane %v10581, 1
          %v10583 = vadd.f32 %v10581, %v10582
          %v10584 = vadd.f32 %v10562, %v10570
          %v10585 = vrot.slane %v10584, 4
          %v10586 = vadd.f32 %v10584, %v10585
          %v10587 = vrot.slane %v10586, 2
          %v10588 = vadd.f32 %v10586, %v10587
          %v10589 = vrot.slane %v10588, 1
          %v10590 = vadd.f32 %v10588, %v10589
          %v10591 = vadd.f32 %v10563, %v10571
          %v10592 = vrot.slane %v10591, 4
          %v10593 = vadd.f32 %v10591, %v10592
          %v10594 = vrot.slane %v10593, 2
          %v10595 = vadd.f32 %v10593, %v10594
          %v10596 = vrot.slane %v10595, 1
          %v10597 = vadd.f32 %v10595, %v10596
          %v10598 = vadd.f32 %v10564, %v10572
          %v10599 = vrot.slane %v10598, 4
          %v10600 = vadd.f32 %v10598, %v10599
          %v10601 = vrot.slane %v10600, 2
          %v10602 = vadd.f32 %v10600, %v10601
          %v10603 = vrot.slane %v10602, 1
          %v10604 = vadd.f32 %v10602, %v10603
          %v10605 = vadd.f32 %v10565, %v10573
          %v10606 = vrot.slane %v10605, 4
          %v10607 = vadd.f32 %v10605, %v10606
          %v10608 = vrot.slane %v10607, 2
          %v10609 = vadd.f32 %v10607, %v10608
          %v10610 = vrot.slane %v10609, 1
          %v10611 = vadd.f32 %v10609, %v10610
          %v10612 = vadd.f32 %v10566, %v10574
          %v10613 = vrot.slane %v10612, 4
          %v10614 = vadd.f32 %v10612, %v10613
          %v10615 = vrot.slane %v10614, 2
          %v10616 = vadd.f32 %v10614, %v10615
          %v10617 = vrot.slane %v10616, 1
          %v10618 = vadd.f32 %v10616, %v10617
          %v10619 = vadd.f32 %v10567, %v10575
          %v10620 = vrot.slane %v10619, 4
          %v10621 = vadd.f32 %v10619, %v10620
          %v10622 = vrot.slane %v10621, 2
          %v10623 = vadd.f32 %v10621, %v10622
          %v10624 = vrot.slane %v10623, 1
          %v10625 = vadd.f32 %v10623, %v10624
          %v10626 = vadd.f32 %v10568, %v10576
          %v10627 = vrot.slane %v10626, 4
          %v10628 = vadd.f32 %v10626, %v10627
          %v10629 = vrot.slane %v10628, 2
          %v10630 = vadd.f32 %v10628, %v10629
          %v10631 = vrot.slane %v10630, 1
          %v10632 = vadd.f32 %v10630, %v10631
          %10634 = vrot.lane.b32.xlu0 %v10583, 64
          %v10635 = vpop.permute.xlu0 %10634
          %v10637 = vadd.f32 %v10583, %v10635
          %v10638 = vadd.f32 %v10637, %v10590
          %10640 = vrot.lane.b32.xlu0 %v10590, 64
          %v10641 = vpop.permute.xlu0 %10640
          %v10643 = vadd.f32 %v10638, %v10641
          %v10644 = vadd.f32 %v10643, %v10597
          %10646 = vrot.lane.b32.xlu0 %v10597, 64
          %v10647 = vpop.permute.xlu0 %10646
          %v10649 = vadd.f32 %v10644, %v10647
          %v10650 = vadd.f32 %v10649, %v10604
          %10652 = vrot.lane.b32.xlu0 %v10604, 64
          %v10653 = vpop.permute.xlu0 %10652
          %v10655 = vadd.f32 %v10650, %v10653
          %v10656 = vadd.f32 %v10655, %v10611
          %10658 = vrot.lane.b32.xlu0 %v10611, 64
          %v10659 = vpop.permute.xlu0 %10658
          %v10661 = vadd.f32 %v10656, %v10659
          %v10662 = vadd.f32 %v10661, %v10618
          %10664 = vrot.lane.b32.xlu0 %v10618, 64
          %v10665 = vpop.permute.xlu0 %10664
          %v10667 = vadd.f32 %v10662, %v10665
          %v10668 = vadd.f32 %v10667, %v10625
          %10670 = vrot.lane.b32.xlu0 %v10625, 64
          %v10671 = vpop.permute.xlu0 %10670
          %v10673 = vadd.f32 %v10668, %v10671
          %v10674 = vadd.f32 %v10673, %v10632
          %10676 = vrot.lane.b32.xlu0 %v10632, 64
          %v10677 = vpop.permute.xlu0 %10676
          %v10679 = vadd.f32 %v10674, %v10677
          %v10680 = vmul.f32 %v10679, 0.00390625
          %10682 = vrot.lane.b32.xlu0 %v10680, 64
          %v10683 = vpop.permute.xlu0 %10682
          %vm10685 = vcmask 523264
          %v10686 = vsel %vm10685, %v10680, %v10683
          %v10687 = vlaneseq
          %v10688 = vshrl.u32 %v10687, 7
          %v10689 = vsub.s32 0, %v10688
          %v10690 = vrot.slane %v10686, %v10689
          %v10691 = vsub.f32 %v10561, %v10690
          %v10692 = vsub.f32 %v10562, %v10690
          %v10693 = vsub.f32 %v10563, %v10690
          %v10694 = vsub.f32 %v10564, %v10690
          %v10695 = vsub.f32 %v10565, %v10690
          %v10696 = vsub.f32 %v10566, %v10690
          %v10697 = vsub.f32 %v10567, %v10690
          %v10698 = vsub.f32 %v10568, %v10690
          %v10699 = vsub.f32 %v10569, %v10690
          %v10700 = vsub.f32 %v10570, %v10690
          %v10701 = vsub.f32 %v10571, %v10690
          %v10702 = vsub.f32 %v10572, %v10690
          %v10703 = vsub.f32 %v10573, %v10690
          %v10704 = vsub.f32 %v10574, %v10690
          %v10705 = vsub.f32 %v10575, %v10690
          %v10706 = vsub.f32 %v10576, %v10690
          %v10707 = vmul.f32 %v10691, %v10691
          %v10708 = vmul.f32 %v10692, %v10692
          %v10709 = vmul.f32 %v10693, %v10693
          %v10710 = vmul.f32 %v10694, %v10694
          %v10711 = vmul.f32 %v10695, %v10695
          %v10712 = vmul.f32 %v10696, %v10696
          %v10713 = vmul.f32 %v10697, %v10697
          %v10714 = vmul.f32 %v10698, %v10698
          %v10715 = vmul.f32 %v10699, %v10699
          %v10716 = vmul.f32 %v10700, %v10700
          %v10717 = vmul.f32 %v10701, %v10701
          %v10718 = vmul.f32 %v10702, %v10702
          %v10719 = vmul.f32 %v10703, %v10703
          %v10720 = vmul.f32 %v10704, %v10704
          %v10721 = vmul.f32 %v10705, %v10705
          %v10722 = vmul.f32 %v10706, %v10706
          %v10723 = vadd.f32 %v10707, %v10715
          %v10724 = vrot.slane %v10723, 4
          %v10725 = vadd.f32 %v10723, %v10724
          %v10726 = vrot.slane %v10725, 2
          %v10727 = vadd.f32 %v10725, %v10726
          %v10728 = vrot.slane %v10727, 1
          %v10729 = vadd.f32 %v10727, %v10728
          %v10730 = vadd.f32 %v10708, %v10716
          %v10731 = vrot.slane %v10730, 4
          %v10732 = vadd.f32 %v10730, %v10731
          %v10733 = vrot.slane %v10732, 2
          %v10734 = vadd.f32 %v10732, %v10733
          %v10735 = vrot.slane %v10734, 1
          %v10736 = vadd.f32 %v10734, %v10735
          %v10737 = vadd.f32 %v10709, %v10717
          %v10738 = vrot.slane %v10737, 4
          %v10739 = vadd.f32 %v10737, %v10738
          %v10740 = vrot.slane %v10739, 2
          %v10741 = vadd.f32 %v10739, %v10740
          %v10742 = vrot.slane %v10741, 1
          %v10743 = vadd.f32 %v10741, %v10742
          %v10744 = vadd.f32 %v10710, %v10718
          %v10745 = vrot.slane %v10744, 4
          %v10746 = vadd.f32 %v10744, %v10745
          %v10747 = vrot.slane %v10746, 2
          %v10748 = vadd.f32 %v10746, %v10747
          %v10749 = vrot.slane %v10748, 1
          %v10750 = vadd.f32 %v10748, %v10749
          %v10751 = vadd.f32 %v10711, %v10719
          %v10752 = vrot.slane %v10751, 4
          %v10753 = vadd.f32 %v10751, %v10752
          %v10754 = vrot.slane %v10753, 2
          %v10755 = vadd.f32 %v10753, %v10754
          %v10756 = vrot.slane %v10755, 1
          %v10757 = vadd.f32 %v10755, %v10756
          %v10758 = vadd.f32 %v10712, %v10720
          %v10759 = vrot.slane %v10758, 4
          %v10760 = vadd.f32 %v10758, %v10759
          %v10761 = vrot.slane %v10760, 2
          %v10762 = vadd.f32 %v10760, %v10761
          %v10763 = vrot.slane %v10762, 1
          %v10764 = vadd.f32 %v10762, %v10763
          %v10765 = vadd.f32 %v10713, %v10721
          %v10766 = vrot.slane %v10765, 4
          %v10767 = vadd.f32 %v10765, %v10766
          %v10768 = vrot.slane %v10767, 2
          %v10769 = vadd.f32 %v10767, %v10768
          %v10770 = vrot.slane %v10769, 1
          %v10771 = vadd.f32 %v10769, %v10770
          %v10772 = vadd.f32 %v10714, %v10722
          %v10773 = vrot.slane %v10772, 4
          %v10774 = vadd.f32 %v10772, %v10773
          %v10775 = vrot.slane %v10774, 2
          %v10776 = vadd.f32 %v10774, %v10775
          %v10777 = vrot.slane %v10776, 1
          %v10778 = vadd.f32 %v10776, %v10777
          %10780 = vrot.lane.b32.xlu0 %v10729, 64
          %v10781 = vpop.permute.xlu0 %10780
          %v10783 = vadd.f32 %v10729, %v10781
          %v10784 = vadd.f32 %v10783, %v10736
          %10786 = vrot.lane.b32.xlu0 %v10736, 64
          %v10787 = vpop.permute.xlu0 %10786
          %v10789 = vadd.f32 %v10784, %v10787
          %v10790 = vadd.f32 %v10789, %v10743
          %10792 = vrot.lane.b32.xlu0 %v10743, 64
          %v10793 = vpop.permute.xlu0 %10792
          %v10795 = vadd.f32 %v10790, %v10793
          %v10796 = vadd.f32 %v10795, %v10750
          %10798 = vrot.lane.b32.xlu0 %v10750, 64
          %v10799 = vpop.permute.xlu0 %10798
          %v10801 = vadd.f32 %v10796, %v10799
          %v10802 = vadd.f32 %v10801, %v10757
          %10804 = vrot.lane.b32.xlu0 %v10757, 64
          %v10805 = vpop.permute.xlu0 %10804
          %v10807 = vadd.f32 %v10802, %v10805
          %v10808 = vadd.f32 %v10807, %v10764
          %10810 = vrot.lane.b32.xlu0 %v10764, 64
          %v10811 = vpop.permute.xlu0 %10810
          %v10813 = vadd.f32 %v10808, %v10811
          %v10814 = vadd.f32 %v10813, %v10771
          %10816 = vrot.lane.b32.xlu0 %v10771, 64
          %v10817 = vpop.permute.xlu0 %10816
          %v10819 = vadd.f32 %v10814, %v10817
          %v10820 = vadd.f32 %v10819, %v10778
          %10822 = vrot.lane.b32.xlu0 %v10778, 64
          %v10823 = vpop.permute.xlu0 %10822
          %v10825 = vadd.f32 %v10820, %v10823
          %v10826 = vmul.f32 %v10825, 0.00390625
          %v10827 = vld [vmem:[#allocation8] sm:$0x1]
          %v10828 = vadd.f32 %v10826, 1e-05
          %v10829 = vrsqrt.pop %v10828
          %v10830 = vmul.f32 %v10827, %v10829
          %v10832 = vlaneseq
          %v10833 = vshrl.u32 %v10832, 7
          %v10834 = vsub.s32 0, %v10833
          %v10835 = vrot.slane %v10830, %v10834
          %10836 = vrot.lane.b32.xlu0 %v10835, 64
          %v10837 = vpop.permute.xlu0 %10836
          %v10839 = vsel %vm10685, %v10830, %v10837
          %v10840 = vld [vmem:[#allocation9] sm:$0x1]
          %v10842 = vlaneseq
          %v10843 = vshrl.u32 %v10842, 7
          %v10844 = vsub.s32 0, %v10843
          %v10845 = vrot.slane %v10840, %v10844
          %10846 = vrot.lane.b32.xlu0 %v10845, 64
          %v10847 = vpop.permute.xlu0 %10846
          %v10849 = vsel %vm10685, %v10840, %v10847
          %v10850 = vlaneseq
          %v10851 = vshrl.u32 %v10850, 7
          %v10852 = vsub.s32 0, %v10851
          %v10853 = vrot.slane %v10839, %v10852
          %v10854 = vmul.f32 %v10691, %v10853
          %v10855 = vmul.f32 %v10692, %v10853
          %v10856 = vmul.f32 %v10693, %v10853
          %v10857 = vmul.f32 %v10694, %v10853
          %v10858 = vmul.f32 %v10695, %v10853
          %v10859 = vmul.f32 %v10696, %v10853
          %v10860 = vmul.f32 %v10697, %v10853
          %v10861 = vmul.f32 %v10698, %v10853
          %v10862 = vmul.f32 %v10699, %v10853
          %v10863 = vmul.f32 %v10700, %v10853
          %v10864 = vmul.f32 %v10701, %v10853
          %v10865 = vmul.f32 %v10702, %v10853
          %v10866 = vmul.f32 %v10703, %v10853
          %v10867 = vmul.f32 %v10704, %v10853
          %v10868 = vmul.f32 %v10705, %v10853
          %v10869 = vmul.f32 %v10706, %v10853
          %v10870 = vlaneseq
          %v10871 = vshrl.u32 %v10870, 7
          %v10872 = vsub.s32 0, %v10871
          %v10873 = vrot.slane %v10849, %v10872
          %v10874 = vadd.f32 %v10854, %v10873
          %v10875 = vadd.f32 %v10855, %v10873
          %v10876 = vadd.f32 %v10856, %v10873
          %v10877 = vadd.f32 %v10857, %v10873
          %v10878 = vadd.f32 %v10858, %v10873
          %v10879 = vadd.f32 %v10859, %v10873
          %v10880 = vadd.f32 %v10860, %v10873
          %v10881 = vadd.f32 %v10861, %v10873
          %v10882 = vadd.f32 %v10862, %v10873
          %v10883 = vadd.f32 %v10863, %v10873
          %v10884 = vadd.f32 %v10864, %v10873
          %v10885 = vadd.f32 %v10865, %v10873
          %v10886 = vadd.f32 %v10866, %v10873
          %v10887 = vadd.f32 %v10867, %v10873
          %v10888 = vadd.f32 %v10868, %v10873
          %v10889 = vadd.f32 %v10869, %v10873
          %vm10890 = vcmp.gt.f32.partialorder %v10874, 0.0
          %vm10891 = vcmp.gt.f32.partialorder %v10875, 0.0
          %vm10892 = vcmp.gt.f32.partialorder %v10876, 0.0
          %vm10893 = vcmp.gt.f32.partialorder %v10877, 0.0
          %vm10894 = vcmp.gt.f32.partialorder %v10878, 0.0
          %vm10895 = vcmp.gt.f32.partialorder %v10879, 0.0
          %vm10896 = vcmp.gt.f32.partialorder %v10880, 0.0
          %vm10897 = vcmp.gt.f32.partialorder %v10881, 0.0
          %vm10898 = vcmp.gt.f32.partialorder %v10882, 0.0
          %vm10899 = vcmp.gt.f32.partialorder %v10883, 0.0
          %vm10900 = vcmp.gt.f32.partialorder %v10884, 0.0
          %vm10901 = vcmp.gt.f32.partialorder %v10885, 0.0
          %vm10902 = vcmp.gt.f32.partialorder %v10886, 0.0
          %vm10903 = vcmp.gt.f32.partialorder %v10887, 0.0
          %vm10904 = vcmp.gt.f32.partialorder %v10888, 0.0
          %vm10905 = vcmp.gt.f32.partialorder %v10889, 0.0
          %v10906 = vmul.f32 %v10874, 0.1
          %v10907 = vmul.f32 %v10875, 0.1
          %v10908 = vmul.f32 %v10876, 0.1
          %v10909 = vmul.f32 %v10877, 0.1
          %v10910 = vmul.f32 %v10878, 0.1
          %v10911 = vmul.f32 %v10879, 0.1
          %v10912 = vmul.f32 %v10880, 0.1
          %v10913 = vmul.f32 %v10881, 0.1
          %v10914 = vmul.f32 %v10882, 0.1
          %v10915 = vmul.f32 %v10883, 0.1
          %v10916 = vmul.f32 %v10884, 0.1
          %v10917 = vmul.f32 %v10885, 0.1
          %v10918 = vmul.f32 %v10886, 0.1
          %v10919 = vmul.f32 %v10887, 0.1
          %v10920 = vmul.f32 %v10888, 0.1
          %v10921 = vmul.f32 %v10889, 0.1
          %v10922 = vsel %vm10890, %v10874, %v10906
          %v10923 = vsel %vm10891, %v10875, %v10907
          %v10924 = vsel %vm10892, %v10876, %v10908
          %v10925 = vsel %vm10893, %v10877, %v10909
          %v10926 = vsel %vm10894, %v10878, %v10910
          %v10927 = vsel %vm10895, %v10879, %v10911
          %v10928 = vsel %vm10896, %v10880, %v10912
          %v10929 = vsel %vm10897, %v10881, %v10913
          %v10930 = vsel %vm10898, %v10882, %v10914
          %v10931 = vsel %vm10899, %v10883, %v10915
          %v10932 = vsel %vm10900, %v10884, %v10916
          %v10933 = vsel %vm10901, %v10885, %v10917
          %v10934 = vsel %vm10902, %v10886, %v10918
          %v10935 = vsel %vm10903, %v10887, %v10919
          %v10936 = vsel %vm10904, %v10888, %v10920
          %v10937 = vsel %vm10905, %v10889, %v10921
          %v10938 = vld [vmem:[#allocation11] sm:$0xff]
          %v10940 = vlaneseq
          %v10941 = vshrl.u32 %v10940, 7
          %v10942 = vsub.s32 0, %v10941
          %v10943 = vrot.slane %v10938, %v10942
          %v10944 = vlaneseq
          %v10945 = vshrl.u32 %v10944, 7
          %v10946 = vsub.s32 1, %v10945
          %v10947 = vrot.slane %v10938, %v10946
          %v10948 = vlaneseq
          %v10949 = vshrl.u32 %v10948, 7
          %v10950 = vsub.s32 2, %v10949
          %v10951 = vrot.slane %v10938, %v10950
          %v10952 = vlaneseq
          %v10953 = vshrl.u32 %v10952, 7
          %v10954 = vsub.s32 3, %v10953
          %v10955 = vrot.slane %v10938, %v10954
          %v10956 = vlaneseq
          %v10957 = vshrl.u32 %v10956, 7
          %v10958 = vsub.s32 4, %v10957
          %v10959 = vrot.slane %v10938, %v10958
          %v10960 = vlaneseq
          %v10961 = vshrl.u32 %v10960, 7
          %v10962 = vsub.s32 5, %v10961
          %v10963 = vrot.slane %v10938, %v10962
          %v10964 = vlaneseq
          %v10965 = vshrl.u32 %v10964, 7
          %v10966 = vsub.s32 6, %v10965
          %v10967 = vrot.slane %v10938, %v10966
          %v10968 = vlaneseq
          %v10969 = vshrl.u32 %v10968, 7
          %v10970 = vsub.s32 7, %v10969
          %v10971 = vrot.slane %v10938, %v10970
          %v10980 = vmul.f32 %v10922, %v10943
          %v10981 = vmul.f32 %v10923, %v10947
          %v10982 = vmul.f32 %v10924, %v10951
          %v10983 = vmul.f32 %v10925, %v10955
          %v10984 = vmul.f32 %v10926, %v10959
          %v10985 = vmul.f32 %v10927, %v10963
          %v10986 = vmul.f32 %v10928, %v10967
          %v10987 = vmul.f32 %v10929, %v10971
          %v10988 = vmul.f32 %v10930, %v10943
          %v10989 = vmul.f32 %v10931, %v10947
          %v10990 = vmul.f32 %v10932, %v10951
          %v10991 = vmul.f32 %v10933, %v10955
          %v10992 = vmul.f32 %v10934, %v10959
          %v10993 = vmul.f32 %v10935, %v10963
          %v10994 = vmul.f32 %v10936, %v10967
          %v10995 = vmul.f32 %v10937, %v10971
          %v10996 = vadd.f32 %v10980, %v10981
          %v10997 = vadd.f32 %v10996, %v10982
          %v10998 = vadd.f32 %v10997, %v10983
          %v10999 = vadd.f32 %v10998, %v10984
          %v11000 = vadd.f32 %v10999, %v10985
          %v11001 = vadd.f32 %v11000, %v10986
          %v11002 = vadd.f32 %v11001, %v10987
          %11003 = vadd.xlane.f32.xlu0 %v11002
          %v11004 = vpop.xlane.xlu0 %11003
          %v11005 = vadd.f32 %v10988, %v10989
          %v11006 = vadd.f32 %v11005, %v10990
          %v11007 = vadd.f32 %v11006, %v10991
          %v11008 = vadd.f32 %v11007, %v10992
          %v11009 = vadd.f32 %v11008, %v10993
          %v11010 = vadd.f32 %v11009, %v10994
          %v11011 = vadd.f32 %v11010, %v10995
          %11012 = vadd.xlane.f32.xlu0 %v11011
          %v11013 = vpop.xlane.xlu0 %11012
          %v11014 = vld [vmem:[#allocation3] sm:$0x1]
          %v11016 = vlaneseq
          %v11017 = vshrl.u32 %v11016, 7
          %v11018 = vsub.s32 0, %v11017
          %v11019 = vrot.slane %v11014, %v11018
          %v11021 = vadd.f32 %v11004, %v11019
          %v11022 = vadd.f32 %v11013, %v11019
          %v11023 = vxor.u32 %v11021, 2147483648
          %v11024 = vxor.u32 %v11022, 2147483648
          %v11025 = vmul.f32 %v11023, 1.442695
          %v11026 = vpow.pop %v11025
          %v11027 = vmul.f32 %v11024, 1.442695
          %v11028 = vpow.pop %v11027
          %v11029 = vadd.f32 %v11026, 1.0
          %v11030 = vadd.f32 %v11028, 1.0
          %v11031 = vrcp.pop %v11029
          %v11032 = vmul.f32 1.0, %v11031
          %v11033 = vrcp.pop %v11030
          %v11034 = vmul.f32 1.0, %v11033
          %vm11035 = vcmask 7168
          %11036 = vst.msk [vmem:[%s7] sm:$0xff] %vm11035, %v11032
          %11037 = vst.msk [vmem:[%s7 + $0x8] sm:$0xff] %vm11035, %v11034
        $region72: #{dcgan_netD_fc_forward.1} parent=47 // pred_fallthru
          _
        // Predicated region
        $region73: #{dcgan_netD_fc_forward.1} parent=47 // pred_check
          %p11038 = pneg %p188
        $region74: #{dcgan_netD_fc_forward.1} parent=47 // pred_check_branch
          %11040 = sbr.rel (%p11038) target = $region76
        $region75: #{dcgan_netD_fc_forward.1} parent=47 // pred_region
          _
        $region76: #{dcgan_netD_fc_forward.1} parent=47 // pred_fallthru
          _
        // Predicated region
        $region77: #{dcgan_netD_fc_forward.1} parent=47 // pred_check
          %p11041 = pneg %p188
        $region78: #{dcgan_netD_fc_forward.1} parent=47 // pred_check_branch
          %11043 = sbr.rel (%p11041) target = $region80
        $region79: #{dcgan_netD_fc_forward.1} parent=47 // pred_region
          _
        $region80: #{dcgan_netD_fc_forward.1} parent=47 // pred_fallthru
          _
      $region48: #{dcgan_netD_fc_forward.1} parent=5 // pred_fallthru
        _
      %p11044 = scmp.le.s32.totalorder 2, %s18
      // Predicated region
      $region81: #{dcgan_netD_fc_forward.1} parent=5 // pred_check
        %p11045 = pneg %p11044
      $region82: #{dcgan_netD_fc_forward.1} parent=5 // pred_check_branch
        %11047 = sbr.rel (%p11045) target = $region84
      $region83: #{dcgan_netD_fc_forward.1} parent=5 // pred_region
        %s11048 = ssub.s32 %s18, 2
      $region84: #{dcgan_netD_fc_forward.1} parent=5 // pred_fallthru
        _
    $region6: #{dcgan_netD_fc_forward.1} parent=1 // loop_footer
      %s22 = sadd.s32 1, %s18
    $region7: #{dcgan_netD_fc_forward.1} parent=1 // loop_footer_branch
      %17 = sbr.rel target = $region3
    $region8: #{dcgan_netD_fc_forward.1} parent=1 // loop_exit
      _
    %11049 = vsyncpa [#allocation5], 1
    %s11050 = scalar_lea.sflag [#allocation5], 1
    %11051 = vsyncpa %s11050, 1
    %11052 = vsyncpa [#allocation7], 1
    %11053 = vsyncpa [#allocation10], 1

</llo_original>
